<compile_context>
chip_gen: v6e
topology: v6e:2x2x1
jax: 0.10.0
libtpu: 0.0.40
codegen_flags: <defaults>
</compile_context>

<pallas_src>
import numpy as np
import jax
import jax.numpy as jnp
from jax.experimental import pallas as pl
from jax.experimental.pallas import tpu as pltpu


# ----------------------------------------------------------------------------
# Host-side helpers
# ----------------------------------------------------------------------------
def _round_up(x, m):
    return (x + m - 1) // m * m


def _pick_row_tile(h, target):
    """Largest divisor of h that is <= target (conv1 rows per tile)."""
    target = max(1, min(h, target))
    for th in range(target, 0, -1):
        if h % th == 0:
            return th
    return 1


def bilinear_taps(l_in, l_out):
    """Per-output-position (i0, frac) for 1-D bilinear, align_corners=True."""
    taps = []
    for p in range(l_out):
        if l_in == 1 or l_out == 1:
            taps.append((0, 0.0))
            continue
        src = p * (l_in - 1) / (l_out - 1)
        i0 = int(np.floor(src))
        if i0 >= l_in - 1:
            i0, f = l_in - 1, 0.0
        else:
            f = float(src - i0)
        taps.append((i0, f))
    return taps


def bilinear_matrix(l_in, l_out):
    a = np.zeros((l_out, l_in), np.float32)
    for p, (i0, f) in enumerate(bilinear_taps(l_in, l_out)):
        a[p, i0] += 1.0 - f
        if f > 0.0:
            a[p, i0 + 1] += f
    return a


def _h_blend_table(h, th, r_u):
    """Per (tile, local upsampled row) 2-tap H-blend weights, flattened f32.

    Local u-row `ul` of tile `t` blends local conv1 rows (ul//2, ul//2+1);
    rows that are conv2 zero padding (image border) or the slack row get
    weights (0, 0)."""
    ho = 2 * h
    t_tiles = h // th
    taps = bilinear_taps(h, ho)
    tbl = np.zeros((t_tiles, r_u, 2), np.float32)
    for t in range(t_tiles):
        for ul in range(r_u):
            q = 2 * t * th - 1 + ul          # global upsampled row
            if ul >= 2 * th + 2 or q < 0 or q >= ho:
                continue                     # zero-pad row / slack row
            i0, f = taps[q]
            gl_lo = t * th - 1 + ul // 2     # global conv1 row feeding tap 0
            w = [0.0, 0.0]
            pos0 = i0 - gl_lo
            assert pos0 in (0, 1), (t, ul, q, i0, gl_lo)
            w[pos0] += 1.0 - f
            if f > 0.0:
                pos1 = pos0 + 1
                assert pos1 in (0, 1), (t, ul, q, i0, gl_lo)
                w[pos1] += f
            tbl[t, ul, 0], tbl[t, ul, 1] = w
    return jnp.asarray(tbl.reshape(-1))


def _vmem_limit_bytes():
    """Generation-aware VMEM limit (leave headroom on v7x's 64 MiB)."""
    cap = None
    try:  # capacity query only; fall back to a conservative value if missing
        cap = getattr(pltpu.get_tpu_info(), "vmem_capacity_bytes", None)
    except Exception:
        cap = None
    if not cap:
        cap = 64 * 1024 * 1024
    if cap <= 64 * 1024 * 1024:                       # v7x
        return int(cap * 0.65)
    return min(int(cap * 0.85), 112 * 1024 * 1024)    # v5e / v6e


# ----------------------------------------------------------------------------
# Pallas kernel (one image x one row tile per grid step)
# ----------------------------------------------------------------------------
def _make_head_kernel(C1, C1h, C2, TH, Wp1, Wp2):
    R_in = TH + 5               # input rows per tile (tile + conv halos + slack)
    R_o1 = TH + 2               # conv1 rows per tile (tile + 1-row halo)
    R_u = 2 * TH + 3            # upsampled rows per tile (+conv2 pads + slack)
    L_in = R_in * Wp1
    L_s1 = (TH + 3) * Wp1       # conv1 per-dy matmul lane extent
    L_o1 = R_o1 * Wp1
    L_s2 = (2 * TH + 1) * Wp2   # conv2 per-dy matmul lane extent
    L_o2 = 2 * TH * Wp2         # output lanes per tile (lane-dense store)

    def kernel(hw_ref, x_hbm, w1_ref, b1_ref, aw_ref, w2_ref, b2_ref,
               w3_ref, b3_ref, o_ref, xp_ref, u_ref, sem):
        f32, bf16 = jnp.float32, jnp.bfloat16
        n = pl.program_id(0)
        t = pl.program_id(1)

        # ---- fetch this tile's halo'd input rows: HBM -> VMEM -------------
        start = pl.multiple_of(t * (TH * Wp1), 128)
        cp = pltpu.make_async_copy(x_hbm.at[n, :, pl.ds(start, L_in)],
                                   xp_ref, sem)
        cp.start()
        cp.wait()
        # TODO(synk): double-buffer this DMA across grid steps to hide it
        # (needs care with megacore-partitioned parallel grid axes).

        # ---- conv1 (3x3, pad=1): per-dy fused matmul, output-side dx shifts
        acc1 = None
        for dy in range(3):
            y = jnp.dot(w1_ref[dy],                          # (3*C1h, C1)
                        xp_ref[:, dy * Wp1: dy * Wp1 + L_s1],
                        preferred_element_type=f32)          # (3*C1h, L_s1)
            for dx in range(3):
                sl = y[dx * C1h:(dx + 1) * C1h, dx: dx + L_o1]
                acc1 = sl if acc1 is None else acc1 + sl
        a1 = (acc1 + b1_ref[...]).astype(bf16)               # (C1h, L_o1)

        # ---- bilinear x2 (align_corners=True), separable -------------------
        # H: 2-tap bf16 blend per upsampled row (weights from SMEM).
        # W: ONE stacked matmul against the (Wp1, Wp2) upsample matrix,
        #    written directly into the u scratch (zero-pad rows via 0 weights).
        base = t * (R_u * 2)
        blended = []
        for ul in range(R_u):
            r_lo = min(ul // 2, R_o1 - 1)
            r_hi = min(ul // 2 + 1, R_o1 - 1)
            wlo = hw_ref[base + 2 * ul].astype(bf16)
            whi = hw_ref[base + 2 * ul + 1].astype(bf16)
            blended.append(wlo * a1[:, r_lo * Wp1:(r_lo + 1) * Wp1]
                           + whi * a1[:, r_hi * Wp1:(r_hi + 1) * Wp1])
        stacked = jnp.concatenate(blended, axis=0)           # (R_u*C1h, Wp1)
        up = jnp.dot(stacked, aw_ref[...],
                     preferred_element_type=f32)             # (R_u*C1h, Wp2)
        for ul in range(R_u):
            u_ref[:, ul * Wp2:(ul + 1) * Wp2] = (
                up[ul * C1h:(ul + 1) * C1h, :].astype(bf16))

        # ---- conv2 (3x3, pad=1) + ReLU: same fused structure ---------------
        acc2 = None
        for dy in range(3):
            y = jnp.dot(w2_ref[dy],                          # (3*C2, C1h)
                        u_ref[:, dy * Wp2: dy * Wp2 + L_s2],
                        preferred_element_type=f32)          # (3*C2, L_s2)
            for dx in range(3):
                sl = y[dx * C2:(dx + 1) * C2, dx: dx + L_o2]
                acc2 = sl if acc2 is None else acc2 + sl
        a2 = jnp.maximum(acc2 + b2_ref[...], 0.0)            # (C2, L_o2) f32

        # ---- conv3 (1x1): per-channel weighted sum on the VPU --------------
        o = jnp.sum(a2 * w3_ref[...], axis=0, keepdims=True) + b3_ref[...]
        o_ref[0] = o.astype(o_ref.dtype)                     # (1, L_o2) store

    return kernel, L_in, R_u, L_o2


# ----------------------------------------------------------------------------
# Wrapper
# ----------------------------------------------------------------------------
def head_depth_forward(x_nchw, w1, b1, w2, b2, w3, b3, *, row_tile=16):
    """x_nchw: (N, F, H, W) f32.  Weights in HWIO: w1 (3,3,F,F//2),
    w2 (3,3,F//2,32), w3 (32,1), biases 1-D.  Returns (N, 1, 2H, 2W) f32."""
    N, C1, H, W = map(int, x_nchw.shape)
    C1h = int(w1.shape[-1])
    C2 = int(w2.shape[-1])                      # 32
    Ho, Wo = 2 * H, 2 * W
    TH = _pick_row_tile(H, row_tile)
    T = H // TH
    Wp1 = _round_up(W + 2, 128)                 # padded widths (lane-aligned)
    Wp2 = _round_up(Wo + 2, 128)

    kernel, L_in, R_u, L_o2 = _make_head_kernel(C1, C1h, C2, TH, Wp1, Wp2)

    f32, bf16 = jnp.float32, jnp.bfloat16
    # Per-dy stacked conv weights: rows [dx*Cout:(dx+1)*Cout] = w[dy, dx].T
    w1s = jnp.transpose(jnp.asarray(w1, f32), (0, 1, 3, 2)).reshape(
        3, 3 * C1h, C1).astype(bf16)
    w2s = jnp.transpose(jnp.asarray(w2, f32), (0, 1, 3, 2)).reshape(
        3, 3 * C2, C1h).astype(bf16)
    b1c = jnp.asarray(b1, f32).reshape(C1h, 1)
    b2c = jnp.asarray(b2, f32).reshape(C2, 1)
    w3c = jnp.asarray(w3, f32).reshape(C2, 1)
    b3c = jnp.asarray(b3, f32).reshape(1, 1)

    # Width-upsample matrix (Wp1, Wp2): conv1 column j lives at lane j; the
    # upsampled column q is emitted at lane q+1 (lane 0 / lanes > Wo are the
    # conv2 zero-pad columns); all-zero rows >= W kill conv1 junk lanes.
    aw_np = np.zeros((Wp1, Wp2), np.float32)
    for q, (j0, f) in enumerate(bilinear_taps(W, Wo)):
        aw_np[j0, q + 1] += 1.0 - f
        if f > 0.0:
            aw_np[j0 + 1, q + 1] += f
    awT = jnp.asarray(aw_np, bf16)

    hwt = _h_blend_table(H, TH, R_u)            # SMEM scalar-prefetch table

    # Input: NCHW, zero-padded (2 rows top, 3 bottom, 1 col left), bf16 slab.
    # TODO(synk): fold this pad/cast into the kernel's DMA (per-row copies
    # into a zero-initialized scratch) to drop one HBM round trip on v5e.
    xpad = jnp.pad(jnp.asarray(x_nchw, f32),
                   ((0, 0), (0, 0), (2, 3), (1, Wp1 - W - 1)))
    xflat = xpad.reshape(N, C1, (H + 5) * Wp1).astype(bf16)

    grid_spec = pltpu.PrefetchScalarGridSpec(
        num_scalar_prefetch=1,
        grid=(N, T),
        in_specs=[
            pl.BlockSpec(memory_space=pl.ANY),                   # x (HBM)
            pl.BlockSpec((3, 3 * C1h, C1), lambda n, t, hw: (0, 0, 0)),
            pl.BlockSpec((C1h, 1), lambda n, t, hw: (0, 0)),
            pl.BlockSpec((Wp1, Wp2), lambda n, t, hw: (0, 0)),
            pl.BlockSpec((3, 3 * C2, C1h), lambda n, t, hw: (0, 0, 0)),
            pl.BlockSpec((C2, 1), lambda n, t, hw: (0, 0)),
            pl.BlockSpec((C2, 1), lambda n, t, hw: (0, 0)),
            pl.BlockSpec((1, 1), lambda n, t, hw: (0, 0)),
        ],
        out_specs=pl.BlockSpec((1, 1, L_o2), lambda n, t, hw: (n, 0, t)),
        scratch_shapes=[
            pltpu.VMEM((C1, L_in), bf16),          # halo'd input rows
            pltpu.VMEM((C1h, R_u * Wp2), bf16),    # upsampled map (tile)
            pltpu.SemaphoreType.DMA,
        ],
    )

    out = pl.pallas_call(
        kernel,
        out_shape=jax.ShapeDtypeStruct((N, 1, Ho * Wp2), f32),
        grid_spec=grid_spec,
        compiler_params=pltpu.CompilerParams(
            dimension_semantics=("parallel", "parallel"),
            vmem_limit_bytes=_vmem_limit_bytes()),
    )(hwt, xflat, w1s, b1c, awT, w2s, b2c, w3c, b3c)

    out = out.reshape(N, Ho, Wp2)[:, :, :Wo]
    return out[:, None, :, :]                      # NCHW: (N, 1, 2H, 2W)


# ----------------------------------------------------------------------------
# Pure-JAX reference (correctness check)
# ----------------------------------------------------------------------------
def head_depth_reference(x_nchw, w1, b1, w2, b2, w3, b3):
    N, C1, H, W = x_nchw.shape
    Ah = jnp.asarray(bilinear_matrix(H, 2 * H))
    Aw = jnp.asarray(bilinear_matrix(W, 2 * W))
    dn = ("NHWC", "HWIO", "NHWC")
    x = jnp.transpose(x_nchw, (0, 2, 3, 1)).astype(jnp.float32)
    a1 = jax.lax.conv_general_dilated(x, w1, (1, 1), "SAME",
                                      dimension_numbers=dn) + b1
    u = jnp.einsum("ph,qw,nhwc->npqc", Ah, Aw, a1)
    a2 = jax.nn.relu(jax.lax.conv_general_dilated(u, w2, (1, 1), "SAME",
                                                  dimension_numbers=dn) + b2)
    o = jnp.einsum("nhwc,co->nhwo", a2, w3) + b3
    return jnp.transpose(o, (0, 3, 1, 2))


if __name__ == "__main__":
    # Small deterministic config: features=8 -> conv chain 8 -> 4 -> 32 -> 1.
    # row_tile=8 so H=16 exercises the multi-tile (grid) path.
    N, F, H, W = 2, 8, 16, 16
    key = jax.random.PRNGKey(0)
    k = jax.random.split(key, 7)

    x = jax.random.normal(k[0], (N, F, H, W), jnp.float32)
    w1 = jax.random.normal(k[1], (3, 3, F, F // 2), jnp.float32) * 0.1  # HWIO
    b1 = jax.random.normal(k[2], (F // 2,), jnp.float32) * 0.1
    w2 = jax.random.normal(k[3], (3, 3, F // 2, 32), jnp.float32) * 0.1
    b2 = jax.random.normal(k[4], (32,), jnp.float32) * 0.1
    w3 = jax.random.normal(k[5], (32, 1), jnp.float32) * 0.1
    b3 = jax.random.normal(k[6], (1,), jnp.float32) * 0.1

    out = jax.block_until_ready(
        head_depth_forward(x, w1, b1, w2, b2, w3, b3, row_tile=8))
    ref = jax.block_until_ready(head_depth_reference(x, w1, b1, w2, b2, w3, b3))

    assert out.shape == (N, 1, 2 * H, 2 * W), out.shape
    max_err = float(np.max(np.abs(np.asarray(out) - np.asarray(ref))))
    assert np.allclose(np.asarray(out), np.asarray(ref), atol=3e-2, rtol=3e-2), (
        "max abs diff %e" % max_err)

    print("KERNEL_OK")
</pallas_src>

<mosaic_0001>
module attributes {stable_mosaic.version = 11 : i64} {
  func.func @kernel(%arg0: i32, %arg1: i32, %arg2: memref<76xf32, #tpu.memory_space<smem>>, %arg3: memref<2x8x2688xbf16, #tpu.memory_space<any>>, %arg4: memref<3x12x8xbf16, #tpu.memory_space<vmem>>, %arg5: memref<4x1xf32, #tpu.memory_space<vmem>>, %arg6: memref<128x128xbf16, #tpu.memory_space<vmem>>, %arg7: memref<3x96x4xbf16, #tpu.memory_space<vmem>>, %arg8: memref<32x1xf32, #tpu.memory_space<vmem>>, %arg9: memref<32x1xf32, #tpu.memory_space<vmem>>, %arg10: memref<1x1xf32, #tpu.memory_space<vmem>>, %arg11: memref<1x1x2048xf32, #tpu.memory_space<vmem>>, %arg12: memref<8x1664xbf16, #tpu.memory_space<vmem>>, %arg13: memref<4x2432xbf16, #tpu.memory_space<vmem>>, %arg14: memref<!tpu.dma_semaphore, #tpu.memory_space<semaphore_mem>>) attributes {dimension_semantics = [#tpu.dimension_semantics<parallel>, #tpu.dimension_semantics<parallel>], iteration_bounds = array<i64: 2, 2>, scalar_prefetch = 1 : i64, scratch_operands = 3 : i64, tpu.core_type = #tpu.core_type<tc>, window_params = [{}, {pipeline_mode = #tpu.pipeline_mode<synchronous>, transform_indices = @transform_1, window_bounds = array<i64: 3, 12, 8>}, {pipeline_mode = #tpu.pipeline_mode<synchronous>, transform_indices = @transform_2, window_bounds = array<i64: 4, 1>}, {pipeline_mode = #tpu.pipeline_mode<synchronous>, transform_indices = @transform_3, window_bounds = array<i64: 128, 128>}, {pipeline_mode = #tpu.pipeline_mode<synchronous>, transform_indices = @transform_4, window_bounds = array<i64: 3, 96, 4>}, {pipeline_mode = #tpu.pipeline_mode<synchronous>, transform_indices = @transform_5, window_bounds = array<i64: 32, 1>}, {pipeline_mode = #tpu.pipeline_mode<synchronous>, transform_indices = @transform_6, window_bounds = array<i64: 32, 1>}, {pipeline_mode = #tpu.pipeline_mode<synchronous>, transform_indices = @transform_7, window_bounds = array<i64: 1, 1>}, {transform_indices = @transform_8, window_bounds = array<i64: 1, 1, 2048>}]} {
    %c1024_i32 = arith.constant 1024 : i32
    %0 = arith.muli %arg1, %c1024_i32 : i32
    %1 = tpu.assume_multiple %0, 128 : i32
    %c0_i32 = arith.constant 0 : i32
    %2 = tpu.memref_slice %arg3[%arg0, %c0_i32, %1] : memref<2x8x2688xbf16, #tpu.memory_space<any>> -> memref<1x8x1664xbf16, #tpu.memory_space<any>>
    %3 = tpu.memref_squeeze %2 : memref<1x8x1664xbf16, #tpu.memory_space<any>> -> memref<8x1664xbf16, #tpu.memory_space<any>>
    tpu.enqueue_dma source(%3 : memref<8x1664xbf16, #tpu.memory_space<any>>) target(%arg12 : memref<8x1664xbf16, #tpu.memory_space<vmem>>) target_semaphore(%arg14 : memref<!tpu.dma_semaphore, #tpu.memory_space<semaphore_mem>>)
    %c0_i32_0 = arith.constant 0 : i32
    %4 = tpu.memref_slice %arg3[%arg0, %c0_i32_0, %1] : memref<2x8x2688xbf16, #tpu.memory_space<any>> -> memref<1x8x1664xbf16, #tpu.memory_space<any>>
    %5 = tpu.memref_squeeze %4 : memref<1x8x1664xbf16, #tpu.memory_space<any>> -> memref<8x1664xbf16, #tpu.memory_space<any>>
    tpu.wait_dma2 semaphore(%arg14 : memref<!tpu.dma_semaphore, #tpu.memory_space<semaphore_mem>>) src(%5 : memref<8x1664xbf16, #tpu.memory_space<any>>) dst(%arg12 : memref<8x1664xbf16, #tpu.memory_space<vmem>>)
    %c0 = arith.constant 0 : index
    %c0_1 = arith.constant 0 : index
    %c0_2 = arith.constant 0 : index
    %6 = vector.load %arg4[%c0, %c0_1, %c0_2] : memref<3x12x8xbf16, #tpu.memory_space<vmem>>, vector<1x12x8xbf16>
    %7 = vector.shape_cast %6 : vector<1x12x8xbf16> to vector<12x8xbf16>
    %c0_3 = arith.constant 0 : index
    %c0_4 = arith.constant 0 : index
    %8 = vector.load %arg12[%c0_3, %c0_4] : memref<8x1664xbf16, #tpu.memory_space<vmem>>, vector<8x1408xbf16>
    %cst = arith.constant dense<0.000000e+00> : vector<12x1408xf32>
    %9 = tpu.matmul %7, %8, %cst {dimension_numbers = #tpu.dot_dimension_numbers<[1], [0], [0], [1], [0, 0, 1, 1], [], []>} : vector<12x8xbf16>, vector<8x1408xbf16>, vector<12x1408xf32> -> vector<12x1408xf32>
    %10 = vector.extract_strided_slice %9 {offsets = [0, 0], sizes = [4, 1280], strides = [1, 1]} : vector<12x1408xf32> to vector<4x1280xf32>
    %11 = vector.extract_strided_slice %9 {offsets = [4, 1], sizes = [4, 1280], strides = [1, 1]} : vector<12x1408xf32> to vector<4x1280xf32>
    %12 = arith.addf %10, %11 : vector<4x1280xf32>
    %13 = vector.extract_strided_slice %9 {offsets = [8, 2], sizes = [4, 1280], strides = [1, 1]} : vector<12x1408xf32> to vector<4x1280xf32>
    %14 = arith.addf %12, %13 : vector<4x1280xf32>
    %c1 = arith.constant 1 : index
    %c0_5 = arith.constant 0 : index
    %c0_6 = arith.constant 0 : index
    %15 = vector.load %arg4[%c1, %c0_5, %c0_6] : memref<3x12x8xbf16, #tpu.memory_space<vmem>>, vector<1x12x8xbf16>
    %16 = vector.shape_cast %15 : vector<1x12x8xbf16> to vector<12x8xbf16>
    %c0_7 = arith.constant 0 : index
    %c128 = arith.constant 128 : index
    %17 = vector.load %arg12[%c0_7, %c128] : memref<8x1664xbf16, #tpu.memory_space<vmem>>, vector<8x1408xbf16>
    %cst_8 = arith.constant dense<0.000000e+00> : vector<12x1408xf32>
    %18 = tpu.matmul %16, %17, %cst_8 {dimension_numbers = #tpu.dot_dimension_numbers<[1], [0], [0], [1], [0, 0, 1, 1], [], []>} : vector<12x8xbf16>, vector<8x1408xbf16>, vector<12x1408xf32> -> vector<12x1408xf32>
    %19 = vector.extract_strided_slice %18 {offsets = [0, 0], sizes = [4, 1280], strides = [1, 1]} : vector<12x1408xf32> to vector<4x1280xf32>
    %20 = arith.addf %14, %19 : vector<4x1280xf32>
    %21 = vector.extract_strided_slice %18 {offsets = [4, 1], sizes = [4, 1280], strides = [1, 1]} : vector<12x1408xf32> to vector<4x1280xf32>
    %22 = arith.addf %20, %21 : vector<4x1280xf32>
    %23 = vector.extract_strided_slice %18 {offsets = [8, 2], sizes = [4, 1280], strides = [1, 1]} : vector<12x1408xf32> to vector<4x1280xf32>
    %24 = arith.addf %22, %23 : vector<4x1280xf32>
    %c2 = arith.constant 2 : index
    %c0_9 = arith.constant 0 : index
    %c0_10 = arith.constant 0 : index
    %25 = vector.load %arg4[%c2, %c0_9, %c0_10] : memref<3x12x8xbf16, #tpu.memory_space<vmem>>, vector<1x12x8xbf16>
    %26 = vector.shape_cast %25 : vector<1x12x8xbf16> to vector<12x8xbf16>
    %c0_11 = arith.constant 0 : index
    %c256 = arith.constant 256 : index
    %27 = vector.load %arg12[%c0_11, %c256] : memref<8x1664xbf16, #tpu.memory_space<vmem>>, vector<8x1408xbf16>
    %cst_12 = arith.constant dense<0.000000e+00> : vector<12x1408xf32>
    %28 = tpu.matmul %26, %27, %cst_12 {dimension_numbers = #tpu.dot_dimension_numbers<[1], [0], [0], [1], [0, 0, 1, 1], [], []>} : vector<12x8xbf16>, vector<8x1408xbf16>, vector<12x1408xf32> -> vector<12x1408xf32>
    %29 = vector.extract_strided_slice %28 {offsets = [0, 0], sizes = [4, 1280], strides = [1, 1]} : vector<12x1408xf32> to vector<4x1280xf32>
    %30 = arith.addf %24, %29 : vector<4x1280xf32>
    %31 = vector.extract_strided_slice %28 {offsets = [4, 1], sizes = [4, 1280], strides = [1, 1]} : vector<12x1408xf32> to vector<4x1280xf32>
    %32 = arith.addf %30, %31 : vector<4x1280xf32>
    %33 = vector.extract_strided_slice %28 {offsets = [8, 2], sizes = [4, 1280], strides = [1, 1]} : vector<12x1408xf32> to vector<4x1280xf32>
    %34 = arith.addf %32, %33 : vector<4x1280xf32>
    %c0_13 = arith.constant 0 : index
    %c0_14 = arith.constant 0 : index
    %35 = vector.load %arg5[%c0_13, %c0_14] : memref<4x1xf32, #tpu.memory_space<vmem>>, vector<4x1xf32>
    %36 = vector.broadcast %35 : vector<4x1xf32> to vector<4x1280xf32>
    %37 = arith.addf %34, %36 : vector<4x1280xf32>
    %38 = arith.truncf %37 : vector<4x1280xf32> to vector<4x1280xbf16>
    %c38_i32 = arith.constant 38 : i32
    %39 = arith.muli %arg1, %c38_i32 : i32
    %c0_i32_15 = arith.constant 0 : i32
    %40 = arith.addi %39, %c0_i32_15 : i32
    %41 = arith.index_cast %40 : i32 to index
    %42 = memref.load %arg2[%41] : memref<76xf32, #tpu.memory_space<smem>>
    %43 = arith.truncf %42 : f32 to bf16
    %c0_i32_16 = arith.constant 0 : i32
    %44 = arith.addi %39, %c0_i32_16 : i32
    %c1_i32 = arith.constant 1 : i32
    %45 = arith.addi %44, %c1_i32 : i32
    %46 = arith.index_cast %45 : i32 to index
    %47 = memref.load %arg2[%46] : memref<76xf32, #tpu.memory_space<smem>>
    %48 = arith.truncf %47 : f32 to bf16
    %49 = vector.extract_strided_slice %38 {offsets = [0, 0], sizes = [4, 128], strides = [1, 1]} : vector<4x1280xbf16> to vector<4x128xbf16>
    %50 = vector.broadcast %43 : bf16 to vector<4x128xbf16>
    %51 = arith.mulf %50, %49 : vector<4x128xbf16>
    %52 = vector.extract_strided_slice %38 {offsets = [0, 128], sizes = [4, 128], strides = [1, 1]} : vector<4x1280xbf16> to vector<4x128xbf16>
    %53 = vector.broadcast %48 : bf16 to vector<4x128xbf16>
    %54 = arith.mulf %53, %52 : vector<4x128xbf16>
    %55 = arith.addf %51, %54 : vector<4x128xbf16>
    %c2_i32 = arith.constant 2 : i32
    %56 = arith.addi %39, %c2_i32 : i32
    %57 = arith.index_cast %56 : i32 to index
    %58 = memref.load %arg2[%57] : memref<76xf32, #tpu.memory_space<smem>>
    %59 = arith.truncf %58 : f32 to bf16
    %c2_i32_17 = arith.constant 2 : i32
    %60 = arith.addi %39, %c2_i32_17 : i32
    %c1_i32_18 = arith.constant 1 : i32
    %61 = arith.addi %60, %c1_i32_18 : i32
    %62 = arith.index_cast %61 : i32 to index
    %63 = memref.load %arg2[%62] : memref<76xf32, #tpu.memory_space<smem>>
    %64 = arith.truncf %63 : f32 to bf16
    %65 = vector.extract_strided_slice %38 {offsets = [0, 0], sizes = [4, 128], strides = [1, 1]} : vector<4x1280xbf16> to vector<4x128xbf16>
    %66 = vector.broadcast %59 : bf16 to vector<4x128xbf16>
    %67 = arith.mulf %66, %65 : vector<4x128xbf16>
    %68 = vector.extract_strided_slice %38 {offsets = [0, 128], sizes = [4, 128], strides = [1, 1]} : vector<4x1280xbf16> to vector<4x128xbf16>
    %69 = vector.broadcast %64 : bf16 to vector<4x128xbf16>
    %70 = arith.mulf %69, %68 : vector<4x128xbf16>
    %71 = arith.addf %67, %70 : vector<4x128xbf16>
    %c4_i32 = arith.constant 4 : i32
    %72 = arith.addi %39, %c4_i32 : i32
    %73 = arith.index_cast %72 : i32 to index
    %74 = memref.load %arg2[%73] : memref<76xf32, #tpu.memory_space<smem>>
    %75 = arith.truncf %74 : f32 to bf16
    %c4_i32_19 = arith.constant 4 : i32
    %76 = arith.addi %39, %c4_i32_19 : i32
    %c1_i32_20 = arith.constant 1 : i32
    %77 = arith.addi %76, %c1_i32_20 : i32
    %78 = arith.index_cast %77 : i32 to index
    %79 = memref.load %arg2[%78] : memref<76xf32, #tpu.memory_space<smem>>
    %80 = arith.truncf %79 : f32 to bf16
    %81 = vector.extract_strided_slice %38 {offsets = [0, 128], sizes = [4, 128], strides = [1, 1]} : vector<4x1280xbf16> to vector<4x128xbf16>
    %82 = vector.broadcast %75 : bf16 to vector<4x128xbf16>
    %83 = arith.mulf %82, %81 : vector<4x128xbf16>
    %84 = vector.extract_strided_slice %38 {offsets = [0, 256], sizes = [4, 128], strides = [1, 1]} : vector<4x1280xbf16> to vector<4x128xbf16>
    %85 = vector.broadcast %80 : bf16 to vector<4x128xbf16>
    %86 = arith.mulf %85, %84 : vector<4x128xbf16>
    %87 = arith.addf %83, %86 : vector<4x128xbf16>
    %c6_i32 = arith.constant 6 : i32
    %88 = arith.addi %39, %c6_i32 : i32
    %89 = arith.index_cast %88 : i32 to index
    %90 = memref.load %arg2[%89] : memref<76xf32, #tpu.memory_space<smem>>
    %91 = arith.truncf %90 : f32 to bf16
    %c6_i32_21 = arith.constant 6 : i32
    %92 = arith.addi %39, %c6_i32_21 : i32
    %c1_i32_22 = arith.constant 1 : i32
    %93 = arith.addi %92, %c1_i32_22 : i32
    %94 = arith.index_cast %93 : i32 to index
    %95 = memref.load %arg2[%94] : memref<76xf32, #tpu.memory_space<smem>>
    %96 = arith.truncf %95 : f32 to bf16
    %97 = vector.extract_strided_slice %38 {offsets = [0, 128], sizes = [4, 128], strides = [1, 1]} : vector<4x1280xbf16> to vector<4x128xbf16>
    %98 = vector.broadcast %91 : bf16 to vector<4x128xbf16>
    %99 = arith.mulf %98, %97 : vector<4x128xbf16>
    %100 = vector.extract_strided_slice %38 {offsets = [0, 256], sizes = [4, 128], strides = [1, 1]} : vector<4x1280xbf16> to vector<4x128xbf16>
    %101 = vector.broadcast %96 : bf16 to vector<4x128xbf16>
    %102 = arith.mulf %101, %100 : vector<4x128xbf16>
    %103 = arith.addf %99, %102 : vector<4x128xbf16>
    %c8_i32 = arith.constant 8 : i32
    %104 = arith.addi %39, %c8_i32 : i32
    %105 = arith.index_cast %104 : i32 to index
    %106 = memref.load %arg2[%105] : memref<76xf32, #tpu.memory_space<smem>>
    %107 = arith.truncf %106 : f32 to bf16
    %c8_i32_23 = arith.constant 8 : i32
    %108 = arith.addi %39, %c8_i32_23 : i32
    %c1_i32_24 = arith.constant 1 : i32
    %109 = arith.addi %108, %c1_i32_24 : i32
    %110 = arith.index_cast %109 : i32 to index
    %111 = memref.load %arg2[%110] : memref<76xf32, #tpu.memory_space<smem>>
    %112 = arith.truncf %111 : f32 to bf16
    %113 = vector.extract_strided_slice %38 {offsets = [0, 256], sizes = [4, 128], strides = [1, 1]} : vector<4x1280xbf16> to vector<4x128xbf16>
    %114 = vector.broadcast %107 : bf16 to vector<4x128xbf16>
    %115 = arith.mulf %114, %113 : vector<4x128xbf16>
    %116 = vector.extract_strided_slice %38 {offsets = [0, 384], sizes = [4, 128], strides = [1, 1]} : vector<4x1280xbf16> to vector<4x128xbf16>
    %117 = vector.broadcast %112 : bf16 to vector<4x128xbf16>
    %118 = arith.mulf %117, %116 : vector<4x128xbf16>
    %119 = arith.addf %115, %118 : vector<4x128xbf16>
    %c10_i32 = arith.constant 10 : i32
    %120 = arith.addi %39, %c10_i32 : i32
    %121 = arith.index_cast %120 : i32 to index
    %122 = memref.load %arg2[%121] : memref<76xf32, #tpu.memory_space<smem>>
    %123 = arith.truncf %122 : f32 to bf16
    %c10_i32_25 = arith.constant 10 : i32
    %124 = arith.addi %39, %c10_i32_25 : i32
    %c1_i32_26 = arith.constant 1 : i32
    %125 = arith.addi %124, %c1_i32_26 : i32
    %126 = arith.index_cast %125 : i32 to index
    %127 = memref.load %arg2[%126] : memref<76xf32, #tpu.memory_space<smem>>
    %128 = arith.truncf %127 : f32 to bf16
    %129 = vector.extract_strided_slice %38 {offsets = [0, 256], sizes = [4, 128], strides = [1, 1]} : vector<4x1280xbf16> to vector<4x128xbf16>
    %130 = vector.broadcast %123 : bf16 to vector<4x128xbf16>
    %131 = arith.mulf %130, %129 : vector<4x128xbf16>
    %132 = vector.extract_strided_slice %38 {offsets = [0, 384], sizes = [4, 128], strides = [1, 1]} : vector<4x1280xbf16> to vector<4x128xbf16>
    %133 = vector.broadcast %128 : bf16 to vector<4x128xbf16>
    %134 = arith.mulf %133, %132 : vector<4x128xbf16>
    %135 = arith.addf %131, %134 : vector<4x128xbf16>
    %c12_i32 = arith.constant 12 : i32
    %136 = arith.addi %39, %c12_i32 : i32
    %137 = arith.index_cast %136 : i32 to index
    %138 = memref.load %arg2[%137] : memref<76xf32, #tpu.memory_space<smem>>
    %139 = arith.truncf %138 : f32 to bf16
    %c12_i32_27 = arith.constant 12 : i32
    %140 = arith.addi %39, %c12_i32_27 : i32
    %c1_i32_28 = arith.constant 1 : i32
    %141 = arith.addi %140, %c1_i32_28 : i32
    %142 = arith.index_cast %141 : i32 to index
    %143 = memref.load %arg2[%142] : memref<76xf32, #tpu.memory_space<smem>>
    %144 = arith.truncf %143 : f32 to bf16
    %145 = vector.extract_strided_slice %38 {offsets = [0, 384], sizes = [4, 128], strides = [1, 1]} : vector<4x1280xbf16> to vector<4x128xbf16>
    %146 = vector.broadcast %139 : bf16 to vector<4x128xbf16>
    %147 = arith.mulf %146, %145 : vector<4x128xbf16>
    %148 = vector.extract_strided_slice %38 {offsets = [0, 512], sizes = [4, 128], strides = [1, 1]} : vector<4x1280xbf16> to vector<4x128xbf16>
    %149 = vector.broadcast %144 : bf16 to vector<4x128xbf16>
    %150 = arith.mulf %149, %148 : vector<4x128xbf16>
    %151 = arith.addf %147, %150 : vector<4x128xbf16>
    %c14_i32 = arith.constant 14 : i32
    %152 = arith.addi %39, %c14_i32 : i32
    %153 = arith.index_cast %152 : i32 to index
    %154 = memref.load %arg2[%153] : memref<76xf32, #tpu.memory_space<smem>>
    %155 = arith.truncf %154 : f32 to bf16
    %c14_i32_29 = arith.constant 14 : i32
    %156 = arith.addi %39, %c14_i32_29 : i32
    %c1_i32_30 = arith.constant 1 : i32
    %157 = arith.addi %156, %c1_i32_30 : i32
    %158 = arith.index_cast %157 : i32 to index
    %159 = memref.load %arg2[%158] : memref<76xf32, #tpu.memory_space<smem>>
    %160 = arith.truncf %159 : f32 to bf16
    %161 = vector.extract_strided_slice %38 {offsets = [0, 384], sizes = [4, 128], strides = [1, 1]} : vector<4x1280xbf16> to vector<4x128xbf16>
    %162 = vector.broadcast %155 : bf16 to vector<4x128xbf16>
    %163 = arith.mulf %162, %161 : vector<4x128xbf16>
    %164 = vector.extract_strided_slice %38 {offsets = [0, 512], sizes = [4, 128], strides = [1, 1]} : vector<4x1280xbf16> to vector<4x128xbf16>
    %165 = vector.broadcast %160 : bf16 to vector<4x128xbf16>
    %166 = arith.mulf %165, %164 : vector<4x128xbf16>
    %167 = arith.addf %163, %166 : vector<4x128xbf16>
    %c16_i32 = arith.constant 16 : i32
    %168 = arith.addi %39, %c16_i32 : i32
    %169 = arith.index_cast %168 : i32 to index
    %170 = memref.load %arg2[%169] : memref<76xf32, #tpu.memory_space<smem>>
    %171 = arith.truncf %170 : f32 to bf16
    %c16_i32_31 = arith.constant 16 : i32
    %172 = arith.addi %39, %c16_i32_31 : i32
    %c1_i32_32 = arith.constant 1 : i32
    %173 = arith.addi %172, %c1_i32_32 : i32
    %174 = arith.index_cast %173 : i32 to index
    %175 = memref.load %arg2[%174] : memref<76xf32, #tpu.memory_space<smem>>
    %176 = arith.truncf %175 : f32 to bf16
    %177 = vector.extract_strided_slice %38 {offsets = [0, 512], sizes = [4, 128], strides = [1, 1]} : vector<4x1280xbf16> to vector<4x128xbf16>
    %178 = vector.broadcast %171 : bf16 to vector<4x128xbf16>
    %179 = arith.mulf %178, %177 : vector<4x128xbf16>
    %180 = vector.extract_strided_slice %38 {offsets = [0, 640], sizes = [4, 128], strides = [1, 1]} : vector<4x1280xbf16> to vector<4x128xbf16>
    %181 = vector.broadcast %176 : bf16 to vector<4x128xbf16>
    %182 = arith.mulf %181, %180 : vector<4x128xbf16>
    %183 = arith.addf %179, %182 : vector<4x128xbf16>
    %c18_i32 = arith.constant 18 : i32
    %184 = arith.addi %39, %c18_i32 : i32
    %185 = arith.index_cast %184 : i32 to index
    %186 = memref.load %arg2[%185] : memref<76xf32, #tpu.memory_space<smem>>
    %187 = arith.truncf %186 : f32 to bf16
    %c18_i32_33 = arith.constant 18 : i32
    %188 = arith.addi %39, %c18_i32_33 : i32
    %c1_i32_34 = arith.constant 1 : i32
    %189 = arith.addi %188, %c1_i32_34 : i32
    %190 = arith.index_cast %189 : i32 to index
    %191 = memref.load %arg2[%190] : memref<76xf32, #tpu.memory_space<smem>>
    %192 = arith.truncf %191 : f32 to bf16
    %193 = vector.extract_strided_slice %38 {offsets = [0, 512], sizes = [4, 128], strides = [1, 1]} : vector<4x1280xbf16> to vector<4x128xbf16>
    %194 = vector.broadcast %187 : bf16 to vector<4x128xbf16>
    %195 = arith.mulf %194, %193 : vector<4x128xbf16>
    %196 = vector.extract_strided_slice %38 {offsets = [0, 640], sizes = [4, 128], strides = [1, 1]} : vector<4x1280xbf16> to vector<4x128xbf16>
    %197 = vector.broadcast %192 : bf16 to vector<4x128xbf16>
    %198 = arith.mulf %197, %196 : vector<4x128xbf16>
    %199 = arith.addf %195, %198 : vector<4x128xbf16>
    %c20_i32 = arith.constant 20 : i32
    %200 = arith.addi %39, %c20_i32 : i32
    %201 = arith.index_cast %200 : i32 to index
    %202 = memref.load %arg2[%201] : memref<76xf32, #tpu.memory_space<smem>>
    %203 = arith.truncf %202 : f32 to bf16
    %c20_i32_35 = arith.constant 20 : i32
    %204 = arith.addi %39, %c20_i32_35 : i32
    %c1_i32_36 = arith.constant 1 : i32
    %205 = arith.addi %204, %c1_i32_36 : i32
    %206 = arith.index_cast %205 : i32 to index
    %207 = memref.load %arg2[%206] : memref<76xf32, #tpu.memory_space<smem>>
    %208 = arith.truncf %207 : f32 to bf16
    %209 = vector.extract_strided_slice %38 {offsets = [0, 640], sizes = [4, 128], strides = [1, 1]} : vector<4x1280xbf16> to vector<4x128xbf16>
    %210 = vector.broadcast %203 : bf16 to vector<4x128xbf16>
    %211 = arith.mulf %210, %209 : vector<4x128xbf16>
    %212 = vector.extract_strided_slice %38 {offsets = [0, 768], sizes = [4, 128], strides = [1, 1]} : vector<4x1280xbf16> to vector<4x128xbf16>
    %213 = vector.broadcast %208 : bf16 to vector<4x128xbf16>
    %214 = arith.mulf %213, %212 : vector<4x128xbf16>
    %215 = arith.addf %211, %214 : vector<4x128xbf16>
    %c22_i32 = arith.constant 22 : i32
    %216 = arith.addi %39, %c22_i32 : i32
    %217 = arith.index_cast %216 : i32 to index
    %218 = memref.load %arg2[%217] : memref<76xf32, #tpu.memory_space<smem>>
    %219 = arith.truncf %218 : f32 to bf16
    %c22_i32_37 = arith.constant 22 : i32
    %220 = arith.addi %39, %c22_i32_37 : i32
    %c1_i32_38 = arith.constant 1 : i32
    %221 = arith.addi %220, %c1_i32_38 : i32
    %222 = arith.index_cast %221 : i32 to index
    %223 = memref.load %arg2[%222] : memref<76xf32, #tpu.memory_space<smem>>
    %224 = arith.truncf %223 : f32 to bf16
    %225 = vector.extract_strided_slice %38 {offsets = [0, 640], sizes = [4, 128], strides = [1, 1]} : vector<4x1280xbf16> to vector<4x128xbf16>
    %226 = vector.broadcast %219 : bf16 to vector<4x128xbf16>
    %227 = arith.mulf %226, %225 : vector<4x128xbf16>
    %228 = vector.extract_strided_slice %38 {offsets = [0, 768], sizes = [4, 128], strides = [1, 1]} : vector<4x1280xbf16> to vector<4x128xbf16>
    %229 = vector.broadcast %224 : bf16 to vector<4x128xbf16>
    %230 = arith.mulf %229, %228 : vector<4x128xbf16>
    %231 = arith.addf %227, %230 : vector<4x128xbf16>
    %c24_i32 = arith.constant 24 : i32
    %232 = arith.addi %39, %c24_i32 : i32
    %233 = arith.index_cast %232 : i32 to index
    %234 = memref.load %arg2[%233] : memref<76xf32, #tpu.memory_space<smem>>
    %235 = arith.truncf %234 : f32 to bf16
    %c24_i32_39 = arith.constant 24 : i32
    %236 = arith.addi %39, %c24_i32_39 : i32
    %c1_i32_40 = arith.constant 1 : i32
    %237 = arith.addi %236, %c1_i32_40 : i32
    %238 = arith.index_cast %237 : i32 to index
    %239 = memref.load %arg2[%238] : memref<76xf32, #tpu.memory_space<smem>>
    %240 = arith.truncf %239 : f32 to bf16
    %241 = vector.extract_strided_slice %38 {offsets = [0, 768], sizes = [4, 128], strides = [1, 1]} : vector<4x1280xbf16> to vector<4x128xbf16>
    %242 = vector.broadcast %235 : bf16 to vector<4x128xbf16>
    %243 = arith.mulf %242, %241 : vector<4x128xbf16>
    %244 = vector.extract_strided_slice %38 {offsets = [0, 896], sizes = [4, 128], strides = [1, 1]} : vector<4x1280xbf16> to vector<4x128xbf16>
    %245 = vector.broadcast %240 : bf16 to vector<4x128xbf16>
    %246 = arith.mulf %245, %244 : vector<4x128xbf16>
    %247 = arith.addf %243, %246 : vector<4x128xbf16>
    %c26_i32 = arith.constant 26 : i32
    %248 = arith.addi %39, %c26_i32 : i32
    %249 = arith.index_cast %248 : i32 to index
    %250 = memref.load %arg2[%249] : memref<76xf32, #tpu.memory_space<smem>>
    %251 = arith.truncf %250 : f32 to bf16
    %c26_i32_41 = arith.constant 26 : i32
    %252 = arith.addi %39, %c26_i32_41 : i32
    %c1_i32_42 = arith.constant 1 : i32
    %253 = arith.addi %252, %c1_i32_42 : i32
    %254 = arith.index_cast %253 : i32 to index
    %255 = memref.load %arg2[%254] : memref<76xf32, #tpu.memory_space<smem>>
    %256 = arith.truncf %255 : f32 to bf16
    %257 = vector.extract_strided_slice %38 {offsets = [0, 768], sizes = [4, 128], strides = [1, 1]} : vector<4x1280xbf16> to vector<4x128xbf16>
    %258 = vector.broadcast %251 : bf16 to vector<4x128xbf16>
    %259 = arith.mulf %258, %257 : vector<4x128xbf16>
    %260 = vector.extract_strided_slice %38 {offsets = [0, 896], sizes = [4, 128], strides = [1, 1]} : vector<4x1280xbf16> to vector<4x128xbf16>
    %261 = vector.broadcast %256 : bf16 to vector<4x128xbf16>
    %262 = arith.mulf %261, %260 : vector<4x128xbf16>
    %263 = arith.addf %259, %262 : vector<4x128xbf16>
    %c28_i32 = arith.constant 28 : i32
    %264 = arith.addi %39, %c28_i32 : i32
    %265 = arith.index_cast %264 : i32 to index
    %266 = memref.load %arg2[%265] : memref<76xf32, #tpu.memory_space<smem>>
    %267 = arith.truncf %266 : f32 to bf16
    %c28_i32_43 = arith.constant 28 : i32
    %268 = arith.addi %39, %c28_i32_43 : i32
    %c1_i32_44 = arith.constant 1 : i32
    %269 = arith.addi %268, %c1_i32_44 : i32
    %270 = arith.index_cast %269 : i32 to index
    %271 = memref.load %arg2[%270] : memref<76xf32, #tpu.memory_space<smem>>
    %272 = arith.truncf %271 : f32 to bf16
    %273 = vector.extract_strided_slice %38 {offsets = [0, 896], sizes = [4, 128], strides = [1, 1]} : vector<4x1280xbf16> to vector<4x128xbf16>
    %274 = vector.broadcast %267 : bf16 to vector<4x128xbf16>
    %275 = arith.mulf %274, %273 : vector<4x128xbf16>
    %276 = vector.extract_strided_slice %38 {offsets = [0, 1024], sizes = [4, 128], strides = [1, 1]} : vector<4x1280xbf16> to vector<4x128xbf16>
    %277 = vector.broadcast %272 : bf16 to vector<4x128xbf16>
    %278 = arith.mulf %277, %276 : vector<4x128xbf16>
    %279 = arith.addf %275, %278 : vector<4x128xbf16>
    %c30_i32 = arith.constant 30 : i32
    %280 = arith.addi %39, %c30_i32 : i32
    %281 = arith.index_cast %280 : i32 to index
    %282 = memref.load %arg2[%281] : memref<76xf32, #tpu.memory_space<smem>>
    %283 = arith.truncf %282 : f32 to bf16
    %c30_i32_45 = arith.constant 30 : i32
    %284 = arith.addi %39, %c30_i32_45 : i32
    %c1_i32_46 = arith.constant 1 : i32
    %285 = arith.addi %284, %c1_i32_46 : i32
    %286 = arith.index_cast %285 : i32 to index
    %287 = memref.load %arg2[%286] : memref<76xf32, #tpu.memory_space<smem>>
    %288 = arith.truncf %287 : f32 to bf16
    %289 = vector.extract_strided_slice %38 {offsets = [0, 896], sizes = [4, 128], strides = [1, 1]} : vector<4x1280xbf16> to vector<4x128xbf16>
    %290 = vector.broadcast %283 : bf16 to vector<4x128xbf16>
    %291 = arith.mulf %290, %289 : vector<4x128xbf16>
    %292 = vector.extract_strided_slice %38 {offsets = [0, 1024], sizes = [4, 128], strides = [1, 1]} : vector<4x1280xbf16> to vector<4x128xbf16>
    %293 = vector.broadcast %288 : bf16 to vector<4x128xbf16>
    %294 = arith.mulf %293, %292 : vector<4x128xbf16>
    %295 = arith.addf %291, %294 : vector<4x128xbf16>
    %c32_i32 = arith.constant 32 : i32
    %296 = arith.addi %39, %c32_i32 : i32
    %297 = arith.index_cast %296 : i32 to index
    %298 = memref.load %arg2[%297] : memref<76xf32, #tpu.memory_space<smem>>
    %299 = arith.truncf %298 : f32 to bf16
    %c32_i32_47 = arith.constant 32 : i32
    %300 = arith.addi %39, %c32_i32_47 : i32
    %c1_i32_48 = arith.constant 1 : i32
    %301 = arith.addi %300, %c1_i32_48 : i32
    %302 = arith.index_cast %301 : i32 to index
    %303 = memref.load %arg2[%302] : memref<76xf32, #tpu.memory_space<smem>>
    %304 = arith.truncf %303 : f32 to bf16
    %305 = vector.extract_strided_slice %38 {offsets = [0, 1024], sizes = [4, 128], strides = [1, 1]} : vector<4x1280xbf16> to vector<4x128xbf16>
    %306 = vector.broadcast %299 : bf16 to vector<4x128xbf16>
    %307 = arith.mulf %306, %305 : vector<4x128xbf16>
    %308 = vector.extract_strided_slice %38 {offsets = [0, 1152], sizes = [4, 128], strides = [1, 1]} : vector<4x1280xbf16> to vector<4x128xbf16>
    %309 = vector.broadcast %304 : bf16 to vector<4x128xbf16>
    %310 = arith.mulf %309, %308 : vector<4x128xbf16>
    %311 = arith.addf %307, %310 : vector<4x128xbf16>
    %c34_i32 = arith.constant 34 : i32
    %312 = arith.addi %39, %c34_i32 : i32
    %313 = arith.index_cast %312 : i32 to index
    %314 = memref.load %arg2[%313] : memref<76xf32, #tpu.memory_space<smem>>
    %315 = arith.truncf %314 : f32 to bf16
    %c34_i32_49 = arith.constant 34 : i32
    %316 = arith.addi %39, %c34_i32_49 : i32
    %c1_i32_50 = arith.constant 1 : i32
    %317 = arith.addi %316, %c1_i32_50 : i32
    %318 = arith.index_cast %317 : i32 to index
    %319 = memref.load %arg2[%318] : memref<76xf32, #tpu.memory_space<smem>>
    %320 = arith.truncf %319 : f32 to bf16
    %321 = vector.extract_strided_slice %38 {offsets = [0, 1024], sizes = [4, 128], strides = [1, 1]} : vector<4x1280xbf16> to vector<4x128xbf16>
    %322 = vector.broadcast %315 : bf16 to vector<4x128xbf16>
    %323 = arith.mulf %322, %321 : vector<4x128xbf16>
    %324 = vector.extract_strided_slice %38 {offsets = [0, 1152], sizes = [4, 128], strides = [1, 1]} : vector<4x1280xbf16> to vector<4x128xbf16>
    %325 = vector.broadcast %320 : bf16 to vector<4x128xbf16>
    %326 = arith.mulf %325, %324 : vector<4x128xbf16>
    %327 = arith.addf %323, %326 : vector<4x128xbf16>
    %c36_i32 = arith.constant 36 : i32
    %328 = arith.addi %39, %c36_i32 : i32
    %329 = arith.index_cast %328 : i32 to index
    %330 = memref.load %arg2[%329] : memref<76xf32, #tpu.memory_space<smem>>
    %331 = arith.truncf %330 : f32 to bf16
    %c36_i32_51 = arith.constant 36 : i32
    %332 = arith.addi %39, %c36_i32_51 : i32
    %c1_i32_52 = arith.constant 1 : i32
    %333 = arith.addi %332, %c1_i32_52 : i32
    %334 = arith.index_cast %333 : i32 to index
    %335 = memref.load %arg2[%334] : memref<76xf32, #tpu.memory_space<smem>>
    %336 = arith.truncf %335 : f32 to bf16
    %337 = vector.extract_strided_slice %38 {offsets = [0, 1152], sizes = [4, 128], strides = [1, 1]} : vector<4x1280xbf16> to vector<4x128xbf16>
    %338 = vector.broadcast %331 : bf16 to vector<4x128xbf16>
    %339 = arith.mulf %338, %337 : vector<4x128xbf16>
    %340 = vector.extract_strided_slice %38 {offsets = [0, 1152], sizes = [4, 128], strides = [1, 1]} : vector<4x1280xbf16> to vector<4x128xbf16>
    %341 = vector.broadcast %336 : bf16 to vector<4x128xbf16>
    %342 = arith.mulf %341, %340 : vector<4x128xbf16>
    %343 = arith.addf %339, %342 : vector<4x128xbf16>
    %344 = tpu.concatenate %55, %71, %87, %103, %119, %135, %151, %167, %183, %199, %215, %231, %247, %263, %279, %295 in 0 : vector<4x128xbf16>, vector<4x128xbf16>, vector<4x128xbf16>, vector<4x128xbf16>, vector<4x128xbf16>, vector<4x128xbf16>, vector<4x128xbf16>, vector<4x128xbf16>, vector<4x128xbf16>, vector<4x128xbf16>, vector<4x128xbf16>, vector<4x128xbf16>, vector<4x128xbf16>, vector<4x128xbf16>, vector<4x128xbf16>, vector<4x128xbf16> -> vector<64x128xbf16>
    %345 = tpu.concatenate %311, %327, %343 in 0 : vector<4x128xbf16>, vector<4x128xbf16>, vector<4x128xbf16> -> vector<12x128xbf16>
    %346 = tpu.concatenate %344, %345 in 0 : vector<64x128xbf16>, vector<12x128xbf16> -> vector<76x128xbf16>
    %c0_53 = arith.constant 0 : index
    %c0_54 = arith.constant 0 : index
    %347 = vector.load %arg6[%c0_53, %c0_54] : memref<128x128xbf16, #tpu.memory_space<vmem>>, vector<128x128xbf16>
    %cst_55 = arith.constant dense<0.000000e+00> : vector<76x128xf32>
    %348 = tpu.matmul %346, %347, %cst_55 {dimension_numbers = #tpu.dot_dimension_numbers<[1], [0], [0], [1], [0, 0, 1, 1], [], []>} : vector<76x128xbf16>, vector<128x128xbf16>, vector<76x128xf32> -> vector<76x128xf32>
    %349 = vector.extract_strided_slice %348 {offsets = [0, 0], sizes = [4, 128], strides = [1, 1]} : vector<76x128xf32> to vector<4x128xf32>
    %350 = arith.truncf %349 : vector<4x128xf32> to vector<4x128xbf16>
    %c0_56 = arith.constant 0 : index
    %c0_57 = arith.constant 0 : index
    %351 = vector.load %arg13[%c0_56, %c0_57] : memref<4x2432xbf16, #tpu.memory_space<vmem>>, vector<4x128xbf16>
    tpu.vector_store %arg13[%c0_56, %c0_57], %350 {strides = array<i32>} : memref<4x2432xbf16, #tpu.memory_space<vmem>>, vector<4x128xbf16>,
    %352 = vector.extract_strided_slice %348 {offsets = [4, 0], sizes = [4, 128], strides = [1, 1]} : vector<76x128xf32> to vector<4x128xf32>
    %353 = arith.truncf %352 : vector<4x128xf32> to vector<4x128xbf16>
    %c0_58 = arith.constant 0 : index
    %c128_59 = arith.constant 128 : index
    %354 = vector.load %arg13[%c0_58, %c128_59] : memref<4x2432xbf16, #tpu.memory_space<vmem>>, vector<4x128xbf16>
    tpu.vector_store %arg13[%c0_58, %c128_59], %353 {strides = array<i32>} : memref<4x2432xbf16, #tpu.memory_space<vmem>>, vector<4x128xbf16>,
    %355 = vector.extract_strided_slice %348 {offsets = [8, 0], sizes = [4, 128], strides = [1, 1]} : vector<76x128xf32> to vector<4x128xf32>
    %356 = arith.truncf %355 : vector<4x128xf32> to vector<4x128xbf16>
    %c0_60 = arith.constant 0 : index
    %c256_61 = arith.constant 256 : index
    %357 = vector.load %arg13[%c0_60, %c256_61] : memref<4x2432xbf16, #tpu.memory_space<vmem>>, vector<4x128xbf16>
    tpu.vector_store %arg13[%c0_60, %c256_61], %356 {strides = array<i32>} : memref<4x2432xbf16, #tpu.memory_space<vmem>>, vector<4x128xbf16>,
    %358 = vector.extract_strided_slice %348 {offsets = [12, 0], sizes = [4, 128], strides = [1, 1]} : vector<76x128xf32> to vector<4x128xf32>
    %359 = arith.truncf %358 : vector<4x128xf32> to vector<4x128xbf16>
    %c0_62 = arith.constant 0 : index
    %c384 = arith.constant 384 : index
    %360 = vector.load %arg13[%c0_62, %c384] : memref<4x2432xbf16, #tpu.memory_space<vmem>>, vector<4x128xbf16>
    tpu.vector_store %arg13[%c0_62, %c384], %359 {strides = array<i32>} : memref<4x2432xbf16, #tpu.memory_space<vmem>>, vector<4x128xbf16>,
    %361 = vector.extract_strided_slice %348 {offsets = [16, 0], sizes = [4, 128], strides = [1, 1]} : vector<76x128xf32> to vector<4x128xf32>
    %362 = arith.truncf %361 : vector<4x128xf32> to vector<4x128xbf16>
    %c0_63 = arith.constant 0 : index
    %c512 = arith.constant 512 : index
    %363 = vector.load %arg13[%c0_63, %c512] : memref<4x2432xbf16, #tpu.memory_space<vmem>>, vector<4x128xbf16>
    tpu.vector_store %arg13[%c0_63, %c512], %362 {strides = array<i32>} : memref<4x2432xbf16, #tpu.memory_space<vmem>>, vector<4x128xbf16>,
    %364 = vector.extract_strided_slice %348 {offsets = [20, 0], sizes = [4, 128], strides = [1, 1]} : vector<76x128xf32> to vector<4x128xf32>
    %365 = arith.truncf %364 : vector<4x128xf32> to vector<4x128xbf16>
    %c0_64 = arith.constant 0 : index
    %c640 = arith.constant 640 : index
    %366 = vector.load %arg13[%c0_64, %c640] : memref<4x2432xbf16, #tpu.memory_space<vmem>>, vector<4x128xbf16>
    tpu.vector_store %arg13[%c0_64, %c640], %365 {strides = array<i32>} : memref<4x2432xbf16, #tpu.memory_space<vmem>>, vector<4x128xbf16>,
    %367 = vector.extract_strided_slice %348 {offsets = [24, 0], sizes = [4, 128], strides = [1, 1]} : vector<76x128xf32> to vector<4x128xf32>
    %368 = arith.truncf %367 : vector<4x128xf32> to vector<4x128xbf16>
    %c0_65 = arith.constant 0 : index
    %c768 = arith.constant 768 : index
    %369 = vector.load %arg13[%c0_65, %c768] : memref<4x2432xbf16, #tpu.memory_space<vmem>>, vector<4x128xbf16>
    tpu.vector_store %arg13[%c0_65, %c768], %368 {strides = array<i32>} : memref<4x2432xbf16, #tpu.memory_space<vmem>>, vector<4x128xbf16>,
    %370 = vector.extract_strided_slice %348 {offsets = [28, 0], sizes = [4, 128], strides = [1, 1]} : vector<76x128xf32> to vector<4x128xf32>
    %371 = arith.truncf %370 : vector<4x128xf32> to vector<4x128xbf16>
    %c0_66 = arith.constant 0 : index
    %c896 = arith.constant 896 : index
    %372 = vector.load %arg13[%c0_66, %c896] : memref<4x2432xbf16, #tpu.memory_space<vmem>>, vector<4x128xbf16>
    tpu.vector_store %arg13[%c0_66, %c896], %371 {strides = array<i32>} : memref<4x2432xbf16, #tpu.memory_space<vmem>>, vector<4x128xbf16>,
    %373 = vector.extract_strided_slice %348 {offsets = [32, 0], sizes = [4, 128], strides = [1, 1]} : vector<76x128xf32> to vector<4x128xf32>
    %374 = arith.truncf %373 : vector<4x128xf32> to vector<4x128xbf16>
    %c0_67 = arith.constant 0 : index
    %c1024 = arith.constant 1024 : index
    %375 = vector.load %arg13[%c0_67, %c1024] : memref<4x2432xbf16, #tpu.memory_space<vmem>>, vector<4x128xbf16>
    tpu.vector_store %arg13[%c0_67, %c1024], %374 {strides = array<i32>} : memref<4x2432xbf16, #tpu.memory_space<vmem>>, vector<4x128xbf16>,
    %376 = vector.extract_strided_slice %348 {offsets = [36, 0], sizes = [4, 128], strides = [1, 1]} : vector<76x128xf32> to vector<4x128xf32>
    %377 = arith.truncf %376 : vector<4x128xf32> to vector<4x128xbf16>
    %c0_68 = arith.constant 0 : index
    %c1152 = arith.constant 1152 : index
    %378 = vector.load %arg13[%c0_68, %c1152] : memref<4x2432xbf16, #tpu.memory_space<vmem>>, vector<4x128xbf16>
    tpu.vector_store %arg13[%c0_68, %c1152], %377 {strides = array<i32>} : memref<4x2432xbf16, #tpu.memory_space<vmem>>, vector<4x128xbf16>,
    %379 = vector.extract_strided_slice %348 {offsets = [40, 0], sizes = [4, 128], strides = [1, 1]} : vector<76x128xf32> to vector<4x128xf32>
    %380 = arith.truncf %379 : vector<4x128xf32> to vector<4x128xbf16>
    %c0_69 = arith.constant 0 : index
    %c1280 = arith.constant 1280 : index
    %381 = vector.load %arg13[%c0_69, %c1280] : memref<4x2432xbf16, #tpu.memory_space<vmem>>, vector<4x128xbf16>
    tpu.vector_store %arg13[%c0_69, %c1280], %380 {strides = array<i32>} : memref<4x2432xbf16, #tpu.memory_space<vmem>>, vector<4x128xbf16>,
    %382 = vector.extract_strided_slice %348 {offsets = [44, 0], sizes = [4, 128], strides = [1, 1]} : vector<76x128xf32> to vector<4x128xf32>
    %383 = arith.truncf %382 : vector<4x128xf32> to vector<4x128xbf16>
    %c0_70 = arith.constant 0 : index
    %c1408 = arith.constant 1408 : index
    %384 = vector.load %arg13[%c0_70, %c1408] : memref<4x2432xbf16, #tpu.memory_space<vmem>>, vector<4x128xbf16>
    tpu.vector_store %arg13[%c0_70, %c1408], %383 {strides = array<i32>} : memref<4x2432xbf16, #tpu.memory_space<vmem>>, vector<4x128xbf16>,
    %385 = vector.extract_strided_slice %348 {offsets = [48, 0], sizes = [4, 128], strides = [1, 1]} : vector<76x128xf32> to vector<4x128xf32>
    %386 = arith.truncf %385 : vector<4x128xf32> to vector<4x128xbf16>
    %c0_71 = arith.constant 0 : index
    %c1536 = arith.constant 1536 : index
    %387 = vector.load %arg13[%c0_71, %c1536] : memref<4x2432xbf16, #tpu.memory_space<vmem>>, vector<4x128xbf16>
    tpu.vector_store %arg13[%c0_71, %c1536], %386 {strides = array<i32>} : memref<4x2432xbf16, #tpu.memory_space<vmem>>, vector<4x128xbf16>,
    %388 = vector.extract_strided_slice %348 {offsets = [52, 0], sizes = [4, 128], strides = [1, 1]} : vector<76x128xf32> to vector<4x128xf32>
    %389 = arith.truncf %388 : vector<4x128xf32> to vector<4x128xbf16>
    %c0_72 = arith.constant 0 : index
    %c1664 = arith.constant 1664 : index
    %390 = vector.load %arg13[%c0_72, %c1664] : memref<4x2432xbf16, #tpu.memory_space<vmem>>, vector<4x128xbf16>
    tpu.vector_store %arg13[%c0_72, %c1664], %389 {strides = array<i32>} : memref<4x2432xbf16, #tpu.memory_space<vmem>>, vector<4x128xbf16>,
    %391 = vector.extract_strided_slice %348 {offsets = [56, 0], sizes = [4, 128], strides = [1, 1]} : vector<76x128xf32> to vector<4x128xf32>
    %392 = arith.truncf %391 : vector<4x128xf32> to vector<4x128xbf16>
    %c0_73 = arith.constant 0 : index
    %c1792 = arith.constant 1792 : index
    %393 = vector.load %arg13[%c0_73, %c1792] : memref<4x2432xbf16, #tpu.memory_space<vmem>>, vector<4x128xbf16>
    tpu.vector_store %arg13[%c0_73, %c1792], %392 {strides = array<i32>} : memref<4x2432xbf16, #tpu.memory_space<vmem>>, vector<4x128xbf16>,
    %394 = vector.extract_strided_slice %348 {offsets = [60, 0], sizes = [4, 128], strides = [1, 1]} : vector<76x128xf32> to vector<4x128xf32>
    %395 = arith.truncf %394 : vector<4x128xf32> to vector<4x128xbf16>
    %c0_74 = arith.constant 0 : index
    %c1920 = arith.constant 1920 : index
    %396 = vector.load %arg13[%c0_74, %c1920] : memref<4x2432xbf16, #tpu.memory_space<vmem>>, vector<4x128xbf16>
    tpu.vector_store %arg13[%c0_74, %c1920], %395 {strides = array<i32>} : memref<4x2432xbf16, #tpu.memory_space<vmem>>, vector<4x128xbf16>,
    %397 = vector.extract_strided_slice %348 {offsets = [64, 0], sizes = [4, 128], strides = [1, 1]} : vector<76x128xf32> to vector<4x128xf32>
    %398 = arith.truncf %397 : vector<4x128xf32> to vector<4x128xbf16>
    %c0_75 = arith.constant 0 : index
    %c2048 = arith.constant 2048 : index
    %399 = vector.load %arg13[%c0_75, %c2048] : memref<4x2432xbf16, #tpu.memory_space<vmem>>, vector<4x128xbf16>
    tpu.vector_store %arg13[%c0_75, %c2048], %398 {strides = array<i32>} : memref<4x2432xbf16, #tpu.memory_space<vmem>>, vector<4x128xbf16>,
    %400 = vector.extract_strided_slice %348 {offsets = [68, 0], sizes = [4, 128], strides = [1, 1]} : vector<76x128xf32> to vector<4x128xf32>
    %401 = arith.truncf %400 : vector<4x128xf32> to vector<4x128xbf16>
    %c0_76 = arith.constant 0 : index
    %c2176 = arith.constant 2176 : index
    %402 = vector.load %arg13[%c0_76, %c2176] : memref<4x2432xbf16, #tpu.memory_space<vmem>>, vector<4x128xbf16>
    tpu.vector_store %arg13[%c0_76, %c2176], %401 {strides = array<i32>} : memref<4x2432xbf16, #tpu.memory_space<vmem>>, vector<4x128xbf16>,
    %403 = vector.extract_strided_slice %348 {offsets = [72, 0], sizes = [4, 128], strides = [1, 1]} : vector<76x128xf32> to vector<4x128xf32>
    %404 = arith.truncf %403 : vector<4x128xf32> to vector<4x128xbf16>
    %c0_77 = arith.constant 0 : index
    %c2304 = arith.constant 2304 : index
    %405 = vector.load %arg13[%c0_77, %c2304] : memref<4x2432xbf16, #tpu.memory_space<vmem>>, vector<4x128xbf16>
    tpu.vector_store %arg13[%c0_77, %c2304], %404 {strides = array<i32>} : memref<4x2432xbf16, #tpu.memory_space<vmem>>, vector<4x128xbf16>,
    %c0_78 = arith.constant 0 : index
    %c0_79 = arith.constant 0 : index
    %c0_80 = arith.constant 0 : index
    %406 = vector.load %arg7[%c0_78, %c0_79, %c0_80] : memref<3x96x4xbf16, #tpu.memory_space<vmem>>, vector<1x96x4xbf16>
    %407 = vector.shape_cast %406 : vector<1x96x4xbf16> to vector<96x4xbf16>
    %c0_81 = arith.constant 0 : index
    %c0_82 = arith.constant 0 : index
    %408 = vector.load %arg13[%c0_81, %c0_82] : memref<4x2432xbf16, #tpu.memory_space<vmem>>, vector<4x2176xbf16>
    %cst_83 = arith.constant dense<0.000000e+00> : vector<96x2176xf32>
    %409 = tpu.matmul %407, %408, %cst_83 {dimension_numbers = #tpu.dot_dimension_numbers<[1], [0], [0], [1], [0, 0, 1, 1], [], []>} : vector<96x4xbf16>, vector<4x2176xbf16>, vector<96x2176xf32> -> vector<96x2176xf32>
    %410 = vector.extract_strided_slice %409 {offsets = [0, 0], sizes = [32, 2048], strides = [1, 1]} : vector<96x2176xf32> to vector<32x2048xf32>
    %411 = vector.extract_strided_slice %409 {offsets = [32, 1], sizes = [32, 2048], strides = [1, 1]} : vector<96x2176xf32> to vector<32x2048xf32>
    %412 = arith.addf %410, %411 : vector<32x2048xf32>
    %413 = vector.extract_strided_slice %409 {offsets = [64, 2], sizes = [32, 2048], strides = [1, 1]} : vector<96x2176xf32> to vector<32x2048xf32>
    %414 = arith.addf %412, %413 : vector<32x2048xf32>
    %c1_84 = arith.constant 1 : index
    %c0_85 = arith.constant 0 : index
    %c0_86 = arith.constant 0 : index
    %415 = vector.load %arg7[%c1_84, %c0_85, %c0_86] : memref<3x96x4xbf16, #tpu.memory_space<vmem>>, vector<1x96x4xbf16>
    %416 = vector.shape_cast %415 : vector<1x96x4xbf16> to vector<96x4xbf16>
    %c0_87 = arith.constant 0 : index
    %c128_88 = arith.constant 128 : index
    %417 = vector.load %arg13[%c0_87, %c128_88] : memref<4x2432xbf16, #tpu.memory_space<vmem>>, vector<4x2176xbf16>
    %cst_89 = arith.constant dense<0.000000e+00> : vector<96x2176xf32>
    %418 = tpu.matmul %416, %417, %cst_89 {dimension_numbers = #tpu.dot_dimension_numbers<[1], [0], [0], [1], [0, 0, 1, 1], [], []>} : vector<96x4xbf16>, vector<4x2176xbf16>, vector<96x2176xf32> -> vector<96x2176xf32>
    %419 = vector.extract_strided_slice %418 {offsets = [0, 0], sizes = [32, 2048], strides = [1, 1]} : vector<96x2176xf32> to vector<32x2048xf32>
    %420 = arith.addf %414, %419 : vector<32x2048xf32>
    %421 = vector.extract_strided_slice %418 {offsets = [32, 1], sizes = [32, 2048], strides = [1, 1]} : vector<96x2176xf32> to vector<32x2048xf32>
    %422 = arith.addf %420, %421 : vector<32x2048xf32>
    %423 = vector.extract_strided_slice %418 {offsets = [64, 2], sizes = [32, 2048], strides = [1, 1]} : vector<96x2176xf32> to vector<32x2048xf32>
    %424 = arith.addf %422, %423 : vector<32x2048xf32>
    %c2_90 = arith.constant 2 : index
    %c0_91 = arith.constant 0 : index
    %c0_92 = arith.constant 0 : index
    %425 = vector.load %arg7[%c2_90, %c0_91, %c0_92] : memref<3x96x4xbf16, #tpu.memory_space<vmem>>, vector<1x96x4xbf16>
    %426 = vector.shape_cast %425 : vector<1x96x4xbf16> to vector<96x4xbf16>
    %c0_93 = arith.constant 0 : index
    %c256_94 = arith.constant 256 : index
    %427 = vector.load %arg13[%c0_93, %c256_94] : memref<4x2432xbf16, #tpu.memory_space<vmem>>, vector<4x2176xbf16>
    %cst_95 = arith.constant dense<0.000000e+00> : vector<96x2176xf32>
    %428 = tpu.matmul %426, %427, %cst_95 {dimension_numbers = #tpu.dot_dimension_numbers<[1], [0], [0], [1], [0, 0, 1, 1], [], []>} : vector<96x4xbf16>, vector<4x2176xbf16>, vector<96x2176xf32> -> vector<96x2176xf32>
    %429 = vector.extract_strided_slice %428 {offsets = [0, 0], sizes = [32, 2048], strides = [1, 1]} : vector<96x2176xf32> to vector<32x2048xf32>
    %430 = arith.addf %424, %429 : vector<32x2048xf32>
    %431 = vector.extract_strided_slice %428 {offsets = [32, 1], sizes = [32, 2048], strides = [1, 1]} : vector<96x2176xf32> to vector<32x2048xf32>
    %432 = arith.addf %430, %431 : vector<32x2048xf32>
    %433 = vector.extract_strided_slice %428 {offsets = [64, 2], sizes = [32, 2048], strides = [1, 1]} : vector<96x2176xf32> to vector<32x2048xf32>
    %434 = arith.addf %432, %433 : vector<32x2048xf32>
    %c0_96 = arith.constant 0 : index
    %c0_97 = arith.constant 0 : index
    %435 = vector.load %arg8[%c0_96, %c0_97] : memref<32x1xf32, #tpu.memory_space<vmem>>, vector<32x1xf32>
    %436 = vector.broadcast %435 : vector<32x1xf32> to vector<32x2048xf32>
    %437 = arith.addf %434, %436 : vector<32x2048xf32>
    %cst_98 = arith.constant 0.000000e+00 : f32
    %438 = vector.broadcast %cst_98 : f32 to vector<32x2048xf32>
    %439 = arith.maximumf %437, %438 : vector<32x2048xf32>
    %c0_99 = arith.constant 0 : index
    %c0_100 = arith.constant 0 : index
    %440 = vector.load %arg9[%c0_99, %c0_100] : memref<32x1xf32, #tpu.memory_space<vmem>>, vector<32x1xf32>
    %441 = vector.broadcast %440 : vector<32x1xf32> to vector<32x2048xf32>
    %442 = arith.mulf %439, %441 : vector<32x2048xf32>
    %cst_101 = arith.constant dense<0.000000e+00> : vector<2048xf32>
    %443 = vector.multi_reduction <add>, %442, %cst_101 [0] : vector<32x2048xf32> to vector<2048xf32>
    %444 = vector.shape_cast %443 : vector<2048xf32> to vector<1x2048xf32>
    %c0_102 = arith.constant 0 : index
    %c0_103 = arith.constant 0 : index
    %445 = vector.load %arg10[%c0_102, %c0_103] : memref<1x1xf32, #tpu.memory_space<vmem>>, vector<1x1xf32>
    %446 = vector.broadcast %445 : vector<1x1xf32> to vector<1x2048xf32>
    %447 = arith.addf %444, %446 : vector<1x2048xf32>
    %c0_104 = arith.constant 0 : index
    %c0_105 = arith.constant 0 : index
    %c0_106 = arith.constant 0 : index
    %448 = vector.load %arg11[%c0_104, %c0_105, %c0_106] : memref<1x1x2048xf32, #tpu.memory_space<vmem>>, vector<1x1x2048xf32>
    %449 = vector.shape_cast %448 : vector<1x1x2048xf32> to vector<1x2048xf32>
    %450 = vector.shape_cast %447 : vector<1x2048xf32> to vector<1x1x2048xf32>
    tpu.vector_store %arg11[%c0_104, %c0_105, %c0_106], %450 {strides = array<i32>} : memref<1x1x2048xf32, #tpu.memory_space<vmem>>, vector<1x1x2048xf32>,
    return
  }
  func.func @transform_1(%arg0: i32, %arg1: i32, %arg2: memref<76xf32, #tpu.memory_space<smem>>) -> (i32, i32, i32) {
    %c0_i32 = arith.constant 0 : i32
    %c0_i32_0 = arith.constant 0 : i32
    %c0_i32_1 = arith.constant 0 : i32
    %c0_i32_2 = arith.constant 0 : i32
    return %c0_i32, %c0_i32_0, %c0_i32_1 : i32, i32, i32
  }
  func.func @transform_2(%arg0: i32, %arg1: i32, %arg2: memref<76xf32, #tpu.memory_space<smem>>) -> (i32, i32) {
    %c0_i32 = arith.constant 0 : i32
    %c0_i32_0 = arith.constant 0 : i32
    %c0_i32_1 = arith.constant 0 : i32
    return %c0_i32, %c0_i32_0 : i32, i32
  }
  func.func @transform_3(%arg0: i32, %arg1: i32, %arg2: memref<76xf32, #tpu.memory_space<smem>>) -> (i32, i32) {
    %c0_i32 = arith.constant 0 : i32
    %c0_i32_0 = arith.constant 0 : i32
    %c0_i32_1 = arith.constant 0 : i32
    return %c0_i32, %c0_i32_0 : i32, i32
  }
  func.func @transform_4(%arg0: i32, %arg1: i32, %arg2: memref<76xf32, #tpu.memory_space<smem>>) -> (i32, i32, i32) {
    %c0_i32 = arith.constant 0 : i32
    %c0_i32_0 = arith.constant 0 : i32
    %c0_i32_1 = arith.constant 0 : i32
    %c0_i32_2 = arith.constant 0 : i32
    return %c0_i32, %c0_i32_0, %c0_i32_1 : i32, i32, i32
  }
  func.func @transform_5(%arg0: i32, %arg1: i32, %arg2: memref<76xf32, #tpu.memory_space<smem>>) -> (i32, i32) {
    %c0_i32 = arith.constant 0 : i32
    %c0_i32_0 = arith.constant 0 : i32
    %c0_i32_1 = arith.constant 0 : i32
    return %c0_i32, %c0_i32_0 : i32, i32
  }
  func.func @transform_6(%arg0: i32, %arg1: i32, %arg2: memref<76xf32, #tpu.memory_space<smem>>) -> (i32, i32) {
    %c0_i32 = arith.constant 0 : i32
    %c0_i32_0 = arith.constant 0 : i32
    %c0_i32_1 = arith.constant 0 : i32
    return %c0_i32, %c0_i32_0 : i32, i32
  }
  func.func @transform_7(%arg0: i32, %arg1: i32, %arg2: memref<76xf32, #tpu.memory_space<smem>>) -> (i32, i32) {
    %c0_i32 = arith.constant 0 : i32
    %c0_i32_0 = arith.constant 0 : i32
    %c0_i32_1 = arith.constant 0 : i32
    return %c0_i32, %c0_i32_0 : i32, i32
  }
  func.func @transform_8(%arg0: i32, %arg1: i32, %arg2: memref<76xf32, #tpu.memory_space<smem>>) -> (i32, i32, i32) {
    %c0_i32 = arith.constant 0 : i32
    %c0_i32_0 = arith.constant 0 : i32
    return %arg0, %c0_i32, %arg1 : i32, i32, i32
  }
}

</mosaic_0001>

<llo_original>
// kernel: tpu_custom_call.1
$region0: #{tpu_custom_call.1}
  #allocation0 [shape = 'u32[]', space=smem, size = 0x4, offset = 0x4, fixed_abs, tag = 'smem constant byte address 0x4 - core index']
  #allocation1 [shape = 'u32[144,128]{1,0:T(1,128)}', space=vmem, size = 0x12000, scoped, tag = 'internal scratch']
  #allocation2 [shape = 'bf16[8,1664]{1,0:T(8,128)(2,1)}', space=vmem, size = 0x6800, scoped, tag = 'scratch operand']
  #allocation3 [shape = 'bf16[4,2432]{1,0:T(4,128)(2,1)}', space=vmem, size = 0x4c00, scoped, tag = 'scratch operand']
  #allocation4 [shape = 's32[1]{0}', space=sflag, size = 0x4, scoped, tag = 'scratch operand']
  #allocation5 [shape = 's32[1]{0}', space=sflag, size = 0x4, scoped, tag = 'scoped memory for tpu_custom_call.1']
  #allocation6 [shape = 'u8[512]{0}', space=smem, size = 0x200, scoped, tag = 'prefetched SMEM operand 0']
  #allocation7 [shape = 'f32[1,1]{1,0:T(1,128)S(1)}', space=vmem, size = 0x200, scoped, tag = 'scoped memory for tpu_custom_call.1']
  #allocation10 [shape = 's32[]', space=sflag, size = 0x4, offset = 0, fixed_abs, tag = 'sflag constant byte address 0x0 - dummy sync flag']
  %s0 = inlined_call_operand.vmem [shape: f32[76], index: 0, kind: input, shape index: {}]
  %s1 = inlined_call_operand.vmem [shape: bf16[2,8,2688], index: 1, kind: input, shape index: {}]
  %s2 = inlined_call_operand.vmem [shape: bf16[3,12,8], index: 2, kind: input, shape index: {}]
  %s3 = inlined_call_operand.vmem [shape: f32[4,1], index: 3, kind: input, shape index: {}]
  %s4 = inlined_call_operand.vmem [shape: bf16[128,128], index: 4, kind: input, shape index: {}]
  %s5 = inlined_call_operand.vmem [shape: bf16[3,96,4], index: 5, kind: input, shape index: {}]
  %s6 = inlined_call_operand.vmem [shape: f32[32,1], index: 6, kind: input, shape index: {}]
  %s7 = inlined_call_operand.vmem [shape: f32[32,1], index: 7, kind: input, shape index: {}]
  %s8 = inlined_call_operand.<no memory space> [shape: f32[1,1], index: 8, kind: input, shape index: {}]
  %s9 = inlined_call_operand.hbm [shape: f32[2,1,4096], index: 9, kind: output, shape index: {}]
  %s10 = sld [smem:[#allocation0]]
  $region98: #{tpu_custom_call.1} parent=0
    _
  %s12 = ssub.s32 1, %s10
  %s13 = scalar_select 0, %s12, %s10
  %s14 = sshll.u32 %s0, 4
  %s15 = int_to_ptr.vmem [resolvable:$true] %s14
  %17 = dma.vmem_to_smem %s15, 16, [#allocation6], [#allocation5]
  %v18 = vstv %s8
  %19 = vst [vmem:[#allocation7] sm:$0x1] %v18
  %20 = dma.done [#allocation5], 16
  %21 = sfence
  $region1: #{tpu_custom_call.1} parent=0
    #allocation8 [shape = 'u8[16384]{0}', space=vmem, size = 0x4000, scoped, tag = 'output window, operand 0']
    #allocation9 [shape = 's32[2]{0}', space=sflag, size = 0x8, scoped, tag = 'scoped memory for tpu_custom_call.1']
    %22 = vsyncpa [#allocation9], 0
    %s23 = scalar_lea.sflag [#allocation9], 1
    %24 = vsyncpa %s23, 0
    loop: start=0, step=1, limit=6
    $region2: #{tpu_custom_call.1} parent=1 // loop_pre_header
      _
    $region3: #{tpu_custom_call.1} parent=1 // loop_header
      %s26 = sphi 0, %s30
      %p27 = scmp.ge.s32.totalorder %s26, 6
      %s33 = sphi 0, %s45
      %s34 = sphi 0, %s41
      %s35 = sphi 0, %s33
      %s36 = sphi 0, %s34
      %s37 = sphi 0, %s35
      %s38 = sphi 0, %s36
      %s46 = sphi 0, %s46
      %s48 = sphi 0, %s46
      %s49 = sphi 0, %s48
      %s63 = sphi 0, %s49
      %s67 = sphi 0, %s67
      %s69 = sphi 0, %s67
      %s70 = sphi 0, %s69
      %s84 = sphi 0, %s70
      %s88 = sphi 0, %s88
      %s90 = sphi 0, %s88
      %s91 = sphi 0, %s90
      %s105 = sphi 0, %s91
      %s109 = sphi 0, %s109
      %s111 = sphi 0, %s109
      %s112 = sphi 0, %s111
      %s126 = sphi 0, %s112
      %s130 = sphi 0, %s130
      %s132 = sphi 0, %s130
      %s133 = sphi 0, %s132
      %s147 = sphi 0, %s133
      %s151 = sphi 0, %s151
      %s153 = sphi 0, %s151
      %s154 = sphi 0, %s153
      %s168 = sphi 0, %s154
      %s172 = sphi 0, %s172
      %s174 = sphi 0, %s172
      %s175 = sphi 0, %s174
      %s189 = sphi 0, %s175
      %s197 = sphi 0, %s199
      %s200 = sphi 0, %s197
      %s201 = sphi 0, %s200
      %s217 = sphi 0, %s201
    $region4: #{tpu_custom_call.1} parent=1 // loop_header_branch
      %29 = sbr.rel (%p27) target = $region8
    $region5: #{tpu_custom_call.1} parent=1 // loop_body
      %s31 = ssub.s32 %s26, 1
      %s32 = ssub.s32 %s26, 2
      %s39 = sadd.s32 1, %s34
      %p40 = scmp.ge.s32.totalorder %s39, 2
      %s41 = scalar_select %p40, 0, %s39
      %s42 = sadd.s32 1, %s33
      %s43 = scalar_select %p40, %s42, %s33
      %p44 = scmp.ge.s32.totalorder %s43, 2
      %s45 = scalar_select %p44, 0, %s43
      %s47 = sadd.s32 %s46, 1
      %p50 = scmp.eq.s32.totalorder %s26, 3
      %p51 = scmp.ne.s32.totalorder %s46, %s48
      %p52 = scmp.eq.s32.totalorder %s26, 0
      %p53 = por %p51, %p52
      %p54 = scmp.ne.s32.totalorder %s46, %s48
      %p55 = scmp.eq.s32.totalorder %s31, 3
      %p56 = por %p54, %p55
      %p57 = scmp.ne.s32.totalorder %s48, %s49
      %p58 = scmp.eq.s32.totalorder %s31, 0
      %p59 = por %p57, %p58
      %p60 = scmp.ne.s32.totalorder %s48, %s49
      %p61 = scmp.eq.s32.totalorder %s32, 3
      %p62 = por %p60, %p61
      %p64 = scmp.ne.s32.totalorder %s49, %s63
      %p65 = scmp.eq.s32.totalorder %s32, 0
      %p66 = por %p64, %p65
      %s68 = sadd.s32 %s67, 1
      %p71 = scmp.eq.s32.totalorder %s26, 3
      %p72 = scmp.ne.s32.totalorder %s67, %s69
      %p73 = scmp.eq.s32.totalorder %s26, 0
      %p74 = por %p72, %p73
      %p75 = scmp.ne.s32.totalorder %s67, %s69
      %p76 = scmp.eq.s32.totalorder %s31, 3
      %p77 = por %p75, %p76
      %p78 = scmp.ne.s32.totalorder %s69, %s70
      %p79 = scmp.eq.s32.totalorder %s31, 0
      %p80 = por %p78, %p79
      %p81 = scmp.ne.s32.totalorder %s69, %s70
      %p82 = scmp.eq.s32.totalorder %s32, 3
      %p83 = por %p81, %p82
      %p85 = scmp.ne.s32.totalorder %s70, %s84
      %p86 = scmp.eq.s32.totalorder %s32, 0
      %p87 = por %p85, %p86
      %s89 = sadd.s32 %s88, 1
      %p92 = scmp.eq.s32.totalorder %s26, 3
      %p93 = scmp.ne.s32.totalorder %s88, %s90
      %p94 = scmp.eq.s32.totalorder %s26, 0
      %p95 = por %p93, %p94
      %p96 = scmp.ne.s32.totalorder %s88, %s90
      %p97 = scmp.eq.s32.totalorder %s31, 3
      %p98 = por %p96, %p97
      %p99 = scmp.ne.s32.totalorder %s90, %s91
      %p100 = scmp.eq.s32.totalorder %s31, 0
      %p101 = por %p99, %p100
      %p102 = scmp.ne.s32.totalorder %s90, %s91
      %p103 = scmp.eq.s32.totalorder %s32, 3
      %p104 = por %p102, %p103
      %p106 = scmp.ne.s32.totalorder %s91, %s105
      %p107 = scmp.eq.s32.totalorder %s32, 0
      %p108 = por %p106, %p107
      %s110 = sadd.s32 %s109, 1
      %p113 = scmp.eq.s32.totalorder %s26, 3
      %p114 = scmp.ne.s32.totalorder %s109, %s111
      %p115 = scmp.eq.s32.totalorder %s26, 0
      %p116 = por %p114, %p115
      %p117 = scmp.ne.s32.totalorder %s109, %s111
      %p118 = scmp.eq.s32.totalorder %s31, 3
      %p119 = por %p117, %p118
      %p120 = scmp.ne.s32.totalorder %s111, %s112
      %p121 = scmp.eq.s32.totalorder %s31, 0
      %p122 = por %p120, %p121
      %p123 = scmp.ne.s32.totalorder %s111, %s112
      %p124 = scmp.eq.s32.totalorder %s32, 3
      %p125 = por %p123, %p124
      %p127 = scmp.ne.s32.totalorder %s112, %s126
      %p128 = scmp.eq.s32.totalorder %s32, 0
      %p129 = por %p127, %p128
      %s131 = sadd.s32 %s130, 1
      %p134 = scmp.eq.s32.totalorder %s26, 3
      %p135 = scmp.ne.s32.totalorder %s130, %s132
      %p136 = scmp.eq.s32.totalorder %s26, 0
      %p137 = por %p135, %p136
      %p138 = scmp.ne.s32.totalorder %s130, %s132
      %p139 = scmp.eq.s32.totalorder %s31, 3
      %p140 = por %p138, %p139
      %p141 = scmp.ne.s32.totalorder %s132, %s133
      %p142 = scmp.eq.s32.totalorder %s31, 0
      %p143 = por %p141, %p142
      %p144 = scmp.ne.s32.totalorder %s132, %s133
      %p145 = scmp.eq.s32.totalorder %s32, 3
      %p146 = por %p144, %p145
      %p148 = scmp.ne.s32.totalorder %s133, %s147
      %p149 = scmp.eq.s32.totalorder %s32, 0
      %p150 = por %p148, %p149
      %s152 = sadd.s32 %s151, 1
      %p155 = scmp.eq.s32.totalorder %s26, 3
      %p156 = scmp.ne.s32.totalorder %s151, %s153
      %p157 = scmp.eq.s32.totalorder %s26, 0
      %p158 = por %p156, %p157
      %p159 = scmp.ne.s32.totalorder %s151, %s153
      %p160 = scmp.eq.s32.totalorder %s31, 3
      %p161 = por %p159, %p160
      %p162 = scmp.ne.s32.totalorder %s153, %s154
      %p163 = scmp.eq.s32.totalorder %s31, 0
      %p164 = por %p162, %p163
      %p165 = scmp.ne.s32.totalorder %s153, %s154
      %p166 = scmp.eq.s32.totalorder %s32, 3
      %p167 = por %p165, %p166
      %p169 = scmp.ne.s32.totalorder %s154, %s168
      %p170 = scmp.eq.s32.totalorder %s32, 0
      %p171 = por %p169, %p170
      %s173 = sadd.s32 %s172, 1
      %p176 = scmp.eq.s32.totalorder %s26, 3
      %p177 = scmp.ne.s32.totalorder %s172, %s174
      %p178 = scmp.eq.s32.totalorder %s26, 0
      %p179 = por %p177, %p178
      %p180 = scmp.ne.s32.totalorder %s172, %s174
      %p181 = scmp.eq.s32.totalorder %s31, 3
      %p182 = por %p180, %p181
      %p183 = scmp.ne.s32.totalorder %s174, %s175
      %p184 = scmp.eq.s32.totalorder %s31, 0
      %p185 = por %p183, %p184
      %p186 = scmp.ne.s32.totalorder %s174, %s175
      %p187 = scmp.eq.s32.totalorder %s32, 3
      %p188 = por %p186, %p187
      %p190 = scmp.ne.s32.totalorder %s175, %s189
      %p191 = scmp.eq.s32.totalorder %s32, 0
      %p192 = por %p190, %p191
      %s193 = ssub.s32 %s33, %s45
      %s194 = ssub.s32 %s34, %s41
      %s195 = sor.u32 %s193, %s194
      %p196 = scmp.eq.s32.totalorder %s195, 0
      %s198 = sadd.s32 %s197, 1
      %s199 = scalar_select %p196, %s197, %s198
      %p202 = pneg %p196
      %p203 = scmp.eq.s32.totalorder %s26, 3
      %p204 = por %p202, %p203
      %p205 = scmp.ne.s32.totalorder %s197, %s200
      %p206 = scmp.eq.s32.totalorder %s26, 0
      %p207 = por %p205, %p206
      %p208 = scmp.ne.s32.totalorder %s197, %s200
      %p209 = scmp.eq.s32.totalorder %s31, 3
      %p210 = por %p208, %p209
      %p211 = scmp.ne.s32.totalorder %s200, %s201
      %p212 = scmp.eq.s32.totalorder %s31, 0
      %p213 = por %p211, %p212
      %p214 = scmp.ne.s32.totalorder %s200, %s201
      %p215 = scmp.eq.s32.totalorder %s32, 3
      %p216 = por %p214, %p215
      %p218 = scmp.ne.s32.totalorder %s201, %s217
      %p219 = scmp.eq.s32.totalorder %s32, 0
      %p220 = por %p218, %p219
      %p221 = scmp.le.s32.totalorder 1, %s26
      %p222 = scmp.lt.s32.totalorder %s26, 5
      %p223 = pnand %p221, %p222
      %p224 = pneg %p223
      // Predicated region
      $region9: #{tpu_custom_call.1} parent=5 // pred_check
        _
      $region10: #{tpu_custom_call.1} parent=5 // pred_check_branch
        %226 = sbr.rel (%p223) target = $region12
      $region11: #{tpu_custom_call.1} parent=5 // pred_region
        %s227 = ssub.s32 %s26, 1
        // Predicated region
        $region13: #{tpu_custom_call.1} parent=11 // pred_check
          %p228 = pneg %p59
        $region14: #{tpu_custom_call.1} parent=11 // pred_check_branch
          %230 = sbr.rel (%p228) target = $region16
        $region15: #{tpu_custom_call.1} parent=11 // pred_region
          _
        $region16: #{tpu_custom_call.1} parent=11 // pred_fallthru
          _
        // Predicated region
        $region17: #{tpu_custom_call.1} parent=11 // pred_check
          %p231 = pneg %p80
        $region18: #{tpu_custom_call.1} parent=11 // pred_check_branch
          %233 = sbr.rel (%p231) target = $region20
        $region19: #{tpu_custom_call.1} parent=11 // pred_region
          _
        $region20: #{tpu_custom_call.1} parent=11 // pred_fallthru
          _
        // Predicated region
        $region21: #{tpu_custom_call.1} parent=11 // pred_check
          %p234 = pneg %p101
        $region22: #{tpu_custom_call.1} parent=11 // pred_check_branch
          %236 = sbr.rel (%p234) target = $region24
        $region23: #{tpu_custom_call.1} parent=11 // pred_region
          _
        $region24: #{tpu_custom_call.1} parent=11 // pred_fallthru
          _
        // Predicated region
        $region25: #{tpu_custom_call.1} parent=11 // pred_check
          %p237 = pneg %p122
        $region26: #{tpu_custom_call.1} parent=11 // pred_check_branch
          %239 = sbr.rel (%p237) target = $region28
        $region27: #{tpu_custom_call.1} parent=11 // pred_region
          _
        $region28: #{tpu_custom_call.1} parent=11 // pred_fallthru
          _
        // Predicated region
        $region29: #{tpu_custom_call.1} parent=11 // pred_check
          %p240 = pneg %p143
        $region30: #{tpu_custom_call.1} parent=11 // pred_check_branch
          %242 = sbr.rel (%p240) target = $region32
        $region31: #{tpu_custom_call.1} parent=11 // pred_region
          _
        $region32: #{tpu_custom_call.1} parent=11 // pred_fallthru
          _
        // Predicated region
        $region33: #{tpu_custom_call.1} parent=11 // pred_check
          %p243 = pneg %p164
        $region34: #{tpu_custom_call.1} parent=11 // pred_check_branch
          %245 = sbr.rel (%p243) target = $region36
        $region35: #{tpu_custom_call.1} parent=11 // pred_region
          _
        $region36: #{tpu_custom_call.1} parent=11 // pred_fallthru
          _
        // Predicated region
        $region37: #{tpu_custom_call.1} parent=11 // pred_check
          %p246 = pneg %p185
        $region38: #{tpu_custom_call.1} parent=11 // pred_check_branch
          %248 = sbr.rel (%p246) target = $region40
        $region39: #{tpu_custom_call.1} parent=11 // pred_region
          _
        $region40: #{tpu_custom_call.1} parent=11 // pred_fallthru
          _
      $region12: #{tpu_custom_call.1} parent=5 // pred_fallthru
        _
      %p249 = scmp.lt.s32.totalorder %s26, 4
      // Predicated region
      $region41: #{tpu_custom_call.1} parent=5 // pred_check
        %p250 = pneg %p249
      $region42: #{tpu_custom_call.1} parent=5 // pred_check_branch
        %252 = sbr.rel (%p250) target = $region44
      $region43: #{tpu_custom_call.1} parent=5 // pred_region
        _
      $region44: #{tpu_custom_call.1} parent=5 // pred_fallthru
        _
      %p253 = scmp.le.s32.totalorder 1, %s26
      %p254 = scmp.lt.s32.totalorder %s26, 5
      %p255 = pnand %p253, %p254
      %p256 = pneg %p255
      // Predicated region
      $region45: #{tpu_custom_call.1} parent=5 // pred_check
        _
      $region46: #{tpu_custom_call.1} parent=5 // pred_check_branch
        %258 = sbr.rel (%p255) target = $region48
      $region47: #{tpu_custom_call.1} parent=5 // pred_region
        %s259 = ssub.s32 %s26, 1
        %p260 = pneg %p59
        %p261 = pneg %p56
        %p262 = pneg %p80
        %p263 = pneg %p77
        %p264 = pneg %p101
        %p265 = pneg %p98
        %p266 = pneg %p122
        %p267 = pneg %p119
        %p268 = pneg %p143
        %p269 = pneg %p140
        %p270 = pneg %p164
        %p271 = pneg %p161
        %p272 = pneg %p185
        %p273 = pneg %p182
        %p274 = pneg %p213
        %p275 = pneg %p210
        %s276 = sand.u32 %s200, 1
        %s277 = scalar_lea.sflag [#allocation9], %s276
        %s278 = sand.u32 %s200, 1
        %s279 = smul.addr %s278, 16
        %s280 = scalar_lea.vmem [#allocation8], %s279
        %s281 = smul.u32 16, %s36
        %s283 = smul.u32 %s36, 1024
        %s284 = sshra.s32 %s283, 7
        %s285 = sand.u32 %s283, 127
        %s286 = smul.u32 %s35, 21
        %s287 = sadd.s32 %s284, %s286
        %s288 = smul.addr %s287, 4
        %s289 = scalar_lea.vmem %s1, %s288
        %p291 = scmp.lt.u32.totalorder 52, 8
        %p292 = pneg %p291
        // Predicated region
        $region49: #{tpu_custom_call.1} parent=47 // pred_check
          _
        $region50: #{tpu_custom_call.1} parent=47 // pred_check_branch
          %294 = sbr.rel (%p291) target = $region52
        $region51: #{tpu_custom_call.1} parent=47 // pred_region
          %s310 = sand.u32 52, 7
          %p311 = scmp.eq.s32.totalorder %s310, 0
          %p312 = pneg %p311
          // Predicated region
          $region64: #{tpu_custom_call.1} parent=51 // pred_check
            _
          $region65: #{tpu_custom_call.1} parent=51 // pred_check_branch
            %314 = sbr.rel (%p311) target = $region67
          $region66: #{tpu_custom_call.1} parent=51 // pred_region
            %s315 = sand.u32 52, 7
            %s316 = ssub.s32 52, %s315
            %s317 = scalar_lea.vmem %s289, %s316
            %s318 = ssub.s32 52, %s315
            %s319 = scalar_lea.vmem [#allocation2], %s318
            loop: start=0, step=1, limit=1
            $region68: #{tpu_custom_call.1} parent=66 // loop_pre_header
              _
            $region69: #{tpu_custom_call.1} parent=66 // loop_header
              %s321 = sphi 0, %s325
              %p322 = scmp.ge.s32.totalorder %s321, 1
              %s326 = sphi %s289, %s289
              %s327 = sphi [#allocation2], [#allocation2]
            $region70: #{tpu_custom_call.1} parent=66 // loop_header_branch
              %324 = sbr.rel (%p322) target = $region74
            $region71: #{tpu_custom_call.1} parent=66 // loop_body
              %v328 = vld [vmem:[%s326] sm:$0xff]
              %329 = vst [vmem:[%s327] sm:$0xff] %v328
              %v330 = vld [vmem:[%s326 + $0x8] sm:$0xff]
              %331 = vst [vmem:[%s327 + $0x8] sm:$0xff] %v330
              %v332 = vld [vmem:[%s326 + $0x10] sm:$0xff]
              %333 = vst [vmem:[%s327 + $0x10] sm:$0xff] %v332
              %v334 = vld [vmem:[%s326 + $0x18] sm:$0xff]
              %335 = vst [vmem:[%s327 + $0x18] sm:$0xff] %v334
              %v336 = vld [vmem:[%s326 + $0x20] sm:$0xff]
              %337 = vst [vmem:[%s327 + $0x20] sm:$0xff] %v336
              %v338 = vld [vmem:[%s326 + $0x28] sm:$0xff]
              %339 = vst [vmem:[%s327 + $0x28] sm:$0xff] %v338
            $region72: #{tpu_custom_call.1} parent=66 // loop_footer
              %s325 = sadd.s32 1, %s321
            $region73: #{tpu_custom_call.1} parent=66 // loop_footer_branch
              %320 = sbr.rel target = $region69
            $region74: #{tpu_custom_call.1} parent=66 // loop_exit
              _
            %s340 = sshll.u32 1, %s315
            %s341 = ssub.s32 %s340, 1
            loop: start=0, step=1, limit=1
            $region75: #{tpu_custom_call.1} parent=66 // loop_pre_header
              _
            $region76: #{tpu_custom_call.1} parent=66 // loop_header
              %s343 = sphi 0, %s347
              %p344 = scmp.ge.s32.totalorder %s343, 1
              %s348 = sphi %s317, %s317
              %s349 = sphi %s319, %s319
            $region77: #{tpu_custom_call.1} parent=66 // loop_header_branch
              %346 = sbr.rel (%p344) target = $region81
            $region78: #{tpu_custom_call.1} parent=66 // loop_body
              %v350 = vld [vmem:[%s348] sm:%s341]
              %351 = vst [vmem:[%s349] sm:%s341] %v350
            $region79: #{tpu_custom_call.1} parent=66 // loop_footer
              %s347 = sadd.s32 1, %s343
            $region80: #{tpu_custom_call.1} parent=66 // loop_footer_branch
              %342 = sbr.rel target = $region76
            $region81: #{tpu_custom_call.1} parent=66 // loop_exit
              _
          $region67: #{tpu_custom_call.1} parent=51 // pred_fallthru
            _
        $region52: #{tpu_custom_call.1} parent=47 // pred_fallthru
          _
        // Predicated region
        $region53: #{tpu_custom_call.1} parent=47 // pred_check
          %p295 = pneg %p291
        $region54: #{tpu_custom_call.1} parent=47 // pred_check_branch
          %297 = sbr.rel (%p295) target = $region56
        $region55: #{tpu_custom_call.1} parent=47 // pred_region
          %s298 = sshll.u32 1, 52
          %s299 = ssub.s32 %s298, 1
          loop: start=0, step=1, limit=1
          $region57: #{tpu_custom_call.1} parent=55 // loop_pre_header
            _
          $region58: #{tpu_custom_call.1} parent=55 // loop_header
            %s301 = sphi 0, %s305
            %p302 = scmp.ge.s32.totalorder %s301, 1
            %s306 = sphi %s289, %s289
            %s307 = sphi [#allocation2], [#allocation2]
          $region59: #{tpu_custom_call.1} parent=55 // loop_header_branch
            %304 = sbr.rel (%p302) target = $region63
          $region60: #{tpu_custom_call.1} parent=55 // loop_body
            %v308 = vld [vmem:[%s306] sm:%s299]
            %309 = vst [vmem:[%s307] sm:%s299] %v308
          $region61: #{tpu_custom_call.1} parent=55 // loop_footer
            %s305 = sadd.s32 1, %s301
          $region62: #{tpu_custom_call.1} parent=55 // loop_footer_branch
            %300 = sbr.rel target = $region58
          $region63: #{tpu_custom_call.1} parent=55 // loop_exit
            _
        $region56: #{tpu_custom_call.1} parent=47 // pred_fallthru
          _
        // Predicated region
        $region82: #{tpu_custom_call.1} parent=47 // pred_check
          _
        $region83: #{tpu_custom_call.1} parent=47 // pred_check_branch
          %354 = sbr.rel (0) target = $region85
        $region84: #{tpu_custom_call.1} parent=47 // pred_region
          %355 = vsyncadd [#allocation4], 832
        $region85: #{tpu_custom_call.1} parent=47 // pred_fallthru
          _
        %s356 = smul.u32 4, 1
        %s357 = smul.u32 %s356, 13
        %s358 = sshll.u32 %s357, 4
        %359 = dma.done [#allocation4], %s358
        %v360 = vld [vmem:[%s2] sm:$0xf]
        %v361 = vld [vmem:[%s2 + $0x4] sm:$0x3]
        %v362 = vld [vmem:[#allocation2] sm:$0xff]
        %v363 = vld [vmem:[#allocation2 + $0x8] sm:$0xff]
        %v364 = vld [vmem:[#allocation2 + $0x10] sm:$0xff]
        %v365 = vld [vmem:[#allocation2 + $0x18] sm:$0xff]
        %v366 = vld [vmem:[#allocation2 + $0x20] sm:$0xff]
        %v367 = vld [vmem:[#allocation2 + $0x28] sm:$0xf]
        %v370 = vunpack.c.l.b16 %v360
        %v371 = vunpack.c.l.b16 %v361
        %v372 = vpack.c.b16 %v371, %v370
        %v379 = vunpack.c.l.b16 %v362
        %v380 = vunpack.c.h.b16 %v362
        %v381 = vunpack.c.l.b16 %v363
        %v382 = vunpack.c.h.b16 %v363
        %v383 = vunpack.c.l.b16 %v364
        %v384 = vunpack.c.h.b16 %v364
        %v385 = vunpack.c.l.b16 %v365
        %v386 = vunpack.c.h.b16 %v365
        %v387 = vunpack.c.l.b16 %v366
        %v388 = vunpack.c.h.b16 %v366
        %v389 = vunpack.c.l.b16 %v367
        %v390 = vpack.c.b16 %v379, %v379
        %v391 = vpack.c.b16 %v380, %v380
        %v392 = vpack.c.b16 %v381, %v381
        %v393 = vpack.c.b16 %v382, %v382
        %v394 = vpack.c.b16 %v383, %v383
        %v395 = vpack.c.b16 %v384, %v384
        %v396 = vpack.c.b16 %v385, %v385
        %v397 = vpack.c.b16 %v386, %v386
        %v398 = vpack.c.b16 %v387, %v387
        %v399 = vpack.c.b16 %v388, %v388
        %v400 = vpack.c.b16 %v389, %v389
        %vm401 = vcmask 64512
        %v403 = vsel %vm401, %v372, 0
        %vm405 = vcmask 1043456
        %v407 = vsel %vm405, %v390, 0
        %v410 = vsel %vm405, %v391, 0
        %v413 = vsel %vm405, %v392, 0
        %v416 = vsel %vm405, %v393, 0
        %v419 = vsel %vm405, %v394, 0
        %v422 = vsel %vm405, %v395, 0
        %v425 = vsel %vm405, %v396, 0
        %v428 = vsel %vm405, %v397, 0
        %v431 = vsel %vm405, %v398, 0
        %v434 = vsel %vm405, %v399, 0
        %v437 = vsel %vm405, %v400, 0
        %439 = vmatprep.subr.bf16.mxu0 0
        %440 = vmatpush1.bf16.msra.mxu0 0
        %441 = vmatprep.subr.bf16.mxu0 0
        %442 = vmatpush1.bf16.msra.mxu0 0
        %443 = vmatprep.subr.bf16.mxu0 0
        %444 = vmatpush1.bf16.msra.mxu0 0
        %445 = vmatprep.subr.bf16.mxu0 0
        %446 = vmatpush1.bf16.msra.mxu0 0
        %447 = vmatprep.subr.bf16.mxu0 0
        %448 = vmatpush1.bf16.msra.mxu0 0
        %449 = vmatprep.subr.bf16.mxu0 0
        %450 = vmatpush1.bf16.msra.mxu0 0
        %451 = vmatprep.subr.bf16.mxu0 0
        %452 = vmatpush1.bf16.msra.mxu0 0
        %453 = vmatprep.subr.bf16.mxu0 %v410
        %454 = vmatpush1.bf16.msra.mxu0 %v407
        %455 = vmatprep.subr.bf16.mxu0 0
        %456 = vmatpush2.bf16.msra.mxu0 0
        %457 = vmatprep.subr.bf16.mxu0 0
        %458 = vmatpush2.bf16.msra.mxu0 0
        %459 = vmatprep.subr.bf16.mxu0 0
        %460 = vmatpush2.bf16.msra.mxu0 0
        %461 = vmatprep.subr.bf16.mxu0 0
        %462 = vmatpush2.bf16.msra.mxu0 0
        %463 = vmatprep.subr.bf16.mxu0 0
        %464 = vmatpush2.bf16.msra.mxu0 0
        %465 = vmatprep.subr.bf16.mxu0 0
        %466 = vmatpush2.bf16.msra.mxu0 0
        %467 = vmatprep.subr.bf16.mxu0 0
        %468 = vmatpush2.bf16.msra.mxu0 0
        %469 = vmatprep.subr.bf16.mxu0 0
        %470 = vmatpush2.bf16.msra.mxu0 0
        %471 = vmatprep.mubr.bf16.mxu0 0
        %472 = vmatmul.mubr.bf16.gmra.mxu0 %v403
        %v473 = vpop.f32.mrf.mxu0
        %v474 = vadd.f32 0.0, %v473
        %v475 = vpop.f32.mrf.mxu0
        %v476 = vadd.f32 0.0, %v475
        %v477 = vpop.f32.mrf.mxu0
        %v478 = vadd.f32 0.0, %v477
        %v479 = vpop.f32.mrf.mxu0
        %v480 = vadd.f32 0.0, %v479
        %481 = vdwg.mxu0
        %482 = vmatprep.subr.bf16.mxu0 0
        %483 = vmatpush1.bf16.msra.mxu0 0
        %484 = vmatprep.subr.bf16.mxu0 0
        %485 = vmatpush1.bf16.msra.mxu0 0
        %486 = vmatprep.subr.bf16.mxu0 0
        %487 = vmatpush1.bf16.msra.mxu0 0
        %488 = vmatprep.subr.bf16.mxu0 0
        %489 = vmatpush1.bf16.msra.mxu0 0
        %490 = vmatprep.subr.bf16.mxu0 0
        %491 = vmatpush1.bf16.msra.mxu0 0
        %492 = vmatprep.subr.bf16.mxu0 0
        %493 = vmatpush1.bf16.msra.mxu0 0
        %494 = vmatprep.subr.bf16.mxu0 0
        %495 = vmatpush1.bf16.msra.mxu0 0
        %496 = vmatprep.subr.bf16.mxu0 %v416
        %497 = vmatpush1.bf16.msra.mxu0 %v413
        %498 = vmatprep.subr.bf16.mxu0 0
        %499 = vmatpush2.bf16.msra.mxu0 0
        %500 = vmatprep.subr.bf16.mxu0 0
        %501 = vmatpush2.bf16.msra.mxu0 0
        %502 = vmatprep.subr.bf16.mxu0 0
        %503 = vmatpush2.bf16.msra.mxu0 0
        %504 = vmatprep.subr.bf16.mxu0 0
        %505 = vmatpush2.bf16.msra.mxu0 0
        %506 = vmatprep.subr.bf16.mxu0 0
        %507 = vmatpush2.bf16.msra.mxu0 0
        %508 = vmatprep.subr.bf16.mxu0 0
        %509 = vmatpush2.bf16.msra.mxu0 0
        %510 = vmatprep.subr.bf16.mxu0 0
        %511 = vmatpush2.bf16.msra.mxu0 0
        %512 = vmatprep.subr.bf16.mxu0 0
        %513 = vmatpush2.bf16.msra.mxu0 0
        %514 = vmatprep.mubr.bf16.mxu0 0
        %515 = vmatmul.mubr.bf16.gmra.mxu0 %v403
        %v516 = vpop.f32.mrf.mxu0
        %v517 = vadd.f32 0.0, %v516
        %v518 = vpop.f32.mrf.mxu0
        %v519 = vadd.f32 0.0, %v518
        %v520 = vpop.f32.mrf.mxu0
        %v521 = vadd.f32 0.0, %v520
        %v522 = vpop.f32.mrf.mxu0
        %v523 = vadd.f32 0.0, %v522
        %524 = vdwg.mxu0
        %525 = vmatprep.subr.bf16.mxu0 0
        %526 = vmatpush1.bf16.msra.mxu0 0
        %527 = vmatprep.subr.bf16.mxu0 0
        %528 = vmatpush1.bf16.msra.mxu0 0
        %529 = vmatprep.subr.bf16.mxu0 0
        %530 = vmatpush1.bf16.msra.mxu0 0
        %531 = vmatprep.subr.bf16.mxu0 0
        %532 = vmatpush1.bf16.msra.mxu0 0
        %533 = vmatprep.subr.bf16.mxu0 0
        %534 = vmatpush1.bf16.msra.mxu0 0
        %535 = vmatprep.subr.bf16.mxu0 0
        %536 = vmatpush1.bf16.msra.mxu0 0
        %537 = vmatprep.subr.bf16.mxu0 0
        %538 = vmatpush1.bf16.msra.mxu0 0
        %539 = vmatprep.subr.bf16.mxu0 %v422
        %540 = vmatpush1.bf16.msra.mxu0 %v419
        %541 = vmatprep.subr.bf16.mxu0 0
        %542 = vmatpush2.bf16.msra.mxu0 0
        %543 = vmatprep.subr.bf16.mxu0 0
        %544 = vmatpush2.bf16.msra.mxu0 0
        %545 = vmatprep.subr.bf16.mxu0 0
        %546 = vmatpush2.bf16.msra.mxu0 0
        %547 = vmatprep.subr.bf16.mxu0 0
        %548 = vmatpush2.bf16.msra.mxu0 0
        %549 = vmatprep.subr.bf16.mxu0 0
        %550 = vmatpush2.bf16.msra.mxu0 0
        %551 = vmatprep.subr.bf16.mxu0 0
        %552 = vmatpush2.bf16.msra.mxu0 0
        %553 = vmatprep.subr.bf16.mxu0 0
        %554 = vmatpush2.bf16.msra.mxu0 0
        %555 = vmatprep.subr.bf16.mxu0 0
        %556 = vmatpush2.bf16.msra.mxu0 0
        %557 = vmatprep.mubr.bf16.mxu0 0
        %558 = vmatmul.mubr.bf16.gmra.mxu0 %v403
        %v559 = vpop.f32.mrf.mxu0
        %v560 = vadd.f32 0.0, %v559
        %v561 = vpop.f32.mrf.mxu0
        %v562 = vadd.f32 0.0, %v561
        %v563 = vpop.f32.mrf.mxu0
        %v564 = vadd.f32 0.0, %v563
        %v565 = vpop.f32.mrf.mxu0
        %v566 = vadd.f32 0.0, %v565
        %567 = vdwg.mxu0
        %568 = vmatprep.subr.bf16.mxu0 0
        %569 = vmatpush1.bf16.msra.mxu0 0
        %570 = vmatprep.subr.bf16.mxu0 0
        %571 = vmatpush1.bf16.msra.mxu0 0
        %572 = vmatprep.subr.bf16.mxu0 0
        %573 = vmatpush1.bf16.msra.mxu0 0
        %574 = vmatprep.subr.bf16.mxu0 0
        %575 = vmatpush1.bf16.msra.mxu0 0
        %576 = vmatprep.subr.bf16.mxu0 0
        %577 = vmatpush1.bf16.msra.mxu0 0
        %578 = vmatprep.subr.bf16.mxu0 0
        %579 = vmatpush1.bf16.msra.mxu0 0
        %580 = vmatprep.subr.bf16.mxu0 0
        %581 = vmatpush1.bf16.msra.mxu0 0
        %582 = vmatprep.subr.bf16.mxu0 %v428
        %583 = vmatpush1.bf16.msra.mxu0 %v425
        %584 = vmatprep.subr.bf16.mxu0 0
        %585 = vmatpush2.bf16.msra.mxu0 0
        %586 = vmatprep.subr.bf16.mxu0 0
        %587 = vmatpush2.bf16.msra.mxu0 0
        %588 = vmatprep.subr.bf16.mxu0 0
        %589 = vmatpush2.bf16.msra.mxu0 0
        %590 = vmatprep.subr.bf16.mxu0 0
        %591 = vmatpush2.bf16.msra.mxu0 0
        %592 = vmatprep.subr.bf16.mxu0 0
        %593 = vmatpush2.bf16.msra.mxu0 0
        %594 = vmatprep.subr.bf16.mxu0 0
        %595 = vmatpush2.bf16.msra.mxu0 0
        %596 = vmatprep.subr.bf16.mxu0 0
        %597 = vmatpush2.bf16.msra.mxu0 0
        %598 = vmatprep.subr.bf16.mxu0 0
        %599 = vmatpush2.bf16.msra.mxu0 0
        %600 = vmatprep.mubr.bf16.mxu0 0
        %601 = vmatmul.mubr.bf16.gmra.mxu0 %v403
        %v602 = vpop.f32.mrf.mxu0
        %v603 = vadd.f32 0.0, %v602
        %v604 = vpop.f32.mrf.mxu0
        %v605 = vadd.f32 0.0, %v604
        %v606 = vpop.f32.mrf.mxu0
        %v607 = vadd.f32 0.0, %v606
        %v608 = vpop.f32.mrf.mxu0
        %v609 = vadd.f32 0.0, %v608
        %610 = vdwg.mxu0
        %611 = vmatprep.subr.bf16.mxu0 0
        %612 = vmatpush1.bf16.msra.mxu0 0
        %613 = vmatprep.subr.bf16.mxu0 0
        %614 = vmatpush1.bf16.msra.mxu0 0
        %615 = vmatprep.subr.bf16.mxu0 0
        %616 = vmatpush1.bf16.msra.mxu0 0
        %617 = vmatprep.subr.bf16.mxu0 0
        %618 = vmatpush1.bf16.msra.mxu0 0
        %619 = vmatprep.subr.bf16.mxu0 0
        %620 = vmatpush1.bf16.msra.mxu0 0
        %621 = vmatprep.subr.bf16.mxu0 0
        %622 = vmatpush1.bf16.msra.mxu0 0
        %623 = vmatprep.subr.bf16.mxu0 0
        %624 = vmatpush1.bf16.msra.mxu0 0
        %625 = vmatprep.subr.bf16.mxu0 %v434
        %626 = vmatpush1.bf16.msra.mxu0 %v431
        %627 = vmatprep.subr.bf16.mxu0 0
        %628 = vmatpush2.bf16.msra.mxu0 0
        %629 = vmatprep.subr.bf16.mxu0 0
        %630 = vmatpush2.bf16.msra.mxu0 0
        %631 = vmatprep.subr.bf16.mxu0 0
        %632 = vmatpush2.bf16.msra.mxu0 0
        %633 = vmatprep.subr.bf16.mxu0 0
        %634 = vmatpush2.bf16.msra.mxu0 0
        %635 = vmatprep.subr.bf16.mxu0 0
        %636 = vmatpush2.bf16.msra.mxu0 0
        %637 = vmatprep.subr.bf16.mxu0 0
        %638 = vmatpush2.bf16.msra.mxu0 0
        %639 = vmatprep.subr.bf16.mxu0 0
        %640 = vmatpush2.bf16.msra.mxu0 0
        %641 = vmatprep.subr.bf16.mxu0 0
        %642 = vmatpush2.bf16.msra.mxu0 0
        %643 = vmatprep.mubr.bf16.mxu0 0
        %644 = vmatmul.mubr.bf16.gmra.mxu0 %v403
        %v645 = vpop.f32.mrf.mxu0
        %v646 = vadd.f32 0.0, %v645
        %v647 = vpop.f32.mrf.mxu0
        %v648 = vadd.f32 0.0, %v647
        %v649 = vpop.f32.mrf.mxu0
        %v650 = vadd.f32 0.0, %v649
        %v651 = vpop.f32.mrf.mxu0
        %v652 = vadd.f32 0.0, %v651
        %653 = vdwg.mxu0
        %654 = vmatprep.subr.bf16.mxu0 0
        %655 = vmatpush1.bf16.msra.mxu0 0
        %656 = vmatprep.subr.bf16.mxu0 0
        %657 = vmatpush1.bf16.msra.mxu0 0
        %658 = vmatprep.subr.bf16.mxu0 0
        %659 = vmatpush1.bf16.msra.mxu0 0
        %660 = vmatprep.subr.bf16.mxu0 0
        %661 = vmatpush1.bf16.msra.mxu0 0
        %662 = vmatprep.subr.bf16.mxu0 0
        %663 = vmatpush1.bf16.msra.mxu0 0
        %664 = vmatprep.subr.bf16.mxu0 0
        %665 = vmatpush1.bf16.msra.mxu0 0
        %666 = vmatprep.subr.bf16.mxu0 0
        %667 = vmatpush1.bf16.msra.mxu0 0
        %668 = vmatprep.subr.bf16.mxu0 0
        %669 = vmatpush1.bf16.msra.mxu0 %v437
        %670 = vmatprep.subr.bf16.mxu0 0
        %671 = vmatpush2.bf16.msra.mxu0 0
        %672 = vmatprep.subr.bf16.mxu0 0
        %673 = vmatpush2.bf16.msra.mxu0 0
        %674 = vmatprep.subr.bf16.mxu0 0
        %675 = vmatpush2.bf16.msra.mxu0 0
        %676 = vmatprep.subr.bf16.mxu0 0
        %677 = vmatpush2.bf16.msra.mxu0 0
        %678 = vmatprep.subr.bf16.mxu0 0
        %679 = vmatpush2.bf16.msra.mxu0 0
        %680 = vmatprep.subr.bf16.mxu0 0
        %681 = vmatpush2.bf16.msra.mxu0 0
        %682 = vmatprep.subr.bf16.mxu0 0
        %683 = vmatpush2.bf16.msra.mxu0 0
        %684 = vmatprep.subr.bf16.mxu0 0
        %685 = vmatpush2.bf16.msra.mxu0 0
        %686 = vmatprep.mubr.bf16.mxu0 0
        %687 = vmatmul.mubr.bf16.gmra.mxu0 %v403
        %v688 = vpop.f32.mrf.mxu0
        %v689 = vadd.f32 0.0, %v688
        %v690 = vpop.f32.mrf.mxu0
        %v691 = vpop.f32.mrf.mxu0
        %v692 = vadd.f32 0.0, %v691
        %v693 = vpop.f32.mrf.mxu0
        %694 = vdwg.mxu0
        %v706 = vrot.slane %v474, 4
        %v707 = vrot.slane %v476, 4
        %v708 = vrot.slane %v517, 4
        %v709 = vrot.slane %v519, 4
        %v710 = vrot.slane %v560, 4
        %v711 = vrot.slane %v562, 4
        %v712 = vrot.slane %v603, 4
        %v713 = vrot.slane %v605, 4
        %v714 = vrot.slane %v646, 4
        %v715 = vrot.slane %v648, 4
        %v716 = vrot.slane %v689, 4
        %717 = vrot.lane.b32.xlu0 %v706, 127
        %v718 = vpop.permute.xlu0 %717
        %719 = vrot.lane.b32.xlu0 %v707, 127
        %v720 = vpop.permute.xlu0 %719
        %721 = vrot.lane.b32.xlu0 %v708, 127
        %v722 = vpop.permute.xlu0 %721
        %723 = vrot.lane.b32.xlu0 %v709, 127
        %v724 = vpop.permute.xlu0 %723
        %725 = vrot.lane.b32.xlu0 %v710, 127
        %v726 = vpop.permute.xlu0 %725
        %727 = vrot.lane.b32.xlu0 %v711, 127
        %v728 = vpop.permute.xlu0 %727
        %729 = vrot.lane.b32.xlu0 %v712, 127
        %v730 = vpop.permute.xlu0 %729
        %731 = vrot.lane.b32.xlu0 %v713, 127
        %v732 = vpop.permute.xlu0 %731
        %733 = vrot.lane.b32.xlu0 %v714, 127
        %v734 = vpop.permute.xlu0 %733
        %735 = vrot.lane.b32.xlu0 %v715, 127
        %v736 = vpop.permute.xlu0 %735
        %737 = vrot.lane.b32.xlu0 %v716, 127
        %v738 = vpop.permute.xlu0 %737
        %vm739 = vcmask 1039360
        %v740 = vsel %vm739, %v718, %v720
        %v741 = vsel %vm739, %v720, %v722
        %v742 = vsel %vm739, %v722, %v724
        %v743 = vsel %vm739, %v724, %v726
        %v744 = vsel %vm739, %v726, %v728
        %v745 = vsel %vm739, %v728, %v730
        %v746 = vsel %vm739, %v730, %v732
        %v747 = vsel %vm739, %v732, %v734
        %v748 = vsel %vm739, %v734, %v736
        %v749 = vsel %vm739, %v736, %v738
        %v760 = vadd.f32 %v474, %v740
        %v761 = vadd.f32 %v476, %v741
        %v762 = vadd.f32 %v517, %v742
        %v763 = vadd.f32 %v519, %v743
        %v764 = vadd.f32 %v560, %v744
        %v765 = vadd.f32 %v562, %v745
        %v766 = vadd.f32 %v603, %v746
        %v767 = vadd.f32 %v605, %v747
        %v768 = vadd.f32 %v646, %v748
        %v769 = vadd.f32 %v648, %v749
        %781 = vrot.lane.b32.xlu0 %v478, 126
        %v782 = vpop.permute.xlu0 %781
        %783 = vrot.lane.b32.xlu0 %v480, 126
        %v784 = vpop.permute.xlu0 %783
        %785 = vrot.lane.b32.xlu0 %v521, 126
        %v786 = vpop.permute.xlu0 %785
        %787 = vrot.lane.b32.xlu0 %v523, 126
        %v788 = vpop.permute.xlu0 %787
        %789 = vrot.lane.b32.xlu0 %v564, 126
        %v790 = vpop.permute.xlu0 %789
        %791 = vrot.lane.b32.xlu0 %v566, 126
        %v792 = vpop.permute.xlu0 %791
        %793 = vrot.lane.b32.xlu0 %v607, 126
        %v794 = vpop.permute.xlu0 %793
        %795 = vrot.lane.b32.xlu0 %v609, 126
        %v796 = vpop.permute.xlu0 %795
        %797 = vrot.lane.b32.xlu0 %v650, 126
        %v798 = vpop.permute.xlu0 %797
        %799 = vrot.lane.b32.xlu0 %v652, 126
        %v800 = vpop.permute.xlu0 %799
        %801 = vrot.lane.b32.xlu0 %v692, 126
        %v802 = vpop.permute.xlu0 %801
        %vm803 = vcmask 1031168
        %v804 = vsel %vm803, %v782, %v784
        %v805 = vsel %vm803, %v784, %v786
        %v806 = vsel %vm803, %v786, %v788
        %v807 = vsel %vm803, %v788, %v790
        %v808 = vsel %vm803, %v790, %v792
        %v809 = vsel %vm803, %v792, %v794
        %v810 = vsel %vm803, %v794, %v796
        %v811 = vsel %vm803, %v796, %v798
        %v812 = vsel %vm803, %v798, %v800
        %v813 = vsel %vm803, %v800, %v802
        %v824 = vadd.f32 %v760, %v804
        %v825 = vadd.f32 %v761, %v805
        %v826 = vadd.f32 %v762, %v806
        %v827 = vadd.f32 %v763, %v807
        %v828 = vadd.f32 %v764, %v808
        %v829 = vadd.f32 %v765, %v809
        %v830 = vadd.f32 %v766, %v810
        %v831 = vadd.f32 %v767, %v811
        %v832 = vadd.f32 %v768, %v812
        %v833 = vadd.f32 %v769, %v813
        %s834 = scalar_lea.vmem %s2, 8
        %v835 = vld [vmem:[%s834] sm:$0xf]
        %v836 = vld [vmem:[%s834 + $0x4] sm:$0x3]
        %v837 = vld [vmem:[#allocation2 + $0x4] sm:$0xff]
        %v838 = vld [vmem:[#allocation2 + $0xc] sm:$0xff]
        %v839 = vld [vmem:[#allocation2 + $0x14] sm:$0xff]
        %v840 = vld [vmem:[#allocation2 + $0x1c] sm:$0xff]
        %v841 = vld [vmem:[#allocation2 + $0x24] sm:$0xff]
        %v842 = vld [vmem:[#allocation2 + $0x2c] sm:$0xf]
        %v845 = vunpack.c.l.b16 %v835
        %v846 = vunpack.c.l.b16 %v836
        %v847 = vpack.c.b16 %v846, %v845
        %v854 = vunpack.c.l.b16 %v837
        %v855 = vunpack.c.h.b16 %v837
        %v856 = vunpack.c.l.b16 %v838
        %v857 = vunpack.c.h.b16 %v838
        %v858 = vunpack.c.l.b16 %v839
        %v859 = vunpack.c.h.b16 %v839
        %v860 = vunpack.c.l.b16 %v840
        %v861 = vunpack.c.h.b16 %v840
        %v862 = vunpack.c.l.b16 %v841
        %v863 = vunpack.c.h.b16 %v841
        %v864 = vunpack.c.l.b16 %v842
        %v865 = vpack.c.b16 %v854, %v854
        %v866 = vpack.c.b16 %v855, %v855
        %v867 = vpack.c.b16 %v856, %v856
        %v868 = vpack.c.b16 %v857, %v857
        %v869 = vpack.c.b16 %v858, %v858
        %v870 = vpack.c.b16 %v859, %v859
        %v871 = vpack.c.b16 %v860, %v860
        %v872 = vpack.c.b16 %v861, %v861
        %v873 = vpack.c.b16 %v862, %v862
        %v874 = vpack.c.b16 %v863, %v863
        %v875 = vpack.c.b16 %v864, %v864
        %v877 = vsel %vm401, %v847, 0
        %v880 = vsel %vm405, %v865, 0
        %v883 = vsel %vm405, %v866, 0
        %v886 = vsel %vm405, %v867, 0
        %v889 = vsel %vm405, %v868, 0
        %v892 = vsel %vm405, %v869, 0
        %v895 = vsel %vm405, %v870, 0
        %v898 = vsel %vm405, %v871, 0
        %v901 = vsel %vm405, %v872, 0
        %v904 = vsel %vm405, %v873, 0
        %v907 = vsel %vm405, %v874, 0
        %v910 = vsel %vm405, %v875, 0
        %912 = vmatprep.subr.bf16.mxu0 0
        %913 = vmatpush1.bf16.msra.mxu0 0
        %914 = vmatprep.subr.bf16.mxu0 0
        %915 = vmatpush1.bf16.msra.mxu0 0
        %916 = vmatprep.subr.bf16.mxu0 0
        %917 = vmatpush1.bf16.msra.mxu0 0
        %918 = vmatprep.subr.bf16.mxu0 0
        %919 = vmatpush1.bf16.msra.mxu0 0
        %920 = vmatprep.subr.bf16.mxu0 0
        %921 = vmatpush1.bf16.msra.mxu0 0
        %922 = vmatprep.subr.bf16.mxu0 0
        %923 = vmatpush1.bf16.msra.mxu0 0
        %924 = vmatprep.subr.bf16.mxu0 0
        %925 = vmatpush1.bf16.msra.mxu0 0
        %926 = vmatprep.subr.bf16.mxu0 %v883
        %927 = vmatpush1.bf16.msra.mxu0 %v880
        %928 = vmatprep.subr.bf16.mxu0 0
        %929 = vmatpush2.bf16.msra.mxu0 0
        %930 = vmatprep.subr.bf16.mxu0 0
        %931 = vmatpush2.bf16.msra.mxu0 0
        %932 = vmatprep.subr.bf16.mxu0 0
        %933 = vmatpush2.bf16.msra.mxu0 0
        %934 = vmatprep.subr.bf16.mxu0 0
        %935 = vmatpush2.bf16.msra.mxu0 0
        %936 = vmatprep.subr.bf16.mxu0 0
        %937 = vmatpush2.bf16.msra.mxu0 0
        %938 = vmatprep.subr.bf16.mxu0 0
        %939 = vmatpush2.bf16.msra.mxu0 0
        %940 = vmatprep.subr.bf16.mxu0 0
        %941 = vmatpush2.bf16.msra.mxu0 0
        %942 = vmatprep.subr.bf16.mxu0 0
        %943 = vmatpush2.bf16.msra.mxu0 0
        %944 = vmatprep.mubr.bf16.mxu0 0
        %945 = vmatmul.mubr.bf16.gmra.mxu0 %v877
        %v946 = vpop.f32.mrf.mxu0
        %v947 = vadd.f32 0.0, %v946
        %v948 = vpop.f32.mrf.mxu0
        %v949 = vadd.f32 0.0, %v948
        %v950 = vpop.f32.mrf.mxu0
        %v951 = vadd.f32 0.0, %v950
        %v952 = vpop.f32.mrf.mxu0
        %v953 = vadd.f32 0.0, %v952
        %954 = vdwg.mxu0
        %955 = vmatprep.subr.bf16.mxu0 0
        %956 = vmatpush1.bf16.msra.mxu0 0
        %957 = vmatprep.subr.bf16.mxu0 0
        %958 = vmatpush1.bf16.msra.mxu0 0
        %959 = vmatprep.subr.bf16.mxu0 0
        %960 = vmatpush1.bf16.msra.mxu0 0
        %961 = vmatprep.subr.bf16.mxu0 0
        %962 = vmatpush1.bf16.msra.mxu0 0
        %963 = vmatprep.subr.bf16.mxu0 0
        %964 = vmatpush1.bf16.msra.mxu0 0
        %965 = vmatprep.subr.bf16.mxu0 0
        %966 = vmatpush1.bf16.msra.mxu0 0
        %967 = vmatprep.subr.bf16.mxu0 0
        %968 = vmatpush1.bf16.msra.mxu0 0
        %969 = vmatprep.subr.bf16.mxu0 %v889
        %970 = vmatpush1.bf16.msra.mxu0 %v886
        %971 = vmatprep.subr.bf16.mxu0 0
        %972 = vmatpush2.bf16.msra.mxu0 0
        %973 = vmatprep.subr.bf16.mxu0 0
        %974 = vmatpush2.bf16.msra.mxu0 0
        %975 = vmatprep.subr.bf16.mxu0 0
        %976 = vmatpush2.bf16.msra.mxu0 0
        %977 = vmatprep.subr.bf16.mxu0 0
        %978 = vmatpush2.bf16.msra.mxu0 0
        %979 = vmatprep.subr.bf16.mxu0 0
        %980 = vmatpush2.bf16.msra.mxu0 0
        %981 = vmatprep.subr.bf16.mxu0 0
        %982 = vmatpush2.bf16.msra.mxu0 0
        %983 = vmatprep.subr.bf16.mxu0 0
        %984 = vmatpush2.bf16.msra.mxu0 0
        %985 = vmatprep.subr.bf16.mxu0 0
        %986 = vmatpush2.bf16.msra.mxu0 0
        %987 = vmatprep.mubr.bf16.mxu0 0
        %988 = vmatmul.mubr.bf16.gmra.mxu0 %v877
        %v989 = vpop.f32.mrf.mxu0
        %v990 = vadd.f32 0.0, %v989
        %v991 = vpop.f32.mrf.mxu0
        %v992 = vadd.f32 0.0, %v991
        %v993 = vpop.f32.mrf.mxu0
        %v994 = vadd.f32 0.0, %v993
        %v995 = vpop.f32.mrf.mxu0
        %v996 = vadd.f32 0.0, %v995
        %997 = vdwg.mxu0
        %998 = vmatprep.subr.bf16.mxu0 0
        %999 = vmatpush1.bf16.msra.mxu0 0
        %1000 = vmatprep.subr.bf16.mxu0 0
        %1001 = vmatpush1.bf16.msra.mxu0 0
        %1002 = vmatprep.subr.bf16.mxu0 0
        %1003 = vmatpush1.bf16.msra.mxu0 0
        %1004 = vmatprep.subr.bf16.mxu0 0
        %1005 = vmatpush1.bf16.msra.mxu0 0
        %1006 = vmatprep.subr.bf16.mxu0 0
        %1007 = vmatpush1.bf16.msra.mxu0 0
        %1008 = vmatprep.subr.bf16.mxu0 0
        %1009 = vmatpush1.bf16.msra.mxu0 0
        %1010 = vmatprep.subr.bf16.mxu0 0
        %1011 = vmatpush1.bf16.msra.mxu0 0
        %1012 = vmatprep.subr.bf16.mxu0 %v895
        %1013 = vmatpush1.bf16.msra.mxu0 %v892
        %1014 = vmatprep.subr.bf16.mxu0 0
        %1015 = vmatpush2.bf16.msra.mxu0 0
        %1016 = vmatprep.subr.bf16.mxu0 0
        %1017 = vmatpush2.bf16.msra.mxu0 0
        %1018 = vmatprep.subr.bf16.mxu0 0
        %1019 = vmatpush2.bf16.msra.mxu0 0
        %1020 = vmatprep.subr.bf16.mxu0 0
        %1021 = vmatpush2.bf16.msra.mxu0 0
        %1022 = vmatprep.subr.bf16.mxu0 0
        %1023 = vmatpush2.bf16.msra.mxu0 0
        %1024 = vmatprep.subr.bf16.mxu0 0
        %1025 = vmatpush2.bf16.msra.mxu0 0
        %1026 = vmatprep.subr.bf16.mxu0 0
        %1027 = vmatpush2.bf16.msra.mxu0 0
        %1028 = vmatprep.subr.bf16.mxu0 0
        %1029 = vmatpush2.bf16.msra.mxu0 0
        %1030 = vmatprep.mubr.bf16.mxu0 0
        %1031 = vmatmul.mubr.bf16.gmra.mxu0 %v877
        %v1032 = vpop.f32.mrf.mxu0
        %v1033 = vadd.f32 0.0, %v1032
        %v1034 = vpop.f32.mrf.mxu0
        %v1035 = vadd.f32 0.0, %v1034
        %v1036 = vpop.f32.mrf.mxu0
        %v1037 = vadd.f32 0.0, %v1036
        %v1038 = vpop.f32.mrf.mxu0
        %v1039 = vadd.f32 0.0, %v1038
        %1040 = vdwg.mxu0
        %1041 = vmatprep.subr.bf16.mxu0 0
        %1042 = vmatpush1.bf16.msra.mxu0 0
        %1043 = vmatprep.subr.bf16.mxu0 0
        %1044 = vmatpush1.bf16.msra.mxu0 0
        %1045 = vmatprep.subr.bf16.mxu0 0
        %1046 = vmatpush1.bf16.msra.mxu0 0
        %1047 = vmatprep.subr.bf16.mxu0 0
        %1048 = vmatpush1.bf16.msra.mxu0 0
        %1049 = vmatprep.subr.bf16.mxu0 0
        %1050 = vmatpush1.bf16.msra.mxu0 0
        %1051 = vmatprep.subr.bf16.mxu0 0
        %1052 = vmatpush1.bf16.msra.mxu0 0
        %1053 = vmatprep.subr.bf16.mxu0 0
        %1054 = vmatpush1.bf16.msra.mxu0 0
        %1055 = vmatprep.subr.bf16.mxu0 %v901
        %1056 = vmatpush1.bf16.msra.mxu0 %v898
        %1057 = vmatprep.subr.bf16.mxu0 0
        %1058 = vmatpush2.bf16.msra.mxu0 0
        %1059 = vmatprep.subr.bf16.mxu0 0
        %1060 = vmatpush2.bf16.msra.mxu0 0
        %1061 = vmatprep.subr.bf16.mxu0 0
        %1062 = vmatpush2.bf16.msra.mxu0 0
        %1063 = vmatprep.subr.bf16.mxu0 0
        %1064 = vmatpush2.bf16.msra.mxu0 0
        %1065 = vmatprep.subr.bf16.mxu0 0
        %1066 = vmatpush2.bf16.msra.mxu0 0
        %1067 = vmatprep.subr.bf16.mxu0 0
        %1068 = vmatpush2.bf16.msra.mxu0 0
        %1069 = vmatprep.subr.bf16.mxu0 0
        %1070 = vmatpush2.bf16.msra.mxu0 0
        %1071 = vmatprep.subr.bf16.mxu0 0
        %1072 = vmatpush2.bf16.msra.mxu0 0
        %1073 = vmatprep.mubr.bf16.mxu0 0
        %1074 = vmatmul.mubr.bf16.gmra.mxu0 %v877
        %v1075 = vpop.f32.mrf.mxu0
        %v1076 = vadd.f32 0.0, %v1075
        %v1077 = vpop.f32.mrf.mxu0
        %v1078 = vadd.f32 0.0, %v1077
        %v1079 = vpop.f32.mrf.mxu0
        %v1080 = vadd.f32 0.0, %v1079
        %v1081 = vpop.f32.mrf.mxu0
        %v1082 = vadd.f32 0.0, %v1081
        %1083 = vdwg.mxu0
        %1084 = vmatprep.subr.bf16.mxu0 0
        %1085 = vmatpush1.bf16.msra.mxu0 0
        %1086 = vmatprep.subr.bf16.mxu0 0
        %1087 = vmatpush1.bf16.msra.mxu0 0
        %1088 = vmatprep.subr.bf16.mxu0 0
        %1089 = vmatpush1.bf16.msra.mxu0 0
        %1090 = vmatprep.subr.bf16.mxu0 0
        %1091 = vmatpush1.bf16.msra.mxu0 0
        %1092 = vmatprep.subr.bf16.mxu0 0
        %1093 = vmatpush1.bf16.msra.mxu0 0
        %1094 = vmatprep.subr.bf16.mxu0 0
        %1095 = vmatpush1.bf16.msra.mxu0 0
        %1096 = vmatprep.subr.bf16.mxu0 0
        %1097 = vmatpush1.bf16.msra.mxu0 0
        %1098 = vmatprep.subr.bf16.mxu0 %v907
        %1099 = vmatpush1.bf16.msra.mxu0 %v904
        %1100 = vmatprep.subr.bf16.mxu0 0
        %1101 = vmatpush2.bf16.msra.mxu0 0
        %1102 = vmatprep.subr.bf16.mxu0 0
        %1103 = vmatpush2.bf16.msra.mxu0 0
        %1104 = vmatprep.subr.bf16.mxu0 0
        %1105 = vmatpush2.bf16.msra.mxu0 0
        %1106 = vmatprep.subr.bf16.mxu0 0
        %1107 = vmatpush2.bf16.msra.mxu0 0
        %1108 = vmatprep.subr.bf16.mxu0 0
        %1109 = vmatpush2.bf16.msra.mxu0 0
        %1110 = vmatprep.subr.bf16.mxu0 0
        %1111 = vmatpush2.bf16.msra.mxu0 0
        %1112 = vmatprep.subr.bf16.mxu0 0
        %1113 = vmatpush2.bf16.msra.mxu0 0
        %1114 = vmatprep.subr.bf16.mxu0 0
        %1115 = vmatpush2.bf16.msra.mxu0 0
        %1116 = vmatprep.mubr.bf16.mxu0 0
        %1117 = vmatmul.mubr.bf16.gmra.mxu0 %v877
        %v1118 = vpop.f32.mrf.mxu0
        %v1119 = vadd.f32 0.0, %v1118
        %v1120 = vpop.f32.mrf.mxu0
        %v1121 = vadd.f32 0.0, %v1120
        %v1122 = vpop.f32.mrf.mxu0
        %v1123 = vadd.f32 0.0, %v1122
        %v1124 = vpop.f32.mrf.mxu0
        %v1125 = vadd.f32 0.0, %v1124
        %1126 = vdwg.mxu0
        %1127 = vmatprep.subr.bf16.mxu0 0
        %1128 = vmatpush1.bf16.msra.mxu0 0
        %1129 = vmatprep.subr.bf16.mxu0 0
        %1130 = vmatpush1.bf16.msra.mxu0 0
        %1131 = vmatprep.subr.bf16.mxu0 0
        %1132 = vmatpush1.bf16.msra.mxu0 0
        %1133 = vmatprep.subr.bf16.mxu0 0
        %1134 = vmatpush1.bf16.msra.mxu0 0
        %1135 = vmatprep.subr.bf16.mxu0 0
        %1136 = vmatpush1.bf16.msra.mxu0 0
        %1137 = vmatprep.subr.bf16.mxu0 0
        %1138 = vmatpush1.bf16.msra.mxu0 0
        %1139 = vmatprep.subr.bf16.mxu0 0
        %1140 = vmatpush1.bf16.msra.mxu0 0
        %1141 = vmatprep.subr.bf16.mxu0 0
        %1142 = vmatpush1.bf16.msra.mxu0 %v910
        %1143 = vmatprep.subr.bf16.mxu0 0
        %1144 = vmatpush2.bf16.msra.mxu0 0
        %1145 = vmatprep.subr.bf16.mxu0 0
        %1146 = vmatpush2.bf16.msra.mxu0 0
        %1147 = vmatprep.subr.bf16.mxu0 0
        %1148 = vmatpush2.bf16.msra.mxu0 0
        %1149 = vmatprep.subr.bf16.mxu0 0
        %1150 = vmatpush2.bf16.msra.mxu0 0
        %1151 = vmatprep.subr.bf16.mxu0 0
        %1152 = vmatpush2.bf16.msra.mxu0 0
        %1153 = vmatprep.subr.bf16.mxu0 0
        %1154 = vmatpush2.bf16.msra.mxu0 0
        %1155 = vmatprep.subr.bf16.mxu0 0
        %1156 = vmatpush2.bf16.msra.mxu0 0
        %1157 = vmatprep.subr.bf16.mxu0 0
        %1158 = vmatpush2.bf16.msra.mxu0 0
        %1159 = vmatprep.mubr.bf16.mxu0 0
        %1160 = vmatmul.mubr.bf16.gmra.mxu0 %v877
        %v1161 = vpop.f32.mrf.mxu0
        %v1162 = vadd.f32 0.0, %v1161
        %v1163 = vpop.f32.mrf.mxu0
        %v1164 = vpop.f32.mrf.mxu0
        %v1165 = vadd.f32 0.0, %v1164
        %v1166 = vpop.f32.mrf.mxu0
        %1167 = vdwg.mxu0
        %v1168 = vadd.f32 %v824, %v947
        %v1169 = vadd.f32 %v825, %v949
        %v1170 = vadd.f32 %v826, %v990
        %v1171 = vadd.f32 %v827, %v992
        %v1172 = vadd.f32 %v828, %v1033
        %v1173 = vadd.f32 %v829, %v1035
        %v1174 = vadd.f32 %v830, %v1076
        %v1175 = vadd.f32 %v831, %v1078
        %v1176 = vadd.f32 %v832, %v1119
        %v1177 = vadd.f32 %v833, %v1121
        %v1189 = vrot.slane %v947, 4
        %v1190 = vrot.slane %v949, 4
        %v1191 = vrot.slane %v990, 4
        %v1192 = vrot.slane %v992, 4
        %v1193 = vrot.slane %v1033, 4
        %v1194 = vrot.slane %v1035, 4
        %v1195 = vrot.slane %v1076, 4
        %v1196 = vrot.slane %v1078, 4
        %v1197 = vrot.slane %v1119, 4
        %v1198 = vrot.slane %v1121, 4
        %v1199 = vrot.slane %v1162, 4
        %1200 = vrot.lane.b32.xlu0 %v1189, 127
        %v1201 = vpop.permute.xlu0 %1200
        %1202 = vrot.lane.b32.xlu0 %v1190, 127
        %v1203 = vpop.permute.xlu0 %1202
        %1204 = vrot.lane.b32.xlu0 %v1191, 127
        %v1205 = vpop.permute.xlu0 %1204
        %1206 = vrot.lane.b32.xlu0 %v1192, 127
        %v1207 = vpop.permute.xlu0 %1206
        %1208 = vrot.lane.b32.xlu0 %v1193, 127
        %v1209 = vpop.permute.xlu0 %1208
        %1210 = vrot.lane.b32.xlu0 %v1194, 127
        %v1211 = vpop.permute.xlu0 %1210
        %1212 = vrot.lane.b32.xlu0 %v1195, 127
        %v1213 = vpop.permute.xlu0 %1212
        %1214 = vrot.lane.b32.xlu0 %v1196, 127
        %v1215 = vpop.permute.xlu0 %1214
        %1216 = vrot.lane.b32.xlu0 %v1197, 127
        %v1217 = vpop.permute.xlu0 %1216
        %1218 = vrot.lane.b32.xlu0 %v1198, 127
        %v1219 = vpop.permute.xlu0 %1218
        %1220 = vrot.lane.b32.xlu0 %v1199, 127
        %v1221 = vpop.permute.xlu0 %1220
        %v1222 = vsel %vm739, %v1201, %v1203
        %v1223 = vsel %vm739, %v1203, %v1205
        %v1224 = vsel %vm739, %v1205, %v1207
        %v1225 = vsel %vm739, %v1207, %v1209
        %v1226 = vsel %vm739, %v1209, %v1211
        %v1227 = vsel %vm739, %v1211, %v1213
        %v1228 = vsel %vm739, %v1213, %v1215
        %v1229 = vsel %vm739, %v1215, %v1217
        %v1230 = vsel %vm739, %v1217, %v1219
        %v1231 = vsel %vm739, %v1219, %v1221
        %v1242 = vadd.f32 %v1168, %v1222
        %v1243 = vadd.f32 %v1169, %v1223
        %v1244 = vadd.f32 %v1170, %v1224
        %v1245 = vadd.f32 %v1171, %v1225
        %v1246 = vadd.f32 %v1172, %v1226
        %v1247 = vadd.f32 %v1173, %v1227
        %v1248 = vadd.f32 %v1174, %v1228
        %v1249 = vadd.f32 %v1175, %v1229
        %v1250 = vadd.f32 %v1176, %v1230
        %v1251 = vadd.f32 %v1177, %v1231
        %1263 = vrot.lane.b32.xlu0 %v951, 126
        %v1264 = vpop.permute.xlu0 %1263
        %1265 = vrot.lane.b32.xlu0 %v953, 126
        %v1266 = vpop.permute.xlu0 %1265
        %1267 = vrot.lane.b32.xlu0 %v994, 126
        %v1268 = vpop.permute.xlu0 %1267
        %1269 = vrot.lane.b32.xlu0 %v996, 126
        %v1270 = vpop.permute.xlu0 %1269
        %1271 = vrot.lane.b32.xlu0 %v1037, 126
        %v1272 = vpop.permute.xlu0 %1271
        %1273 = vrot.lane.b32.xlu0 %v1039, 126
        %v1274 = vpop.permute.xlu0 %1273
        %1275 = vrot.lane.b32.xlu0 %v1080, 126
        %v1276 = vpop.permute.xlu0 %1275
        %1277 = vrot.lane.b32.xlu0 %v1082, 126
        %v1278 = vpop.permute.xlu0 %1277
        %1279 = vrot.lane.b32.xlu0 %v1123, 126
        %v1280 = vpop.permute.xlu0 %1279
        %1281 = vrot.lane.b32.xlu0 %v1125, 126
        %v1282 = vpop.permute.xlu0 %1281
        %1283 = vrot.lane.b32.xlu0 %v1165, 126
        %v1284 = vpop.permute.xlu0 %1283
        %v1285 = vsel %vm803, %v1264, %v1266
        %v1286 = vsel %vm803, %v1266, %v1268
        %v1287 = vsel %vm803, %v1268, %v1270
        %v1288 = vsel %vm803, %v1270, %v1272
        %v1289 = vsel %vm803, %v1272, %v1274
        %v1290 = vsel %vm803, %v1274, %v1276
        %v1291 = vsel %vm803, %v1276, %v1278
        %v1292 = vsel %vm803, %v1278, %v1280
        %v1293 = vsel %vm803, %v1280, %v1282
        %v1294 = vsel %vm803, %v1282, %v1284
        %v1305 = vadd.f32 %v1242, %v1285
        %v1306 = vadd.f32 %v1243, %v1286
        %v1307 = vadd.f32 %v1244, %v1287
        %v1308 = vadd.f32 %v1245, %v1288
        %v1309 = vadd.f32 %v1246, %v1289
        %v1310 = vadd.f32 %v1247, %v1290
        %v1311 = vadd.f32 %v1248, %v1291
        %v1312 = vadd.f32 %v1249, %v1292
        %v1313 = vadd.f32 %v1250, %v1293
        %v1314 = vadd.f32 %v1251, %v1294
        %s1315 = scalar_lea.vmem %s2, 16
        %v1316 = vld [vmem:[%s1315] sm:$0xf]
        %v1317 = vld [vmem:[%s1315 + $0x4] sm:$0x3]
        %v1318 = vld [vmem:[#allocation2 + $0x8] sm:$0xff]
        %v1319 = vld [vmem:[#allocation2 + $0x10] sm:$0xff]
        %v1320 = vld [vmem:[#allocation2 + $0x18] sm:$0xff]
        %v1321 = vld [vmem:[#allocation2 + $0x20] sm:$0xff]
        %v1322 = vld [vmem:[#allocation2 + $0x28] sm:$0xff]
        %v1323 = vld [vmem:[#allocation2 + $0x30] sm:$0xf]
        %v1326 = vunpack.c.l.b16 %v1316
        %v1327 = vunpack.c.l.b16 %v1317
        %v1328 = vpack.c.b16 %v1327, %v1326
        %v1335 = vunpack.c.l.b16 %v1318
        %v1336 = vunpack.c.h.b16 %v1318
        %v1337 = vunpack.c.l.b16 %v1319
        %v1338 = vunpack.c.h.b16 %v1319
        %v1339 = vunpack.c.l.b16 %v1320
        %v1340 = vunpack.c.h.b16 %v1320
        %v1341 = vunpack.c.l.b16 %v1321
        %v1342 = vunpack.c.h.b16 %v1321
        %v1343 = vunpack.c.l.b16 %v1322
        %v1344 = vunpack.c.h.b16 %v1322
        %v1345 = vunpack.c.l.b16 %v1323
        %v1346 = vpack.c.b16 %v1335, %v1335
        %v1347 = vpack.c.b16 %v1336, %v1336
        %v1348 = vpack.c.b16 %v1337, %v1337
        %v1349 = vpack.c.b16 %v1338, %v1338
        %v1350 = vpack.c.b16 %v1339, %v1339
        %v1351 = vpack.c.b16 %v1340, %v1340
        %v1352 = vpack.c.b16 %v1341, %v1341
        %v1353 = vpack.c.b16 %v1342, %v1342
        %v1354 = vpack.c.b16 %v1343, %v1343
        %v1355 = vpack.c.b16 %v1344, %v1344
        %v1356 = vpack.c.b16 %v1345, %v1345
        %v1358 = vsel %vm401, %v1328, 0
        %v1361 = vsel %vm405, %v1346, 0
        %v1364 = vsel %vm405, %v1347, 0
        %v1367 = vsel %vm405, %v1348, 0
        %v1370 = vsel %vm405, %v1349, 0
        %v1373 = vsel %vm405, %v1350, 0
        %v1376 = vsel %vm405, %v1351, 0
        %v1379 = vsel %vm405, %v1352, 0
        %v1382 = vsel %vm405, %v1353, 0
        %v1385 = vsel %vm405, %v1354, 0
        %v1388 = vsel %vm405, %v1355, 0
        %v1391 = vsel %vm405, %v1356, 0
        %1393 = vmatprep.subr.bf16.mxu0 0
        %1394 = vmatpush1.bf16.msra.mxu0 0
        %1395 = vmatprep.subr.bf16.mxu0 0
        %1396 = vmatpush1.bf16.msra.mxu0 0
        %1397 = vmatprep.subr.bf16.mxu0 0
        %1398 = vmatpush1.bf16.msra.mxu0 0
        %1399 = vmatprep.subr.bf16.mxu0 0
        %1400 = vmatpush1.bf16.msra.mxu0 0
        %1401 = vmatprep.subr.bf16.mxu0 0
        %1402 = vmatpush1.bf16.msra.mxu0 0
        %1403 = vmatprep.subr.bf16.mxu0 0
        %1404 = vmatpush1.bf16.msra.mxu0 0
        %1405 = vmatprep.subr.bf16.mxu0 0
        %1406 = vmatpush1.bf16.msra.mxu0 0
        %1407 = vmatprep.subr.bf16.mxu0 %v1364
        %1408 = vmatpush1.bf16.msra.mxu0 %v1361
        %1409 = vmatprep.subr.bf16.mxu0 0
        %1410 = vmatpush2.bf16.msra.mxu0 0
        %1411 = vmatprep.subr.bf16.mxu0 0
        %1412 = vmatpush2.bf16.msra.mxu0 0
        %1413 = vmatprep.subr.bf16.mxu0 0
        %1414 = vmatpush2.bf16.msra.mxu0 0
        %1415 = vmatprep.subr.bf16.mxu0 0
        %1416 = vmatpush2.bf16.msra.mxu0 0
        %1417 = vmatprep.subr.bf16.mxu0 0
        %1418 = vmatpush2.bf16.msra.mxu0 0
        %1419 = vmatprep.subr.bf16.mxu0 0
        %1420 = vmatpush2.bf16.msra.mxu0 0
        %1421 = vmatprep.subr.bf16.mxu0 0
        %1422 = vmatpush2.bf16.msra.mxu0 0
        %1423 = vmatprep.subr.bf16.mxu0 0
        %1424 = vmatpush2.bf16.msra.mxu0 0
        %1425 = vmatprep.mubr.bf16.mxu0 0
        %1426 = vmatmul.mubr.bf16.gmra.mxu0 %v1358
        %v1427 = vpop.f32.mrf.mxu0
        %v1428 = vadd.f32 0.0, %v1427
        %v1429 = vpop.f32.mrf.mxu0
        %v1430 = vadd.f32 0.0, %v1429
        %v1431 = vpop.f32.mrf.mxu0
        %v1432 = vadd.f32 0.0, %v1431
        %v1433 = vpop.f32.mrf.mxu0
        %v1434 = vadd.f32 0.0, %v1433
        %1435 = vdwg.mxu0
        %1436 = vmatprep.subr.bf16.mxu0 0
        %1437 = vmatpush1.bf16.msra.mxu0 0
        %1438 = vmatprep.subr.bf16.mxu0 0
        %1439 = vmatpush1.bf16.msra.mxu0 0
        %1440 = vmatprep.subr.bf16.mxu0 0
        %1441 = vmatpush1.bf16.msra.mxu0 0
        %1442 = vmatprep.subr.bf16.mxu0 0
        %1443 = vmatpush1.bf16.msra.mxu0 0
        %1444 = vmatprep.subr.bf16.mxu0 0
        %1445 = vmatpush1.bf16.msra.mxu0 0
        %1446 = vmatprep.subr.bf16.mxu0 0
        %1447 = vmatpush1.bf16.msra.mxu0 0
        %1448 = vmatprep.subr.bf16.mxu0 0
        %1449 = vmatpush1.bf16.msra.mxu0 0
        %1450 = vmatprep.subr.bf16.mxu0 %v1370
        %1451 = vmatpush1.bf16.msra.mxu0 %v1367
        %1452 = vmatprep.subr.bf16.mxu0 0
        %1453 = vmatpush2.bf16.msra.mxu0 0
        %1454 = vmatprep.subr.bf16.mxu0 0
        %1455 = vmatpush2.bf16.msra.mxu0 0
        %1456 = vmatprep.subr.bf16.mxu0 0
        %1457 = vmatpush2.bf16.msra.mxu0 0
        %1458 = vmatprep.subr.bf16.mxu0 0
        %1459 = vmatpush2.bf16.msra.mxu0 0
        %1460 = vmatprep.subr.bf16.mxu0 0
        %1461 = vmatpush2.bf16.msra.mxu0 0
        %1462 = vmatprep.subr.bf16.mxu0 0
        %1463 = vmatpush2.bf16.msra.mxu0 0
        %1464 = vmatprep.subr.bf16.mxu0 0
        %1465 = vmatpush2.bf16.msra.mxu0 0
        %1466 = vmatprep.subr.bf16.mxu0 0
        %1467 = vmatpush2.bf16.msra.mxu0 0
        %1468 = vmatprep.mubr.bf16.mxu0 0
        %1469 = vmatmul.mubr.bf16.gmra.mxu0 %v1358
        %v1470 = vpop.f32.mrf.mxu0
        %v1471 = vadd.f32 0.0, %v1470
        %v1472 = vpop.f32.mrf.mxu0
        %v1473 = vadd.f32 0.0, %v1472
        %v1474 = vpop.f32.mrf.mxu0
        %v1475 = vadd.f32 0.0, %v1474
        %v1476 = vpop.f32.mrf.mxu0
        %v1477 = vadd.f32 0.0, %v1476
        %1478 = vdwg.mxu0
        %1479 = vmatprep.subr.bf16.mxu0 0
        %1480 = vmatpush1.bf16.msra.mxu0 0
        %1481 = vmatprep.subr.bf16.mxu0 0
        %1482 = vmatpush1.bf16.msra.mxu0 0
        %1483 = vmatprep.subr.bf16.mxu0 0
        %1484 = vmatpush1.bf16.msra.mxu0 0
        %1485 = vmatprep.subr.bf16.mxu0 0
        %1486 = vmatpush1.bf16.msra.mxu0 0
        %1487 = vmatprep.subr.bf16.mxu0 0
        %1488 = vmatpush1.bf16.msra.mxu0 0
        %1489 = vmatprep.subr.bf16.mxu0 0
        %1490 = vmatpush1.bf16.msra.mxu0 0
        %1491 = vmatprep.subr.bf16.mxu0 0
        %1492 = vmatpush1.bf16.msra.mxu0 0
        %1493 = vmatprep.subr.bf16.mxu0 %v1376
        %1494 = vmatpush1.bf16.msra.mxu0 %v1373
        %1495 = vmatprep.subr.bf16.mxu0 0
        %1496 = vmatpush2.bf16.msra.mxu0 0
        %1497 = vmatprep.subr.bf16.mxu0 0
        %1498 = vmatpush2.bf16.msra.mxu0 0
        %1499 = vmatprep.subr.bf16.mxu0 0
        %1500 = vmatpush2.bf16.msra.mxu0 0
        %1501 = vmatprep.subr.bf16.mxu0 0
        %1502 = vmatpush2.bf16.msra.mxu0 0
        %1503 = vmatprep.subr.bf16.mxu0 0
        %1504 = vmatpush2.bf16.msra.mxu0 0
        %1505 = vmatprep.subr.bf16.mxu0 0
        %1506 = vmatpush2.bf16.msra.mxu0 0
        %1507 = vmatprep.subr.bf16.mxu0 0
        %1508 = vmatpush2.bf16.msra.mxu0 0
        %1509 = vmatprep.subr.bf16.mxu0 0
        %1510 = vmatpush2.bf16.msra.mxu0 0
        %1511 = vmatprep.mubr.bf16.mxu0 0
        %1512 = vmatmul.mubr.bf16.gmra.mxu0 %v1358
        %v1513 = vpop.f32.mrf.mxu0
        %v1514 = vadd.f32 0.0, %v1513
        %v1515 = vpop.f32.mrf.mxu0
        %v1516 = vadd.f32 0.0, %v1515
        %v1517 = vpop.f32.mrf.mxu0
        %v1518 = vadd.f32 0.0, %v1517
        %v1519 = vpop.f32.mrf.mxu0
        %v1520 = vadd.f32 0.0, %v1519
        %1521 = vdwg.mxu0
        %1522 = vmatprep.subr.bf16.mxu0 0
        %1523 = vmatpush1.bf16.msra.mxu0 0
        %1524 = vmatprep.subr.bf16.mxu0 0
        %1525 = vmatpush1.bf16.msra.mxu0 0
        %1526 = vmatprep.subr.bf16.mxu0 0
        %1527 = vmatpush1.bf16.msra.mxu0 0
        %1528 = vmatprep.subr.bf16.mxu0 0
        %1529 = vmatpush1.bf16.msra.mxu0 0
        %1530 = vmatprep.subr.bf16.mxu0 0
        %1531 = vmatpush1.bf16.msra.mxu0 0
        %1532 = vmatprep.subr.bf16.mxu0 0
        %1533 = vmatpush1.bf16.msra.mxu0 0
        %1534 = vmatprep.subr.bf16.mxu0 0
        %1535 = vmatpush1.bf16.msra.mxu0 0
        %1536 = vmatprep.subr.bf16.mxu0 %v1382
        %1537 = vmatpush1.bf16.msra.mxu0 %v1379
        %1538 = vmatprep.subr.bf16.mxu0 0
        %1539 = vmatpush2.bf16.msra.mxu0 0
        %1540 = vmatprep.subr.bf16.mxu0 0
        %1541 = vmatpush2.bf16.msra.mxu0 0
        %1542 = vmatprep.subr.bf16.mxu0 0
        %1543 = vmatpush2.bf16.msra.mxu0 0
        %1544 = vmatprep.subr.bf16.mxu0 0
        %1545 = vmatpush2.bf16.msra.mxu0 0
        %1546 = vmatprep.subr.bf16.mxu0 0
        %1547 = vmatpush2.bf16.msra.mxu0 0
        %1548 = vmatprep.subr.bf16.mxu0 0
        %1549 = vmatpush2.bf16.msra.mxu0 0
        %1550 = vmatprep.subr.bf16.mxu0 0
        %1551 = vmatpush2.bf16.msra.mxu0 0
        %1552 = vmatprep.subr.bf16.mxu0 0
        %1553 = vmatpush2.bf16.msra.mxu0 0
        %1554 = vmatprep.mubr.bf16.mxu0 0
        %1555 = vmatmul.mubr.bf16.gmra.mxu0 %v1358
        %v1556 = vpop.f32.mrf.mxu0
        %v1557 = vadd.f32 0.0, %v1556
        %v1558 = vpop.f32.mrf.mxu0
        %v1559 = vadd.f32 0.0, %v1558
        %v1560 = vpop.f32.mrf.mxu0
        %v1561 = vadd.f32 0.0, %v1560
        %v1562 = vpop.f32.mrf.mxu0
        %v1563 = vadd.f32 0.0, %v1562
        %1564 = vdwg.mxu0
        %1565 = vmatprep.subr.bf16.mxu0 0
        %1566 = vmatpush1.bf16.msra.mxu0 0
        %1567 = vmatprep.subr.bf16.mxu0 0
        %1568 = vmatpush1.bf16.msra.mxu0 0
        %1569 = vmatprep.subr.bf16.mxu0 0
        %1570 = vmatpush1.bf16.msra.mxu0 0
        %1571 = vmatprep.subr.bf16.mxu0 0
        %1572 = vmatpush1.bf16.msra.mxu0 0
        %1573 = vmatprep.subr.bf16.mxu0 0
        %1574 = vmatpush1.bf16.msra.mxu0 0
        %1575 = vmatprep.subr.bf16.mxu0 0
        %1576 = vmatpush1.bf16.msra.mxu0 0
        %1577 = vmatprep.subr.bf16.mxu0 0
        %1578 = vmatpush1.bf16.msra.mxu0 0
        %1579 = vmatprep.subr.bf16.mxu0 %v1388
        %1580 = vmatpush1.bf16.msra.mxu0 %v1385
        %1581 = vmatprep.subr.bf16.mxu0 0
        %1582 = vmatpush2.bf16.msra.mxu0 0
        %1583 = vmatprep.subr.bf16.mxu0 0
        %1584 = vmatpush2.bf16.msra.mxu0 0
        %1585 = vmatprep.subr.bf16.mxu0 0
        %1586 = vmatpush2.bf16.msra.mxu0 0
        %1587 = vmatprep.subr.bf16.mxu0 0
        %1588 = vmatpush2.bf16.msra.mxu0 0
        %1589 = vmatprep.subr.bf16.mxu0 0
        %1590 = vmatpush2.bf16.msra.mxu0 0
        %1591 = vmatprep.subr.bf16.mxu0 0
        %1592 = vmatpush2.bf16.msra.mxu0 0
        %1593 = vmatprep.subr.bf16.mxu0 0
        %1594 = vmatpush2.bf16.msra.mxu0 0
        %1595 = vmatprep.subr.bf16.mxu0 0
        %1596 = vmatpush2.bf16.msra.mxu0 0
        %1597 = vmatprep.mubr.bf16.mxu0 0
        %1598 = vmatmul.mubr.bf16.gmra.mxu0 %v1358
        %v1599 = vpop.f32.mrf.mxu0
        %v1600 = vadd.f32 0.0, %v1599
        %v1601 = vpop.f32.mrf.mxu0
        %v1602 = vadd.f32 0.0, %v1601
        %v1603 = vpop.f32.mrf.mxu0
        %v1604 = vadd.f32 0.0, %v1603
        %v1605 = vpop.f32.mrf.mxu0
        %v1606 = vadd.f32 0.0, %v1605
        %1607 = vdwg.mxu0
        %1608 = vmatprep.subr.bf16.mxu0 0
        %1609 = vmatpush1.bf16.msra.mxu0 0
        %1610 = vmatprep.subr.bf16.mxu0 0
        %1611 = vmatpush1.bf16.msra.mxu0 0
        %1612 = vmatprep.subr.bf16.mxu0 0
        %1613 = vmatpush1.bf16.msra.mxu0 0
        %1614 = vmatprep.subr.bf16.mxu0 0
        %1615 = vmatpush1.bf16.msra.mxu0 0
        %1616 = vmatprep.subr.bf16.mxu0 0
        %1617 = vmatpush1.bf16.msra.mxu0 0
        %1618 = vmatprep.subr.bf16.mxu0 0
        %1619 = vmatpush1.bf16.msra.mxu0 0
        %1620 = vmatprep.subr.bf16.mxu0 0
        %1621 = vmatpush1.bf16.msra.mxu0 0
        %1622 = vmatprep.subr.bf16.mxu0 0
        %1623 = vmatpush1.bf16.msra.mxu0 %v1391
        %1624 = vmatprep.subr.bf16.mxu0 0
        %1625 = vmatpush2.bf16.msra.mxu0 0
        %1626 = vmatprep.subr.bf16.mxu0 0
        %1627 = vmatpush2.bf16.msra.mxu0 0
        %1628 = vmatprep.subr.bf16.mxu0 0
        %1629 = vmatpush2.bf16.msra.mxu0 0
        %1630 = vmatprep.subr.bf16.mxu0 0
        %1631 = vmatpush2.bf16.msra.mxu0 0
        %1632 = vmatprep.subr.bf16.mxu0 0
        %1633 = vmatpush2.bf16.msra.mxu0 0
        %1634 = vmatprep.subr.bf16.mxu0 0
        %1635 = vmatpush2.bf16.msra.mxu0 0
        %1636 = vmatprep.subr.bf16.mxu0 0
        %1637 = vmatpush2.bf16.msra.mxu0 0
        %1638 = vmatprep.subr.bf16.mxu0 0
        %1639 = vmatpush2.bf16.msra.mxu0 0
        %1640 = vmatprep.mubr.bf16.mxu0 0
        %1641 = vmatmul.mubr.bf16.gmra.mxu0 %v1358
        %v1642 = vpop.f32.mrf.mxu0
        %v1643 = vadd.f32 0.0, %v1642
        %v1644 = vpop.f32.mrf.mxu0
        %v1645 = vpop.f32.mrf.mxu0
        %v1646 = vadd.f32 0.0, %v1645
        %v1647 = vpop.f32.mrf.mxu0
        %1648 = vdwg.mxu0
        %v1649 = vadd.f32 %v1305, %v1428
        %v1650 = vadd.f32 %v1306, %v1430
        %v1651 = vadd.f32 %v1307, %v1471
        %v1652 = vadd.f32 %v1308, %v1473
        %v1653 = vadd.f32 %v1309, %v1514
        %v1654 = vadd.f32 %v1310, %v1516
        %v1655 = vadd.f32 %v1311, %v1557
        %v1656 = vadd.f32 %v1312, %v1559
        %v1657 = vadd.f32 %v1313, %v1600
        %v1658 = vadd.f32 %v1314, %v1602
        %v1670 = vrot.slane %v1428, 4
        %v1671 = vrot.slane %v1430, 4
        %v1672 = vrot.slane %v1471, 4
        %v1673 = vrot.slane %v1473, 4
        %v1674 = vrot.slane %v1514, 4
        %v1675 = vrot.slane %v1516, 4
        %v1676 = vrot.slane %v1557, 4
        %v1677 = vrot.slane %v1559, 4
        %v1678 = vrot.slane %v1600, 4
        %v1679 = vrot.slane %v1602, 4
        %v1680 = vrot.slane %v1643, 4
        %1681 = vrot.lane.b32.xlu0 %v1670, 127
        %v1682 = vpop.permute.xlu0 %1681
        %1683 = vrot.lane.b32.xlu0 %v1671, 127
        %v1684 = vpop.permute.xlu0 %1683
        %1685 = vrot.lane.b32.xlu0 %v1672, 127
        %v1686 = vpop.permute.xlu0 %1685
        %1687 = vrot.lane.b32.xlu0 %v1673, 127
        %v1688 = vpop.permute.xlu0 %1687
        %1689 = vrot.lane.b32.xlu0 %v1674, 127
        %v1690 = vpop.permute.xlu0 %1689
        %1691 = vrot.lane.b32.xlu0 %v1675, 127
        %v1692 = vpop.permute.xlu0 %1691
        %1693 = vrot.lane.b32.xlu0 %v1676, 127
        %v1694 = vpop.permute.xlu0 %1693
        %1695 = vrot.lane.b32.xlu0 %v1677, 127
        %v1696 = vpop.permute.xlu0 %1695
        %1697 = vrot.lane.b32.xlu0 %v1678, 127
        %v1698 = vpop.permute.xlu0 %1697
        %1699 = vrot.lane.b32.xlu0 %v1679, 127
        %v1700 = vpop.permute.xlu0 %1699
        %1701 = vrot.lane.b32.xlu0 %v1680, 127
        %v1702 = vpop.permute.xlu0 %1701
        %v1703 = vsel %vm739, %v1682, %v1684
        %v1704 = vsel %vm739, %v1684, %v1686
        %v1705 = vsel %vm739, %v1686, %v1688
        %v1706 = vsel %vm739, %v1688, %v1690
        %v1707 = vsel %vm739, %v1690, %v1692
        %v1708 = vsel %vm739, %v1692, %v1694
        %v1709 = vsel %vm739, %v1694, %v1696
        %v1710 = vsel %vm739, %v1696, %v1698
        %v1711 = vsel %vm739, %v1698, %v1700
        %v1712 = vsel %vm739, %v1700, %v1702
        %v1723 = vadd.f32 %v1649, %v1703
        %v1724 = vadd.f32 %v1650, %v1704
        %v1725 = vadd.f32 %v1651, %v1705
        %v1726 = vadd.f32 %v1652, %v1706
        %v1727 = vadd.f32 %v1653, %v1707
        %v1728 = vadd.f32 %v1654, %v1708
        %v1729 = vadd.f32 %v1655, %v1709
        %v1730 = vadd.f32 %v1656, %v1710
        %v1731 = vadd.f32 %v1657, %v1711
        %v1732 = vadd.f32 %v1658, %v1712
        %1744 = vrot.lane.b32.xlu0 %v1432, 126
        %v1745 = vpop.permute.xlu0 %1744
        %1746 = vrot.lane.b32.xlu0 %v1434, 126
        %v1747 = vpop.permute.xlu0 %1746
        %1748 = vrot.lane.b32.xlu0 %v1475, 126
        %v1749 = vpop.permute.xlu0 %1748
        %1750 = vrot.lane.b32.xlu0 %v1477, 126
        %v1751 = vpop.permute.xlu0 %1750
        %1752 = vrot.lane.b32.xlu0 %v1518, 126
        %v1753 = vpop.permute.xlu0 %1752
        %1754 = vrot.lane.b32.xlu0 %v1520, 126
        %v1755 = vpop.permute.xlu0 %1754
        %1756 = vrot.lane.b32.xlu0 %v1561, 126
        %v1757 = vpop.permute.xlu0 %1756
        %1758 = vrot.lane.b32.xlu0 %v1563, 126
        %v1759 = vpop.permute.xlu0 %1758
        %1760 = vrot.lane.b32.xlu0 %v1604, 126
        %v1761 = vpop.permute.xlu0 %1760
        %1762 = vrot.lane.b32.xlu0 %v1606, 126
        %v1763 = vpop.permute.xlu0 %1762
        %1764 = vrot.lane.b32.xlu0 %v1646, 126
        %v1765 = vpop.permute.xlu0 %1764
        %v1766 = vsel %vm803, %v1745, %v1747
        %v1767 = vsel %vm803, %v1747, %v1749
        %v1768 = vsel %vm803, %v1749, %v1751
        %v1769 = vsel %vm803, %v1751, %v1753
        %v1770 = vsel %vm803, %v1753, %v1755
        %v1771 = vsel %vm803, %v1755, %v1757
        %v1772 = vsel %vm803, %v1757, %v1759
        %v1773 = vsel %vm803, %v1759, %v1761
        %v1774 = vsel %vm803, %v1761, %v1763
        %v1775 = vsel %vm803, %v1763, %v1765
        %v1786 = vadd.f32 %v1723, %v1766
        %v1787 = vadd.f32 %v1724, %v1767
        %v1788 = vadd.f32 %v1725, %v1768
        %v1789 = vadd.f32 %v1726, %v1769
        %v1790 = vadd.f32 %v1727, %v1770
        %v1791 = vadd.f32 %v1728, %v1771
        %v1792 = vadd.f32 %v1729, %v1772
        %v1793 = vadd.f32 %v1730, %v1773
        %v1794 = vadd.f32 %v1731, %v1774
        %v1795 = vadd.f32 %v1732, %v1775
        %v1796 = vld [vmem:[%s3] sm:$0xf]
        %1798 = vset.pattern.permute.xlu0 0
        %1799 = vperm.xlu0 %1798, %v1796
        %v1800 = vpop.permute.xlu0 %1799
        %v1802 = vadd.f32 %v1786, %v1800
        %v1803 = vadd.f32 %v1787, %v1800
        %v1804 = vadd.f32 %v1788, %v1800
        %v1805 = vadd.f32 %v1789, %v1800
        %v1806 = vadd.f32 %v1790, %v1800
        %v1807 = vadd.f32 %v1791, %v1800
        %v1808 = vadd.f32 %v1792, %v1800
        %v1809 = vadd.f32 %v1793, %v1800
        %v1810 = vadd.f32 %v1794, %v1800
        %v1811 = vadd.f32 %v1795, %v1800
        %v1812 = vpack.c.bf16 %v1802, %v1802
        %v1813 = vpack.c.bf16 %v1803, %v1803
        %v1814 = vpack.c.bf16 %v1804, %v1804
        %v1815 = vpack.c.bf16 %v1805, %v1805
        %v1816 = vpack.c.bf16 %v1806, %v1806
        %v1817 = vpack.c.bf16 %v1807, %v1807
        %v1818 = vpack.c.bf16 %v1808, %v1808
        %v1819 = vpack.c.bf16 %v1809, %v1809
        %v1820 = vpack.c.bf16 %v1810, %v1810
        %v1821 = vpack.c.bf16 %v1811, %v1811
        %s1822 = smul.u32 %s36, 38
        %s1823 = sld [smem:[#allocation6 + %s1822]]
        %p1825 = scmp.ne.f32.partialorder %s1823, %s1823
        %s1826 = sshrl.u32 %s1823, 16
        %s1827 = sand.u32 %s1826, 1
        %s1828 = sadd.s32 32767, %s1827
        %s1829 = sadd.s32 %s1823, %s1828
        %s1830 = sand.u32 %s1829, 4294901760
        %s1831 = scalar_select %p1825, 2143289344, %s1830
        %s1833 = sshrl.u32 %s1831, 16
        %s1834 = sadd.s32 %s1822, 1
        %s1835 = sld [smem:[#allocation6 + %s1834]]
        %p1837 = scmp.ne.f32.partialorder %s1835, %s1835
        %s1838 = sshrl.u32 %s1835, 16
        %s1839 = sand.u32 %s1838, 1
        %s1840 = sadd.s32 32767, %s1839
        %s1841 = sadd.s32 %s1835, %s1840
        %s1842 = sand.u32 %s1841, 4294901760
        %s1843 = scalar_select %p1837, 2143289344, %s1842
        %s1845 = sshrl.u32 %s1843, 16
        %s1846 = sshll.u32 %s1833, 16
        %s1847 = sor.u32 %s1833, %s1846
        %v1848 = vstv %s1847
        %v1850 = vmul.bf16 %v1848, %v1812
        %s1851 = sshll.u32 %s1845, 16
        %s1852 = sor.u32 %s1845, %s1851
        %v1853 = vstv %s1852
        %v1855 = vmul.bf16 %v1853, %v1813
        %v1856 = vadd.bf16 %v1850, %v1855
        %s1857 = sadd.s32 %s1822, 2
        %s1858 = sld [smem:[#allocation6 + %s1857]]
        %p1860 = scmp.ne.f32.partialorder %s1858, %s1858
        %s1861 = sshrl.u32 %s1858, 16
        %s1862 = sand.u32 %s1861, 1
        %s1863 = sadd.s32 32767, %s1862
        %s1864 = sadd.s32 %s1858, %s1863
        %s1865 = sand.u32 %s1864, 4294901760
        %s1866 = scalar_select %p1860, 2143289344, %s1865
        %s1868 = sshrl.u32 %s1866, 16
        %s1869 = sadd.s32 %s1822, 3
        %s1870 = sld [smem:[#allocation6 + %s1869]]
        %p1872 = scmp.ne.f32.partialorder %s1870, %s1870
        %s1873 = sshrl.u32 %s1870, 16
        %s1874 = sand.u32 %s1873, 1
        %s1875 = sadd.s32 32767, %s1874
        %s1876 = sadd.s32 %s1870, %s1875
        %s1877 = sand.u32 %s1876, 4294901760
        %s1878 = scalar_select %p1872, 2143289344, %s1877
        %s1880 = sshrl.u32 %s1878, 16
        %s1881 = sshll.u32 %s1868, 16
        %s1882 = sor.u32 %s1868, %s1881
        %v1883 = vstv %s1882
        %v1885 = vmul.bf16 %v1883, %v1812
        %s1886 = sshll.u32 %s1880, 16
        %s1887 = sor.u32 %s1880, %s1886
        %v1888 = vstv %s1887
        %v1890 = vmul.bf16 %v1888, %v1813
        %v1891 = vadd.bf16 %v1885, %v1890
        %s1892 = sadd.s32 %s1822, 4
        %s1893 = sld [smem:[#allocation6 + %s1892]]
        %p1895 = scmp.ne.f32.partialorder %s1893, %s1893
        %s1896 = sshrl.u32 %s1893, 16
        %s1897 = sand.u32 %s1896, 1
        %s1898 = sadd.s32 32767, %s1897
        %s1899 = sadd.s32 %s1893, %s1898
        %s1900 = sand.u32 %s1899, 4294901760
        %s1901 = scalar_select %p1895, 2143289344, %s1900
        %s1903 = sshrl.u32 %s1901, 16
        %s1904 = sadd.s32 %s1822, 5
        %s1905 = sld [smem:[#allocation6 + %s1904]]
        %p1907 = scmp.ne.f32.partialorder %s1905, %s1905
        %s1908 = sshrl.u32 %s1905, 16
        %s1909 = sand.u32 %s1908, 1
        %s1910 = sadd.s32 32767, %s1909
        %s1911 = sadd.s32 %s1905, %s1910
        %s1912 = sand.u32 %s1911, 4294901760
        %s1913 = scalar_select %p1907, 2143289344, %s1912
        %s1915 = sshrl.u32 %s1913, 16
        %s1916 = sshll.u32 %s1903, 16
        %s1917 = sor.u32 %s1903, %s1916
        %v1918 = vstv %s1917
        %v1920 = vmul.bf16 %v1918, %v1813
        %s1921 = sshll.u32 %s1915, 16
        %s1922 = sor.u32 %s1915, %s1921
        %v1923 = vstv %s1922
        %v1925 = vmul.bf16 %v1923, %v1814
        %v1926 = vadd.bf16 %v1920, %v1925
        %s1927 = sadd.s32 %s1822, 6
        %s1928 = sld [smem:[#allocation6 + %s1927]]
        %p1930 = scmp.ne.f32.partialorder %s1928, %s1928
        %s1931 = sshrl.u32 %s1928, 16
        %s1932 = sand.u32 %s1931, 1
        %s1933 = sadd.s32 32767, %s1932
        %s1934 = sadd.s32 %s1928, %s1933
        %s1935 = sand.u32 %s1934, 4294901760
        %s1936 = scalar_select %p1930, 2143289344, %s1935
        %s1938 = sshrl.u32 %s1936, 16
        %s1939 = sadd.s32 %s1822, 7
        %s1940 = sld [smem:[#allocation6 + %s1939]]
        %p1942 = scmp.ne.f32.partialorder %s1940, %s1940
        %s1943 = sshrl.u32 %s1940, 16
        %s1944 = sand.u32 %s1943, 1
        %s1945 = sadd.s32 32767, %s1944
        %s1946 = sadd.s32 %s1940, %s1945
        %s1947 = sand.u32 %s1946, 4294901760
        %s1948 = scalar_select %p1942, 2143289344, %s1947
        %s1950 = sshrl.u32 %s1948, 16
        %s1951 = sshll.u32 %s1938, 16
        %s1952 = sor.u32 %s1938, %s1951
        %v1953 = vstv %s1952
        %v1955 = vmul.bf16 %v1953, %v1813
        %s1956 = sshll.u32 %s1950, 16
        %s1957 = sor.u32 %s1950, %s1956
        %v1958 = vstv %s1957
        %v1960 = vmul.bf16 %v1958, %v1814
        %v1961 = vadd.bf16 %v1955, %v1960
        %s1962 = sadd.s32 %s1822, 8
        %s1963 = sld [smem:[#allocation6 + %s1962]]
        %p1965 = scmp.ne.f32.partialorder %s1963, %s1963
        %s1966 = sshrl.u32 %s1963, 16
        %s1967 = sand.u32 %s1966, 1
        %s1968 = sadd.s32 32767, %s1967
        %s1969 = sadd.s32 %s1963, %s1968
        %s1970 = sand.u32 %s1969, 4294901760
        %s1971 = scalar_select %p1965, 2143289344, %s1970
        %s1973 = sshrl.u32 %s1971, 16
        %s1974 = sadd.s32 %s1822, 9
        %s1975 = sld [smem:[#allocation6 + %s1974]]
        %p1977 = scmp.ne.f32.partialorder %s1975, %s1975
        %s1978 = sshrl.u32 %s1975, 16
        %s1979 = sand.u32 %s1978, 1
        %s1980 = sadd.s32 32767, %s1979
        %s1981 = sadd.s32 %s1975, %s1980
        %s1982 = sand.u32 %s1981, 4294901760
        %s1983 = scalar_select %p1977, 2143289344, %s1982
        %s1985 = sshrl.u32 %s1983, 16
        %s1986 = sshll.u32 %s1973, 16
        %s1987 = sor.u32 %s1973, %s1986
        %v1988 = vstv %s1987
        %v1990 = vmul.bf16 %v1988, %v1814
        %s1991 = sshll.u32 %s1985, 16
        %s1992 = sor.u32 %s1985, %s1991
        %v1993 = vstv %s1992
        %v1995 = vmul.bf16 %v1993, %v1815
        %v1996 = vadd.bf16 %v1990, %v1995
        %s1997 = sadd.s32 %s1822, 10
        %s1998 = sld [smem:[#allocation6 + %s1997]]
        %p2000 = scmp.ne.f32.partialorder %s1998, %s1998
        %s2001 = sshrl.u32 %s1998, 16
        %s2002 = sand.u32 %s2001, 1
        %s2003 = sadd.s32 32767, %s2002
        %s2004 = sadd.s32 %s1998, %s2003
        %s2005 = sand.u32 %s2004, 4294901760
        %s2006 = scalar_select %p2000, 2143289344, %s2005
        %s2008 = sshrl.u32 %s2006, 16
        %s2009 = sadd.s32 %s1822, 11
        %s2010 = sld [smem:[#allocation6 + %s2009]]
        %p2012 = scmp.ne.f32.partialorder %s2010, %s2010
        %s2013 = sshrl.u32 %s2010, 16
        %s2014 = sand.u32 %s2013, 1
        %s2015 = sadd.s32 32767, %s2014
        %s2016 = sadd.s32 %s2010, %s2015
        %s2017 = sand.u32 %s2016, 4294901760
        %s2018 = scalar_select %p2012, 2143289344, %s2017
        %s2020 = sshrl.u32 %s2018, 16
        %s2021 = sshll.u32 %s2008, 16
        %s2022 = sor.u32 %s2008, %s2021
        %v2023 = vstv %s2022
        %v2025 = vmul.bf16 %v2023, %v1814
        %s2026 = sshll.u32 %s2020, 16
        %s2027 = sor.u32 %s2020, %s2026
        %v2028 = vstv %s2027
        %v2030 = vmul.bf16 %v2028, %v1815
        %v2031 = vadd.bf16 %v2025, %v2030
        %s2032 = sadd.s32 %s1822, 12
        %s2033 = sld [smem:[#allocation6 + %s2032]]
        %p2035 = scmp.ne.f32.partialorder %s2033, %s2033
        %s2036 = sshrl.u32 %s2033, 16
        %s2037 = sand.u32 %s2036, 1
        %s2038 = sadd.s32 32767, %s2037
        %s2039 = sadd.s32 %s2033, %s2038
        %s2040 = sand.u32 %s2039, 4294901760
        %s2041 = scalar_select %p2035, 2143289344, %s2040
        %s2043 = sshrl.u32 %s2041, 16
        %s2044 = sadd.s32 %s1822, 13
        %s2045 = sld [smem:[#allocation6 + %s2044]]
        %p2047 = scmp.ne.f32.partialorder %s2045, %s2045
        %s2048 = sshrl.u32 %s2045, 16
        %s2049 = sand.u32 %s2048, 1
        %s2050 = sadd.s32 32767, %s2049
        %s2051 = sadd.s32 %s2045, %s2050
        %s2052 = sand.u32 %s2051, 4294901760
        %s2053 = scalar_select %p2047, 2143289344, %s2052
        %s2055 = sshrl.u32 %s2053, 16
        %s2056 = sshll.u32 %s2043, 16
        %s2057 = sor.u32 %s2043, %s2056
        %v2058 = vstv %s2057
        %v2060 = vmul.bf16 %v2058, %v1815
        %s2061 = sshll.u32 %s2055, 16
        %s2062 = sor.u32 %s2055, %s2061
        %v2063 = vstv %s2062
        %v2065 = vmul.bf16 %v2063, %v1816
        %v2066 = vadd.bf16 %v2060, %v2065
        %s2067 = sadd.s32 %s1822, 14
        %s2068 = sld [smem:[#allocation6 + %s2067]]
        %p2070 = scmp.ne.f32.partialorder %s2068, %s2068
        %s2071 = sshrl.u32 %s2068, 16
        %s2072 = sand.u32 %s2071, 1
        %s2073 = sadd.s32 32767, %s2072
        %s2074 = sadd.s32 %s2068, %s2073
        %s2075 = sand.u32 %s2074, 4294901760
        %s2076 = scalar_select %p2070, 2143289344, %s2075
        %s2078 = sshrl.u32 %s2076, 16
        %s2079 = sadd.s32 %s1822, 15
        %s2080 = sld [smem:[#allocation6 + %s2079]]
        %p2082 = scmp.ne.f32.partialorder %s2080, %s2080
        %s2083 = sshrl.u32 %s2080, 16
        %s2084 = sand.u32 %s2083, 1
        %s2085 = sadd.s32 32767, %s2084
        %s2086 = sadd.s32 %s2080, %s2085
        %s2087 = sand.u32 %s2086, 4294901760
        %s2088 = scalar_select %p2082, 2143289344, %s2087
        %s2090 = sshrl.u32 %s2088, 16
        %s2091 = sshll.u32 %s2078, 16
        %s2092 = sor.u32 %s2078, %s2091
        %v2093 = vstv %s2092
        %v2095 = vmul.bf16 %v2093, %v1815
        %s2096 = sshll.u32 %s2090, 16
        %s2097 = sor.u32 %s2090, %s2096
        %v2098 = vstv %s2097
        %v2100 = vmul.bf16 %v2098, %v1816
        %v2101 = vadd.bf16 %v2095, %v2100
        %s2102 = sadd.s32 %s1822, 16
        %s2103 = sld [smem:[#allocation6 + %s2102]]
        %p2105 = scmp.ne.f32.partialorder %s2103, %s2103
        %s2106 = sshrl.u32 %s2103, 16
        %s2107 = sand.u32 %s2106, 1
        %s2108 = sadd.s32 32767, %s2107
        %s2109 = sadd.s32 %s2103, %s2108
        %s2110 = sand.u32 %s2109, 4294901760
        %s2111 = scalar_select %p2105, 2143289344, %s2110
        %s2113 = sshrl.u32 %s2111, 16
        %s2114 = sadd.s32 %s1822, 17
        %s2115 = sld [smem:[#allocation6 + %s2114]]
        %p2117 = scmp.ne.f32.partialorder %s2115, %s2115
        %s2118 = sshrl.u32 %s2115, 16
        %s2119 = sand.u32 %s2118, 1
        %s2120 = sadd.s32 32767, %s2119
        %s2121 = sadd.s32 %s2115, %s2120
        %s2122 = sand.u32 %s2121, 4294901760
        %s2123 = scalar_select %p2117, 2143289344, %s2122
        %s2125 = sshrl.u32 %s2123, 16
        %s2126 = sshll.u32 %s2113, 16
        %s2127 = sor.u32 %s2113, %s2126
        %v2128 = vstv %s2127
        %v2130 = vmul.bf16 %v2128, %v1816
        %s2131 = sshll.u32 %s2125, 16
        %s2132 = sor.u32 %s2125, %s2131
        %v2133 = vstv %s2132
        %v2135 = vmul.bf16 %v2133, %v1817
        %v2136 = vadd.bf16 %v2130, %v2135
        %s2137 = sadd.s32 %s1822, 18
        %s2138 = sld [smem:[#allocation6 + %s2137]]
        %p2140 = scmp.ne.f32.partialorder %s2138, %s2138
        %s2141 = sshrl.u32 %s2138, 16
        %s2142 = sand.u32 %s2141, 1
        %s2143 = sadd.s32 32767, %s2142
        %s2144 = sadd.s32 %s2138, %s2143
        %s2145 = sand.u32 %s2144, 4294901760
        %s2146 = scalar_select %p2140, 2143289344, %s2145
        %s2148 = sshrl.u32 %s2146, 16
        %s2149 = sadd.s32 %s1822, 19
        %s2150 = sld [smem:[#allocation6 + %s2149]]
        %p2152 = scmp.ne.f32.partialorder %s2150, %s2150
        %s2153 = sshrl.u32 %s2150, 16
        %s2154 = sand.u32 %s2153, 1
        %s2155 = sadd.s32 32767, %s2154
        %s2156 = sadd.s32 %s2150, %s2155
        %s2157 = sand.u32 %s2156, 4294901760
        %s2158 = scalar_select %p2152, 2143289344, %s2157
        %s2160 = sshrl.u32 %s2158, 16
        %s2161 = sshll.u32 %s2148, 16
        %s2162 = sor.u32 %s2148, %s2161
        %v2163 = vstv %s2162
        %v2165 = vmul.bf16 %v2163, %v1816
        %s2166 = sshll.u32 %s2160, 16
        %s2167 = sor.u32 %s2160, %s2166
        %v2168 = vstv %s2167
        %v2170 = vmul.bf16 %v2168, %v1817
        %v2171 = vadd.bf16 %v2165, %v2170
        %s2172 = sadd.s32 %s1822, 20
        %s2173 = sld [smem:[#allocation6 + %s2172]]
        %p2175 = scmp.ne.f32.partialorder %s2173, %s2173
        %s2176 = sshrl.u32 %s2173, 16
        %s2177 = sand.u32 %s2176, 1
        %s2178 = sadd.s32 32767, %s2177
        %s2179 = sadd.s32 %s2173, %s2178
        %s2180 = sand.u32 %s2179, 4294901760
        %s2181 = scalar_select %p2175, 2143289344, %s2180
        %s2183 = sshrl.u32 %s2181, 16
        %s2184 = sadd.s32 %s1822, 21
        %s2185 = sld [smem:[#allocation6 + %s2184]]
        %p2187 = scmp.ne.f32.partialorder %s2185, %s2185
        %s2188 = sshrl.u32 %s2185, 16
        %s2189 = sand.u32 %s2188, 1
        %s2190 = sadd.s32 32767, %s2189
        %s2191 = sadd.s32 %s2185, %s2190
        %s2192 = sand.u32 %s2191, 4294901760
        %s2193 = scalar_select %p2187, 2143289344, %s2192
        %s2195 = sshrl.u32 %s2193, 16
        %s2196 = sshll.u32 %s2183, 16
        %s2197 = sor.u32 %s2183, %s2196
        %v2198 = vstv %s2197
        %v2200 = vmul.bf16 %v2198, %v1817
        %s2201 = sshll.u32 %s2195, 16
        %s2202 = sor.u32 %s2195, %s2201
        %v2203 = vstv %s2202
        %v2205 = vmul.bf16 %v2203, %v1818
        %v2206 = vadd.bf16 %v2200, %v2205
        %s2207 = sadd.s32 %s1822, 22
        %s2208 = sld [smem:[#allocation6 + %s2207]]
        %p2210 = scmp.ne.f32.partialorder %s2208, %s2208
        %s2211 = sshrl.u32 %s2208, 16
        %s2212 = sand.u32 %s2211, 1
        %s2213 = sadd.s32 32767, %s2212
        %s2214 = sadd.s32 %s2208, %s2213
        %s2215 = sand.u32 %s2214, 4294901760
        %s2216 = scalar_select %p2210, 2143289344, %s2215
        %s2218 = sshrl.u32 %s2216, 16
        %s2219 = sadd.s32 %s1822, 23
        %s2220 = sld [smem:[#allocation6 + %s2219]]
        %p2222 = scmp.ne.f32.partialorder %s2220, %s2220
        %s2223 = sshrl.u32 %s2220, 16
        %s2224 = sand.u32 %s2223, 1
        %s2225 = sadd.s32 32767, %s2224
        %s2226 = sadd.s32 %s2220, %s2225
        %s2227 = sand.u32 %s2226, 4294901760
        %s2228 = scalar_select %p2222, 2143289344, %s2227
        %s2230 = sshrl.u32 %s2228, 16
        %s2231 = sshll.u32 %s2218, 16
        %s2232 = sor.u32 %s2218, %s2231
        %v2233 = vstv %s2232
        %v2235 = vmul.bf16 %v2233, %v1817
        %s2236 = sshll.u32 %s2230, 16
        %s2237 = sor.u32 %s2230, %s2236
        %v2238 = vstv %s2237
        %v2240 = vmul.bf16 %v2238, %v1818
        %v2241 = vadd.bf16 %v2235, %v2240
        %s2242 = sadd.s32 %s1822, 24
        %s2243 = sld [smem:[#allocation6 + %s2242]]
        %p2245 = scmp.ne.f32.partialorder %s2243, %s2243
        %s2246 = sshrl.u32 %s2243, 16
        %s2247 = sand.u32 %s2246, 1
        %s2248 = sadd.s32 32767, %s2247
        %s2249 = sadd.s32 %s2243, %s2248
        %s2250 = sand.u32 %s2249, 4294901760
        %s2251 = scalar_select %p2245, 2143289344, %s2250
        %s2253 = sshrl.u32 %s2251, 16
        %s2254 = sadd.s32 %s1822, 25
        %s2255 = sld [smem:[#allocation6 + %s2254]]
        %p2257 = scmp.ne.f32.partialorder %s2255, %s2255
        %s2258 = sshrl.u32 %s2255, 16
        %s2259 = sand.u32 %s2258, 1
        %s2260 = sadd.s32 32767, %s2259
        %s2261 = sadd.s32 %s2255, %s2260
        %s2262 = sand.u32 %s2261, 4294901760
        %s2263 = scalar_select %p2257, 2143289344, %s2262
        %s2265 = sshrl.u32 %s2263, 16
        %s2266 = sshll.u32 %s2253, 16
        %s2267 = sor.u32 %s2253, %s2266
        %v2268 = vstv %s2267
        %v2270 = vmul.bf16 %v2268, %v1818
        %s2271 = sshll.u32 %s2265, 16
        %s2272 = sor.u32 %s2265, %s2271
        %v2273 = vstv %s2272
        %v2275 = vmul.bf16 %v2273, %v1819
        %v2276 = vadd.bf16 %v2270, %v2275
        %s2277 = sadd.s32 %s1822, 26
        %s2278 = sld [smem:[#allocation6 + %s2277]]
        %p2280 = scmp.ne.f32.partialorder %s2278, %s2278
        %s2281 = sshrl.u32 %s2278, 16
        %s2282 = sand.u32 %s2281, 1
        %s2283 = sadd.s32 32767, %s2282
        %s2284 = sadd.s32 %s2278, %s2283
        %s2285 = sand.u32 %s2284, 4294901760
        %s2286 = scalar_select %p2280, 2143289344, %s2285
        %s2288 = sshrl.u32 %s2286, 16
        %s2289 = sadd.s32 %s1822, 27
        %s2290 = sld [smem:[#allocation6 + %s2289]]
        %p2292 = scmp.ne.f32.partialorder %s2290, %s2290
        %s2293 = sshrl.u32 %s2290, 16
        %s2294 = sand.u32 %s2293, 1
        %s2295 = sadd.s32 32767, %s2294
        %s2296 = sadd.s32 %s2290, %s2295
        %s2297 = sand.u32 %s2296, 4294901760
        %s2298 = scalar_select %p2292, 2143289344, %s2297
        %s2300 = sshrl.u32 %s2298, 16
        %s2301 = sshll.u32 %s2288, 16
        %s2302 = sor.u32 %s2288, %s2301
        %v2303 = vstv %s2302
        %v2305 = vmul.bf16 %v2303, %v1818
        %s2306 = sshll.u32 %s2300, 16
        %s2307 = sor.u32 %s2300, %s2306
        %v2308 = vstv %s2307
        %v2310 = vmul.bf16 %v2308, %v1819
        %v2311 = vadd.bf16 %v2305, %v2310
        %s2312 = sadd.s32 %s1822, 28
        %s2313 = sld [smem:[#allocation6 + %s2312]]
        %p2315 = scmp.ne.f32.partialorder %s2313, %s2313
        %s2316 = sshrl.u32 %s2313, 16
        %s2317 = sand.u32 %s2316, 1
        %s2318 = sadd.s32 32767, %s2317
        %s2319 = sadd.s32 %s2313, %s2318
        %s2320 = sand.u32 %s2319, 4294901760
        %s2321 = scalar_select %p2315, 2143289344, %s2320
        %s2323 = sshrl.u32 %s2321, 16
        %s2324 = sadd.s32 %s1822, 29
        %s2325 = sld [smem:[#allocation6 + %s2324]]
        %p2327 = scmp.ne.f32.partialorder %s2325, %s2325
        %s2328 = sshrl.u32 %s2325, 16
        %s2329 = sand.u32 %s2328, 1
        %s2330 = sadd.s32 32767, %s2329
        %s2331 = sadd.s32 %s2325, %s2330
        %s2332 = sand.u32 %s2331, 4294901760
        %s2333 = scalar_select %p2327, 2143289344, %s2332
        %s2335 = sshrl.u32 %s2333, 16
        %s2336 = sshll.u32 %s2323, 16
        %s2337 = sor.u32 %s2323, %s2336
        %v2338 = vstv %s2337
        %v2340 = vmul.bf16 %v2338, %v1819
        %s2341 = sshll.u32 %s2335, 16
        %s2342 = sor.u32 %s2335, %s2341
        %v2343 = vstv %s2342
        %v2345 = vmul.bf16 %v2343, %v1820
        %v2346 = vadd.bf16 %v2340, %v2345
        %s2347 = sadd.s32 %s1822, 30
        %s2348 = sld [smem:[#allocation6 + %s2347]]
        %p2350 = scmp.ne.f32.partialorder %s2348, %s2348
        %s2351 = sshrl.u32 %s2348, 16
        %s2352 = sand.u32 %s2351, 1
        %s2353 = sadd.s32 32767, %s2352
        %s2354 = sadd.s32 %s2348, %s2353
        %s2355 = sand.u32 %s2354, 4294901760
        %s2356 = scalar_select %p2350, 2143289344, %s2355
        %s2358 = sshrl.u32 %s2356, 16
        %s2359 = sadd.s32 %s1822, 31
        %s2360 = sld [smem:[#allocation6 + %s2359]]
        %p2362 = scmp.ne.f32.partialorder %s2360, %s2360
        %s2363 = sshrl.u32 %s2360, 16
        %s2364 = sand.u32 %s2363, 1
        %s2365 = sadd.s32 32767, %s2364
        %s2366 = sadd.s32 %s2360, %s2365
        %s2367 = sand.u32 %s2366, 4294901760
        %s2368 = scalar_select %p2362, 2143289344, %s2367
        %s2370 = sshrl.u32 %s2368, 16
        %s2371 = sshll.u32 %s2358, 16
        %s2372 = sor.u32 %s2358, %s2371
        %v2373 = vstv %s2372
        %v2375 = vmul.bf16 %v2373, %v1819
        %s2376 = sshll.u32 %s2370, 16
        %s2377 = sor.u32 %s2370, %s2376
        %v2378 = vstv %s2377
        %v2380 = vmul.bf16 %v2378, %v1820
        %v2381 = vadd.bf16 %v2375, %v2380
        %s2382 = sadd.s32 %s1822, 32
        %s2383 = sld [smem:[#allocation6 + %s2382]]
        %p2385 = scmp.ne.f32.partialorder %s2383, %s2383
        %s2386 = sshrl.u32 %s2383, 16
        %s2387 = sand.u32 %s2386, 1
        %s2388 = sadd.s32 32767, %s2387
        %s2389 = sadd.s32 %s2383, %s2388
        %s2390 = sand.u32 %s2389, 4294901760
        %s2391 = scalar_select %p2385, 2143289344, %s2390
        %s2393 = sshrl.u32 %s2391, 16
        %s2394 = sadd.s32 %s1822, 33
        %s2395 = sld [smem:[#allocation6 + %s2394]]
        %p2397 = scmp.ne.f32.partialorder %s2395, %s2395
        %s2398 = sshrl.u32 %s2395, 16
        %s2399 = sand.u32 %s2398, 1
        %s2400 = sadd.s32 32767, %s2399
        %s2401 = sadd.s32 %s2395, %s2400
        %s2402 = sand.u32 %s2401, 4294901760
        %s2403 = scalar_select %p2397, 2143289344, %s2402
        %s2405 = sshrl.u32 %s2403, 16
        %s2406 = sshll.u32 %s2393, 16
        %s2407 = sor.u32 %s2393, %s2406
        %v2408 = vstv %s2407
        %v2410 = vmul.bf16 %v2408, %v1820
        %s2411 = sshll.u32 %s2405, 16
        %s2412 = sor.u32 %s2405, %s2411
        %v2413 = vstv %s2412
        %v2415 = vmul.bf16 %v2413, %v1821
        %v2416 = vadd.bf16 %v2410, %v2415
        %s2417 = sadd.s32 %s1822, 34
        %s2418 = sld [smem:[#allocation6 + %s2417]]
        %p2420 = scmp.ne.f32.partialorder %s2418, %s2418
        %s2421 = sshrl.u32 %s2418, 16
        %s2422 = sand.u32 %s2421, 1
        %s2423 = sadd.s32 32767, %s2422
        %s2424 = sadd.s32 %s2418, %s2423
        %s2425 = sand.u32 %s2424, 4294901760
        %s2426 = scalar_select %p2420, 2143289344, %s2425
        %s2428 = sshrl.u32 %s2426, 16
        %s2429 = sadd.s32 %s1822, 35
        %s2430 = sld [smem:[#allocation6 + %s2429]]
        %p2432 = scmp.ne.f32.partialorder %s2430, %s2430
        %s2433 = sshrl.u32 %s2430, 16
        %s2434 = sand.u32 %s2433, 1
        %s2435 = sadd.s32 32767, %s2434
        %s2436 = sadd.s32 %s2430, %s2435
        %s2437 = sand.u32 %s2436, 4294901760
        %s2438 = scalar_select %p2432, 2143289344, %s2437
        %s2440 = sshrl.u32 %s2438, 16
        %s2441 = sshll.u32 %s2428, 16
        %s2442 = sor.u32 %s2428, %s2441
        %v2443 = vstv %s2442
        %v2445 = vmul.bf16 %v2443, %v1820
        %s2446 = sshll.u32 %s2440, 16
        %s2447 = sor.u32 %s2440, %s2446
        %v2448 = vstv %s2447
        %v2450 = vmul.bf16 %v2448, %v1821
        %v2451 = vadd.bf16 %v2445, %v2450
        %s2452 = sadd.s32 %s1822, 36
        %s2453 = sld [smem:[#allocation6 + %s2452]]
        %p2455 = scmp.ne.f32.partialorder %s2453, %s2453
        %s2456 = sshrl.u32 %s2453, 16
        %s2457 = sand.u32 %s2456, 1
        %s2458 = sadd.s32 32767, %s2457
        %s2459 = sadd.s32 %s2453, %s2458
        %s2460 = sand.u32 %s2459, 4294901760
        %s2461 = scalar_select %p2455, 2143289344, %s2460
        %s2463 = sshrl.u32 %s2461, 16
        %s2464 = sadd.s32 %s1822, 37
        %s2465 = sld [smem:[#allocation6 + %s2464]]
        %p2467 = scmp.ne.f32.partialorder %s2465, %s2465
        %s2468 = sshrl.u32 %s2465, 16
        %s2469 = sand.u32 %s2468, 1
        %s2470 = sadd.s32 32767, %s2469
        %s2471 = sadd.s32 %s2465, %s2470
        %s2472 = sand.u32 %s2471, 4294901760
        %s2473 = scalar_select %p2467, 2143289344, %s2472
        %s2475 = sshrl.u32 %s2473, 16
        %s2476 = sshll.u32 %s2463, 16
        %s2477 = sor.u32 %s2463, %s2476
        %v2478 = vstv %s2477
        %v2480 = vmul.bf16 %v2478, %v1821
        %s2481 = sshll.u32 %s2475, 16
        %s2482 = sor.u32 %s2475, %s2481
        %v2483 = vstv %s2482
        %v2485 = vmul.bf16 %v2483, %v1821
        %v2486 = vadd.bf16 %v2480, %v2485
        %v2488 = vrot.slane %v1891, 6
        %v2490 = vrot.slane %v1926, 4
        %v2492 = vrot.slane %v1961, 2
        %v2494 = vrot.slane %v2031, 6
        %v2496 = vrot.slane %v2066, 4
        %v2498 = vrot.slane %v2101, 2
        %v2500 = vrot.slane %v2171, 6
        %v2502 = vrot.slane %v2206, 4
        %v2504 = vrot.slane %v2241, 2
        %v2506 = vrot.slane %v2311, 6
        %v2508 = vrot.slane %v2346, 4
        %v2510 = vrot.slane %v2381, 2
        %vm2511 = vcmask 1041408
        %v2514 = vsel %vm2511, %v1856, %v2488
        %v2516 = vsel %vm405, %v2514, %v2490
        %vm2517 = vcmask 1045504
        %v2519 = vsel %vm2517, %v2516, %v2492
        %v2523 = vsel %vm2511, %v1996, %v2494
        %v2525 = vsel %vm405, %v2523, %v2496
        %v2527 = vsel %vm2517, %v2525, %v2498
        %v2531 = vsel %vm2511, %v2136, %v2500
        %v2533 = vsel %vm405, %v2531, %v2502
        %v2535 = vsel %vm2517, %v2533, %v2504
        %v2539 = vsel %vm2511, %v2276, %v2506
        %v2541 = vsel %vm405, %v2539, %v2508
        %v2543 = vsel %vm2517, %v2541, %v2510
        %v2546 = vrot.slane %v2451, 6
        %v2548 = vrot.slane %v2486, 4
        %v2551 = vsel %vm2511, %v2416, %v2546
        %v2553 = vsel %vm405, %v2551, %v2548
        %v2555 = vld [vmem:[%s4] sm:$0xf]
        %v2556 = vld [vmem:[%s4 + $0x4] sm:$0xf]
        %v2557 = vld [vmem:[%s4 + $0x8] sm:$0xf]
        %v2558 = vld [vmem:[%s4 + $0xc] sm:$0xf]
        %v2559 = vld [vmem:[%s4 + $0x10] sm:$0xf]
        %v2560 = vld [vmem:[%s4 + $0x14] sm:$0xf]
        %v2561 = vld [vmem:[%s4 + $0x18] sm:$0xf]
        %v2562 = vld [vmem:[%s4 + $0x1c] sm:$0xf]
        %v2563 = vld [vmem:[%s4 + $0x20] sm:$0xf]
        %v2564 = vld [vmem:[%s4 + $0x24] sm:$0xf]
        %v2565 = vld [vmem:[%s4 + $0x28] sm:$0xf]
        %v2566 = vld [vmem:[%s4 + $0x2c] sm:$0xf]
        %v2567 = vld [vmem:[%s4 + $0x30] sm:$0xf]
        %v2568 = vld [vmem:[%s4 + $0x34] sm:$0xf]
        %v2569 = vld [vmem:[%s4 + $0x38] sm:$0xf]
        %v2570 = vld [vmem:[%s4 + $0x3c] sm:$0xf]
        %v2587 = vunpack.c.l.b16 %v2555
        %v2588 = vunpack.c.l.b16 %v2556
        %v2589 = vunpack.c.l.b16 %v2557
        %v2590 = vunpack.c.l.b16 %v2558
        %v2591 = vunpack.c.l.b16 %v2559
        %v2592 = vunpack.c.l.b16 %v2560
        %v2593 = vunpack.c.l.b16 %v2561
        %v2594 = vunpack.c.l.b16 %v2562
        %v2595 = vunpack.c.l.b16 %v2563
        %v2596 = vunpack.c.l.b16 %v2564
        %v2597 = vunpack.c.l.b16 %v2565
        %v2598 = vunpack.c.l.b16 %v2566
        %v2599 = vunpack.c.l.b16 %v2567
        %v2600 = vunpack.c.l.b16 %v2568
        %v2601 = vunpack.c.l.b16 %v2569
        %v2602 = vunpack.c.l.b16 %v2570
        %v2603 = vpack.c.b16 %v2588, %v2587
        %v2604 = vpack.c.b16 %v2590, %v2589
        %v2605 = vpack.c.b16 %v2592, %v2591
        %v2606 = vpack.c.b16 %v2594, %v2593
        %v2607 = vpack.c.b16 %v2596, %v2595
        %v2608 = vpack.c.b16 %v2598, %v2597
        %v2609 = vpack.c.b16 %v2600, %v2599
        %v2610 = vpack.c.b16 %v2602, %v2601
        %2619 = vmatprep.subr.bf16.mxu0 0
        %2620 = vmatpush1.bf16.msra.mxu0 %v2610
        %2621 = vmatprep.subr.bf16.mxu0 0
        %2622 = vmatpush1.bf16.msra.mxu0 %v2609
        %2623 = vmatprep.subr.bf16.mxu0 0
        %2624 = vmatpush1.bf16.msra.mxu0 %v2608
        %2625 = vmatprep.subr.bf16.mxu0 0
        %2626 = vmatpush1.bf16.msra.mxu0 %v2607
        %2627 = vmatprep.subr.bf16.mxu0 0
        %2628 = vmatpush1.bf16.msra.mxu0 %v2606
        %2629 = vmatprep.subr.bf16.mxu0 0
        %2630 = vmatpush1.bf16.msra.mxu0 %v2605
        %2631 = vmatprep.subr.bf16.mxu0 0
        %2632 = vmatpush1.bf16.msra.mxu0 %v2604
        %2633 = vmatprep.subr.bf16.mxu0 0
        %2634 = vmatpush1.bf16.msra.mxu0 %v2603
        %2635 = vmatprep.subr.bf16.mxu0 0
        %2636 = vmatpush2.bf16.msra.mxu0 0
        %2637 = vmatprep.subr.bf16.mxu0 0
        %2638 = vmatpush2.bf16.msra.mxu0 0
        %2639 = vmatprep.subr.bf16.mxu0 0
        %2640 = vmatpush2.bf16.msra.mxu0 0
        %2641 = vmatprep.subr.bf16.mxu0 0
        %2642 = vmatpush2.bf16.msra.mxu0 0
        %2643 = vmatprep.subr.bf16.mxu0 0
        %2644 = vmatpush2.bf16.msra.mxu0 0
        %2645 = vmatprep.subr.bf16.mxu0 0
        %2646 = vmatpush2.bf16.msra.mxu0 0
        %2647 = vmatprep.subr.bf16.mxu0 0
        %2648 = vmatpush2.bf16.msra.mxu0 0
        %2649 = vmatprep.subr.bf16.mxu0 0
        %2650 = vmatpush2.bf16.msra.mxu0 0
        %2651 = vmatprep.mubr.bf16.mxu0 0
        %2652 = vmatmul.mubr.bf16.gmra.mxu0 %v2519
        %v2653 = vpop.f32.mrf.mxu0
        %v2654 = vadd.f32 0.0, %v2653
        %v2655 = vpop.f32.mrf.mxu0
        %v2656 = vpop.f32.mrf.mxu0
        %v2657 = vadd.f32 0.0, %v2656
        %v2658 = vpop.f32.mrf.mxu0
        %2659 = vmatprep.mubr.bf16.mxu0 0
        %2660 = vmatmul.mubr.bf16.gmra.mxu0 %v2527
        %v2661 = vpop.f32.mrf.mxu0
        %v2662 = vadd.f32 0.0, %v2661
        %v2663 = vpop.f32.mrf.mxu0
        %v2664 = vpop.f32.mrf.mxu0
        %v2665 = vadd.f32 0.0, %v2664
        %v2666 = vpop.f32.mrf.mxu0
        %2667 = vmatprep.mubr.bf16.mxu0 0
        %2668 = vmatmul.mubr.bf16.gmra.mxu0 %v2535
        %v2669 = vpop.f32.mrf.mxu0
        %v2670 = vadd.f32 0.0, %v2669
        %v2671 = vpop.f32.mrf.mxu0
        %v2672 = vpop.f32.mrf.mxu0
        %v2673 = vadd.f32 0.0, %v2672
        %v2674 = vpop.f32.mrf.mxu0
        %2675 = vmatprep.mubr.bf16.mxu0 0
        %2676 = vmatmul.mubr.bf16.gmra.mxu0 %v2543
        %v2677 = vpop.f32.mrf.mxu0
        %v2678 = vadd.f32 0.0, %v2677
        %v2679 = vpop.f32.mrf.mxu0
        %v2680 = vpop.f32.mrf.mxu0
        %v2681 = vadd.f32 0.0, %v2680
        %v2682 = vpop.f32.mrf.mxu0
        %2683 = vmatprep.mubr.bf16.mxu0 0
        %2684 = vmatmul.mubr.bf16.gmra.mxu0 %v2553
        %v2685 = vpop.f32.mrf.mxu0
        %v2686 = vadd.f32 0.0, %v2685
        %v2687 = vpop.f32.mrf.mxu0
        %v2688 = vpop.f32.mrf.mxu0
        %v2689 = vadd.f32 0.0, %v2688
        %v2690 = vpop.f32.mrf.mxu0
        %2691 = vdwg.mxu0
        %v2692 = vpack.c.bf16 %v2654, %v2654
        %2693 = vst [vmem:[#allocation3] sm:$0x3] %v2692
        %v2696 = vunpack.c.l.s4 1983009808
        %v2697 = vunpack.c.0.s8 %v2696
        %v2698 = vlaneseq
        %v2699 = vshrl.u32 %v2698, 7
        %v2700 = vsub.s32 %v2697, %v2699
        %v2701 = vrot.slane %v2692, %v2700
        %v2702 = vcombine.high %v2701, %v2701
        %2704 = vst [vmem:[#allocation3 + $0x2] sm:$0x3] %v2702
        %v2705 = vpack.c.bf16 %v2657, %v2657
        %2706 = vst [vmem:[#allocation3 + $0x4] sm:$0x3] %v2705
        %v2709 = vunpack.c.l.s4 1983009808
        %v2710 = vunpack.c.0.s8 %v2709
        %v2711 = vlaneseq
        %v2712 = vshrl.u32 %v2711, 7
        %v2713 = vsub.s32 %v2710, %v2712
        %v2714 = vrot.slane %v2705, %v2713
        %v2715 = vcombine.high %v2714, %v2714
        %2717 = vst [vmem:[#allocation3 + $0x6] sm:$0x3] %v2715
        %v2718 = vpack.c.bf16 %v2662, %v2662
        %2719 = vst [vmem:[#allocation3 + $0x8] sm:$0x3] %v2718
        %v2722 = vunpack.c.l.s4 1983009808
        %v2723 = vunpack.c.0.s8 %v2722
        %v2724 = vlaneseq
        %v2725 = vshrl.u32 %v2724, 7
        %v2726 = vsub.s32 %v2723, %v2725
        %v2727 = vrot.slane %v2718, %v2726
        %v2728 = vcombine.high %v2727, %v2727
        %2730 = vst [vmem:[#allocation3 + $0xa] sm:$0x3] %v2728
        %v2731 = vpack.c.bf16 %v2665, %v2665
        %2732 = vst [vmem:[#allocation3 + $0xc] sm:$0x3] %v2731
        %v2735 = vunpack.c.l.s4 1983009808
        %v2736 = vunpack.c.0.s8 %v2735
        %v2737 = vlaneseq
        %v2738 = vshrl.u32 %v2737, 7
        %v2739 = vsub.s32 %v2736, %v2738
        %v2740 = vrot.slane %v2731, %v2739
        %v2741 = vcombine.high %v2740, %v2740
        %2743 = vst [vmem:[#allocation3 + $0xe] sm:$0x3] %v2741
        %v2744 = vpack.c.bf16 %v2670, %v2670
        %2745 = vst [vmem:[#allocation3 + $0x10] sm:$0x3] %v2744
        %v2748 = vunpack.c.l.s4 1983009808
        %v2749 = vunpack.c.0.s8 %v2748
        %v2750 = vlaneseq
        %v2751 = vshrl.u32 %v2750, 7
        %v2752 = vsub.s32 %v2749, %v2751
        %v2753 = vrot.slane %v2744, %v2752
        %v2754 = vcombine.high %v2753, %v2753
        %2756 = vst [vmem:[#allocation3 + $0x12] sm:$0x3] %v2754
        %v2757 = vpack.c.bf16 %v2673, %v2673
        %2758 = vst [vmem:[#allocation3 + $0x14] sm:$0x3] %v2757
        %v2761 = vunpack.c.l.s4 1983009808
        %v2762 = vunpack.c.0.s8 %v2761
        %v2763 = vlaneseq
        %v2764 = vshrl.u32 %v2763, 7
        %v2765 = vsub.s32 %v2762, %v2764
        %v2766 = vrot.slane %v2757, %v2765
        %v2767 = vcombine.high %v2766, %v2766
        %2769 = vst [vmem:[#allocation3 + $0x16] sm:$0x3] %v2767
        %v2770 = vpack.c.bf16 %v2678, %v2678
        %2771 = vst [vmem:[#allocation3 + $0x18] sm:$0x3] %v2770
        %v2774 = vunpack.c.l.s4 1983009808
        %v2775 = vunpack.c.0.s8 %v2774
        %v2776 = vlaneseq
        %v2777 = vshrl.u32 %v2776, 7
        %v2778 = vsub.s32 %v2775, %v2777
        %v2779 = vrot.slane %v2770, %v2778
        %v2780 = vcombine.high %v2779, %v2779
        %2782 = vst [vmem:[#allocation3 + $0x1a] sm:$0x3] %v2780
        %v2783 = vpack.c.bf16 %v2681, %v2681
        %2784 = vst [vmem:[#allocation3 + $0x1c] sm:$0x3] %v2783
        %v2787 = vunpack.c.l.s4 1983009808
        %v2788 = vunpack.c.0.s8 %v2787
        %v2789 = vlaneseq
        %v2790 = vshrl.u32 %v2789, 7
        %v2791 = vsub.s32 %v2788, %v2790
        %v2792 = vrot.slane %v2783, %v2791
        %v2793 = vcombine.high %v2792, %v2792
        %2795 = vst [vmem:[#allocation3 + $0x1e] sm:$0x3] %v2793
        %v2796 = vpack.c.bf16 %v2686, %v2686
        %2797 = vst [vmem:[#allocation3 + $0x20] sm:$0x3] %v2796
        %v2800 = vunpack.c.l.s4 1983009808
        %v2801 = vunpack.c.0.s8 %v2800
        %v2802 = vlaneseq
        %v2803 = vshrl.u32 %v2802, 7
        %v2804 = vsub.s32 %v2801, %v2803
        %v2805 = vrot.slane %v2796, %v2804
        %v2806 = vcombine.high %v2805, %v2805
        %2808 = vst [vmem:[#allocation3 + $0x22] sm:$0x3] %v2806
        %v2809 = vpack.c.bf16 %v2689, %v2689
        %2810 = vst [vmem:[#allocation3 + $0x24] sm:$0x3] %v2809
        %v2811 = vld [vmem:[%s5] sm:$0xf]
        %v2812 = vld [vmem:[%s5 + $0x4] sm:$0xf]
        %v2813 = vld [vmem:[%s5 + $0x8] sm:$0xf]
        %v2814 = vld [vmem:[%s5 + $0xc] sm:$0xf]
        %v2815 = vld [vmem:[%s5 + $0x10] sm:$0xf]
        %v2816 = vld [vmem:[%s5 + $0x14] sm:$0xf]
        %v2817 = vld [vmem:[%s5 + $0x18] sm:$0xf]
        %v2818 = vld [vmem:[%s5 + $0x1c] sm:$0xf]
        %v2819 = vld [vmem:[%s5 + $0x20] sm:$0xf]
        %v2820 = vld [vmem:[%s5 + $0x24] sm:$0xf]
        %v2821 = vld [vmem:[%s5 + $0x28] sm:$0xf]
        %v2822 = vld [vmem:[%s5 + $0x2c] sm:$0xf]
        %v2823 = vld [vmem:[#allocation3] sm:$0xff]
        %v2824 = vld [vmem:[#allocation3 + $0x8] sm:$0xff]
        %v2825 = vld [vmem:[#allocation3 + $0x10] sm:$0xff]
        %v2826 = vld [vmem:[#allocation3 + $0x18] sm:$0xff]
        %v2827 = vld [vmem:[#allocation3 + $0x20] sm:$0x3]
        %v2840 = vunpack.c.l.b16 %v2811
        %v2841 = vunpack.c.l.b16 %v2812
        %v2842 = vunpack.c.l.b16 %v2813
        %v2843 = vunpack.c.l.b16 %v2814
        %v2844 = vunpack.c.l.b16 %v2815
        %v2845 = vunpack.c.l.b16 %v2816
        %v2846 = vunpack.c.l.b16 %v2817
        %v2847 = vunpack.c.l.b16 %v2818
        %v2848 = vunpack.c.l.b16 %v2819
        %v2849 = vunpack.c.l.b16 %v2820
        %v2850 = vunpack.c.l.b16 %v2821
        %v2851 = vunpack.c.l.b16 %v2822
        %v2852 = vpack.c.b16 %v2841, %v2840
        %v2853 = vpack.c.b16 %v2843, %v2842
        %v2854 = vpack.c.b16 %v2845, %v2844
        %v2855 = vpack.c.b16 %v2847, %v2846
        %v2856 = vpack.c.b16 %v2849, %v2848
        %v2857 = vpack.c.b16 %v2851, %v2850
        %v2863 = vcombine.high %v2823, %v2823
        %v2865 = vunpack.c.l.s4 1983009808
        %v2866 = vunpack.c.0.s8 %v2865
        %v2867 = vlaneseq
        %v2868 = vshrl.u32 %v2867, 7
        %v2869 = vsub.s32 %v2866, %v2868
        %v2870 = vrot.slane %v2823, %v2869
        %v2872 = vunpack.c.l.s4 1983009808
        %v2873 = vunpack.c.0.s8 %v2872
        %v2874 = vlaneseq
        %v2875 = vshrl.u32 %v2874, 7
        %v2876 = vsub.s32 %v2873, %v2875
        %v2877 = vrot.slane %v2863, %v2876
        %v2878 = vcombine.high %v2870, %v2870
        %v2879 = vcombine.high %v2877, %v2877
        %v2880 = vcombine.high %v2824, %v2824
        %v2882 = vunpack.c.l.s4 1983009808
        %v2883 = vunpack.c.0.s8 %v2882
        %v2884 = vlaneseq
        %v2885 = vshrl.u32 %v2884, 7
        %v2886 = vsub.s32 %v2883, %v2885
        %v2887 = vrot.slane %v2824, %v2886
        %v2889 = vunpack.c.l.s4 1983009808
        %v2890 = vunpack.c.0.s8 %v2889
        %v2891 = vlaneseq
        %v2892 = vshrl.u32 %v2891, 7
        %v2893 = vsub.s32 %v2890, %v2892
        %v2894 = vrot.slane %v2880, %v2893
        %v2895 = vcombine.high %v2887, %v2887
        %v2896 = vcombine.high %v2894, %v2894
        %v2897 = vcombine.high %v2825, %v2825
        %v2899 = vunpack.c.l.s4 1983009808
        %v2900 = vunpack.c.0.s8 %v2899
        %v2901 = vlaneseq
        %v2902 = vshrl.u32 %v2901, 7
        %v2903 = vsub.s32 %v2900, %v2902
        %v2904 = vrot.slane %v2825, %v2903
        %v2906 = vunpack.c.l.s4 1983009808
        %v2907 = vunpack.c.0.s8 %v2906
        %v2908 = vlaneseq
        %v2909 = vshrl.u32 %v2908, 7
        %v2910 = vsub.s32 %v2907, %v2909
        %v2911 = vrot.slane %v2897, %v2910
        %v2912 = vcombine.high %v2904, %v2904
        %v2913 = vcombine.high %v2911, %v2911
        %v2914 = vcombine.high %v2826, %v2826
        %v2916 = vunpack.c.l.s4 1983009808
        %v2917 = vunpack.c.0.s8 %v2916
        %v2918 = vlaneseq
        %v2919 = vshrl.u32 %v2918, 7
        %v2920 = vsub.s32 %v2917, %v2919
        %v2921 = vrot.slane %v2826, %v2920
        %v2923 = vunpack.c.l.s4 1983009808
        %v2924 = vunpack.c.0.s8 %v2923
        %v2925 = vlaneseq
        %v2926 = vshrl.u32 %v2925, 7
        %v2927 = vsub.s32 %v2924, %v2926
        %v2928 = vrot.slane %v2914, %v2927
        %v2929 = vcombine.high %v2921, %v2921
        %v2930 = vcombine.high %v2928, %v2928
        %v2932 = vunpack.c.l.s4 1983009808
        %v2933 = vunpack.c.0.s8 %v2932
        %v2934 = vlaneseq
        %v2935 = vshrl.u32 %v2934, 7
        %v2936 = vsub.s32 %v2933, %v2935
        %v2937 = vrot.slane %v2827, %v2936
        %vm2938 = vcmask 31744
        %v2940 = vsel %vm2938, %v2852, 0
        %v2943 = vsel %vm2938, %v2853, 0
        %v2946 = vsel %vm2938, %v2854, 0
        %v2949 = vsel %vm2938, %v2855, 0
        %v2952 = vsel %vm2938, %v2856, 0
        %v2955 = vsel %vm2938, %v2857, 0
        %v2958 = vsel %vm2511, %v2870, 0
        %v2961 = vsel %vm2511, %v2878, 0
        %v2964 = vsel %vm2511, %v2877, 0
        %v2967 = vsel %vm2511, %v2879, 0
        %v2970 = vsel %vm2511, %v2887, 0
        %v2973 = vsel %vm2511, %v2895, 0
        %v2976 = vsel %vm2511, %v2894, 0
        %v2979 = vsel %vm2511, %v2896, 0
        %v2982 = vsel %vm2511, %v2904, 0
        %v2985 = vsel %vm2511, %v2912, 0
        %v2988 = vsel %vm2511, %v2911, 0
        %v2991 = vsel %vm2511, %v2913, 0
        %v2994 = vsel %vm2511, %v2921, 0
        %v2997 = vsel %vm2511, %v2929, 0
        %v3000 = vsel %vm2511, %v2928, 0
        %v3003 = vsel %vm2511, %v2930, 0
        %v3006 = vsel %vm2511, %v2937, 0
        %3008 = vmatprep.subr.bf16.mxu0 0
        %3009 = vmatpush1.bf16.msra.mxu0 0
        %3010 = vmatprep.subr.bf16.mxu0 0
        %3011 = vmatpush1.bf16.msra.mxu0 0
        %3012 = vmatprep.subr.bf16.mxu0 0
        %3013 = vmatpush1.bf16.msra.mxu0 0
        %3014 = vmatprep.subr.bf16.mxu0 0
        %3015 = vmatpush1.bf16.msra.mxu0 0
        %3016 = vmatprep.subr.bf16.mxu0 0
        %3017 = vmatpush1.bf16.msra.mxu0 0
        %3018 = vmatprep.subr.bf16.mxu0 0
        %3019 = vmatpush1.bf16.msra.mxu0 0
        %3020 = vmatprep.subr.bf16.mxu0 0
        %3021 = vmatpush1.bf16.msra.mxu0 0
        %3022 = vmatprep.subr.bf16.mxu0 %v2961
        %3023 = vmatpush1.bf16.msra.mxu0 %v2958
        %3024 = vmatprep.subr.bf16.mxu0 0
        %3025 = vmatpush2.bf16.msra.mxu0 0
        %3026 = vmatprep.subr.bf16.mxu0 0
        %3027 = vmatpush2.bf16.msra.mxu0 0
        %3028 = vmatprep.subr.bf16.mxu0 0
        %3029 = vmatpush2.bf16.msra.mxu0 0
        %3030 = vmatprep.subr.bf16.mxu0 0
        %3031 = vmatpush2.bf16.msra.mxu0 0
        %3032 = vmatprep.subr.bf16.mxu0 0
        %3033 = vmatpush2.bf16.msra.mxu0 0
        %3034 = vmatprep.subr.bf16.mxu0 0
        %3035 = vmatpush2.bf16.msra.mxu0 0
        %3036 = vmatprep.subr.bf16.mxu0 0
        %3037 = vmatpush2.bf16.msra.mxu0 0
        %3038 = vmatprep.subr.bf16.mxu0 0
        %3039 = vmatpush2.bf16.msra.mxu0 0
        %3040 = vmatprep.mubr.bf16.mxu0 0
        %3041 = vmatmul.mubr.bf16.gmra.mxu0 %v2940
        %v3042 = vpop.f32.mrf.mxu0
        %v3043 = vadd.f32 0.0, %v3042
        %v3044 = vpop.f32.mrf.mxu0
        %v3045 = vadd.f32 0.0, %v3044
        %v3046 = vpop.f32.mrf.mxu0
        %v3047 = vadd.f32 0.0, %v3046
        %v3048 = vpop.f32.mrf.mxu0
        %v3049 = vadd.f32 0.0, %v3048
        %3050 = vmatprep.mubr.bf16.mxu0 0
        %3051 = vmatmul.mubr.bf16.gmra.mxu0 %v2943
        %v3052 = vpop.f32.mrf.mxu0
        %v3053 = vadd.f32 0.0, %v3052
        %v3054 = vpop.f32.mrf.mxu0
        %v3055 = vadd.f32 0.0, %v3054
        %v3056 = vpop.f32.mrf.mxu0
        %v3057 = vadd.f32 0.0, %v3056
        %v3058 = vpop.f32.mrf.mxu0
        %v3059 = vadd.f32 0.0, %v3058
        %3060 = vmatprep.mubr.bf16.mxu0 0
        %3061 = vmatmul.mubr.bf16.gmra.mxu0 %v2946
        %v3062 = vpop.f32.mrf.mxu0
        %v3063 = vadd.f32 0.0, %v3062
        %v3064 = vpop.f32.mrf.mxu0
        %v3065 = vadd.f32 0.0, %v3064
        %v3066 = vpop.f32.mrf.mxu0
        %v3067 = vadd.f32 0.0, %v3066
        %v3068 = vpop.f32.mrf.mxu0
        %v3069 = vadd.f32 0.0, %v3068
        %3070 = vmatprep.mubr.bf16.mxu0 0
        %3071 = vmatmul.mubr.bf16.gmra.mxu0 %v2949
        %v3072 = vpop.f32.mrf.mxu0
        %v3073 = vadd.f32 0.0, %v3072
        %v3074 = vpop.f32.mrf.mxu0
        %v3075 = vadd.f32 0.0, %v3074
        %v3076 = vpop.f32.mrf.mxu0
        %v3077 = vadd.f32 0.0, %v3076
        %v3078 = vpop.f32.mrf.mxu0
        %v3079 = vadd.f32 0.0, %v3078
        %3080 = vmatprep.mubr.bf16.mxu0 0
        %3081 = vmatmul.mubr.bf16.gmra.mxu0 %v2952
        %v3082 = vpop.f32.mrf.mxu0
        %v3083 = vadd.f32 0.0, %v3082
        %v3084 = vpop.f32.mrf.mxu0
        %v3085 = vadd.f32 0.0, %v3084
        %v3086 = vpop.f32.mrf.mxu0
        %v3087 = vadd.f32 0.0, %v3086
        %v3088 = vpop.f32.mrf.mxu0
        %v3089 = vadd.f32 0.0, %v3088
        %3090 = vmatprep.mubr.bf16.mxu0 0
        %3091 = vmatmul.mubr.bf16.gmra.mxu0 %v2955
        %v3092 = vpop.f32.mrf.mxu0
        %v3093 = vadd.f32 0.0, %v3092
        %v3094 = vpop.f32.mrf.mxu0
        %v3095 = vadd.f32 0.0, %v3094
        %v3096 = vpop.f32.mrf.mxu0
        %v3097 = vadd.f32 0.0, %v3096
        %v3098 = vpop.f32.mrf.mxu0
        %v3099 = vadd.f32 0.0, %v3098
        %3100 = vdwg.mxu0
        %3101 = vmatprep.subr.bf16.mxu0 0
        %3102 = vmatpush1.bf16.msra.mxu0 0
        %3103 = vmatprep.subr.bf16.mxu0 0
        %3104 = vmatpush1.bf16.msra.mxu0 0
        %3105 = vmatprep.subr.bf16.mxu0 0
        %3106 = vmatpush1.bf16.msra.mxu0 0
        %3107 = vmatprep.subr.bf16.mxu0 0
        %3108 = vmatpush1.bf16.msra.mxu0 0
        %3109 = vmatprep.subr.bf16.mxu0 0
        %3110 = vmatpush1.bf16.msra.mxu0 0
        %3111 = vmatprep.subr.bf16.mxu0 0
        %3112 = vmatpush1.bf16.msra.mxu0 0
        %3113 = vmatprep.subr.bf16.mxu0 0
        %3114 = vmatpush1.bf16.msra.mxu0 0
        %3115 = vmatprep.subr.bf16.mxu0 %v2967
        %3116 = vmatpush1.bf16.msra.mxu0 %v2964
        %3117 = vmatprep.subr.bf16.mxu0 0
        %3118 = vmatpush2.bf16.msra.mxu0 0
        %3119 = vmatprep.subr.bf16.mxu0 0
        %3120 = vmatpush2.bf16.msra.mxu0 0
        %3121 = vmatprep.subr.bf16.mxu0 0
        %3122 = vmatpush2.bf16.msra.mxu0 0
        %3123 = vmatprep.subr.bf16.mxu0 0
        %3124 = vmatpush2.bf16.msra.mxu0 0
        %3125 = vmatprep.subr.bf16.mxu0 0
        %3126 = vmatpush2.bf16.msra.mxu0 0
        %3127 = vmatprep.subr.bf16.mxu0 0
        %3128 = vmatpush2.bf16.msra.mxu0 0
        %3129 = vmatprep.subr.bf16.mxu0 0
        %3130 = vmatpush2.bf16.msra.mxu0 0
        %3131 = vmatprep.subr.bf16.mxu0 0
        %3132 = vmatpush2.bf16.msra.mxu0 0
        %3133 = vmatprep.mubr.bf16.mxu0 0
        %3134 = vmatmul.mubr.bf16.gmra.mxu0 %v2940
        %v3135 = vpop.f32.mrf.mxu0
        %v3136 = vadd.f32 0.0, %v3135
        %v3137 = vpop.f32.mrf.mxu0
        %v3138 = vadd.f32 0.0, %v3137
        %v3139 = vpop.f32.mrf.mxu0
        %v3140 = vadd.f32 0.0, %v3139
        %v3141 = vpop.f32.mrf.mxu0
        %v3142 = vadd.f32 0.0, %v3141
        %3143 = vmatprep.mubr.bf16.mxu0 0
        %3144 = vmatmul.mubr.bf16.gmra.mxu0 %v2943
        %v3145 = vpop.f32.mrf.mxu0
        %v3146 = vadd.f32 0.0, %v3145
        %v3147 = vpop.f32.mrf.mxu0
        %v3148 = vadd.f32 0.0, %v3147
        %v3149 = vpop.f32.mrf.mxu0
        %v3150 = vadd.f32 0.0, %v3149
        %v3151 = vpop.f32.mrf.mxu0
        %v3152 = vadd.f32 0.0, %v3151
        %3153 = vmatprep.mubr.bf16.mxu0 0
        %3154 = vmatmul.mubr.bf16.gmra.mxu0 %v2946
        %v3155 = vpop.f32.mrf.mxu0
        %v3156 = vadd.f32 0.0, %v3155
        %v3157 = vpop.f32.mrf.mxu0
        %v3158 = vadd.f32 0.0, %v3157
        %v3159 = vpop.f32.mrf.mxu0
        %v3160 = vadd.f32 0.0, %v3159
        %v3161 = vpop.f32.mrf.mxu0
        %v3162 = vadd.f32 0.0, %v3161
        %3163 = vmatprep.mubr.bf16.mxu0 0
        %3164 = vmatmul.mubr.bf16.gmra.mxu0 %v2949
        %v3165 = vpop.f32.mrf.mxu0
        %v3166 = vadd.f32 0.0, %v3165
        %v3167 = vpop.f32.mrf.mxu0
        %v3168 = vadd.f32 0.0, %v3167
        %v3169 = vpop.f32.mrf.mxu0
        %v3170 = vadd.f32 0.0, %v3169
        %v3171 = vpop.f32.mrf.mxu0
        %v3172 = vadd.f32 0.0, %v3171
        %3173 = vmatprep.mubr.bf16.mxu0 0
        %3174 = vmatmul.mubr.bf16.gmra.mxu0 %v2952
        %v3175 = vpop.f32.mrf.mxu0
        %v3176 = vadd.f32 0.0, %v3175
        %v3177 = vpop.f32.mrf.mxu0
        %v3178 = vadd.f32 0.0, %v3177
        %v3179 = vpop.f32.mrf.mxu0
        %v3180 = vadd.f32 0.0, %v3179
        %v3181 = vpop.f32.mrf.mxu0
        %v3182 = vadd.f32 0.0, %v3181
        %3183 = vmatprep.mubr.bf16.mxu0 0
        %3184 = vmatmul.mubr.bf16.gmra.mxu0 %v2955
        %v3185 = vpop.f32.mrf.mxu0
        %v3186 = vadd.f32 0.0, %v3185
        %v3187 = vpop.f32.mrf.mxu0
        %v3188 = vadd.f32 0.0, %v3187
        %v3189 = vpop.f32.mrf.mxu0
        %v3190 = vadd.f32 0.0, %v3189
        %v3191 = vpop.f32.mrf.mxu0
        %v3192 = vadd.f32 0.0, %v3191
        %3193 = vdwg.mxu0
        %3194 = vmatprep.subr.bf16.mxu0 0
        %3195 = vmatpush1.bf16.msra.mxu0 0
        %3196 = vmatprep.subr.bf16.mxu0 0
        %3197 = vmatpush1.bf16.msra.mxu0 0
        %3198 = vmatprep.subr.bf16.mxu0 0
        %3199 = vmatpush1.bf16.msra.mxu0 0
        %3200 = vmatprep.subr.bf16.mxu0 0
        %3201 = vmatpush1.bf16.msra.mxu0 0
        %3202 = vmatprep.subr.bf16.mxu0 0
        %3203 = vmatpush1.bf16.msra.mxu0 0
        %3204 = vmatprep.subr.bf16.mxu0 0
        %3205 = vmatpush1.bf16.msra.mxu0 0
        %3206 = vmatprep.subr.bf16.mxu0 0
        %3207 = vmatpush1.bf16.msra.mxu0 0
        %3208 = vmatprep.subr.bf16.mxu0 %v2973
        %3209 = vmatpush1.bf16.msra.mxu0 %v2970
        %3210 = vmatprep.subr.bf16.mxu0 0
        %3211 = vmatpush2.bf16.msra.mxu0 0
        %3212 = vmatprep.subr.bf16.mxu0 0
        %3213 = vmatpush2.bf16.msra.mxu0 0
        %3214 = vmatprep.subr.bf16.mxu0 0
        %3215 = vmatpush2.bf16.msra.mxu0 0
        %3216 = vmatprep.subr.bf16.mxu0 0
        %3217 = vmatpush2.bf16.msra.mxu0 0
        %3218 = vmatprep.subr.bf16.mxu0 0
        %3219 = vmatpush2.bf16.msra.mxu0 0
        %3220 = vmatprep.subr.bf16.mxu0 0
        %3221 = vmatpush2.bf16.msra.mxu0 0
        %3222 = vmatprep.subr.bf16.mxu0 0
        %3223 = vmatpush2.bf16.msra.mxu0 0
        %3224 = vmatprep.subr.bf16.mxu0 0
        %3225 = vmatpush2.bf16.msra.mxu0 0
        %3226 = vmatprep.mubr.bf16.mxu0 0
        %3227 = vmatmul.mubr.bf16.gmra.mxu0 %v2940
        %v3228 = vpop.f32.mrf.mxu0
        %v3229 = vadd.f32 0.0, %v3228
        %v3230 = vpop.f32.mrf.mxu0
        %v3231 = vadd.f32 0.0, %v3230
        %v3232 = vpop.f32.mrf.mxu0
        %v3233 = vadd.f32 0.0, %v3232
        %v3234 = vpop.f32.mrf.mxu0
        %v3235 = vadd.f32 0.0, %v3234
        %3236 = vmatprep.mubr.bf16.mxu0 0
        %3237 = vmatmul.mubr.bf16.gmra.mxu0 %v2943
        %v3238 = vpop.f32.mrf.mxu0
        %v3239 = vadd.f32 0.0, %v3238
        %v3240 = vpop.f32.mrf.mxu0
        %v3241 = vadd.f32 0.0, %v3240
        %v3242 = vpop.f32.mrf.mxu0
        %v3243 = vadd.f32 0.0, %v3242
        %v3244 = vpop.f32.mrf.mxu0
        %v3245 = vadd.f32 0.0, %v3244
        %3246 = vmatprep.mubr.bf16.mxu0 0
        %3247 = vmatmul.mubr.bf16.gmra.mxu0 %v2946
        %v3248 = vpop.f32.mrf.mxu0
        %v3249 = vadd.f32 0.0, %v3248
        %v3250 = vpop.f32.mrf.mxu0
        %v3251 = vadd.f32 0.0, %v3250
        %v3252 = vpop.f32.mrf.mxu0
        %v3253 = vadd.f32 0.0, %v3252
        %v3254 = vpop.f32.mrf.mxu0
        %v3255 = vadd.f32 0.0, %v3254
        %3256 = vmatprep.mubr.bf16.mxu0 0
        %3257 = vmatmul.mubr.bf16.gmra.mxu0 %v2949
        %v3258 = vpop.f32.mrf.mxu0
        %v3259 = vadd.f32 0.0, %v3258
        %v3260 = vpop.f32.mrf.mxu0
        %v3261 = vadd.f32 0.0, %v3260
        %v3262 = vpop.f32.mrf.mxu0
        %v3263 = vadd.f32 0.0, %v3262
        %v3264 = vpop.f32.mrf.mxu0
        %v3265 = vadd.f32 0.0, %v3264
        %3266 = vmatprep.mubr.bf16.mxu0 0
        %3267 = vmatmul.mubr.bf16.gmra.mxu0 %v2952
        %v3268 = vpop.f32.mrf.mxu0
        %v3269 = vadd.f32 0.0, %v3268
        %v3270 = vpop.f32.mrf.mxu0
        %v3271 = vadd.f32 0.0, %v3270
        %v3272 = vpop.f32.mrf.mxu0
        %v3273 = vadd.f32 0.0, %v3272
        %v3274 = vpop.f32.mrf.mxu0
        %v3275 = vadd.f32 0.0, %v3274
        %3276 = vmatprep.mubr.bf16.mxu0 0
        %3277 = vmatmul.mubr.bf16.gmra.mxu0 %v2955
        %v3278 = vpop.f32.mrf.mxu0
        %v3279 = vadd.f32 0.0, %v3278
        %v3280 = vpop.f32.mrf.mxu0
        %v3281 = vadd.f32 0.0, %v3280
        %v3282 = vpop.f32.mrf.mxu0
        %v3283 = vadd.f32 0.0, %v3282
        %v3284 = vpop.f32.mrf.mxu0
        %v3285 = vadd.f32 0.0, %v3284
        %3286 = vdwg.mxu0
        %3287 = vmatprep.subr.bf16.mxu0 0
        %3288 = vmatpush1.bf16.msra.mxu0 0
        %3289 = vmatprep.subr.bf16.mxu0 0
        %3290 = vmatpush1.bf16.msra.mxu0 0
        %3291 = vmatprep.subr.bf16.mxu0 0
        %3292 = vmatpush1.bf16.msra.mxu0 0
        %3293 = vmatprep.subr.bf16.mxu0 0
        %3294 = vmatpush1.bf16.msra.mxu0 0
        %3295 = vmatprep.subr.bf16.mxu0 0
        %3296 = vmatpush1.bf16.msra.mxu0 0
        %3297 = vmatprep.subr.bf16.mxu0 0
        %3298 = vmatpush1.bf16.msra.mxu0 0
        %3299 = vmatprep.subr.bf16.mxu0 0
        %3300 = vmatpush1.bf16.msra.mxu0 0
        %3301 = vmatprep.subr.bf16.mxu0 %v2979
        %3302 = vmatpush1.bf16.msra.mxu0 %v2976
        %3303 = vmatprep.subr.bf16.mxu0 0
        %3304 = vmatpush2.bf16.msra.mxu0 0
        %3305 = vmatprep.subr.bf16.mxu0 0
        %3306 = vmatpush2.bf16.msra.mxu0 0
        %3307 = vmatprep.subr.bf16.mxu0 0
        %3308 = vmatpush2.bf16.msra.mxu0 0
        %3309 = vmatprep.subr.bf16.mxu0 0
        %3310 = vmatpush2.bf16.msra.mxu0 0
        %3311 = vmatprep.subr.bf16.mxu0 0
        %3312 = vmatpush2.bf16.msra.mxu0 0
        %3313 = vmatprep.subr.bf16.mxu0 0
        %3314 = vmatpush2.bf16.msra.mxu0 0
        %3315 = vmatprep.subr.bf16.mxu0 0
        %3316 = vmatpush2.bf16.msra.mxu0 0
        %3317 = vmatprep.subr.bf16.mxu0 0
        %3318 = vmatpush2.bf16.msra.mxu0 0
        %3319 = vmatprep.mubr.bf16.mxu0 0
        %3320 = vmatmul.mubr.bf16.gmra.mxu0 %v2940
        %v3321 = vpop.f32.mrf.mxu0
        %v3322 = vadd.f32 0.0, %v3321
        %v3323 = vpop.f32.mrf.mxu0
        %v3324 = vadd.f32 0.0, %v3323
        %v3325 = vpop.f32.mrf.mxu0
        %v3326 = vadd.f32 0.0, %v3325
        %v3327 = vpop.f32.mrf.mxu0
        %v3328 = vadd.f32 0.0, %v3327
        %3329 = vmatprep.mubr.bf16.mxu0 0
        %3330 = vmatmul.mubr.bf16.gmra.mxu0 %v2943
        %v3331 = vpop.f32.mrf.mxu0
        %v3332 = vadd.f32 0.0, %v3331
        %v3333 = vpop.f32.mrf.mxu0
        %v3334 = vadd.f32 0.0, %v3333
        %v3335 = vpop.f32.mrf.mxu0
        %v3336 = vadd.f32 0.0, %v3335
        %v3337 = vpop.f32.mrf.mxu0
        %v3338 = vadd.f32 0.0, %v3337
        %3339 = vmatprep.mubr.bf16.mxu0 0
        %3340 = vmatmul.mubr.bf16.gmra.mxu0 %v2946
        %v3341 = vpop.f32.mrf.mxu0
        %v3342 = vadd.f32 0.0, %v3341
        %v3343 = vpop.f32.mrf.mxu0
        %v3344 = vadd.f32 0.0, %v3343
        %v3345 = vpop.f32.mrf.mxu0
        %v3346 = vadd.f32 0.0, %v3345
        %v3347 = vpop.f32.mrf.mxu0
        %v3348 = vadd.f32 0.0, %v3347
        %3349 = vmatprep.mubr.bf16.mxu0 0
        %3350 = vmatmul.mubr.bf16.gmra.mxu0 %v2949
        %v3351 = vpop.f32.mrf.mxu0
        %v3352 = vadd.f32 0.0, %v3351
        %v3353 = vpop.f32.mrf.mxu0
        %v3354 = vadd.f32 0.0, %v3353
        %v3355 = vpop.f32.mrf.mxu0
        %v3356 = vadd.f32 0.0, %v3355
        %v3357 = vpop.f32.mrf.mxu0
        %v3358 = vadd.f32 0.0, %v3357
        %3359 = vmatprep.mubr.bf16.mxu0 0
        %3360 = vmatmul.mubr.bf16.gmra.mxu0 %v2952
        %v3361 = vpop.f32.mrf.mxu0
        %v3362 = vadd.f32 0.0, %v3361
        %v3363 = vpop.f32.mrf.mxu0
        %v3364 = vadd.f32 0.0, %v3363
        %v3365 = vpop.f32.mrf.mxu0
        %v3366 = vadd.f32 0.0, %v3365
        %v3367 = vpop.f32.mrf.mxu0
        %v3368 = vadd.f32 0.0, %v3367
        %3369 = vmatprep.mubr.bf16.mxu0 0
        %3370 = vmatmul.mubr.bf16.gmra.mxu0 %v2955
        %v3371 = vpop.f32.mrf.mxu0
        %v3372 = vadd.f32 0.0, %v3371
        %v3373 = vpop.f32.mrf.mxu0
        %v3374 = vadd.f32 0.0, %v3373
        %v3375 = vpop.f32.mrf.mxu0
        %v3376 = vadd.f32 0.0, %v3375
        %v3377 = vpop.f32.mrf.mxu0
        %v3378 = vadd.f32 0.0, %v3377
        %3379 = vdwg.mxu0
        %3380 = vmatprep.subr.bf16.mxu0 0
        %3381 = vmatpush1.bf16.msra.mxu0 0
        %3382 = vmatprep.subr.bf16.mxu0 0
        %3383 = vmatpush1.bf16.msra.mxu0 0
        %3384 = vmatprep.subr.bf16.mxu0 0
        %3385 = vmatpush1.bf16.msra.mxu0 0
        %3386 = vmatprep.subr.bf16.mxu0 0
        %3387 = vmatpush1.bf16.msra.mxu0 0
        %3388 = vmatprep.subr.bf16.mxu0 0
        %3389 = vmatpush1.bf16.msra.mxu0 0
        %3390 = vmatprep.subr.bf16.mxu0 0
        %3391 = vmatpush1.bf16.msra.mxu0 0
        %3392 = vmatprep.subr.bf16.mxu0 0
        %3393 = vmatpush1.bf16.msra.mxu0 0
        %3394 = vmatprep.subr.bf16.mxu0 %v2985
        %3395 = vmatpush1.bf16.msra.mxu0 %v2982
        %3396 = vmatprep.subr.bf16.mxu0 0
        %3397 = vmatpush2.bf16.msra.mxu0 0
        %3398 = vmatprep.subr.bf16.mxu0 0
        %3399 = vmatpush2.bf16.msra.mxu0 0
        %3400 = vmatprep.subr.bf16.mxu0 0
        %3401 = vmatpush2.bf16.msra.mxu0 0
        %3402 = vmatprep.subr.bf16.mxu0 0
        %3403 = vmatpush2.bf16.msra.mxu0 0
        %3404 = vmatprep.subr.bf16.mxu0 0
        %3405 = vmatpush2.bf16.msra.mxu0 0
        %3406 = vmatprep.subr.bf16.mxu0 0
        %3407 = vmatpush2.bf16.msra.mxu0 0
        %3408 = vmatprep.subr.bf16.mxu0 0
        %3409 = vmatpush2.bf16.msra.mxu0 0
        %3410 = vmatprep.subr.bf16.mxu0 0
        %3411 = vmatpush2.bf16.msra.mxu0 0
        %3412 = vmatprep.mubr.bf16.mxu0 0
        %3413 = vmatmul.mubr.bf16.gmra.mxu0 %v2940
        %v3414 = vpop.f32.mrf.mxu0
        %v3415 = vadd.f32 0.0, %v3414
        %v3416 = vpop.f32.mrf.mxu0
        %v3417 = vadd.f32 0.0, %v3416
        %v3418 = vpop.f32.mrf.mxu0
        %v3419 = vadd.f32 0.0, %v3418
        %v3420 = vpop.f32.mrf.mxu0
        %v3421 = vadd.f32 0.0, %v3420
        %3422 = vmatprep.mubr.bf16.mxu0 0
        %3423 = vmatmul.mubr.bf16.gmra.mxu0 %v2943
        %v3424 = vpop.f32.mrf.mxu0
        %v3425 = vadd.f32 0.0, %v3424
        %v3426 = vpop.f32.mrf.mxu0
        %v3427 = vadd.f32 0.0, %v3426
        %v3428 = vpop.f32.mrf.mxu0
        %v3429 = vadd.f32 0.0, %v3428
        %v3430 = vpop.f32.mrf.mxu0
        %v3431 = vadd.f32 0.0, %v3430
        %3432 = vmatprep.mubr.bf16.mxu0 0
        %3433 = vmatmul.mubr.bf16.gmra.mxu0 %v2946
        %v3434 = vpop.f32.mrf.mxu0
        %v3435 = vadd.f32 0.0, %v3434
        %v3436 = vpop.f32.mrf.mxu0
        %v3437 = vadd.f32 0.0, %v3436
        %v3438 = vpop.f32.mrf.mxu0
        %v3439 = vadd.f32 0.0, %v3438
        %v3440 = vpop.f32.mrf.mxu0
        %v3441 = vadd.f32 0.0, %v3440
        %3442 = vmatprep.mubr.bf16.mxu0 0
        %3443 = vmatmul.mubr.bf16.gmra.mxu0 %v2949
        %v3444 = vpop.f32.mrf.mxu0
        %v3445 = vadd.f32 0.0, %v3444
        %v3446 = vpop.f32.mrf.mxu0
        %v3447 = vadd.f32 0.0, %v3446
        %v3448 = vpop.f32.mrf.mxu0
        %v3449 = vadd.f32 0.0, %v3448
        %v3450 = vpop.f32.mrf.mxu0
        %v3451 = vadd.f32 0.0, %v3450
        %3452 = vmatprep.mubr.bf16.mxu0 0
        %3453 = vmatmul.mubr.bf16.gmra.mxu0 %v2952
        %v3454 = vpop.f32.mrf.mxu0
        %v3455 = vadd.f32 0.0, %v3454
        %v3456 = vpop.f32.mrf.mxu0
        %v3457 = vadd.f32 0.0, %v3456
        %v3458 = vpop.f32.mrf.mxu0
        %v3459 = vadd.f32 0.0, %v3458
        %v3460 = vpop.f32.mrf.mxu0
        %v3461 = vadd.f32 0.0, %v3460
        %3462 = vmatprep.mubr.bf16.mxu0 0
        %3463 = vmatmul.mubr.bf16.gmra.mxu0 %v2955
        %v3464 = vpop.f32.mrf.mxu0
        %v3465 = vadd.f32 0.0, %v3464
        %v3466 = vpop.f32.mrf.mxu0
        %v3467 = vadd.f32 0.0, %v3466
        %v3468 = vpop.f32.mrf.mxu0
        %v3469 = vadd.f32 0.0, %v3468
        %v3470 = vpop.f32.mrf.mxu0
        %v3471 = vadd.f32 0.0, %v3470
        %3472 = vdwg.mxu0
        %3473 = vmatprep.subr.bf16.mxu0 0
        %3474 = vmatpush1.bf16.msra.mxu0 0
        %3475 = vmatprep.subr.bf16.mxu0 0
        %3476 = vmatpush1.bf16.msra.mxu0 0
        %3477 = vmatprep.subr.bf16.mxu0 0
        %3478 = vmatpush1.bf16.msra.mxu0 0
        %3479 = vmatprep.subr.bf16.mxu0 0
        %3480 = vmatpush1.bf16.msra.mxu0 0
        %3481 = vmatprep.subr.bf16.mxu0 0
        %3482 = vmatpush1.bf16.msra.mxu0 0
        %3483 = vmatprep.subr.bf16.mxu0 0
        %3484 = vmatpush1.bf16.msra.mxu0 0
        %3485 = vmatprep.subr.bf16.mxu0 0
        %3486 = vmatpush1.bf16.msra.mxu0 0
        %3487 = vmatprep.subr.bf16.mxu0 %v2991
        %3488 = vmatpush1.bf16.msra.mxu0 %v2988
        %3489 = vmatprep.subr.bf16.mxu0 0
        %3490 = vmatpush2.bf16.msra.mxu0 0
        %3491 = vmatprep.subr.bf16.mxu0 0
        %3492 = vmatpush2.bf16.msra.mxu0 0
        %3493 = vmatprep.subr.bf16.mxu0 0
        %3494 = vmatpush2.bf16.msra.mxu0 0
        %3495 = vmatprep.subr.bf16.mxu0 0
        %3496 = vmatpush2.bf16.msra.mxu0 0
        %3497 = vmatprep.subr.bf16.mxu0 0
        %3498 = vmatpush2.bf16.msra.mxu0 0
        %3499 = vmatprep.subr.bf16.mxu0 0
        %3500 = vmatpush2.bf16.msra.mxu0 0
        %3501 = vmatprep.subr.bf16.mxu0 0
        %3502 = vmatpush2.bf16.msra.mxu0 0
        %3503 = vmatprep.subr.bf16.mxu0 0
        %3504 = vmatpush2.bf16.msra.mxu0 0
        %3505 = vmatprep.mubr.bf16.mxu0 0
        %3506 = vmatmul.mubr.bf16.gmra.mxu0 %v2940
        %v3507 = vpop.f32.mrf.mxu0
        %v3508 = vadd.f32 0.0, %v3507
        %v3509 = vpop.f32.mrf.mxu0
        %v3510 = vadd.f32 0.0, %v3509
        %v3511 = vpop.f32.mrf.mxu0
        %v3512 = vadd.f32 0.0, %v3511
        %v3513 = vpop.f32.mrf.mxu0
        %v3514 = vadd.f32 0.0, %v3513
        %3515 = vmatprep.mubr.bf16.mxu0 0
        %3516 = vmatmul.mubr.bf16.gmra.mxu0 %v2943
        %v3517 = vpop.f32.mrf.mxu0
        %v3518 = vadd.f32 0.0, %v3517
        %v3519 = vpop.f32.mrf.mxu0
        %v3520 = vadd.f32 0.0, %v3519
        %v3521 = vpop.f32.mrf.mxu0
        %v3522 = vadd.f32 0.0, %v3521
        %v3523 = vpop.f32.mrf.mxu0
        %v3524 = vadd.f32 0.0, %v3523
        %3525 = vmatprep.mubr.bf16.mxu0 0
        %3526 = vmatmul.mubr.bf16.gmra.mxu0 %v2946
        %v3527 = vpop.f32.mrf.mxu0
        %v3528 = vadd.f32 0.0, %v3527
        %v3529 = vpop.f32.mrf.mxu0
        %v3530 = vadd.f32 0.0, %v3529
        %v3531 = vpop.f32.mrf.mxu0
        %v3532 = vadd.f32 0.0, %v3531
        %v3533 = vpop.f32.mrf.mxu0
        %v3534 = vadd.f32 0.0, %v3533
        %3535 = vmatprep.mubr.bf16.mxu0 0
        %3536 = vmatmul.mubr.bf16.gmra.mxu0 %v2949
        %v3537 = vpop.f32.mrf.mxu0
        %v3538 = vadd.f32 0.0, %v3537
        %v3539 = vpop.f32.mrf.mxu0
        %v3540 = vadd.f32 0.0, %v3539
        %v3541 = vpop.f32.mrf.mxu0
        %v3542 = vadd.f32 0.0, %v3541
        %v3543 = vpop.f32.mrf.mxu0
        %v3544 = vadd.f32 0.0, %v3543
        %3545 = vmatprep.mubr.bf16.mxu0 0
        %3546 = vmatmul.mubr.bf16.gmra.mxu0 %v2952
        %v3547 = vpop.f32.mrf.mxu0
        %v3548 = vadd.f32 0.0, %v3547
        %v3549 = vpop.f32.mrf.mxu0
        %v3550 = vadd.f32 0.0, %v3549
        %v3551 = vpop.f32.mrf.mxu0
        %v3552 = vadd.f32 0.0, %v3551
        %v3553 = vpop.f32.mrf.mxu0
        %v3554 = vadd.f32 0.0, %v3553
        %3555 = vmatprep.mubr.bf16.mxu0 0
        %3556 = vmatmul.mubr.bf16.gmra.mxu0 %v2955
        %v3557 = vpop.f32.mrf.mxu0
        %v3558 = vadd.f32 0.0, %v3557
        %v3559 = vpop.f32.mrf.mxu0
        %v3560 = vadd.f32 0.0, %v3559
        %v3561 = vpop.f32.mrf.mxu0
        %v3562 = vadd.f32 0.0, %v3561
        %v3563 = vpop.f32.mrf.mxu0
        %v3564 = vadd.f32 0.0, %v3563
        %3565 = vdwg.mxu0
        %3566 = vmatprep.subr.bf16.mxu0 0
        %3567 = vmatpush1.bf16.msra.mxu0 0
        %3568 = vmatprep.subr.bf16.mxu0 0
        %3569 = vmatpush1.bf16.msra.mxu0 0
        %3570 = vmatprep.subr.bf16.mxu0 0
        %3571 = vmatpush1.bf16.msra.mxu0 0
        %3572 = vmatprep.subr.bf16.mxu0 0
        %3573 = vmatpush1.bf16.msra.mxu0 0
        %3574 = vmatprep.subr.bf16.mxu0 0
        %3575 = vmatpush1.bf16.msra.mxu0 0
        %3576 = vmatprep.subr.bf16.mxu0 0
        %3577 = vmatpush1.bf16.msra.mxu0 0
        %3578 = vmatprep.subr.bf16.mxu0 0
        %3579 = vmatpush1.bf16.msra.mxu0 0
        %3580 = vmatprep.subr.bf16.mxu0 %v2997
        %3581 = vmatpush1.bf16.msra.mxu0 %v2994
        %3582 = vmatprep.subr.bf16.mxu0 0
        %3583 = vmatpush2.bf16.msra.mxu0 0
        %3584 = vmatprep.subr.bf16.mxu0 0
        %3585 = vmatpush2.bf16.msra.mxu0 0
        %3586 = vmatprep.subr.bf16.mxu0 0
        %3587 = vmatpush2.bf16.msra.mxu0 0
        %3588 = vmatprep.subr.bf16.mxu0 0
        %3589 = vmatpush2.bf16.msra.mxu0 0
        %3590 = vmatprep.subr.bf16.mxu0 0
        %3591 = vmatpush2.bf16.msra.mxu0 0
        %3592 = vmatprep.subr.bf16.mxu0 0
        %3593 = vmatpush2.bf16.msra.mxu0 0
        %3594 = vmatprep.subr.bf16.mxu0 0
        %3595 = vmatpush2.bf16.msra.mxu0 0
        %3596 = vmatprep.subr.bf16.mxu0 0
        %3597 = vmatpush2.bf16.msra.mxu0 0
        %3598 = vmatprep.mubr.bf16.mxu0 0
        %3599 = vmatmul.mubr.bf16.gmra.mxu0 %v2940
        %v3600 = vpop.f32.mrf.mxu0
        %v3601 = vadd.f32 0.0, %v3600
        %v3602 = vpop.f32.mrf.mxu0
        %v3603 = vadd.f32 0.0, %v3602
        %v3604 = vpop.f32.mrf.mxu0
        %v3605 = vadd.f32 0.0, %v3604
        %v3606 = vpop.f32.mrf.mxu0
        %v3607 = vadd.f32 0.0, %v3606
        %3608 = vmatprep.mubr.bf16.mxu0 0
        %3609 = vmatmul.mubr.bf16.gmra.mxu0 %v2943
        %v3610 = vpop.f32.mrf.mxu0
        %v3611 = vadd.f32 0.0, %v3610
        %v3612 = vpop.f32.mrf.mxu0
        %v3613 = vadd.f32 0.0, %v3612
        %v3614 = vpop.f32.mrf.mxu0
        %v3615 = vadd.f32 0.0, %v3614
        %v3616 = vpop.f32.mrf.mxu0
        %v3617 = vadd.f32 0.0, %v3616
        %3618 = vmatprep.mubr.bf16.mxu0 0
        %3619 = vmatmul.mubr.bf16.gmra.mxu0 %v2946
        %v3620 = vpop.f32.mrf.mxu0
        %v3621 = vadd.f32 0.0, %v3620
        %v3622 = vpop.f32.mrf.mxu0
        %v3623 = vadd.f32 0.0, %v3622
        %v3624 = vpop.f32.mrf.mxu0
        %v3625 = vadd.f32 0.0, %v3624
        %v3626 = vpop.f32.mrf.mxu0
        %v3627 = vadd.f32 0.0, %v3626
        %3628 = vmatprep.mubr.bf16.mxu0 0
        %3629 = vmatmul.mubr.bf16.gmra.mxu0 %v2949
        %v3630 = vpop.f32.mrf.mxu0
        %v3631 = vadd.f32 0.0, %v3630
        %v3632 = vpop.f32.mrf.mxu0
        %v3633 = vadd.f32 0.0, %v3632
        %v3634 = vpop.f32.mrf.mxu0
        %v3635 = vadd.f32 0.0, %v3634
        %v3636 = vpop.f32.mrf.mxu0
        %v3637 = vadd.f32 0.0, %v3636
        %3638 = vmatprep.mubr.bf16.mxu0 0
        %3639 = vmatmul.mubr.bf16.gmra.mxu0 %v2952
        %v3640 = vpop.f32.mrf.mxu0
        %v3641 = vadd.f32 0.0, %v3640
        %v3642 = vpop.f32.mrf.mxu0
        %v3643 = vadd.f32 0.0, %v3642
        %v3644 = vpop.f32.mrf.mxu0
        %v3645 = vadd.f32 0.0, %v3644
        %v3646 = vpop.f32.mrf.mxu0
        %v3647 = vadd.f32 0.0, %v3646
        %3648 = vmatprep.mubr.bf16.mxu0 0
        %3649 = vmatmul.mubr.bf16.gmra.mxu0 %v2955
        %v3650 = vpop.f32.mrf.mxu0
        %v3651 = vadd.f32 0.0, %v3650
        %v3652 = vpop.f32.mrf.mxu0
        %v3653 = vadd.f32 0.0, %v3652
        %v3654 = vpop.f32.mrf.mxu0
        %v3655 = vadd.f32 0.0, %v3654
        %v3656 = vpop.f32.mrf.mxu0
        %v3657 = vadd.f32 0.0, %v3656
        %3658 = vdwg.mxu0
        %3659 = vmatprep.subr.bf16.mxu0 0
        %3660 = vmatpush1.bf16.msra.mxu0 0
        %3661 = vmatprep.subr.bf16.mxu0 0
        %3662 = vmatpush1.bf16.msra.mxu0 0
        %3663 = vmatprep.subr.bf16.mxu0 0
        %3664 = vmatpush1.bf16.msra.mxu0 0
        %3665 = vmatprep.subr.bf16.mxu0 0
        %3666 = vmatpush1.bf16.msra.mxu0 0
        %3667 = vmatprep.subr.bf16.mxu0 0
        %3668 = vmatpush1.bf16.msra.mxu0 0
        %3669 = vmatprep.subr.bf16.mxu0 0
        %3670 = vmatpush1.bf16.msra.mxu0 0
        %3671 = vmatprep.subr.bf16.mxu0 0
        %3672 = vmatpush1.bf16.msra.mxu0 0
        %3673 = vmatprep.subr.bf16.mxu0 %v3003
        %3674 = vmatpush1.bf16.msra.mxu0 %v3000
        %3675 = vmatprep.subr.bf16.mxu0 0
        %3676 = vmatpush2.bf16.msra.mxu0 0
        %3677 = vmatprep.subr.bf16.mxu0 0
        %3678 = vmatpush2.bf16.msra.mxu0 0
        %3679 = vmatprep.subr.bf16.mxu0 0
        %3680 = vmatpush2.bf16.msra.mxu0 0
        %3681 = vmatprep.subr.bf16.mxu0 0
        %3682 = vmatpush2.bf16.msra.mxu0 0
        %3683 = vmatprep.subr.bf16.mxu0 0
        %3684 = vmatpush2.bf16.msra.mxu0 0
        %3685 = vmatprep.subr.bf16.mxu0 0
        %3686 = vmatpush2.bf16.msra.mxu0 0
        %3687 = vmatprep.subr.bf16.mxu0 0
        %3688 = vmatpush2.bf16.msra.mxu0 0
        %3689 = vmatprep.subr.bf16.mxu0 0
        %3690 = vmatpush2.bf16.msra.mxu0 0
        %3691 = vmatprep.mubr.bf16.mxu0 0
        %3692 = vmatmul.mubr.bf16.gmra.mxu0 %v2940
        %v3693 = vpop.f32.mrf.mxu0
        %v3694 = vadd.f32 0.0, %v3693
        %v3695 = vpop.f32.mrf.mxu0
        %v3696 = vadd.f32 0.0, %v3695
        %v3697 = vpop.f32.mrf.mxu0
        %v3698 = vadd.f32 0.0, %v3697
        %v3699 = vpop.f32.mrf.mxu0
        %v3700 = vadd.f32 0.0, %v3699
        %3701 = vmatprep.mubr.bf16.mxu0 0
        %3702 = vmatmul.mubr.bf16.gmra.mxu0 %v2943
        %v3703 = vpop.f32.mrf.mxu0
        %v3704 = vadd.f32 0.0, %v3703
        %v3705 = vpop.f32.mrf.mxu0
        %v3706 = vadd.f32 0.0, %v3705
        %v3707 = vpop.f32.mrf.mxu0
        %v3708 = vadd.f32 0.0, %v3707
        %v3709 = vpop.f32.mrf.mxu0
        %v3710 = vadd.f32 0.0, %v3709
        %3711 = vmatprep.mubr.bf16.mxu0 0
        %3712 = vmatmul.mubr.bf16.gmra.mxu0 %v2946
        %v3713 = vpop.f32.mrf.mxu0
        %v3714 = vadd.f32 0.0, %v3713
        %v3715 = vpop.f32.mrf.mxu0
        %v3716 = vadd.f32 0.0, %v3715
        %v3717 = vpop.f32.mrf.mxu0
        %v3718 = vadd.f32 0.0, %v3717
        %v3719 = vpop.f32.mrf.mxu0
        %v3720 = vadd.f32 0.0, %v3719
        %3721 = vmatprep.mubr.bf16.mxu0 0
        %3722 = vmatmul.mubr.bf16.gmra.mxu0 %v2949
        %v3723 = vpop.f32.mrf.mxu0
        %v3724 = vadd.f32 0.0, %v3723
        %v3725 = vpop.f32.mrf.mxu0
        %v3726 = vadd.f32 0.0, %v3725
        %v3727 = vpop.f32.mrf.mxu0
        %v3728 = vadd.f32 0.0, %v3727
        %v3729 = vpop.f32.mrf.mxu0
        %v3730 = vadd.f32 0.0, %v3729
        %3731 = vmatprep.mubr.bf16.mxu0 0
        %3732 = vmatmul.mubr.bf16.gmra.mxu0 %v2952
        %v3733 = vpop.f32.mrf.mxu0
        %v3734 = vadd.f32 0.0, %v3733
        %v3735 = vpop.f32.mrf.mxu0
        %v3736 = vadd.f32 0.0, %v3735
        %v3737 = vpop.f32.mrf.mxu0
        %v3738 = vadd.f32 0.0, %v3737
        %v3739 = vpop.f32.mrf.mxu0
        %v3740 = vadd.f32 0.0, %v3739
        %3741 = vmatprep.mubr.bf16.mxu0 0
        %3742 = vmatmul.mubr.bf16.gmra.mxu0 %v2955
        %v3743 = vpop.f32.mrf.mxu0
        %v3744 = vadd.f32 0.0, %v3743
        %v3745 = vpop.f32.mrf.mxu0
        %v3746 = vadd.f32 0.0, %v3745
        %v3747 = vpop.f32.mrf.mxu0
        %v3748 = vadd.f32 0.0, %v3747
        %v3749 = vpop.f32.mrf.mxu0
        %v3750 = vadd.f32 0.0, %v3749
        %3751 = vdwg.mxu0
        %3752 = vmatprep.subr.bf16.mxu0 0
        %3753 = vmatpush1.bf16.msra.mxu0 0
        %3754 = vmatprep.subr.bf16.mxu0 0
        %3755 = vmatpush1.bf16.msra.mxu0 0
        %3756 = vmatprep.subr.bf16.mxu0 0
        %3757 = vmatpush1.bf16.msra.mxu0 0
        %3758 = vmatprep.subr.bf16.mxu0 0
        %3759 = vmatpush1.bf16.msra.mxu0 0
        %3760 = vmatprep.subr.bf16.mxu0 0
        %3761 = vmatpush1.bf16.msra.mxu0 0
        %3762 = vmatprep.subr.bf16.mxu0 0
        %3763 = vmatpush1.bf16.msra.mxu0 0
        %3764 = vmatprep.subr.bf16.mxu0 0
        %3765 = vmatpush1.bf16.msra.mxu0 0
        %3766 = vmatprep.subr.bf16.mxu0 0
        %3767 = vmatpush1.bf16.msra.mxu0 %v3006
        %3768 = vmatprep.subr.bf16.mxu0 0
        %3769 = vmatpush2.bf16.msra.mxu0 0
        %3770 = vmatprep.subr.bf16.mxu0 0
        %3771 = vmatpush2.bf16.msra.mxu0 0
        %3772 = vmatprep.subr.bf16.mxu0 0
        %3773 = vmatpush2.bf16.msra.mxu0 0
        %3774 = vmatprep.subr.bf16.mxu0 0
        %3775 = vmatpush2.bf16.msra.mxu0 0
        %3776 = vmatprep.subr.bf16.mxu0 0
        %3777 = vmatpush2.bf16.msra.mxu0 0
        %3778 = vmatprep.subr.bf16.mxu0 0
        %3779 = vmatpush2.bf16.msra.mxu0 0
        %3780 = vmatprep.subr.bf16.mxu0 0
        %3781 = vmatpush2.bf16.msra.mxu0 0
        %3782 = vmatprep.subr.bf16.mxu0 0
        %3783 = vmatpush2.bf16.msra.mxu0 0
        %3784 = vmatprep.mubr.bf16.mxu0 0
        %3785 = vmatmul.mubr.bf16.gmra.mxu0 %v2940
        %v3786 = vpop.f32.mrf.mxu0
        %v3787 = vpop.f32.mrf.mxu0
        %v3788 = vpop.f32.mrf.mxu0
        %v3789 = vpop.f32.mrf.mxu0
        %3790 = vmatprep.mubr.bf16.mxu0 0
        %3791 = vmatmul.mubr.bf16.gmra.mxu0 %v2943
        %v3792 = vpop.f32.mrf.mxu0
        %v3793 = vpop.f32.mrf.mxu0
        %v3794 = vpop.f32.mrf.mxu0
        %v3795 = vpop.f32.mrf.mxu0
        %3796 = vmatprep.mubr.bf16.mxu0 0
        %3797 = vmatmul.mubr.bf16.gmra.mxu0 %v2946
        %v3798 = vpop.f32.mrf.mxu0
        %v3799 = vadd.f32 0.0, %v3798
        %v3800 = vpop.f32.mrf.mxu0
        %v3801 = vpop.f32.mrf.mxu0
        %v3802 = vadd.f32 0.0, %v3801
        %v3803 = vpop.f32.mrf.mxu0
        %3804 = vmatprep.mubr.bf16.mxu0 0
        %3805 = vmatmul.mubr.bf16.gmra.mxu0 %v2949
        %v3806 = vpop.f32.mrf.mxu0
        %v3807 = vadd.f32 0.0, %v3806
        %v3808 = vpop.f32.mrf.mxu0
        %v3809 = vpop.f32.mrf.mxu0
        %v3810 = vadd.f32 0.0, %v3809
        %v3811 = vpop.f32.mrf.mxu0
        %3812 = vmatprep.mubr.bf16.mxu0 0
        %3813 = vmatmul.mubr.bf16.gmra.mxu0 %v2952
        %v3814 = vpop.f32.mrf.mxu0
        %v3815 = vadd.f32 0.0, %v3814
        %v3816 = vpop.f32.mrf.mxu0
        %v3817 = vpop.f32.mrf.mxu0
        %v3818 = vadd.f32 0.0, %v3817
        %v3819 = vpop.f32.mrf.mxu0
        %3820 = vmatprep.mubr.bf16.mxu0 0
        %3821 = vmatmul.mubr.bf16.gmra.mxu0 %v2955
        %v3822 = vpop.f32.mrf.mxu0
        %v3823 = vadd.f32 0.0, %v3822
        %v3824 = vpop.f32.mrf.mxu0
        %v3825 = vpop.f32.mrf.mxu0
        %v3826 = vadd.f32 0.0, %v3825
        %v3827 = vpop.f32.mrf.mxu0
        %3828 = vdwg.mxu0
        %3897 = vrot.lane.b32.xlu0 %v3063, 127
        %v3898 = vpop.permute.xlu0 %3897
        %3899 = vrot.lane.b32.xlu0 %v3065, 127
        %v3900 = vpop.permute.xlu0 %3899
        %3901 = vrot.lane.b32.xlu0 %v3156, 127
        %v3902 = vpop.permute.xlu0 %3901
        %3903 = vrot.lane.b32.xlu0 %v3158, 127
        %v3904 = vpop.permute.xlu0 %3903
        %3905 = vrot.lane.b32.xlu0 %v3249, 127
        %v3906 = vpop.permute.xlu0 %3905
        %3907 = vrot.lane.b32.xlu0 %v3251, 127
        %v3908 = vpop.permute.xlu0 %3907
        %3909 = vrot.lane.b32.xlu0 %v3342, 127
        %v3910 = vpop.permute.xlu0 %3909
        %3911 = vrot.lane.b32.xlu0 %v3344, 127
        %v3912 = vpop.permute.xlu0 %3911
        %3913 = vrot.lane.b32.xlu0 %v3435, 127
        %v3914 = vpop.permute.xlu0 %3913
        %3915 = vrot.lane.b32.xlu0 %v3437, 127
        %v3916 = vpop.permute.xlu0 %3915
        %3917 = vrot.lane.b32.xlu0 %v3528, 127
        %v3918 = vpop.permute.xlu0 %3917
        %3919 = vrot.lane.b32.xlu0 %v3530, 127
        %v3920 = vpop.permute.xlu0 %3919
        %3921 = vrot.lane.b32.xlu0 %v3621, 127
        %v3922 = vpop.permute.xlu0 %3921
        %3923 = vrot.lane.b32.xlu0 %v3623, 127
        %v3924 = vpop.permute.xlu0 %3923
        %3925 = vrot.lane.b32.xlu0 %v3714, 127
        %v3926 = vpop.permute.xlu0 %3925
        %3927 = vrot.lane.b32.xlu0 %v3716, 127
        %v3928 = vpop.permute.xlu0 %3927
        %3929 = vrot.lane.b32.xlu0 %v3799, 127
        %v3930 = vpop.permute.xlu0 %3929
        %3931 = vrot.lane.b32.xlu0 %v3067, 127
        %v3932 = vpop.permute.xlu0 %3931
        %3933 = vrot.lane.b32.xlu0 %v3069, 127
        %v3934 = vpop.permute.xlu0 %3933
        %3935 = vrot.lane.b32.xlu0 %v3160, 127
        %v3936 = vpop.permute.xlu0 %3935
        %3937 = vrot.lane.b32.xlu0 %v3162, 127
        %v3938 = vpop.permute.xlu0 %3937
        %3939 = vrot.lane.b32.xlu0 %v3253, 127
        %v3940 = vpop.permute.xlu0 %3939
        %3941 = vrot.lane.b32.xlu0 %v3255, 127
        %v3942 = vpop.permute.xlu0 %3941
        %3943 = vrot.lane.b32.xlu0 %v3346, 127
        %v3944 = vpop.permute.xlu0 %3943
        %3945 = vrot.lane.b32.xlu0 %v3348, 127
        %v3946 = vpop.permute.xlu0 %3945
        %3947 = vrot.lane.b32.xlu0 %v3439, 127
        %v3948 = vpop.permute.xlu0 %3947
        %3949 = vrot.lane.b32.xlu0 %v3441, 127
        %v3950 = vpop.permute.xlu0 %3949
        %3951 = vrot.lane.b32.xlu0 %v3532, 127
        %v3952 = vpop.permute.xlu0 %3951
        %3953 = vrot.lane.b32.xlu0 %v3534, 127
        %v3954 = vpop.permute.xlu0 %3953
        %3955 = vrot.lane.b32.xlu0 %v3625, 127
        %v3956 = vpop.permute.xlu0 %3955
        %3957 = vrot.lane.b32.xlu0 %v3627, 127
        %v3958 = vpop.permute.xlu0 %3957
        %3959 = vrot.lane.b32.xlu0 %v3718, 127
        %v3960 = vpop.permute.xlu0 %3959
        %3961 = vrot.lane.b32.xlu0 %v3720, 127
        %v3962 = vpop.permute.xlu0 %3961
        %3963 = vrot.lane.b32.xlu0 %v3802, 127
        %v3964 = vpop.permute.xlu0 %3963
        %3965 = vrot.lane.b32.xlu0 %v3073, 127
        %v3966 = vpop.permute.xlu0 %3965
        %3967 = vrot.lane.b32.xlu0 %v3075, 127
        %v3968 = vpop.permute.xlu0 %3967
        %3969 = vrot.lane.b32.xlu0 %v3166, 127
        %v3970 = vpop.permute.xlu0 %3969
        %3971 = vrot.lane.b32.xlu0 %v3168, 127
        %v3972 = vpop.permute.xlu0 %3971
        %3973 = vrot.lane.b32.xlu0 %v3259, 127
        %v3974 = vpop.permute.xlu0 %3973
        %3975 = vrot.lane.b32.xlu0 %v3261, 127
        %v3976 = vpop.permute.xlu0 %3975
        %3977 = vrot.lane.b32.xlu0 %v3352, 127
        %v3978 = vpop.permute.xlu0 %3977
        %3979 = vrot.lane.b32.xlu0 %v3354, 127
        %v3980 = vpop.permute.xlu0 %3979
        %3981 = vrot.lane.b32.xlu0 %v3445, 127
        %v3982 = vpop.permute.xlu0 %3981
        %3983 = vrot.lane.b32.xlu0 %v3447, 127
        %v3984 = vpop.permute.xlu0 %3983
        %3985 = vrot.lane.b32.xlu0 %v3538, 127
        %v3986 = vpop.permute.xlu0 %3985
        %3987 = vrot.lane.b32.xlu0 %v3540, 127
        %v3988 = vpop.permute.xlu0 %3987
        %3989 = vrot.lane.b32.xlu0 %v3631, 127
        %v3990 = vpop.permute.xlu0 %3989
        %3991 = vrot.lane.b32.xlu0 %v3633, 127
        %v3992 = vpop.permute.xlu0 %3991
        %3993 = vrot.lane.b32.xlu0 %v3724, 127
        %v3994 = vpop.permute.xlu0 %3993
        %3995 = vrot.lane.b32.xlu0 %v3726, 127
        %v3996 = vpop.permute.xlu0 %3995
        %3997 = vrot.lane.b32.xlu0 %v3807, 127
        %v3998 = vpop.permute.xlu0 %3997
        %3999 = vrot.lane.b32.xlu0 %v3077, 127
        %v4000 = vpop.permute.xlu0 %3999
        %4001 = vrot.lane.b32.xlu0 %v3079, 127
        %v4002 = vpop.permute.xlu0 %4001
        %4003 = vrot.lane.b32.xlu0 %v3170, 127
        %v4004 = vpop.permute.xlu0 %4003
        %4005 = vrot.lane.b32.xlu0 %v3172, 127
        %v4006 = vpop.permute.xlu0 %4005
        %4007 = vrot.lane.b32.xlu0 %v3263, 127
        %v4008 = vpop.permute.xlu0 %4007
        %4009 = vrot.lane.b32.xlu0 %v3265, 127
        %v4010 = vpop.permute.xlu0 %4009
        %4011 = vrot.lane.b32.xlu0 %v3356, 127
        %v4012 = vpop.permute.xlu0 %4011
        %4013 = vrot.lane.b32.xlu0 %v3358, 127
        %v4014 = vpop.permute.xlu0 %4013
        %4015 = vrot.lane.b32.xlu0 %v3449, 127
        %v4016 = vpop.permute.xlu0 %4015
        %4017 = vrot.lane.b32.xlu0 %v3451, 127
        %v4018 = vpop.permute.xlu0 %4017
        %4019 = vrot.lane.b32.xlu0 %v3542, 127
        %v4020 = vpop.permute.xlu0 %4019
        %4021 = vrot.lane.b32.xlu0 %v3544, 127
        %v4022 = vpop.permute.xlu0 %4021
        %4023 = vrot.lane.b32.xlu0 %v3635, 127
        %v4024 = vpop.permute.xlu0 %4023
        %4025 = vrot.lane.b32.xlu0 %v3637, 127
        %v4026 = vpop.permute.xlu0 %4025
        %4027 = vrot.lane.b32.xlu0 %v3728, 127
        %v4028 = vpop.permute.xlu0 %4027
        %4029 = vrot.lane.b32.xlu0 %v3730, 127
        %v4030 = vpop.permute.xlu0 %4029
        %4031 = vrot.lane.b32.xlu0 %v3810, 127
        %v4032 = vpop.permute.xlu0 %4031
        %v4033 = vsel %vm739, %v3898, %v3900
        %v4034 = vsel %vm739, %v3900, %v3902
        %v4035 = vsel %vm739, %v3902, %v3904
        %v4036 = vsel %vm739, %v3904, %v3906
        %v4037 = vsel %vm739, %v3906, %v3908
        %v4038 = vsel %vm739, %v3908, %v3910
        %v4039 = vsel %vm739, %v3910, %v3912
        %v4040 = vsel %vm739, %v3912, %v3914
        %v4041 = vsel %vm739, %v3914, %v3916
        %v4042 = vsel %vm739, %v3916, %v3918
        %v4043 = vsel %vm739, %v3918, %v3920
        %v4044 = vsel %vm739, %v3920, %v3922
        %v4045 = vsel %vm739, %v3922, %v3924
        %v4046 = vsel %vm739, %v3924, %v3926
        %v4047 = vsel %vm739, %v3926, %v3928
        %v4048 = vsel %vm739, %v3928, %v3930
        %v4049 = vsel %vm739, %v3932, %v3934
        %v4050 = vsel %vm739, %v3934, %v3936
        %v4051 = vsel %vm739, %v3936, %v3938
        %v4052 = vsel %vm739, %v3938, %v3940
        %v4053 = vsel %vm739, %v3940, %v3942
        %v4054 = vsel %vm739, %v3942, %v3944
        %v4055 = vsel %vm739, %v3944, %v3946
        %v4056 = vsel %vm739, %v3946, %v3948
        %v4057 = vsel %vm739, %v3948, %v3950
        %v4058 = vsel %vm739, %v3950, %v3952
        %v4059 = vsel %vm739, %v3952, %v3954
        %v4060 = vsel %vm739, %v3954, %v3956
        %v4061 = vsel %vm739, %v3956, %v3958
        %v4062 = vsel %vm739, %v3958, %v3960
        %v4063 = vsel %vm739, %v3960, %v3962
        %v4064 = vsel %vm739, %v3962, %v3964
        %v4065 = vsel %vm739, %v3966, %v3968
        %v4066 = vsel %vm739, %v3968, %v3970
        %v4067 = vsel %vm739, %v3970, %v3972
        %v4068 = vsel %vm739, %v3972, %v3974
        %v4069 = vsel %vm739, %v3974, %v3976
        %v4070 = vsel %vm739, %v3976, %v3978
        %v4071 = vsel %vm739, %v3978, %v3980
        %v4072 = vsel %vm739, %v3980, %v3982
        %v4073 = vsel %vm739, %v3982, %v3984
        %v4074 = vsel %vm739, %v3984, %v3986
        %v4075 = vsel %vm739, %v3986, %v3988
        %v4076 = vsel %vm739, %v3988, %v3990
        %v4077 = vsel %vm739, %v3990, %v3992
        %v4078 = vsel %vm739, %v3992, %v3994
        %v4079 = vsel %vm739, %v3994, %v3996
        %v4080 = vsel %vm739, %v3996, %v3998
        %v4081 = vsel %vm739, %v4000, %v4002
        %v4082 = vsel %vm739, %v4002, %v4004
        %v4083 = vsel %vm739, %v4004, %v4006
        %v4084 = vsel %vm739, %v4006, %v4008
        %v4085 = vsel %vm739, %v4008, %v4010
        %v4086 = vsel %vm739, %v4010, %v4012
        %v4087 = vsel %vm739, %v4012, %v4014
        %v4088 = vsel %vm739, %v4014, %v4016
        %v4089 = vsel %vm739, %v4016, %v4018
        %v4090 = vsel %vm739, %v4018, %v4020
        %v4091 = vsel %vm739, %v4020, %v4022
        %v4092 = vsel %vm739, %v4022, %v4024
        %v4093 = vsel %vm739, %v4024, %v4026
        %v4094 = vsel %vm739, %v4026, %v4028
        %v4095 = vsel %vm739, %v4028, %v4030
        %v4096 = vsel %vm739, %v4030, %v4032
        %v4161 = vadd.f32 %v3043, %v4033
        %v4162 = vadd.f32 %v3045, %v4034
        %v4163 = vadd.f32 %v3136, %v4035
        %v4164 = vadd.f32 %v3138, %v4036
        %v4165 = vadd.f32 %v3229, %v4037
        %v4166 = vadd.f32 %v3231, %v4038
        %v4167 = vadd.f32 %v3322, %v4039
        %v4168 = vadd.f32 %v3324, %v4040
        %v4169 = vadd.f32 %v3415, %v4041
        %v4170 = vadd.f32 %v3417, %v4042
        %v4171 = vadd.f32 %v3508, %v4043
        %v4172 = vadd.f32 %v3510, %v4044
        %v4173 = vadd.f32 %v3601, %v4045
        %v4174 = vadd.f32 %v3603, %v4046
        %v4175 = vadd.f32 %v3694, %v4047
        %v4176 = vadd.f32 %v3696, %v4048
        %v4177 = vadd.f32 %v3047, %v4049
        %v4178 = vadd.f32 %v3049, %v4050
        %v4179 = vadd.f32 %v3140, %v4051
        %v4180 = vadd.f32 %v3142, %v4052
        %v4181 = vadd.f32 %v3233, %v4053
        %v4182 = vadd.f32 %v3235, %v4054
        %v4183 = vadd.f32 %v3326, %v4055
        %v4184 = vadd.f32 %v3328, %v4056
        %v4185 = vadd.f32 %v3419, %v4057
        %v4186 = vadd.f32 %v3421, %v4058
        %v4187 = vadd.f32 %v3512, %v4059
        %v4188 = vadd.f32 %v3514, %v4060
        %v4189 = vadd.f32 %v3605, %v4061
        %v4190 = vadd.f32 %v3607, %v4062
        %v4191 = vadd.f32 %v3698, %v4063
        %v4192 = vadd.f32 %v3700, %v4064
        %v4193 = vadd.f32 %v3053, %v4065
        %v4194 = vadd.f32 %v3055, %v4066
        %v4195 = vadd.f32 %v3146, %v4067
        %v4196 = vadd.f32 %v3148, %v4068
        %v4197 = vadd.f32 %v3239, %v4069
        %v4198 = vadd.f32 %v3241, %v4070
        %v4199 = vadd.f32 %v3332, %v4071
        %v4200 = vadd.f32 %v3334, %v4072
        %v4201 = vadd.f32 %v3425, %v4073
        %v4202 = vadd.f32 %v3427, %v4074
        %v4203 = vadd.f32 %v3518, %v4075
        %v4204 = vadd.f32 %v3520, %v4076
        %v4205 = vadd.f32 %v3611, %v4077
        %v4206 = vadd.f32 %v3613, %v4078
        %v4207 = vadd.f32 %v3704, %v4079
        %v4208 = vadd.f32 %v3706, %v4080
        %v4209 = vadd.f32 %v3057, %v4081
        %v4210 = vadd.f32 %v3059, %v4082
        %v4211 = vadd.f32 %v3150, %v4083
        %v4212 = vadd.f32 %v3152, %v4084
        %v4213 = vadd.f32 %v3243, %v4085
        %v4214 = vadd.f32 %v3245, %v4086
        %v4215 = vadd.f32 %v3336, %v4087
        %v4216 = vadd.f32 %v3338, %v4088
        %v4217 = vadd.f32 %v3429, %v4089
        %v4218 = vadd.f32 %v3431, %v4090
        %v4219 = vadd.f32 %v3522, %v4091
        %v4220 = vadd.f32 %v3524, %v4092
        %v4221 = vadd.f32 %v3615, %v4093
        %v4222 = vadd.f32 %v3617, %v4094
        %v4223 = vadd.f32 %v3708, %v4095
        %v4224 = vadd.f32 %v3710, %v4096
        %4293 = vrot.lane.b32.xlu0 %v3083, 126
        %v4294 = vpop.permute.xlu0 %4293
        %4295 = vrot.lane.b32.xlu0 %v3085, 126
        %v4296 = vpop.permute.xlu0 %4295
        %4297 = vrot.lane.b32.xlu0 %v3176, 126
        %v4298 = vpop.permute.xlu0 %4297
        %4299 = vrot.lane.b32.xlu0 %v3178, 126
        %v4300 = vpop.permute.xlu0 %4299
        %4301 = vrot.lane.b32.xlu0 %v3269, 126
        %v4302 = vpop.permute.xlu0 %4301
        %4303 = vrot.lane.b32.xlu0 %v3271, 126
        %v4304 = vpop.permute.xlu0 %4303
        %4305 = vrot.lane.b32.xlu0 %v3362, 126
        %v4306 = vpop.permute.xlu0 %4305
        %4307 = vrot.lane.b32.xlu0 %v3364, 126
        %v4308 = vpop.permute.xlu0 %4307
        %4309 = vrot.lane.b32.xlu0 %v3455, 126
        %v4310 = vpop.permute.xlu0 %4309
        %4311 = vrot.lane.b32.xlu0 %v3457, 126
        %v4312 = vpop.permute.xlu0 %4311
        %4313 = vrot.lane.b32.xlu0 %v3548, 126
        %v4314 = vpop.permute.xlu0 %4313
        %4315 = vrot.lane.b32.xlu0 %v3550, 126
        %v4316 = vpop.permute.xlu0 %4315
        %4317 = vrot.lane.b32.xlu0 %v3641, 126
        %v4318 = vpop.permute.xlu0 %4317
        %4319 = vrot.lane.b32.xlu0 %v3643, 126
        %v4320 = vpop.permute.xlu0 %4319
        %4321 = vrot.lane.b32.xlu0 %v3734, 126
        %v4322 = vpop.permute.xlu0 %4321
        %4323 = vrot.lane.b32.xlu0 %v3736, 126
        %v4324 = vpop.permute.xlu0 %4323
        %4325 = vrot.lane.b32.xlu0 %v3815, 126
        %v4326 = vpop.permute.xlu0 %4325
        %4327 = vrot.lane.b32.xlu0 %v3087, 126
        %v4328 = vpop.permute.xlu0 %4327
        %4329 = vrot.lane.b32.xlu0 %v3089, 126
        %v4330 = vpop.permute.xlu0 %4329
        %4331 = vrot.lane.b32.xlu0 %v3180, 126
        %v4332 = vpop.permute.xlu0 %4331
        %4333 = vrot.lane.b32.xlu0 %v3182, 126
        %v4334 = vpop.permute.xlu0 %4333
        %4335 = vrot.lane.b32.xlu0 %v3273, 126
        %v4336 = vpop.permute.xlu0 %4335
        %4337 = vrot.lane.b32.xlu0 %v3275, 126
        %v4338 = vpop.permute.xlu0 %4337
        %4339 = vrot.lane.b32.xlu0 %v3366, 126
        %v4340 = vpop.permute.xlu0 %4339
        %4341 = vrot.lane.b32.xlu0 %v3368, 126
        %v4342 = vpop.permute.xlu0 %4341
        %4343 = vrot.lane.b32.xlu0 %v3459, 126
        %v4344 = vpop.permute.xlu0 %4343
        %4345 = vrot.lane.b32.xlu0 %v3461, 126
        %v4346 = vpop.permute.xlu0 %4345
        %4347 = vrot.lane.b32.xlu0 %v3552, 126
        %v4348 = vpop.permute.xlu0 %4347
        %4349 = vrot.lane.b32.xlu0 %v3554, 126
        %v4350 = vpop.permute.xlu0 %4349
        %4351 = vrot.lane.b32.xlu0 %v3645, 126
        %v4352 = vpop.permute.xlu0 %4351
        %4353 = vrot.lane.b32.xlu0 %v3647, 126
        %v4354 = vpop.permute.xlu0 %4353
        %4355 = vrot.lane.b32.xlu0 %v3738, 126
        %v4356 = vpop.permute.xlu0 %4355
        %4357 = vrot.lane.b32.xlu0 %v3740, 126
        %v4358 = vpop.permute.xlu0 %4357
        %4359 = vrot.lane.b32.xlu0 %v3818, 126
        %v4360 = vpop.permute.xlu0 %4359
        %4361 = vrot.lane.b32.xlu0 %v3093, 126
        %v4362 = vpop.permute.xlu0 %4361
        %4363 = vrot.lane.b32.xlu0 %v3095, 126
        %v4364 = vpop.permute.xlu0 %4363
        %4365 = vrot.lane.b32.xlu0 %v3186, 126
        %v4366 = vpop.permute.xlu0 %4365
        %4367 = vrot.lane.b32.xlu0 %v3188, 126
        %v4368 = vpop.permute.xlu0 %4367
        %4369 = vrot.lane.b32.xlu0 %v3279, 126
        %v4370 = vpop.permute.xlu0 %4369
        %4371 = vrot.lane.b32.xlu0 %v3281, 126
        %v4372 = vpop.permute.xlu0 %4371
        %4373 = vrot.lane.b32.xlu0 %v3372, 126
        %v4374 = vpop.permute.xlu0 %4373
        %4375 = vrot.lane.b32.xlu0 %v3374, 126
        %v4376 = vpop.permute.xlu0 %4375
        %4377 = vrot.lane.b32.xlu0 %v3465, 126
        %v4378 = vpop.permute.xlu0 %4377
        %4379 = vrot.lane.b32.xlu0 %v3467, 126
        %v4380 = vpop.permute.xlu0 %4379
        %4381 = vrot.lane.b32.xlu0 %v3558, 126
        %v4382 = vpop.permute.xlu0 %4381
        %4383 = vrot.lane.b32.xlu0 %v3560, 126
        %v4384 = vpop.permute.xlu0 %4383
        %4385 = vrot.lane.b32.xlu0 %v3651, 126
        %v4386 = vpop.permute.xlu0 %4385
        %4387 = vrot.lane.b32.xlu0 %v3653, 126
        %v4388 = vpop.permute.xlu0 %4387
        %4389 = vrot.lane.b32.xlu0 %v3744, 126
        %v4390 = vpop.permute.xlu0 %4389
        %4391 = vrot.lane.b32.xlu0 %v3746, 126
        %v4392 = vpop.permute.xlu0 %4391
        %4393 = vrot.lane.b32.xlu0 %v3823, 126
        %v4394 = vpop.permute.xlu0 %4393
        %4395 = vrot.lane.b32.xlu0 %v3097, 126
        %v4396 = vpop.permute.xlu0 %4395
        %4397 = vrot.lane.b32.xlu0 %v3099, 126
        %v4398 = vpop.permute.xlu0 %4397
        %4399 = vrot.lane.b32.xlu0 %v3190, 126
        %v4400 = vpop.permute.xlu0 %4399
        %4401 = vrot.lane.b32.xlu0 %v3192, 126
        %v4402 = vpop.permute.xlu0 %4401
        %4403 = vrot.lane.b32.xlu0 %v3283, 126
        %v4404 = vpop.permute.xlu0 %4403
        %4405 = vrot.lane.b32.xlu0 %v3285, 126
        %v4406 = vpop.permute.xlu0 %4405
        %4407 = vrot.lane.b32.xlu0 %v3376, 126
        %v4408 = vpop.permute.xlu0 %4407
        %4409 = vrot.lane.b32.xlu0 %v3378, 126
        %v4410 = vpop.permute.xlu0 %4409
        %4411 = vrot.lane.b32.xlu0 %v3469, 126
        %v4412 = vpop.permute.xlu0 %4411
        %4413 = vrot.lane.b32.xlu0 %v3471, 126
        %v4414 = vpop.permute.xlu0 %4413
        %4415 = vrot.lane.b32.xlu0 %v3562, 126
        %v4416 = vpop.permute.xlu0 %4415
        %4417 = vrot.lane.b32.xlu0 %v3564, 126
        %v4418 = vpop.permute.xlu0 %4417
        %4419 = vrot.lane.b32.xlu0 %v3655, 126
        %v4420 = vpop.permute.xlu0 %4419
        %4421 = vrot.lane.b32.xlu0 %v3657, 126
        %v4422 = vpop.permute.xlu0 %4421
        %4423 = vrot.lane.b32.xlu0 %v3748, 126
        %v4424 = vpop.permute.xlu0 %4423
        %4425 = vrot.lane.b32.xlu0 %v3750, 126
        %v4426 = vpop.permute.xlu0 %4425
        %4427 = vrot.lane.b32.xlu0 %v3826, 126
        %v4428 = vpop.permute.xlu0 %4427
        %v4429 = vsel %vm803, %v4294, %v4296
        %v4430 = vsel %vm803, %v4296, %v4298
        %v4431 = vsel %vm803, %v4298, %v4300
        %v4432 = vsel %vm803, %v4300, %v4302
        %v4433 = vsel %vm803, %v4302, %v4304
        %v4434 = vsel %vm803, %v4304, %v4306
        %v4435 = vsel %vm803, %v4306, %v4308
        %v4436 = vsel %vm803, %v4308, %v4310
        %v4437 = vsel %vm803, %v4310, %v4312
        %v4438 = vsel %vm803, %v4312, %v4314
        %v4439 = vsel %vm803, %v4314, %v4316
        %v4440 = vsel %vm803, %v4316, %v4318
        %v4441 = vsel %vm803, %v4318, %v4320
        %v4442 = vsel %vm803, %v4320, %v4322
        %v4443 = vsel %vm803, %v4322, %v4324
        %v4444 = vsel %vm803, %v4324, %v4326
        %v4445 = vsel %vm803, %v4328, %v4330
        %v4446 = vsel %vm803, %v4330, %v4332
        %v4447 = vsel %vm803, %v4332, %v4334
        %v4448 = vsel %vm803, %v4334, %v4336
        %v4449 = vsel %vm803, %v4336, %v4338
        %v4450 = vsel %vm803, %v4338, %v4340
        %v4451 = vsel %vm803, %v4340, %v4342
        %v4452 = vsel %vm803, %v4342, %v4344
        %v4453 = vsel %vm803, %v4344, %v4346
        %v4454 = vsel %vm803, %v4346, %v4348
        %v4455 = vsel %vm803, %v4348, %v4350
        %v4456 = vsel %vm803, %v4350, %v4352
        %v4457 = vsel %vm803, %v4352, %v4354
        %v4458 = vsel %vm803, %v4354, %v4356
        %v4459 = vsel %vm803, %v4356, %v4358
        %v4460 = vsel %vm803, %v4358, %v4360
        %v4461 = vsel %vm803, %v4362, %v4364
        %v4462 = vsel %vm803, %v4364, %v4366
        %v4463 = vsel %vm803, %v4366, %v4368
        %v4464 = vsel %vm803, %v4368, %v4370
        %v4465 = vsel %vm803, %v4370, %v4372
        %v4466 = vsel %vm803, %v4372, %v4374
        %v4467 = vsel %vm803, %v4374, %v4376
        %v4468 = vsel %vm803, %v4376, %v4378
        %v4469 = vsel %vm803, %v4378, %v4380
        %v4470 = vsel %vm803, %v4380, %v4382
        %v4471 = vsel %vm803, %v4382, %v4384
        %v4472 = vsel %vm803, %v4384, %v4386
        %v4473 = vsel %vm803, %v4386, %v4388
        %v4474 = vsel %vm803, %v4388, %v4390
        %v4475 = vsel %vm803, %v4390, %v4392
        %v4476 = vsel %vm803, %v4392, %v4394
        %v4477 = vsel %vm803, %v4396, %v4398
        %v4478 = vsel %vm803, %v4398, %v4400
        %v4479 = vsel %vm803, %v4400, %v4402
        %v4480 = vsel %vm803, %v4402, %v4404
        %v4481 = vsel %vm803, %v4404, %v4406
        %v4482 = vsel %vm803, %v4406, %v4408
        %v4483 = vsel %vm803, %v4408, %v4410
        %v4484 = vsel %vm803, %v4410, %v4412
        %v4485 = vsel %vm803, %v4412, %v4414
        %v4486 = vsel %vm803, %v4414, %v4416
        %v4487 = vsel %vm803, %v4416, %v4418
        %v4488 = vsel %vm803, %v4418, %v4420
        %v4489 = vsel %vm803, %v4420, %v4422
        %v4490 = vsel %vm803, %v4422, %v4424
        %v4491 = vsel %vm803, %v4424, %v4426
        %v4492 = vsel %vm803, %v4426, %v4428
        %v4557 = vadd.f32 %v4161, %v4429
        %v4558 = vadd.f32 %v4162, %v4430
        %v4559 = vadd.f32 %v4163, %v4431
        %v4560 = vadd.f32 %v4164, %v4432
        %v4561 = vadd.f32 %v4165, %v4433
        %v4562 = vadd.f32 %v4166, %v4434
        %v4563 = vadd.f32 %v4167, %v4435
        %v4564 = vadd.f32 %v4168, %v4436
        %v4565 = vadd.f32 %v4169, %v4437
        %v4566 = vadd.f32 %v4170, %v4438
        %v4567 = vadd.f32 %v4171, %v4439
        %v4568 = vadd.f32 %v4172, %v4440
        %v4569 = vadd.f32 %v4173, %v4441
        %v4570 = vadd.f32 %v4174, %v4442
        %v4571 = vadd.f32 %v4175, %v4443
        %v4572 = vadd.f32 %v4176, %v4444
        %v4573 = vadd.f32 %v4177, %v4445
        %v4574 = vadd.f32 %v4178, %v4446
        %v4575 = vadd.f32 %v4179, %v4447
        %v4576 = vadd.f32 %v4180, %v4448
        %v4577 = vadd.f32 %v4181, %v4449
        %v4578 = vadd.f32 %v4182, %v4450
        %v4579 = vadd.f32 %v4183, %v4451
        %v4580 = vadd.f32 %v4184, %v4452
        %v4581 = vadd.f32 %v4185, %v4453
        %v4582 = vadd.f32 %v4186, %v4454
        %v4583 = vadd.f32 %v4187, %v4455
        %v4584 = vadd.f32 %v4188, %v4456
        %v4585 = vadd.f32 %v4189, %v4457
        %v4586 = vadd.f32 %v4190, %v4458
        %v4587 = vadd.f32 %v4191, %v4459
        %v4588 = vadd.f32 %v4192, %v4460
        %v4589 = vadd.f32 %v4193, %v4461
        %v4590 = vadd.f32 %v4194, %v4462
        %v4591 = vadd.f32 %v4195, %v4463
        %v4592 = vadd.f32 %v4196, %v4464
        %v4593 = vadd.f32 %v4197, %v4465
        %v4594 = vadd.f32 %v4198, %v4466
        %v4595 = vadd.f32 %v4199, %v4467
        %v4596 = vadd.f32 %v4200, %v4468
        %v4597 = vadd.f32 %v4201, %v4469
        %v4598 = vadd.f32 %v4202, %v4470
        %v4599 = vadd.f32 %v4203, %v4471
        %v4600 = vadd.f32 %v4204, %v4472
        %v4601 = vadd.f32 %v4205, %v4473
        %v4602 = vadd.f32 %v4206, %v4474
        %v4603 = vadd.f32 %v4207, %v4475
        %v4604 = vadd.f32 %v4208, %v4476
        %v4605 = vadd.f32 %v4209, %v4477
        %v4606 = vadd.f32 %v4210, %v4478
        %v4607 = vadd.f32 %v4211, %v4479
        %v4608 = vadd.f32 %v4212, %v4480
        %v4609 = vadd.f32 %v4213, %v4481
        %v4610 = vadd.f32 %v4214, %v4482
        %v4611 = vadd.f32 %v4215, %v4483
        %v4612 = vadd.f32 %v4216, %v4484
        %v4613 = vadd.f32 %v4217, %v4485
        %v4614 = vadd.f32 %v4218, %v4486
        %v4615 = vadd.f32 %v4219, %v4487
        %v4616 = vadd.f32 %v4220, %v4488
        %v4617 = vadd.f32 %v4221, %v4489
        %v4618 = vadd.f32 %v4222, %v4490
        %v4619 = vadd.f32 %v4223, %v4491
        %v4620 = vadd.f32 %v4224, %v4492
        %s4621 = scalar_lea.vmem %s5, 48
        %v4622 = vld [vmem:[%s4621] sm:$0xf]
        %v4623 = vld [vmem:[%s4621 + $0x4] sm:$0xf]
        %v4624 = vld [vmem:[%s4621 + $0x8] sm:$0xf]
        %v4625 = vld [vmem:[%s4621 + $0xc] sm:$0xf]
        %v4626 = vld [vmem:[%s4621 + $0x10] sm:$0xf]
        %v4627 = vld [vmem:[%s4621 + $0x14] sm:$0xf]
        %v4628 = vld [vmem:[%s4621 + $0x18] sm:$0xf]
        %v4629 = vld [vmem:[%s4621 + $0x1c] sm:$0xf]
        %v4630 = vld [vmem:[%s4621 + $0x20] sm:$0xf]
        %v4631 = vld [vmem:[%s4621 + $0x24] sm:$0xf]
        %v4632 = vld [vmem:[%s4621 + $0x28] sm:$0xf]
        %v4633 = vld [vmem:[%s4621 + $0x2c] sm:$0xf]
        %v4634 = vld [vmem:[#allocation3 + $0x2] sm:$0xff]
        %v4635 = vld [vmem:[#allocation3 + $0xa] sm:$0xff]
        %v4636 = vld [vmem:[#allocation3 + $0x12] sm:$0xff]
        %v4637 = vld [vmem:[#allocation3 + $0x1a] sm:$0xff]
        %v4638 = vld [vmem:[#allocation3 + $0x22] sm:$0x3]
        %v4651 = vunpack.c.l.b16 %v4622
        %v4652 = vunpack.c.l.b16 %v4623
        %v4653 = vunpack.c.l.b16 %v4624
        %v4654 = vunpack.c.l.b16 %v4625
        %v4655 = vunpack.c.l.b16 %v4626
        %v4656 = vunpack.c.l.b16 %v4627
        %v4657 = vunpack.c.l.b16 %v4628
        %v4658 = vunpack.c.l.b16 %v4629
        %v4659 = vunpack.c.l.b16 %v4630
        %v4660 = vunpack.c.l.b16 %v4631
        %v4661 = vunpack.c.l.b16 %v4632
        %v4662 = vunpack.c.l.b16 %v4633
        %v4663 = vpack.c.b16 %v4652, %v4651
        %v4664 = vpack.c.b16 %v4654, %v4653
        %v4665 = vpack.c.b16 %v4656, %v4655
        %v4666 = vpack.c.b16 %v4658, %v4657
        %v4667 = vpack.c.b16 %v4660, %v4659
        %v4668 = vpack.c.b16 %v4662, %v4661
        %v4674 = vcombine.high %v4634, %v4634
        %v4676 = vunpack.c.l.s4 1983009808
        %v4677 = vunpack.c.0.s8 %v4676
        %v4678 = vlaneseq
        %v4679 = vshrl.u32 %v4678, 7
        %v4680 = vsub.s32 %v4677, %v4679
        %v4681 = vrot.slane %v4634, %v4680
        %v4683 = vunpack.c.l.s4 1983009808
        %v4684 = vunpack.c.0.s8 %v4683
        %v4685 = vlaneseq
        %v4686 = vshrl.u32 %v4685, 7
        %v4687 = vsub.s32 %v4684, %v4686
        %v4688 = vrot.slane %v4674, %v4687
        %v4689 = vcombine.high %v4681, %v4681
        %v4690 = vcombine.high %v4688, %v4688
        %v4691 = vcombine.high %v4635, %v4635
        %v4693 = vunpack.c.l.s4 1983009808
        %v4694 = vunpack.c.0.s8 %v4693
        %v4695 = vlaneseq
        %v4696 = vshrl.u32 %v4695, 7
        %v4697 = vsub.s32 %v4694, %v4696
        %v4698 = vrot.slane %v4635, %v4697
        %v4700 = vunpack.c.l.s4 1983009808
        %v4701 = vunpack.c.0.s8 %v4700
        %v4702 = vlaneseq
        %v4703 = vshrl.u32 %v4702, 7
        %v4704 = vsub.s32 %v4701, %v4703
        %v4705 = vrot.slane %v4691, %v4704
        %v4706 = vcombine.high %v4698, %v4698
        %v4707 = vcombine.high %v4705, %v4705
        %v4708 = vcombine.high %v4636, %v4636
        %v4710 = vunpack.c.l.s4 1983009808
        %v4711 = vunpack.c.0.s8 %v4710
        %v4712 = vlaneseq
        %v4713 = vshrl.u32 %v4712, 7
        %v4714 = vsub.s32 %v4711, %v4713
        %v4715 = vrot.slane %v4636, %v4714
        %v4717 = vunpack.c.l.s4 1983009808
        %v4718 = vunpack.c.0.s8 %v4717
        %v4719 = vlaneseq
        %v4720 = vshrl.u32 %v4719, 7
        %v4721 = vsub.s32 %v4718, %v4720
        %v4722 = vrot.slane %v4708, %v4721
        %v4723 = vcombine.high %v4715, %v4715
        %v4724 = vcombine.high %v4722, %v4722
        %v4725 = vcombine.high %v4637, %v4637
        %v4727 = vunpack.c.l.s4 1983009808
        %v4728 = vunpack.c.0.s8 %v4727
        %v4729 = vlaneseq
        %v4730 = vshrl.u32 %v4729, 7
        %v4731 = vsub.s32 %v4728, %v4730
        %v4732 = vrot.slane %v4637, %v4731
        %v4734 = vunpack.c.l.s4 1983009808
        %v4735 = vunpack.c.0.s8 %v4734
        %v4736 = vlaneseq
        %v4737 = vshrl.u32 %v4736, 7
        %v4738 = vsub.s32 %v4735, %v4737
        %v4739 = vrot.slane %v4725, %v4738
        %v4740 = vcombine.high %v4732, %v4732
        %v4741 = vcombine.high %v4739, %v4739
        %v4743 = vunpack.c.l.s4 1983009808
        %v4744 = vunpack.c.0.s8 %v4743
        %v4745 = vlaneseq
        %v4746 = vshrl.u32 %v4745, 7
        %v4747 = vsub.s32 %v4744, %v4746
        %v4748 = vrot.slane %v4638, %v4747
        %v4750 = vsel %vm2938, %v4663, 0
        %v4753 = vsel %vm2938, %v4664, 0
        %v4756 = vsel %vm2938, %v4665, 0
        %v4759 = vsel %vm2938, %v4666, 0
        %v4762 = vsel %vm2938, %v4667, 0
        %v4765 = vsel %vm2938, %v4668, 0
        %v4768 = vsel %vm2511, %v4681, 0
        %v4771 = vsel %vm2511, %v4689, 0
        %v4774 = vsel %vm2511, %v4688, 0
        %v4777 = vsel %vm2511, %v4690, 0
        %v4780 = vsel %vm2511, %v4698, 0
        %v4783 = vsel %vm2511, %v4706, 0
        %v4786 = vsel %vm2511, %v4705, 0
        %v4789 = vsel %vm2511, %v4707, 0
        %v4792 = vsel %vm2511, %v4715, 0
        %v4795 = vsel %vm2511, %v4723, 0
        %v4798 = vsel %vm2511, %v4722, 0
        %v4801 = vsel %vm2511, %v4724, 0
        %v4804 = vsel %vm2511, %v4732, 0
        %v4807 = vsel %vm2511, %v4740, 0
        %v4810 = vsel %vm2511, %v4739, 0
        %v4813 = vsel %vm2511, %v4741, 0
        %v4816 = vsel %vm2511, %v4748, 0
        %4818 = vmatprep.subr.bf16.mxu0 0
        %4819 = vmatpush1.bf16.msra.mxu0 0
        %4820 = vmatprep.subr.bf16.mxu0 0
        %4821 = vmatpush1.bf16.msra.mxu0 0
        %4822 = vmatprep.subr.bf16.mxu0 0
        %4823 = vmatpush1.bf16.msra.mxu0 0
        %4824 = vmatprep.subr.bf16.mxu0 0
        %4825 = vmatpush1.bf16.msra.mxu0 0
        %4826 = vmatprep.subr.bf16.mxu0 0
        %4827 = vmatpush1.bf16.msra.mxu0 0
        %4828 = vmatprep.subr.bf16.mxu0 0
        %4829 = vmatpush1.bf16.msra.mxu0 0
        %4830 = vmatprep.subr.bf16.mxu0 0
        %4831 = vmatpush1.bf16.msra.mxu0 0
        %4832 = vmatprep.subr.bf16.mxu0 %v4771
        %4833 = vmatpush1.bf16.msra.mxu0 %v4768
        %4834 = vmatprep.subr.bf16.mxu0 0
        %4835 = vmatpush2.bf16.msra.mxu0 0
        %4836 = vmatprep.subr.bf16.mxu0 0
        %4837 = vmatpush2.bf16.msra.mxu0 0
        %4838 = vmatprep.subr.bf16.mxu0 0
        %4839 = vmatpush2.bf16.msra.mxu0 0
        %4840 = vmatprep.subr.bf16.mxu0 0
        %4841 = vmatpush2.bf16.msra.mxu0 0
        %4842 = vmatprep.subr.bf16.mxu0 0
        %4843 = vmatpush2.bf16.msra.mxu0 0
        %4844 = vmatprep.subr.bf16.mxu0 0
        %4845 = vmatpush2.bf16.msra.mxu0 0
        %4846 = vmatprep.subr.bf16.mxu0 0
        %4847 = vmatpush2.bf16.msra.mxu0 0
        %4848 = vmatprep.subr.bf16.mxu0 0
        %4849 = vmatpush2.bf16.msra.mxu0 0
        %4850 = vmatprep.mubr.bf16.mxu0 0
        %4851 = vmatmul.mubr.bf16.gmra.mxu0 %v4750
        %v4852 = vpop.f32.mrf.mxu0
        %v4853 = vadd.f32 0.0, %v4852
        %v4854 = vpop.f32.mrf.mxu0
        %v4855 = vadd.f32 0.0, %v4854
        %v4856 = vpop.f32.mrf.mxu0
        %v4857 = vadd.f32 0.0, %v4856
        %v4858 = vpop.f32.mrf.mxu0
        %v4859 = vadd.f32 0.0, %v4858
        %4860 = vmatprep.mubr.bf16.mxu0 0
        %4861 = vmatmul.mubr.bf16.gmra.mxu0 %v4753
        %v4862 = vpop.f32.mrf.mxu0
        %v4863 = vadd.f32 0.0, %v4862
        %v4864 = vpop.f32.mrf.mxu0
        %v4865 = vadd.f32 0.0, %v4864
        %v4866 = vpop.f32.mrf.mxu0
        %v4867 = vadd.f32 0.0, %v4866
        %v4868 = vpop.f32.mrf.mxu0
        %v4869 = vadd.f32 0.0, %v4868
        %4870 = vmatprep.mubr.bf16.mxu0 0
        %4871 = vmatmul.mubr.bf16.gmra.mxu0 %v4756
        %v4872 = vpop.f32.mrf.mxu0
        %v4873 = vadd.f32 0.0, %v4872
        %v4874 = vpop.f32.mrf.mxu0
        %v4875 = vadd.f32 0.0, %v4874
        %v4876 = vpop.f32.mrf.mxu0
        %v4877 = vadd.f32 0.0, %v4876
        %v4878 = vpop.f32.mrf.mxu0
        %v4879 = vadd.f32 0.0, %v4878
        %4880 = vmatprep.mubr.bf16.mxu0 0
        %4881 = vmatmul.mubr.bf16.gmra.mxu0 %v4759
        %v4882 = vpop.f32.mrf.mxu0
        %v4883 = vadd.f32 0.0, %v4882
        %v4884 = vpop.f32.mrf.mxu0
        %v4885 = vadd.f32 0.0, %v4884
        %v4886 = vpop.f32.mrf.mxu0
        %v4887 = vadd.f32 0.0, %v4886
        %v4888 = vpop.f32.mrf.mxu0
        %v4889 = vadd.f32 0.0, %v4888
        %4890 = vmatprep.mubr.bf16.mxu0 0
        %4891 = vmatmul.mubr.bf16.gmra.mxu0 %v4762
        %v4892 = vpop.f32.mrf.mxu0
        %v4893 = vadd.f32 0.0, %v4892
        %v4894 = vpop.f32.mrf.mxu0
        %v4895 = vadd.f32 0.0, %v4894
        %v4896 = vpop.f32.mrf.mxu0
        %v4897 = vadd.f32 0.0, %v4896
        %v4898 = vpop.f32.mrf.mxu0
        %v4899 = vadd.f32 0.0, %v4898
        %4900 = vmatprep.mubr.bf16.mxu0 0
        %4901 = vmatmul.mubr.bf16.gmra.mxu0 %v4765
        %v4902 = vpop.f32.mrf.mxu0
        %v4903 = vadd.f32 0.0, %v4902
        %v4904 = vpop.f32.mrf.mxu0
        %v4905 = vadd.f32 0.0, %v4904
        %v4906 = vpop.f32.mrf.mxu0
        %v4907 = vadd.f32 0.0, %v4906
        %v4908 = vpop.f32.mrf.mxu0
        %v4909 = vadd.f32 0.0, %v4908
        %4910 = vdwg.mxu0
        %4911 = vmatprep.subr.bf16.mxu0 0
        %4912 = vmatpush1.bf16.msra.mxu0 0
        %4913 = vmatprep.subr.bf16.mxu0 0
        %4914 = vmatpush1.bf16.msra.mxu0 0
        %4915 = vmatprep.subr.bf16.mxu0 0
        %4916 = vmatpush1.bf16.msra.mxu0 0
        %4917 = vmatprep.subr.bf16.mxu0 0
        %4918 = vmatpush1.bf16.msra.mxu0 0
        %4919 = vmatprep.subr.bf16.mxu0 0
        %4920 = vmatpush1.bf16.msra.mxu0 0
        %4921 = vmatprep.subr.bf16.mxu0 0
        %4922 = vmatpush1.bf16.msra.mxu0 0
        %4923 = vmatprep.subr.bf16.mxu0 0
        %4924 = vmatpush1.bf16.msra.mxu0 0
        %4925 = vmatprep.subr.bf16.mxu0 %v4777
        %4926 = vmatpush1.bf16.msra.mxu0 %v4774
        %4927 = vmatprep.subr.bf16.mxu0 0
        %4928 = vmatpush2.bf16.msra.mxu0 0
        %4929 = vmatprep.subr.bf16.mxu0 0
        %4930 = vmatpush2.bf16.msra.mxu0 0
        %4931 = vmatprep.subr.bf16.mxu0 0
        %4932 = vmatpush2.bf16.msra.mxu0 0
        %4933 = vmatprep.subr.bf16.mxu0 0
        %4934 = vmatpush2.bf16.msra.mxu0 0
        %4935 = vmatprep.subr.bf16.mxu0 0
        %4936 = vmatpush2.bf16.msra.mxu0 0
        %4937 = vmatprep.subr.bf16.mxu0 0
        %4938 = vmatpush2.bf16.msra.mxu0 0
        %4939 = vmatprep.subr.bf16.mxu0 0
        %4940 = vmatpush2.bf16.msra.mxu0 0
        %4941 = vmatprep.subr.bf16.mxu0 0
        %4942 = vmatpush2.bf16.msra.mxu0 0
        %4943 = vmatprep.mubr.bf16.mxu0 0
        %4944 = vmatmul.mubr.bf16.gmra.mxu0 %v4750
        %v4945 = vpop.f32.mrf.mxu0
        %v4946 = vadd.f32 0.0, %v4945
        %v4947 = vpop.f32.mrf.mxu0
        %v4948 = vadd.f32 0.0, %v4947
        %v4949 = vpop.f32.mrf.mxu0
        %v4950 = vadd.f32 0.0, %v4949
        %v4951 = vpop.f32.mrf.mxu0
        %v4952 = vadd.f32 0.0, %v4951
        %4953 = vmatprep.mubr.bf16.mxu0 0
        %4954 = vmatmul.mubr.bf16.gmra.mxu0 %v4753
        %v4955 = vpop.f32.mrf.mxu0
        %v4956 = vadd.f32 0.0, %v4955
        %v4957 = vpop.f32.mrf.mxu0
        %v4958 = vadd.f32 0.0, %v4957
        %v4959 = vpop.f32.mrf.mxu0
        %v4960 = vadd.f32 0.0, %v4959
        %v4961 = vpop.f32.mrf.mxu0
        %v4962 = vadd.f32 0.0, %v4961
        %4963 = vmatprep.mubr.bf16.mxu0 0
        %4964 = vmatmul.mubr.bf16.gmra.mxu0 %v4756
        %v4965 = vpop.f32.mrf.mxu0
        %v4966 = vadd.f32 0.0, %v4965
        %v4967 = vpop.f32.mrf.mxu0
        %v4968 = vadd.f32 0.0, %v4967
        %v4969 = vpop.f32.mrf.mxu0
        %v4970 = vadd.f32 0.0, %v4969
        %v4971 = vpop.f32.mrf.mxu0
        %v4972 = vadd.f32 0.0, %v4971
        %4973 = vmatprep.mubr.bf16.mxu0 0
        %4974 = vmatmul.mubr.bf16.gmra.mxu0 %v4759
        %v4975 = vpop.f32.mrf.mxu0
        %v4976 = vadd.f32 0.0, %v4975
        %v4977 = vpop.f32.mrf.mxu0
        %v4978 = vadd.f32 0.0, %v4977
        %v4979 = vpop.f32.mrf.mxu0
        %v4980 = vadd.f32 0.0, %v4979
        %v4981 = vpop.f32.mrf.mxu0
        %v4982 = vadd.f32 0.0, %v4981
        %4983 = vmatprep.mubr.bf16.mxu0 0
        %4984 = vmatmul.mubr.bf16.gmra.mxu0 %v4762
        %v4985 = vpop.f32.mrf.mxu0
        %v4986 = vadd.f32 0.0, %v4985
        %v4987 = vpop.f32.mrf.mxu0
        %v4988 = vadd.f32 0.0, %v4987
        %v4989 = vpop.f32.mrf.mxu0
        %v4990 = vadd.f32 0.0, %v4989
        %v4991 = vpop.f32.mrf.mxu0
        %v4992 = vadd.f32 0.0, %v4991
        %4993 = vmatprep.mubr.bf16.mxu0 0
        %4994 = vmatmul.mubr.bf16.gmra.mxu0 %v4765
        %v4995 = vpop.f32.mrf.mxu0
        %v4996 = vadd.f32 0.0, %v4995
        %v4997 = vpop.f32.mrf.mxu0
        %v4998 = vadd.f32 0.0, %v4997
        %v4999 = vpop.f32.mrf.mxu0
        %v5000 = vadd.f32 0.0, %v4999
        %v5001 = vpop.f32.mrf.mxu0
        %v5002 = vadd.f32 0.0, %v5001
        %5003 = vdwg.mxu0
        %5004 = vmatprep.subr.bf16.mxu0 0
        %5005 = vmatpush1.bf16.msra.mxu0 0
        %5006 = vmatprep.subr.bf16.mxu0 0
        %5007 = vmatpush1.bf16.msra.mxu0 0
        %5008 = vmatprep.subr.bf16.mxu0 0
        %5009 = vmatpush1.bf16.msra.mxu0 0
        %5010 = vmatprep.subr.bf16.mxu0 0
        %5011 = vmatpush1.bf16.msra.mxu0 0
        %5012 = vmatprep.subr.bf16.mxu0 0
        %5013 = vmatpush1.bf16.msra.mxu0 0
        %5014 = vmatprep.subr.bf16.mxu0 0
        %5015 = vmatpush1.bf16.msra.mxu0 0
        %5016 = vmatprep.subr.bf16.mxu0 0
        %5017 = vmatpush1.bf16.msra.mxu0 0
        %5018 = vmatprep.subr.bf16.mxu0 %v4783
        %5019 = vmatpush1.bf16.msra.mxu0 %v4780
        %5020 = vmatprep.subr.bf16.mxu0 0
        %5021 = vmatpush2.bf16.msra.mxu0 0
        %5022 = vmatprep.subr.bf16.mxu0 0
        %5023 = vmatpush2.bf16.msra.mxu0 0
        %5024 = vmatprep.subr.bf16.mxu0 0
        %5025 = vmatpush2.bf16.msra.mxu0 0
        %5026 = vmatprep.subr.bf16.mxu0 0
        %5027 = vmatpush2.bf16.msra.mxu0 0
        %5028 = vmatprep.subr.bf16.mxu0 0
        %5029 = vmatpush2.bf16.msra.mxu0 0
        %5030 = vmatprep.subr.bf16.mxu0 0
        %5031 = vmatpush2.bf16.msra.mxu0 0
        %5032 = vmatprep.subr.bf16.mxu0 0
        %5033 = vmatpush2.bf16.msra.mxu0 0
        %5034 = vmatprep.subr.bf16.mxu0 0
        %5035 = vmatpush2.bf16.msra.mxu0 0
        %5036 = vmatprep.mubr.bf16.mxu0 0
        %5037 = vmatmul.mubr.bf16.gmra.mxu0 %v4750
        %v5038 = vpop.f32.mrf.mxu0
        %v5039 = vadd.f32 0.0, %v5038
        %v5040 = vpop.f32.mrf.mxu0
        %v5041 = vadd.f32 0.0, %v5040
        %v5042 = vpop.f32.mrf.mxu0
        %v5043 = vadd.f32 0.0, %v5042
        %v5044 = vpop.f32.mrf.mxu0
        %v5045 = vadd.f32 0.0, %v5044
        %5046 = vmatprep.mubr.bf16.mxu0 0
        %5047 = vmatmul.mubr.bf16.gmra.mxu0 %v4753
        %v5048 = vpop.f32.mrf.mxu0
        %v5049 = vadd.f32 0.0, %v5048
        %v5050 = vpop.f32.mrf.mxu0
        %v5051 = vadd.f32 0.0, %v5050
        %v5052 = vpop.f32.mrf.mxu0
        %v5053 = vadd.f32 0.0, %v5052
        %v5054 = vpop.f32.mrf.mxu0
        %v5055 = vadd.f32 0.0, %v5054
        %5056 = vmatprep.mubr.bf16.mxu0 0
        %5057 = vmatmul.mubr.bf16.gmra.mxu0 %v4756
        %v5058 = vpop.f32.mrf.mxu0
        %v5059 = vadd.f32 0.0, %v5058
        %v5060 = vpop.f32.mrf.mxu0
        %v5061 = vadd.f32 0.0, %v5060
        %v5062 = vpop.f32.mrf.mxu0
        %v5063 = vadd.f32 0.0, %v5062
        %v5064 = vpop.f32.mrf.mxu0
        %v5065 = vadd.f32 0.0, %v5064
        %5066 = vmatprep.mubr.bf16.mxu0 0
        %5067 = vmatmul.mubr.bf16.gmra.mxu0 %v4759
        %v5068 = vpop.f32.mrf.mxu0
        %v5069 = vadd.f32 0.0, %v5068
        %v5070 = vpop.f32.mrf.mxu0
        %v5071 = vadd.f32 0.0, %v5070
        %v5072 = vpop.f32.mrf.mxu0
        %v5073 = vadd.f32 0.0, %v5072
        %v5074 = vpop.f32.mrf.mxu0
        %v5075 = vadd.f32 0.0, %v5074
        %5076 = vmatprep.mubr.bf16.mxu0 0
        %5077 = vmatmul.mubr.bf16.gmra.mxu0 %v4762
        %v5078 = vpop.f32.mrf.mxu0
        %v5079 = vadd.f32 0.0, %v5078
        %v5080 = vpop.f32.mrf.mxu0
        %v5081 = vadd.f32 0.0, %v5080
        %v5082 = vpop.f32.mrf.mxu0
        %v5083 = vadd.f32 0.0, %v5082
        %v5084 = vpop.f32.mrf.mxu0
        %v5085 = vadd.f32 0.0, %v5084
        %5086 = vmatprep.mubr.bf16.mxu0 0
        %5087 = vmatmul.mubr.bf16.gmra.mxu0 %v4765
        %v5088 = vpop.f32.mrf.mxu0
        %v5089 = vadd.f32 0.0, %v5088
        %v5090 = vpop.f32.mrf.mxu0
        %v5091 = vadd.f32 0.0, %v5090
        %v5092 = vpop.f32.mrf.mxu0
        %v5093 = vadd.f32 0.0, %v5092
        %v5094 = vpop.f32.mrf.mxu0
        %v5095 = vadd.f32 0.0, %v5094
        %5096 = vdwg.mxu0
        %5097 = vmatprep.subr.bf16.mxu0 0
        %5098 = vmatpush1.bf16.msra.mxu0 0
        %5099 = vmatprep.subr.bf16.mxu0 0
        %5100 = vmatpush1.bf16.msra.mxu0 0
        %5101 = vmatprep.subr.bf16.mxu0 0
        %5102 = vmatpush1.bf16.msra.mxu0 0
        %5103 = vmatprep.subr.bf16.mxu0 0
        %5104 = vmatpush1.bf16.msra.mxu0 0
        %5105 = vmatprep.subr.bf16.mxu0 0
        %5106 = vmatpush1.bf16.msra.mxu0 0
        %5107 = vmatprep.subr.bf16.mxu0 0
        %5108 = vmatpush1.bf16.msra.mxu0 0
        %5109 = vmatprep.subr.bf16.mxu0 0
        %5110 = vmatpush1.bf16.msra.mxu0 0
        %5111 = vmatprep.subr.bf16.mxu0 %v4789
        %5112 = vmatpush1.bf16.msra.mxu0 %v4786
        %5113 = vmatprep.subr.bf16.mxu0 0
        %5114 = vmatpush2.bf16.msra.mxu0 0
        %5115 = vmatprep.subr.bf16.mxu0 0
        %5116 = vmatpush2.bf16.msra.mxu0 0
        %5117 = vmatprep.subr.bf16.mxu0 0
        %5118 = vmatpush2.bf16.msra.mxu0 0
        %5119 = vmatprep.subr.bf16.mxu0 0
        %5120 = vmatpush2.bf16.msra.mxu0 0
        %5121 = vmatprep.subr.bf16.mxu0 0
        %5122 = vmatpush2.bf16.msra.mxu0 0
        %5123 = vmatprep.subr.bf16.mxu0 0
        %5124 = vmatpush2.bf16.msra.mxu0 0
        %5125 = vmatprep.subr.bf16.mxu0 0
        %5126 = vmatpush2.bf16.msra.mxu0 0
        %5127 = vmatprep.subr.bf16.mxu0 0
        %5128 = vmatpush2.bf16.msra.mxu0 0
        %5129 = vmatprep.mubr.bf16.mxu0 0
        %5130 = vmatmul.mubr.bf16.gmra.mxu0 %v4750
        %v5131 = vpop.f32.mrf.mxu0
        %v5132 = vadd.f32 0.0, %v5131
        %v5133 = vpop.f32.mrf.mxu0
        %v5134 = vadd.f32 0.0, %v5133
        %v5135 = vpop.f32.mrf.mxu0
        %v5136 = vadd.f32 0.0, %v5135
        %v5137 = vpop.f32.mrf.mxu0
        %v5138 = vadd.f32 0.0, %v5137
        %5139 = vmatprep.mubr.bf16.mxu0 0
        %5140 = vmatmul.mubr.bf16.gmra.mxu0 %v4753
        %v5141 = vpop.f32.mrf.mxu0
        %v5142 = vadd.f32 0.0, %v5141
        %v5143 = vpop.f32.mrf.mxu0
        %v5144 = vadd.f32 0.0, %v5143
        %v5145 = vpop.f32.mrf.mxu0
        %v5146 = vadd.f32 0.0, %v5145
        %v5147 = vpop.f32.mrf.mxu0
        %v5148 = vadd.f32 0.0, %v5147
        %5149 = vmatprep.mubr.bf16.mxu0 0
        %5150 = vmatmul.mubr.bf16.gmra.mxu0 %v4756
        %v5151 = vpop.f32.mrf.mxu0
        %v5152 = vadd.f32 0.0, %v5151
        %v5153 = vpop.f32.mrf.mxu0
        %v5154 = vadd.f32 0.0, %v5153
        %v5155 = vpop.f32.mrf.mxu0
        %v5156 = vadd.f32 0.0, %v5155
        %v5157 = vpop.f32.mrf.mxu0
        %v5158 = vadd.f32 0.0, %v5157
        %5159 = vmatprep.mubr.bf16.mxu0 0
        %5160 = vmatmul.mubr.bf16.gmra.mxu0 %v4759
        %v5161 = vpop.f32.mrf.mxu0
        %v5162 = vadd.f32 0.0, %v5161
        %v5163 = vpop.f32.mrf.mxu0
        %v5164 = vadd.f32 0.0, %v5163
        %v5165 = vpop.f32.mrf.mxu0
        %v5166 = vadd.f32 0.0, %v5165
        %v5167 = vpop.f32.mrf.mxu0
        %v5168 = vadd.f32 0.0, %v5167
        %5169 = vmatprep.mubr.bf16.mxu0 0
        %5170 = vmatmul.mubr.bf16.gmra.mxu0 %v4762
        %v5171 = vpop.f32.mrf.mxu0
        %v5172 = vadd.f32 0.0, %v5171
        %v5173 = vpop.f32.mrf.mxu0
        %v5174 = vadd.f32 0.0, %v5173
        %v5175 = vpop.f32.mrf.mxu0
        %v5176 = vadd.f32 0.0, %v5175
        %v5177 = vpop.f32.mrf.mxu0
        %v5178 = vadd.f32 0.0, %v5177
        %5179 = vmatprep.mubr.bf16.mxu0 0
        %5180 = vmatmul.mubr.bf16.gmra.mxu0 %v4765
        %v5181 = vpop.f32.mrf.mxu0
        %v5182 = vadd.f32 0.0, %v5181
        %v5183 = vpop.f32.mrf.mxu0
        %v5184 = vadd.f32 0.0, %v5183
        %v5185 = vpop.f32.mrf.mxu0
        %v5186 = vadd.f32 0.0, %v5185
        %v5187 = vpop.f32.mrf.mxu0
        %v5188 = vadd.f32 0.0, %v5187
        %5189 = vdwg.mxu0
        %5190 = vmatprep.subr.bf16.mxu0 0
        %5191 = vmatpush1.bf16.msra.mxu0 0
        %5192 = vmatprep.subr.bf16.mxu0 0
        %5193 = vmatpush1.bf16.msra.mxu0 0
        %5194 = vmatprep.subr.bf16.mxu0 0
        %5195 = vmatpush1.bf16.msra.mxu0 0
        %5196 = vmatprep.subr.bf16.mxu0 0
        %5197 = vmatpush1.bf16.msra.mxu0 0
        %5198 = vmatprep.subr.bf16.mxu0 0
        %5199 = vmatpush1.bf16.msra.mxu0 0
        %5200 = vmatprep.subr.bf16.mxu0 0
        %5201 = vmatpush1.bf16.msra.mxu0 0
        %5202 = vmatprep.subr.bf16.mxu0 0
        %5203 = vmatpush1.bf16.msra.mxu0 0
        %5204 = vmatprep.subr.bf16.mxu0 %v4795
        %5205 = vmatpush1.bf16.msra.mxu0 %v4792
        %5206 = vmatprep.subr.bf16.mxu0 0
        %5207 = vmatpush2.bf16.msra.mxu0 0
        %5208 = vmatprep.subr.bf16.mxu0 0
        %5209 = vmatpush2.bf16.msra.mxu0 0
        %5210 = vmatprep.subr.bf16.mxu0 0
        %5211 = vmatpush2.bf16.msra.mxu0 0
        %5212 = vmatprep.subr.bf16.mxu0 0
        %5213 = vmatpush2.bf16.msra.mxu0 0
        %5214 = vmatprep.subr.bf16.mxu0 0
        %5215 = vmatpush2.bf16.msra.mxu0 0
        %5216 = vmatprep.subr.bf16.mxu0 0
        %5217 = vmatpush2.bf16.msra.mxu0 0
        %5218 = vmatprep.subr.bf16.mxu0 0
        %5219 = vmatpush2.bf16.msra.mxu0 0
        %5220 = vmatprep.subr.bf16.mxu0 0
        %5221 = vmatpush2.bf16.msra.mxu0 0
        %5222 = vmatprep.mubr.bf16.mxu0 0
        %5223 = vmatmul.mubr.bf16.gmra.mxu0 %v4750
        %v5224 = vpop.f32.mrf.mxu0
        %v5225 = vadd.f32 0.0, %v5224
        %v5226 = vpop.f32.mrf.mxu0
        %v5227 = vadd.f32 0.0, %v5226
        %v5228 = vpop.f32.mrf.mxu0
        %v5229 = vadd.f32 0.0, %v5228
        %v5230 = vpop.f32.mrf.mxu0
        %v5231 = vadd.f32 0.0, %v5230
        %5232 = vmatprep.mubr.bf16.mxu0 0
        %5233 = vmatmul.mubr.bf16.gmra.mxu0 %v4753
        %v5234 = vpop.f32.mrf.mxu0
        %v5235 = vadd.f32 0.0, %v5234
        %v5236 = vpop.f32.mrf.mxu0
        %v5237 = vadd.f32 0.0, %v5236
        %v5238 = vpop.f32.mrf.mxu0
        %v5239 = vadd.f32 0.0, %v5238
        %v5240 = vpop.f32.mrf.mxu0
        %v5241 = vadd.f32 0.0, %v5240
        %5242 = vmatprep.mubr.bf16.mxu0 0
        %5243 = vmatmul.mubr.bf16.gmra.mxu0 %v4756
        %v5244 = vpop.f32.mrf.mxu0
        %v5245 = vadd.f32 0.0, %v5244
        %v5246 = vpop.f32.mrf.mxu0
        %v5247 = vadd.f32 0.0, %v5246
        %v5248 = vpop.f32.mrf.mxu0
        %v5249 = vadd.f32 0.0, %v5248
        %v5250 = vpop.f32.mrf.mxu0
        %v5251 = vadd.f32 0.0, %v5250
        %5252 = vmatprep.mubr.bf16.mxu0 0
        %5253 = vmatmul.mubr.bf16.gmra.mxu0 %v4759
        %v5254 = vpop.f32.mrf.mxu0
        %v5255 = vadd.f32 0.0, %v5254
        %v5256 = vpop.f32.mrf.mxu0
        %v5257 = vadd.f32 0.0, %v5256
        %v5258 = vpop.f32.mrf.mxu0
        %v5259 = vadd.f32 0.0, %v5258
        %v5260 = vpop.f32.mrf.mxu0
        %v5261 = vadd.f32 0.0, %v5260
        %5262 = vmatprep.mubr.bf16.mxu0 0
        %5263 = vmatmul.mubr.bf16.gmra.mxu0 %v4762
        %v5264 = vpop.f32.mrf.mxu0
        %v5265 = vadd.f32 0.0, %v5264
        %v5266 = vpop.f32.mrf.mxu0
        %v5267 = vadd.f32 0.0, %v5266
        %v5268 = vpop.f32.mrf.mxu0
        %v5269 = vadd.f32 0.0, %v5268
        %v5270 = vpop.f32.mrf.mxu0
        %v5271 = vadd.f32 0.0, %v5270
        %5272 = vmatprep.mubr.bf16.mxu0 0
        %5273 = vmatmul.mubr.bf16.gmra.mxu0 %v4765
        %v5274 = vpop.f32.mrf.mxu0
        %v5275 = vadd.f32 0.0, %v5274
        %v5276 = vpop.f32.mrf.mxu0
        %v5277 = vadd.f32 0.0, %v5276
        %v5278 = vpop.f32.mrf.mxu0
        %v5279 = vadd.f32 0.0, %v5278
        %v5280 = vpop.f32.mrf.mxu0
        %v5281 = vadd.f32 0.0, %v5280
        %5282 = vdwg.mxu0
        %5283 = vmatprep.subr.bf16.mxu0 0
        %5284 = vmatpush1.bf16.msra.mxu0 0
        %5285 = vmatprep.subr.bf16.mxu0 0
        %5286 = vmatpush1.bf16.msra.mxu0 0
        %5287 = vmatprep.subr.bf16.mxu0 0
        %5288 = vmatpush1.bf16.msra.mxu0 0
        %5289 = vmatprep.subr.bf16.mxu0 0
        %5290 = vmatpush1.bf16.msra.mxu0 0
        %5291 = vmatprep.subr.bf16.mxu0 0
        %5292 = vmatpush1.bf16.msra.mxu0 0
        %5293 = vmatprep.subr.bf16.mxu0 0
        %5294 = vmatpush1.bf16.msra.mxu0 0
        %5295 = vmatprep.subr.bf16.mxu0 0
        %5296 = vmatpush1.bf16.msra.mxu0 0
        %5297 = vmatprep.subr.bf16.mxu0 %v4801
        %5298 = vmatpush1.bf16.msra.mxu0 %v4798
        %5299 = vmatprep.subr.bf16.mxu0 0
        %5300 = vmatpush2.bf16.msra.mxu0 0
        %5301 = vmatprep.subr.bf16.mxu0 0
        %5302 = vmatpush2.bf16.msra.mxu0 0
        %5303 = vmatprep.subr.bf16.mxu0 0
        %5304 = vmatpush2.bf16.msra.mxu0 0
        %5305 = vmatprep.subr.bf16.mxu0 0
        %5306 = vmatpush2.bf16.msra.mxu0 0
        %5307 = vmatprep.subr.bf16.mxu0 0
        %5308 = vmatpush2.bf16.msra.mxu0 0
        %5309 = vmatprep.subr.bf16.mxu0 0
        %5310 = vmatpush2.bf16.msra.mxu0 0
        %5311 = vmatprep.subr.bf16.mxu0 0
        %5312 = vmatpush2.bf16.msra.mxu0 0
        %5313 = vmatprep.subr.bf16.mxu0 0
        %5314 = vmatpush2.bf16.msra.mxu0 0
        %5315 = vmatprep.mubr.bf16.mxu0 0
        %5316 = vmatmul.mubr.bf16.gmra.mxu0 %v4750
        %v5317 = vpop.f32.mrf.mxu0
        %v5318 = vadd.f32 0.0, %v5317
        %v5319 = vpop.f32.mrf.mxu0
        %v5320 = vadd.f32 0.0, %v5319
        %v5321 = vpop.f32.mrf.mxu0
        %v5322 = vadd.f32 0.0, %v5321
        %v5323 = vpop.f32.mrf.mxu0
        %v5324 = vadd.f32 0.0, %v5323
        %5325 = vmatprep.mubr.bf16.mxu0 0
        %5326 = vmatmul.mubr.bf16.gmra.mxu0 %v4753
        %v5327 = vpop.f32.mrf.mxu0
        %v5328 = vadd.f32 0.0, %v5327
        %v5329 = vpop.f32.mrf.mxu0
        %v5330 = vadd.f32 0.0, %v5329
        %v5331 = vpop.f32.mrf.mxu0
        %v5332 = vadd.f32 0.0, %v5331
        %v5333 = vpop.f32.mrf.mxu0
        %v5334 = vadd.f32 0.0, %v5333
        %5335 = vmatprep.mubr.bf16.mxu0 0
        %5336 = vmatmul.mubr.bf16.gmra.mxu0 %v4756
        %v5337 = vpop.f32.mrf.mxu0
        %v5338 = vadd.f32 0.0, %v5337
        %v5339 = vpop.f32.mrf.mxu0
        %v5340 = vadd.f32 0.0, %v5339
        %v5341 = vpop.f32.mrf.mxu0
        %v5342 = vadd.f32 0.0, %v5341
        %v5343 = vpop.f32.mrf.mxu0
        %v5344 = vadd.f32 0.0, %v5343
        %5345 = vmatprep.mubr.bf16.mxu0 0
        %5346 = vmatmul.mubr.bf16.gmra.mxu0 %v4759
        %v5347 = vpop.f32.mrf.mxu0
        %v5348 = vadd.f32 0.0, %v5347
        %v5349 = vpop.f32.mrf.mxu0
        %v5350 = vadd.f32 0.0, %v5349
        %v5351 = vpop.f32.mrf.mxu0
        %v5352 = vadd.f32 0.0, %v5351
        %v5353 = vpop.f32.mrf.mxu0
        %v5354 = vadd.f32 0.0, %v5353
        %5355 = vmatprep.mubr.bf16.mxu0 0
        %5356 = vmatmul.mubr.bf16.gmra.mxu0 %v4762
        %v5357 = vpop.f32.mrf.mxu0
        %v5358 = vadd.f32 0.0, %v5357
        %v5359 = vpop.f32.mrf.mxu0
        %v5360 = vadd.f32 0.0, %v5359
        %v5361 = vpop.f32.mrf.mxu0
        %v5362 = vadd.f32 0.0, %v5361
        %v5363 = vpop.f32.mrf.mxu0
        %v5364 = vadd.f32 0.0, %v5363
        %5365 = vmatprep.mubr.bf16.mxu0 0
        %5366 = vmatmul.mubr.bf16.gmra.mxu0 %v4765
        %v5367 = vpop.f32.mrf.mxu0
        %v5368 = vadd.f32 0.0, %v5367
        %v5369 = vpop.f32.mrf.mxu0
        %v5370 = vadd.f32 0.0, %v5369
        %v5371 = vpop.f32.mrf.mxu0
        %v5372 = vadd.f32 0.0, %v5371
        %v5373 = vpop.f32.mrf.mxu0
        %v5374 = vadd.f32 0.0, %v5373
        %5375 = vdwg.mxu0
        %5376 = vmatprep.subr.bf16.mxu0 0
        %5377 = vmatpush1.bf16.msra.mxu0 0
        %5378 = vmatprep.subr.bf16.mxu0 0
        %5379 = vmatpush1.bf16.msra.mxu0 0
        %5380 = vmatprep.subr.bf16.mxu0 0
        %5381 = vmatpush1.bf16.msra.mxu0 0
        %5382 = vmatprep.subr.bf16.mxu0 0
        %5383 = vmatpush1.bf16.msra.mxu0 0
        %5384 = vmatprep.subr.bf16.mxu0 0
        %5385 = vmatpush1.bf16.msra.mxu0 0
        %5386 = vmatprep.subr.bf16.mxu0 0
        %5387 = vmatpush1.bf16.msra.mxu0 0
        %5388 = vmatprep.subr.bf16.mxu0 0
        %5389 = vmatpush1.bf16.msra.mxu0 0
        %5390 = vmatprep.subr.bf16.mxu0 %v4807
        %5391 = vmatpush1.bf16.msra.mxu0 %v4804
        %5392 = vmatprep.subr.bf16.mxu0 0
        %5393 = vmatpush2.bf16.msra.mxu0 0
        %5394 = vmatprep.subr.bf16.mxu0 0
        %5395 = vmatpush2.bf16.msra.mxu0 0
        %5396 = vmatprep.subr.bf16.mxu0 0
        %5397 = vmatpush2.bf16.msra.mxu0 0
        %5398 = vmatprep.subr.bf16.mxu0 0
        %5399 = vmatpush2.bf16.msra.mxu0 0
        %5400 = vmatprep.subr.bf16.mxu0 0
        %5401 = vmatpush2.bf16.msra.mxu0 0
        %5402 = vmatprep.subr.bf16.mxu0 0
        %5403 = vmatpush2.bf16.msra.mxu0 0
        %5404 = vmatprep.subr.bf16.mxu0 0
        %5405 = vmatpush2.bf16.msra.mxu0 0
        %5406 = vmatprep.subr.bf16.mxu0 0
        %5407 = vmatpush2.bf16.msra.mxu0 0
        %5408 = vmatprep.mubr.bf16.mxu0 0
        %5409 = vmatmul.mubr.bf16.gmra.mxu0 %v4750
        %v5410 = vpop.f32.mrf.mxu0
        %v5411 = vadd.f32 0.0, %v5410
        %v5412 = vpop.f32.mrf.mxu0
        %v5413 = vadd.f32 0.0, %v5412
        %v5414 = vpop.f32.mrf.mxu0
        %v5415 = vadd.f32 0.0, %v5414
        %v5416 = vpop.f32.mrf.mxu0
        %v5417 = vadd.f32 0.0, %v5416
        %5418 = vmatprep.mubr.bf16.mxu0 0
        %5419 = vmatmul.mubr.bf16.gmra.mxu0 %v4753
        %v5420 = vpop.f32.mrf.mxu0
        %v5421 = vadd.f32 0.0, %v5420
        %v5422 = vpop.f32.mrf.mxu0
        %v5423 = vadd.f32 0.0, %v5422
        %v5424 = vpop.f32.mrf.mxu0
        %v5425 = vadd.f32 0.0, %v5424
        %v5426 = vpop.f32.mrf.mxu0
        %v5427 = vadd.f32 0.0, %v5426
        %5428 = vmatprep.mubr.bf16.mxu0 0
        %5429 = vmatmul.mubr.bf16.gmra.mxu0 %v4756
        %v5430 = vpop.f32.mrf.mxu0
        %v5431 = vadd.f32 0.0, %v5430
        %v5432 = vpop.f32.mrf.mxu0
        %v5433 = vadd.f32 0.0, %v5432
        %v5434 = vpop.f32.mrf.mxu0
        %v5435 = vadd.f32 0.0, %v5434
        %v5436 = vpop.f32.mrf.mxu0
        %v5437 = vadd.f32 0.0, %v5436
        %5438 = vmatprep.mubr.bf16.mxu0 0
        %5439 = vmatmul.mubr.bf16.gmra.mxu0 %v4759
        %v5440 = vpop.f32.mrf.mxu0
        %v5441 = vadd.f32 0.0, %v5440
        %v5442 = vpop.f32.mrf.mxu0
        %v5443 = vadd.f32 0.0, %v5442
        %v5444 = vpop.f32.mrf.mxu0
        %v5445 = vadd.f32 0.0, %v5444
        %v5446 = vpop.f32.mrf.mxu0
        %v5447 = vadd.f32 0.0, %v5446
        %5448 = vmatprep.mubr.bf16.mxu0 0
        %5449 = vmatmul.mubr.bf16.gmra.mxu0 %v4762
        %v5450 = vpop.f32.mrf.mxu0
        %v5451 = vadd.f32 0.0, %v5450
        %v5452 = vpop.f32.mrf.mxu0
        %v5453 = vadd.f32 0.0, %v5452
        %v5454 = vpop.f32.mrf.mxu0
        %v5455 = vadd.f32 0.0, %v5454
        %v5456 = vpop.f32.mrf.mxu0
        %v5457 = vadd.f32 0.0, %v5456
        %5458 = vmatprep.mubr.bf16.mxu0 0
        %5459 = vmatmul.mubr.bf16.gmra.mxu0 %v4765
        %v5460 = vpop.f32.mrf.mxu0
        %v5461 = vadd.f32 0.0, %v5460
        %v5462 = vpop.f32.mrf.mxu0
        %v5463 = vadd.f32 0.0, %v5462
        %v5464 = vpop.f32.mrf.mxu0
        %v5465 = vadd.f32 0.0, %v5464
        %v5466 = vpop.f32.mrf.mxu0
        %v5467 = vadd.f32 0.0, %v5466
        %5468 = vdwg.mxu0
        %5469 = vmatprep.subr.bf16.mxu0 0
        %5470 = vmatpush1.bf16.msra.mxu0 0
        %5471 = vmatprep.subr.bf16.mxu0 0
        %5472 = vmatpush1.bf16.msra.mxu0 0
        %5473 = vmatprep.subr.bf16.mxu0 0
        %5474 = vmatpush1.bf16.msra.mxu0 0
        %5475 = vmatprep.subr.bf16.mxu0 0
        %5476 = vmatpush1.bf16.msra.mxu0 0
        %5477 = vmatprep.subr.bf16.mxu0 0
        %5478 = vmatpush1.bf16.msra.mxu0 0
        %5479 = vmatprep.subr.bf16.mxu0 0
        %5480 = vmatpush1.bf16.msra.mxu0 0
        %5481 = vmatprep.subr.bf16.mxu0 0
        %5482 = vmatpush1.bf16.msra.mxu0 0
        %5483 = vmatprep.subr.bf16.mxu0 %v4813
        %5484 = vmatpush1.bf16.msra.mxu0 %v4810
        %5485 = vmatprep.subr.bf16.mxu0 0
        %5486 = vmatpush2.bf16.msra.mxu0 0
        %5487 = vmatprep.subr.bf16.mxu0 0
        %5488 = vmatpush2.bf16.msra.mxu0 0
        %5489 = vmatprep.subr.bf16.mxu0 0
        %5490 = vmatpush2.bf16.msra.mxu0 0
        %5491 = vmatprep.subr.bf16.mxu0 0
        %5492 = vmatpush2.bf16.msra.mxu0 0
        %5493 = vmatprep.subr.bf16.mxu0 0
        %5494 = vmatpush2.bf16.msra.mxu0 0
        %5495 = vmatprep.subr.bf16.mxu0 0
        %5496 = vmatpush2.bf16.msra.mxu0 0
        %5497 = vmatprep.subr.bf16.mxu0 0
        %5498 = vmatpush2.bf16.msra.mxu0 0
        %5499 = vmatprep.subr.bf16.mxu0 0
        %5500 = vmatpush2.bf16.msra.mxu0 0
        %5501 = vmatprep.mubr.bf16.mxu0 0
        %5502 = vmatmul.mubr.bf16.gmra.mxu0 %v4750
        %v5503 = vpop.f32.mrf.mxu0
        %v5504 = vadd.f32 0.0, %v5503
        %v5505 = vpop.f32.mrf.mxu0
        %v5506 = vadd.f32 0.0, %v5505
        %v5507 = vpop.f32.mrf.mxu0
        %v5508 = vadd.f32 0.0, %v5507
        %v5509 = vpop.f32.mrf.mxu0
        %v5510 = vadd.f32 0.0, %v5509
        %5511 = vmatprep.mubr.bf16.mxu0 0
        %5512 = vmatmul.mubr.bf16.gmra.mxu0 %v4753
        %v5513 = vpop.f32.mrf.mxu0
        %v5514 = vadd.f32 0.0, %v5513
        %v5515 = vpop.f32.mrf.mxu0
        %v5516 = vadd.f32 0.0, %v5515
        %v5517 = vpop.f32.mrf.mxu0
        %v5518 = vadd.f32 0.0, %v5517
        %v5519 = vpop.f32.mrf.mxu0
        %v5520 = vadd.f32 0.0, %v5519
        %5521 = vmatprep.mubr.bf16.mxu0 0
        %5522 = vmatmul.mubr.bf16.gmra.mxu0 %v4756
        %v5523 = vpop.f32.mrf.mxu0
        %v5524 = vadd.f32 0.0, %v5523
        %v5525 = vpop.f32.mrf.mxu0
        %v5526 = vadd.f32 0.0, %v5525
        %v5527 = vpop.f32.mrf.mxu0
        %v5528 = vadd.f32 0.0, %v5527
        %v5529 = vpop.f32.mrf.mxu0
        %v5530 = vadd.f32 0.0, %v5529
        %5531 = vmatprep.mubr.bf16.mxu0 0
        %5532 = vmatmul.mubr.bf16.gmra.mxu0 %v4759
        %v5533 = vpop.f32.mrf.mxu0
        %v5534 = vadd.f32 0.0, %v5533
        %v5535 = vpop.f32.mrf.mxu0
        %v5536 = vadd.f32 0.0, %v5535
        %v5537 = vpop.f32.mrf.mxu0
        %v5538 = vadd.f32 0.0, %v5537
        %v5539 = vpop.f32.mrf.mxu0
        %v5540 = vadd.f32 0.0, %v5539
        %5541 = vmatprep.mubr.bf16.mxu0 0
        %5542 = vmatmul.mubr.bf16.gmra.mxu0 %v4762
        %v5543 = vpop.f32.mrf.mxu0
        %v5544 = vadd.f32 0.0, %v5543
        %v5545 = vpop.f32.mrf.mxu0
        %v5546 = vadd.f32 0.0, %v5545
        %v5547 = vpop.f32.mrf.mxu0
        %v5548 = vadd.f32 0.0, %v5547
        %v5549 = vpop.f32.mrf.mxu0
        %v5550 = vadd.f32 0.0, %v5549
        %5551 = vmatprep.mubr.bf16.mxu0 0
        %5552 = vmatmul.mubr.bf16.gmra.mxu0 %v4765
        %v5553 = vpop.f32.mrf.mxu0
        %v5554 = vadd.f32 0.0, %v5553
        %v5555 = vpop.f32.mrf.mxu0
        %v5556 = vadd.f32 0.0, %v5555
        %v5557 = vpop.f32.mrf.mxu0
        %v5558 = vadd.f32 0.0, %v5557
        %v5559 = vpop.f32.mrf.mxu0
        %v5560 = vadd.f32 0.0, %v5559
        %5561 = vdwg.mxu0
        %5562 = vmatprep.subr.bf16.mxu0 0
        %5563 = vmatpush1.bf16.msra.mxu0 0
        %5564 = vmatprep.subr.bf16.mxu0 0
        %5565 = vmatpush1.bf16.msra.mxu0 0
        %5566 = vmatprep.subr.bf16.mxu0 0
        %5567 = vmatpush1.bf16.msra.mxu0 0
        %5568 = vmatprep.subr.bf16.mxu0 0
        %5569 = vmatpush1.bf16.msra.mxu0 0
        %5570 = vmatprep.subr.bf16.mxu0 0
        %5571 = vmatpush1.bf16.msra.mxu0 0
        %5572 = vmatprep.subr.bf16.mxu0 0
        %5573 = vmatpush1.bf16.msra.mxu0 0
        %5574 = vmatprep.subr.bf16.mxu0 0
        %5575 = vmatpush1.bf16.msra.mxu0 0
        %5576 = vmatprep.subr.bf16.mxu0 0
        %5577 = vmatpush1.bf16.msra.mxu0 %v4816
        %5578 = vmatprep.subr.bf16.mxu0 0
        %5579 = vmatpush2.bf16.msra.mxu0 0
        %5580 = vmatprep.subr.bf16.mxu0 0
        %5581 = vmatpush2.bf16.msra.mxu0 0
        %5582 = vmatprep.subr.bf16.mxu0 0
        %5583 = vmatpush2.bf16.msra.mxu0 0
        %5584 = vmatprep.subr.bf16.mxu0 0
        %5585 = vmatpush2.bf16.msra.mxu0 0
        %5586 = vmatprep.subr.bf16.mxu0 0
        %5587 = vmatpush2.bf16.msra.mxu0 0
        %5588 = vmatprep.subr.bf16.mxu0 0
        %5589 = vmatpush2.bf16.msra.mxu0 0
        %5590 = vmatprep.subr.bf16.mxu0 0
        %5591 = vmatpush2.bf16.msra.mxu0 0
        %5592 = vmatprep.subr.bf16.mxu0 0
        %5593 = vmatpush2.bf16.msra.mxu0 0
        %5594 = vmatprep.mubr.bf16.mxu0 0
        %5595 = vmatmul.mubr.bf16.gmra.mxu0 %v4750
        %v5596 = vpop.f32.mrf.mxu0
        %v5597 = vpop.f32.mrf.mxu0
        %v5598 = vpop.f32.mrf.mxu0
        %v5599 = vpop.f32.mrf.mxu0
        %5600 = vmatprep.mubr.bf16.mxu0 0
        %5601 = vmatmul.mubr.bf16.gmra.mxu0 %v4753
        %v5602 = vpop.f32.mrf.mxu0
        %v5603 = vpop.f32.mrf.mxu0
        %v5604 = vpop.f32.mrf.mxu0
        %v5605 = vpop.f32.mrf.mxu0
        %5606 = vmatprep.mubr.bf16.mxu0 0
        %5607 = vmatmul.mubr.bf16.gmra.mxu0 %v4756
        %v5608 = vpop.f32.mrf.mxu0
        %v5609 = vadd.f32 0.0, %v5608
        %v5610 = vpop.f32.mrf.mxu0
        %v5611 = vpop.f32.mrf.mxu0
        %v5612 = vadd.f32 0.0, %v5611
        %v5613 = vpop.f32.mrf.mxu0
        %5614 = vmatprep.mubr.bf16.mxu0 0
        %5615 = vmatmul.mubr.bf16.gmra.mxu0 %v4759
        %v5616 = vpop.f32.mrf.mxu0
        %v5617 = vadd.f32 0.0, %v5616
        %v5618 = vpop.f32.mrf.mxu0
        %v5619 = vpop.f32.mrf.mxu0
        %v5620 = vadd.f32 0.0, %v5619
        %v5621 = vpop.f32.mrf.mxu0
        %5622 = vmatprep.mubr.bf16.mxu0 0
        %5623 = vmatmul.mubr.bf16.gmra.mxu0 %v4762
        %v5624 = vpop.f32.mrf.mxu0
        %v5625 = vadd.f32 0.0, %v5624
        %v5626 = vpop.f32.mrf.mxu0
        %v5627 = vpop.f32.mrf.mxu0
        %v5628 = vadd.f32 0.0, %v5627
        %v5629 = vpop.f32.mrf.mxu0
        %5630 = vmatprep.mubr.bf16.mxu0 0
        %5631 = vmatmul.mubr.bf16.gmra.mxu0 %v4765
        %v5632 = vpop.f32.mrf.mxu0
        %v5633 = vadd.f32 0.0, %v5632
        %v5634 = vpop.f32.mrf.mxu0
        %v5635 = vpop.f32.mrf.mxu0
        %v5636 = vadd.f32 0.0, %v5635
        %v5637 = vpop.f32.mrf.mxu0
        %5638 = vdwg.mxu0
        %v5639 = vadd.f32 %v4557, %v4853
        %v5640 = vadd.f32 %v4558, %v4855
        %v5641 = vadd.f32 %v4559, %v4946
        %v5642 = vadd.f32 %v4560, %v4948
        %v5643 = vadd.f32 %v4561, %v5039
        %v5644 = vadd.f32 %v4562, %v5041
        %v5645 = vadd.f32 %v4563, %v5132
        %v5646 = vadd.f32 %v4564, %v5134
        %v5647 = vadd.f32 %v4565, %v5225
        %v5648 = vadd.f32 %v4566, %v5227
        %v5649 = vadd.f32 %v4567, %v5318
        %v5650 = vadd.f32 %v4568, %v5320
        %v5651 = vadd.f32 %v4569, %v5411
        %v5652 = vadd.f32 %v4570, %v5413
        %v5653 = vadd.f32 %v4571, %v5504
        %v5654 = vadd.f32 %v4572, %v5506
        %v5655 = vadd.f32 %v4573, %v4857
        %v5656 = vadd.f32 %v4574, %v4859
        %v5657 = vadd.f32 %v4575, %v4950
        %v5658 = vadd.f32 %v4576, %v4952
        %v5659 = vadd.f32 %v4577, %v5043
        %v5660 = vadd.f32 %v4578, %v5045
        %v5661 = vadd.f32 %v4579, %v5136
        %v5662 = vadd.f32 %v4580, %v5138
        %v5663 = vadd.f32 %v4581, %v5229
        %v5664 = vadd.f32 %v4582, %v5231
        %v5665 = vadd.f32 %v4583, %v5322
        %v5666 = vadd.f32 %v4584, %v5324
        %v5667 = vadd.f32 %v4585, %v5415
        %v5668 = vadd.f32 %v4586, %v5417
        %v5669 = vadd.f32 %v4587, %v5508
        %v5670 = vadd.f32 %v4588, %v5510
        %v5671 = vadd.f32 %v4589, %v4863
        %v5672 = vadd.f32 %v4590, %v4865
        %v5673 = vadd.f32 %v4591, %v4956
        %v5674 = vadd.f32 %v4592, %v4958
        %v5675 = vadd.f32 %v4593, %v5049
        %v5676 = vadd.f32 %v4594, %v5051
        %v5677 = vadd.f32 %v4595, %v5142
        %v5678 = vadd.f32 %v4596, %v5144
        %v5679 = vadd.f32 %v4597, %v5235
        %v5680 = vadd.f32 %v4598, %v5237
        %v5681 = vadd.f32 %v4599, %v5328
        %v5682 = vadd.f32 %v4600, %v5330
        %v5683 = vadd.f32 %v4601, %v5421
        %v5684 = vadd.f32 %v4602, %v5423
        %v5685 = vadd.f32 %v4603, %v5514
        %v5686 = vadd.f32 %v4604, %v5516
        %v5687 = vadd.f32 %v4605, %v4867
        %v5688 = vadd.f32 %v4606, %v4869
        %v5689 = vadd.f32 %v4607, %v4960
        %v5690 = vadd.f32 %v4608, %v4962
        %v5691 = vadd.f32 %v4609, %v5053
        %v5692 = vadd.f32 %v4610, %v5055
        %v5693 = vadd.f32 %v4611, %v5146
        %v5694 = vadd.f32 %v4612, %v5148
        %v5695 = vadd.f32 %v4613, %v5239
        %v5696 = vadd.f32 %v4614, %v5241
        %v5697 = vadd.f32 %v4615, %v5332
        %v5698 = vadd.f32 %v4616, %v5334
        %v5699 = vadd.f32 %v4617, %v5425
        %v5700 = vadd.f32 %v4618, %v5427
        %v5701 = vadd.f32 %v4619, %v5518
        %v5702 = vadd.f32 %v4620, %v5520
        %5771 = vrot.lane.b32.xlu0 %v4873, 127
        %v5772 = vpop.permute.xlu0 %5771
        %5773 = vrot.lane.b32.xlu0 %v4875, 127
        %v5774 = vpop.permute.xlu0 %5773
        %5775 = vrot.lane.b32.xlu0 %v4966, 127
        %v5776 = vpop.permute.xlu0 %5775
        %5777 = vrot.lane.b32.xlu0 %v4968, 127
        %v5778 = vpop.permute.xlu0 %5777
        %5779 = vrot.lane.b32.xlu0 %v5059, 127
        %v5780 = vpop.permute.xlu0 %5779
        %5781 = vrot.lane.b32.xlu0 %v5061, 127
        %v5782 = vpop.permute.xlu0 %5781
        %5783 = vrot.lane.b32.xlu0 %v5152, 127
        %v5784 = vpop.permute.xlu0 %5783
        %5785 = vrot.lane.b32.xlu0 %v5154, 127
        %v5786 = vpop.permute.xlu0 %5785
        %5787 = vrot.lane.b32.xlu0 %v5245, 127
        %v5788 = vpop.permute.xlu0 %5787
        %5789 = vrot.lane.b32.xlu0 %v5247, 127
        %v5790 = vpop.permute.xlu0 %5789
        %5791 = vrot.lane.b32.xlu0 %v5338, 127
        %v5792 = vpop.permute.xlu0 %5791
        %5793 = vrot.lane.b32.xlu0 %v5340, 127
        %v5794 = vpop.permute.xlu0 %5793
        %5795 = vrot.lane.b32.xlu0 %v5431, 127
        %v5796 = vpop.permute.xlu0 %5795
        %5797 = vrot.lane.b32.xlu0 %v5433, 127
        %v5798 = vpop.permute.xlu0 %5797
        %5799 = vrot.lane.b32.xlu0 %v5524, 127
        %v5800 = vpop.permute.xlu0 %5799
        %5801 = vrot.lane.b32.xlu0 %v5526, 127
        %v5802 = vpop.permute.xlu0 %5801
        %5803 = vrot.lane.b32.xlu0 %v5609, 127
        %v5804 = vpop.permute.xlu0 %5803
        %5805 = vrot.lane.b32.xlu0 %v4877, 127
        %v5806 = vpop.permute.xlu0 %5805
        %5807 = vrot.lane.b32.xlu0 %v4879, 127
        %v5808 = vpop.permute.xlu0 %5807
        %5809 = vrot.lane.b32.xlu0 %v4970, 127
        %v5810 = vpop.permute.xlu0 %5809
        %5811 = vrot.lane.b32.xlu0 %v4972, 127
        %v5812 = vpop.permute.xlu0 %5811
        %5813 = vrot.lane.b32.xlu0 %v5063, 127
        %v5814 = vpop.permute.xlu0 %5813
        %5815 = vrot.lane.b32.xlu0 %v5065, 127
        %v5816 = vpop.permute.xlu0 %5815
        %5817 = vrot.lane.b32.xlu0 %v5156, 127
        %v5818 = vpop.permute.xlu0 %5817
        %5819 = vrot.lane.b32.xlu0 %v5158, 127
        %v5820 = vpop.permute.xlu0 %5819
        %5821 = vrot.lane.b32.xlu0 %v5249, 127
        %v5822 = vpop.permute.xlu0 %5821
        %5823 = vrot.lane.b32.xlu0 %v5251, 127
        %v5824 = vpop.permute.xlu0 %5823
        %5825 = vrot.lane.b32.xlu0 %v5342, 127
        %v5826 = vpop.permute.xlu0 %5825
        %5827 = vrot.lane.b32.xlu0 %v5344, 127
        %v5828 = vpop.permute.xlu0 %5827
        %5829 = vrot.lane.b32.xlu0 %v5435, 127
        %v5830 = vpop.permute.xlu0 %5829
        %5831 = vrot.lane.b32.xlu0 %v5437, 127
        %v5832 = vpop.permute.xlu0 %5831
        %5833 = vrot.lane.b32.xlu0 %v5528, 127
        %v5834 = vpop.permute.xlu0 %5833
        %5835 = vrot.lane.b32.xlu0 %v5530, 127
        %v5836 = vpop.permute.xlu0 %5835
        %5837 = vrot.lane.b32.xlu0 %v5612, 127
        %v5838 = vpop.permute.xlu0 %5837
        %5839 = vrot.lane.b32.xlu0 %v4883, 127
        %v5840 = vpop.permute.xlu0 %5839
        %5841 = vrot.lane.b32.xlu0 %v4885, 127
        %v5842 = vpop.permute.xlu0 %5841
        %5843 = vrot.lane.b32.xlu0 %v4976, 127
        %v5844 = vpop.permute.xlu0 %5843
        %5845 = vrot.lane.b32.xlu0 %v4978, 127
        %v5846 = vpop.permute.xlu0 %5845
        %5847 = vrot.lane.b32.xlu0 %v5069, 127
        %v5848 = vpop.permute.xlu0 %5847
        %5849 = vrot.lane.b32.xlu0 %v5071, 127
        %v5850 = vpop.permute.xlu0 %5849
        %5851 = vrot.lane.b32.xlu0 %v5162, 127
        %v5852 = vpop.permute.xlu0 %5851
        %5853 = vrot.lane.b32.xlu0 %v5164, 127
        %v5854 = vpop.permute.xlu0 %5853
        %5855 = vrot.lane.b32.xlu0 %v5255, 127
        %v5856 = vpop.permute.xlu0 %5855
        %5857 = vrot.lane.b32.xlu0 %v5257, 127
        %v5858 = vpop.permute.xlu0 %5857
        %5859 = vrot.lane.b32.xlu0 %v5348, 127
        %v5860 = vpop.permute.xlu0 %5859
        %5861 = vrot.lane.b32.xlu0 %v5350, 127
        %v5862 = vpop.permute.xlu0 %5861
        %5863 = vrot.lane.b32.xlu0 %v5441, 127
        %v5864 = vpop.permute.xlu0 %5863
        %5865 = vrot.lane.b32.xlu0 %v5443, 127
        %v5866 = vpop.permute.xlu0 %5865
        %5867 = vrot.lane.b32.xlu0 %v5534, 127
        %v5868 = vpop.permute.xlu0 %5867
        %5869 = vrot.lane.b32.xlu0 %v5536, 127
        %v5870 = vpop.permute.xlu0 %5869
        %5871 = vrot.lane.b32.xlu0 %v5617, 127
        %v5872 = vpop.permute.xlu0 %5871
        %5873 = vrot.lane.b32.xlu0 %v4887, 127
        %v5874 = vpop.permute.xlu0 %5873
        %5875 = vrot.lane.b32.xlu0 %v4889, 127
        %v5876 = vpop.permute.xlu0 %5875
        %5877 = vrot.lane.b32.xlu0 %v4980, 127
        %v5878 = vpop.permute.xlu0 %5877
        %5879 = vrot.lane.b32.xlu0 %v4982, 127
        %v5880 = vpop.permute.xlu0 %5879
        %5881 = vrot.lane.b32.xlu0 %v5073, 127
        %v5882 = vpop.permute.xlu0 %5881
        %5883 = vrot.lane.b32.xlu0 %v5075, 127
        %v5884 = vpop.permute.xlu0 %5883
        %5885 = vrot.lane.b32.xlu0 %v5166, 127
        %v5886 = vpop.permute.xlu0 %5885
        %5887 = vrot.lane.b32.xlu0 %v5168, 127
        %v5888 = vpop.permute.xlu0 %5887
        %5889 = vrot.lane.b32.xlu0 %v5259, 127
        %v5890 = vpop.permute.xlu0 %5889
        %5891 = vrot.lane.b32.xlu0 %v5261, 127
        %v5892 = vpop.permute.xlu0 %5891
        %5893 = vrot.lane.b32.xlu0 %v5352, 127
        %v5894 = vpop.permute.xlu0 %5893
        %5895 = vrot.lane.b32.xlu0 %v5354, 127
        %v5896 = vpop.permute.xlu0 %5895
        %5897 = vrot.lane.b32.xlu0 %v5445, 127
        %v5898 = vpop.permute.xlu0 %5897
        %5899 = vrot.lane.b32.xlu0 %v5447, 127
        %v5900 = vpop.permute.xlu0 %5899
        %5901 = vrot.lane.b32.xlu0 %v5538, 127
        %v5902 = vpop.permute.xlu0 %5901
        %5903 = vrot.lane.b32.xlu0 %v5540, 127
        %v5904 = vpop.permute.xlu0 %5903
        %5905 = vrot.lane.b32.xlu0 %v5620, 127
        %v5906 = vpop.permute.xlu0 %5905
        %v5907 = vsel %vm739, %v5772, %v5774
        %v5908 = vsel %vm739, %v5774, %v5776
        %v5909 = vsel %vm739, %v5776, %v5778
        %v5910 = vsel %vm739, %v5778, %v5780
        %v5911 = vsel %vm739, %v5780, %v5782
        %v5912 = vsel %vm739, %v5782, %v5784
        %v5913 = vsel %vm739, %v5784, %v5786
        %v5914 = vsel %vm739, %v5786, %v5788
        %v5915 = vsel %vm739, %v5788, %v5790
        %v5916 = vsel %vm739, %v5790, %v5792
        %v5917 = vsel %vm739, %v5792, %v5794
        %v5918 = vsel %vm739, %v5794, %v5796
        %v5919 = vsel %vm739, %v5796, %v5798
        %v5920 = vsel %vm739, %v5798, %v5800
        %v5921 = vsel %vm739, %v5800, %v5802
        %v5922 = vsel %vm739, %v5802, %v5804
        %v5923 = vsel %vm739, %v5806, %v5808
        %v5924 = vsel %vm739, %v5808, %v5810
        %v5925 = vsel %vm739, %v5810, %v5812
        %v5926 = vsel %vm739, %v5812, %v5814
        %v5927 = vsel %vm739, %v5814, %v5816
        %v5928 = vsel %vm739, %v5816, %v5818
        %v5929 = vsel %vm739, %v5818, %v5820
        %v5930 = vsel %vm739, %v5820, %v5822
        %v5931 = vsel %vm739, %v5822, %v5824
        %v5932 = vsel %vm739, %v5824, %v5826
        %v5933 = vsel %vm739, %v5826, %v5828
        %v5934 = vsel %vm739, %v5828, %v5830
        %v5935 = vsel %vm739, %v5830, %v5832
        %v5936 = vsel %vm739, %v5832, %v5834
        %v5937 = vsel %vm739, %v5834, %v5836
        %v5938 = vsel %vm739, %v5836, %v5838
        %v5939 = vsel %vm739, %v5840, %v5842
        %v5940 = vsel %vm739, %v5842, %v5844
        %v5941 = vsel %vm739, %v5844, %v5846
        %v5942 = vsel %vm739, %v5846, %v5848
        %v5943 = vsel %vm739, %v5848, %v5850
        %v5944 = vsel %vm739, %v5850, %v5852
        %v5945 = vsel %vm739, %v5852, %v5854
        %v5946 = vsel %vm739, %v5854, %v5856
        %v5947 = vsel %vm739, %v5856, %v5858
        %v5948 = vsel %vm739, %v5858, %v5860
        %v5949 = vsel %vm739, %v5860, %v5862
        %v5950 = vsel %vm739, %v5862, %v5864
        %v5951 = vsel %vm739, %v5864, %v5866
        %v5952 = vsel %vm739, %v5866, %v5868
        %v5953 = vsel %vm739, %v5868, %v5870
        %v5954 = vsel %vm739, %v5870, %v5872
        %v5955 = vsel %vm739, %v5874, %v5876
        %v5956 = vsel %vm739, %v5876, %v5878
        %v5957 = vsel %vm739, %v5878, %v5880
        %v5958 = vsel %vm739, %v5880, %v5882
        %v5959 = vsel %vm739, %v5882, %v5884
        %v5960 = vsel %vm739, %v5884, %v5886
        %v5961 = vsel %vm739, %v5886, %v5888
        %v5962 = vsel %vm739, %v5888, %v5890
        %v5963 = vsel %vm739, %v5890, %v5892
        %v5964 = vsel %vm739, %v5892, %v5894
        %v5965 = vsel %vm739, %v5894, %v5896
        %v5966 = vsel %vm739, %v5896, %v5898
        %v5967 = vsel %vm739, %v5898, %v5900
        %v5968 = vsel %vm739, %v5900, %v5902
        %v5969 = vsel %vm739, %v5902, %v5904
        %v5970 = vsel %vm739, %v5904, %v5906
        %v6035 = vadd.f32 %v5639, %v5907
        %v6036 = vadd.f32 %v5640, %v5908
        %v6037 = vadd.f32 %v5641, %v5909
        %v6038 = vadd.f32 %v5642, %v5910
        %v6039 = vadd.f32 %v5643, %v5911
        %v6040 = vadd.f32 %v5644, %v5912
        %v6041 = vadd.f32 %v5645, %v5913
        %v6042 = vadd.f32 %v5646, %v5914
        %v6043 = vadd.f32 %v5647, %v5915
        %v6044 = vadd.f32 %v5648, %v5916
        %v6045 = vadd.f32 %v5649, %v5917
        %v6046 = vadd.f32 %v5650, %v5918
        %v6047 = vadd.f32 %v5651, %v5919
        %v6048 = vadd.f32 %v5652, %v5920
        %v6049 = vadd.f32 %v5653, %v5921
        %v6050 = vadd.f32 %v5654, %v5922
        %v6051 = vadd.f32 %v5655, %v5923
        %v6052 = vadd.f32 %v5656, %v5924
        %v6053 = vadd.f32 %v5657, %v5925
        %v6054 = vadd.f32 %v5658, %v5926
        %v6055 = vadd.f32 %v5659, %v5927
        %v6056 = vadd.f32 %v5660, %v5928
        %v6057 = vadd.f32 %v5661, %v5929
        %v6058 = vadd.f32 %v5662, %v5930
        %v6059 = vadd.f32 %v5663, %v5931
        %v6060 = vadd.f32 %v5664, %v5932
        %v6061 = vadd.f32 %v5665, %v5933
        %v6062 = vadd.f32 %v5666, %v5934
        %v6063 = vadd.f32 %v5667, %v5935
        %v6064 = vadd.f32 %v5668, %v5936
        %v6065 = vadd.f32 %v5669, %v5937
        %v6066 = vadd.f32 %v5670, %v5938
        %v6067 = vadd.f32 %v5671, %v5939
        %v6068 = vadd.f32 %v5672, %v5940
        %v6069 = vadd.f32 %v5673, %v5941
        %v6070 = vadd.f32 %v5674, %v5942
        %v6071 = vadd.f32 %v5675, %v5943
        %v6072 = vadd.f32 %v5676, %v5944
        %v6073 = vadd.f32 %v5677, %v5945
        %v6074 = vadd.f32 %v5678, %v5946
        %v6075 = vadd.f32 %v5679, %v5947
        %v6076 = vadd.f32 %v5680, %v5948
        %v6077 = vadd.f32 %v5681, %v5949
        %v6078 = vadd.f32 %v5682, %v5950
        %v6079 = vadd.f32 %v5683, %v5951
        %v6080 = vadd.f32 %v5684, %v5952
        %v6081 = vadd.f32 %v5685, %v5953
        %v6082 = vadd.f32 %v5686, %v5954
        %v6083 = vadd.f32 %v5687, %v5955
        %v6084 = vadd.f32 %v5688, %v5956
        %v6085 = vadd.f32 %v5689, %v5957
        %v6086 = vadd.f32 %v5690, %v5958
        %v6087 = vadd.f32 %v5691, %v5959
        %v6088 = vadd.f32 %v5692, %v5960
        %v6089 = vadd.f32 %v5693, %v5961
        %v6090 = vadd.f32 %v5694, %v5962
        %v6091 = vadd.f32 %v5695, %v5963
        %v6092 = vadd.f32 %v5696, %v5964
        %v6093 = vadd.f32 %v5697, %v5965
        %v6094 = vadd.f32 %v5698, %v5966
        %v6095 = vadd.f32 %v5699, %v5967
        %v6096 = vadd.f32 %v5700, %v5968
        %v6097 = vadd.f32 %v5701, %v5969
        %v6098 = vadd.f32 %v5702, %v5970
        %6167 = vrot.lane.b32.xlu0 %v4893, 126
        %v6168 = vpop.permute.xlu0 %6167
        %6169 = vrot.lane.b32.xlu0 %v4895, 126
        %v6170 = vpop.permute.xlu0 %6169
        %6171 = vrot.lane.b32.xlu0 %v4986, 126
        %v6172 = vpop.permute.xlu0 %6171
        %6173 = vrot.lane.b32.xlu0 %v4988, 126
        %v6174 = vpop.permute.xlu0 %6173
        %6175 = vrot.lane.b32.xlu0 %v5079, 126
        %v6176 = vpop.permute.xlu0 %6175
        %6177 = vrot.lane.b32.xlu0 %v5081, 126
        %v6178 = vpop.permute.xlu0 %6177
        %6179 = vrot.lane.b32.xlu0 %v5172, 126
        %v6180 = vpop.permute.xlu0 %6179
        %6181 = vrot.lane.b32.xlu0 %v5174, 126
        %v6182 = vpop.permute.xlu0 %6181
        %6183 = vrot.lane.b32.xlu0 %v5265, 126
        %v6184 = vpop.permute.xlu0 %6183
        %6185 = vrot.lane.b32.xlu0 %v5267, 126
        %v6186 = vpop.permute.xlu0 %6185
        %6187 = vrot.lane.b32.xlu0 %v5358, 126
        %v6188 = vpop.permute.xlu0 %6187
        %6189 = vrot.lane.b32.xlu0 %v5360, 126
        %v6190 = vpop.permute.xlu0 %6189
        %6191 = vrot.lane.b32.xlu0 %v5451, 126
        %v6192 = vpop.permute.xlu0 %6191
        %6193 = vrot.lane.b32.xlu0 %v5453, 126
        %v6194 = vpop.permute.xlu0 %6193
        %6195 = vrot.lane.b32.xlu0 %v5544, 126
        %v6196 = vpop.permute.xlu0 %6195
        %6197 = vrot.lane.b32.xlu0 %v5546, 126
        %v6198 = vpop.permute.xlu0 %6197
        %6199 = vrot.lane.b32.xlu0 %v5625, 126
        %v6200 = vpop.permute.xlu0 %6199
        %6201 = vrot.lane.b32.xlu0 %v4897, 126
        %v6202 = vpop.permute.xlu0 %6201
        %6203 = vrot.lane.b32.xlu0 %v4899, 126
        %v6204 = vpop.permute.xlu0 %6203
        %6205 = vrot.lane.b32.xlu0 %v4990, 126
        %v6206 = vpop.permute.xlu0 %6205
        %6207 = vrot.lane.b32.xlu0 %v4992, 126
        %v6208 = vpop.permute.xlu0 %6207
        %6209 = vrot.lane.b32.xlu0 %v5083, 126
        %v6210 = vpop.permute.xlu0 %6209
        %6211 = vrot.lane.b32.xlu0 %v5085, 126
        %v6212 = vpop.permute.xlu0 %6211
        %6213 = vrot.lane.b32.xlu0 %v5176, 126
        %v6214 = vpop.permute.xlu0 %6213
        %6215 = vrot.lane.b32.xlu0 %v5178, 126
        %v6216 = vpop.permute.xlu0 %6215
        %6217 = vrot.lane.b32.xlu0 %v5269, 126
        %v6218 = vpop.permute.xlu0 %6217
        %6219 = vrot.lane.b32.xlu0 %v5271, 126
        %v6220 = vpop.permute.xlu0 %6219
        %6221 = vrot.lane.b32.xlu0 %v5362, 126
        %v6222 = vpop.permute.xlu0 %6221
        %6223 = vrot.lane.b32.xlu0 %v5364, 126
        %v6224 = vpop.permute.xlu0 %6223
        %6225 = vrot.lane.b32.xlu0 %v5455, 126
        %v6226 = vpop.permute.xlu0 %6225
        %6227 = vrot.lane.b32.xlu0 %v5457, 126
        %v6228 = vpop.permute.xlu0 %6227
        %6229 = vrot.lane.b32.xlu0 %v5548, 126
        %v6230 = vpop.permute.xlu0 %6229
        %6231 = vrot.lane.b32.xlu0 %v5550, 126
        %v6232 = vpop.permute.xlu0 %6231
        %6233 = vrot.lane.b32.xlu0 %v5628, 126
        %v6234 = vpop.permute.xlu0 %6233
        %6235 = vrot.lane.b32.xlu0 %v4903, 126
        %v6236 = vpop.permute.xlu0 %6235
        %6237 = vrot.lane.b32.xlu0 %v4905, 126
        %v6238 = vpop.permute.xlu0 %6237
        %6239 = vrot.lane.b32.xlu0 %v4996, 126
        %v6240 = vpop.permute.xlu0 %6239
        %6241 = vrot.lane.b32.xlu0 %v4998, 126
        %v6242 = vpop.permute.xlu0 %6241
        %6243 = vrot.lane.b32.xlu0 %v5089, 126
        %v6244 = vpop.permute.xlu0 %6243
        %6245 = vrot.lane.b32.xlu0 %v5091, 126
        %v6246 = vpop.permute.xlu0 %6245
        %6247 = vrot.lane.b32.xlu0 %v5182, 126
        %v6248 = vpop.permute.xlu0 %6247
        %6249 = vrot.lane.b32.xlu0 %v5184, 126
        %v6250 = vpop.permute.xlu0 %6249
        %6251 = vrot.lane.b32.xlu0 %v5275, 126
        %v6252 = vpop.permute.xlu0 %6251
        %6253 = vrot.lane.b32.xlu0 %v5277, 126
        %v6254 = vpop.permute.xlu0 %6253
        %6255 = vrot.lane.b32.xlu0 %v5368, 126
        %v6256 = vpop.permute.xlu0 %6255
        %6257 = vrot.lane.b32.xlu0 %v5370, 126
        %v6258 = vpop.permute.xlu0 %6257
        %6259 = vrot.lane.b32.xlu0 %v5461, 126
        %v6260 = vpop.permute.xlu0 %6259
        %6261 = vrot.lane.b32.xlu0 %v5463, 126
        %v6262 = vpop.permute.xlu0 %6261
        %6263 = vrot.lane.b32.xlu0 %v5554, 126
        %v6264 = vpop.permute.xlu0 %6263
        %6265 = vrot.lane.b32.xlu0 %v5556, 126
        %v6266 = vpop.permute.xlu0 %6265
        %6267 = vrot.lane.b32.xlu0 %v5633, 126
        %v6268 = vpop.permute.xlu0 %6267
        %6269 = vrot.lane.b32.xlu0 %v4907, 126
        %v6270 = vpop.permute.xlu0 %6269
        %6271 = vrot.lane.b32.xlu0 %v4909, 126
        %v6272 = vpop.permute.xlu0 %6271
        %6273 = vrot.lane.b32.xlu0 %v5000, 126
        %v6274 = vpop.permute.xlu0 %6273
        %6275 = vrot.lane.b32.xlu0 %v5002, 126
        %v6276 = vpop.permute.xlu0 %6275
        %6277 = vrot.lane.b32.xlu0 %v5093, 126
        %v6278 = vpop.permute.xlu0 %6277
        %6279 = vrot.lane.b32.xlu0 %v5095, 126
        %v6280 = vpop.permute.xlu0 %6279
        %6281 = vrot.lane.b32.xlu0 %v5186, 126
        %v6282 = vpop.permute.xlu0 %6281
        %6283 = vrot.lane.b32.xlu0 %v5188, 126
        %v6284 = vpop.permute.xlu0 %6283
        %6285 = vrot.lane.b32.xlu0 %v5279, 126
        %v6286 = vpop.permute.xlu0 %6285
        %6287 = vrot.lane.b32.xlu0 %v5281, 126
        %v6288 = vpop.permute.xlu0 %6287
        %6289 = vrot.lane.b32.xlu0 %v5372, 126
        %v6290 = vpop.permute.xlu0 %6289
        %6291 = vrot.lane.b32.xlu0 %v5374, 126
        %v6292 = vpop.permute.xlu0 %6291
        %6293 = vrot.lane.b32.xlu0 %v5465, 126
        %v6294 = vpop.permute.xlu0 %6293
        %6295 = vrot.lane.b32.xlu0 %v5467, 126
        %v6296 = vpop.permute.xlu0 %6295
        %6297 = vrot.lane.b32.xlu0 %v5558, 126
        %v6298 = vpop.permute.xlu0 %6297
        %6299 = vrot.lane.b32.xlu0 %v5560, 126
        %v6300 = vpop.permute.xlu0 %6299
        %6301 = vrot.lane.b32.xlu0 %v5636, 126
        %v6302 = vpop.permute.xlu0 %6301
        %v6303 = vsel %vm803, %v6168, %v6170
        %v6304 = vsel %vm803, %v6170, %v6172
        %v6305 = vsel %vm803, %v6172, %v6174
        %v6306 = vsel %vm803, %v6174, %v6176
        %v6307 = vsel %vm803, %v6176, %v6178
        %v6308 = vsel %vm803, %v6178, %v6180
        %v6309 = vsel %vm803, %v6180, %v6182
        %v6310 = vsel %vm803, %v6182, %v6184
        %v6311 = vsel %vm803, %v6184, %v6186
        %v6312 = vsel %vm803, %v6186, %v6188
        %v6313 = vsel %vm803, %v6188, %v6190
        %v6314 = vsel %vm803, %v6190, %v6192
        %v6315 = vsel %vm803, %v6192, %v6194
        %v6316 = vsel %vm803, %v6194, %v6196
        %v6317 = vsel %vm803, %v6196, %v6198
        %v6318 = vsel %vm803, %v6198, %v6200
        %v6319 = vsel %vm803, %v6202, %v6204
        %v6320 = vsel %vm803, %v6204, %v6206
        %v6321 = vsel %vm803, %v6206, %v6208
        %v6322 = vsel %vm803, %v6208, %v6210
        %v6323 = vsel %vm803, %v6210, %v6212
        %v6324 = vsel %vm803, %v6212, %v6214
        %v6325 = vsel %vm803, %v6214, %v6216
        %v6326 = vsel %vm803, %v6216, %v6218
        %v6327 = vsel %vm803, %v6218, %v6220
        %v6328 = vsel %vm803, %v6220, %v6222
        %v6329 = vsel %vm803, %v6222, %v6224
        %v6330 = vsel %vm803, %v6224, %v6226
        %v6331 = vsel %vm803, %v6226, %v6228
        %v6332 = vsel %vm803, %v6228, %v6230
        %v6333 = vsel %vm803, %v6230, %v6232
        %v6334 = vsel %vm803, %v6232, %v6234
        %v6335 = vsel %vm803, %v6236, %v6238
        %v6336 = vsel %vm803, %v6238, %v6240
        %v6337 = vsel %vm803, %v6240, %v6242
        %v6338 = vsel %vm803, %v6242, %v6244
        %v6339 = vsel %vm803, %v6244, %v6246
        %v6340 = vsel %vm803, %v6246, %v6248
        %v6341 = vsel %vm803, %v6248, %v6250
        %v6342 = vsel %vm803, %v6250, %v6252
        %v6343 = vsel %vm803, %v6252, %v6254
        %v6344 = vsel %vm803, %v6254, %v6256
        %v6345 = vsel %vm803, %v6256, %v6258
        %v6346 = vsel %vm803, %v6258, %v6260
        %v6347 = vsel %vm803, %v6260, %v6262
        %v6348 = vsel %vm803, %v6262, %v6264
        %v6349 = vsel %vm803, %v6264, %v6266
        %v6350 = vsel %vm803, %v6266, %v6268
        %v6351 = vsel %vm803, %v6270, %v6272
        %v6352 = vsel %vm803, %v6272, %v6274
        %v6353 = vsel %vm803, %v6274, %v6276
        %v6354 = vsel %vm803, %v6276, %v6278
        %v6355 = vsel %vm803, %v6278, %v6280
        %v6356 = vsel %vm803, %v6280, %v6282
        %v6357 = vsel %vm803, %v6282, %v6284
        %v6358 = vsel %vm803, %v6284, %v6286
        %v6359 = vsel %vm803, %v6286, %v6288
        %v6360 = vsel %vm803, %v6288, %v6290
        %v6361 = vsel %vm803, %v6290, %v6292
        %v6362 = vsel %vm803, %v6292, %v6294
        %v6363 = vsel %vm803, %v6294, %v6296
        %v6364 = vsel %vm803, %v6296, %v6298
        %v6365 = vsel %vm803, %v6298, %v6300
        %v6366 = vsel %vm803, %v6300, %v6302
        %v6431 = vadd.f32 %v6035, %v6303
        %v6432 = vadd.f32 %v6036, %v6304
        %v6433 = vadd.f32 %v6037, %v6305
        %v6434 = vadd.f32 %v6038, %v6306
        %v6435 = vadd.f32 %v6039, %v6307
        %v6436 = vadd.f32 %v6040, %v6308
        %v6437 = vadd.f32 %v6041, %v6309
        %v6438 = vadd.f32 %v6042, %v6310
        %v6439 = vadd.f32 %v6043, %v6311
        %v6440 = vadd.f32 %v6044, %v6312
        %v6441 = vadd.f32 %v6045, %v6313
        %v6442 = vadd.f32 %v6046, %v6314
        %v6443 = vadd.f32 %v6047, %v6315
        %v6444 = vadd.f32 %v6048, %v6316
        %v6445 = vadd.f32 %v6049, %v6317
        %v6446 = vadd.f32 %v6050, %v6318
        %v6447 = vadd.f32 %v6051, %v6319
        %v6448 = vadd.f32 %v6052, %v6320
        %v6449 = vadd.f32 %v6053, %v6321
        %v6450 = vadd.f32 %v6054, %v6322
        %v6451 = vadd.f32 %v6055, %v6323
        %v6452 = vadd.f32 %v6056, %v6324
        %v6453 = vadd.f32 %v6057, %v6325
        %v6454 = vadd.f32 %v6058, %v6326
        %v6455 = vadd.f32 %v6059, %v6327
        %v6456 = vadd.f32 %v6060, %v6328
        %v6457 = vadd.f32 %v6061, %v6329
        %v6458 = vadd.f32 %v6062, %v6330
        %v6459 = vadd.f32 %v6063, %v6331
        %v6460 = vadd.f32 %v6064, %v6332
        %v6461 = vadd.f32 %v6065, %v6333
        %v6462 = vadd.f32 %v6066, %v6334
        %v6463 = vadd.f32 %v6067, %v6335
        %v6464 = vadd.f32 %v6068, %v6336
        %v6465 = vadd.f32 %v6069, %v6337
        %v6466 = vadd.f32 %v6070, %v6338
        %v6467 = vadd.f32 %v6071, %v6339
        %v6468 = vadd.f32 %v6072, %v6340
        %v6469 = vadd.f32 %v6073, %v6341
        %v6470 = vadd.f32 %v6074, %v6342
        %v6471 = vadd.f32 %v6075, %v6343
        %v6472 = vadd.f32 %v6076, %v6344
        %v6473 = vadd.f32 %v6077, %v6345
        %v6474 = vadd.f32 %v6078, %v6346
        %v6475 = vadd.f32 %v6079, %v6347
        %v6476 = vadd.f32 %v6080, %v6348
        %v6477 = vadd.f32 %v6081, %v6349
        %v6478 = vadd.f32 %v6082, %v6350
        %v6479 = vadd.f32 %v6083, %v6351
        %v6480 = vadd.f32 %v6084, %v6352
        %v6481 = vadd.f32 %v6085, %v6353
        %v6482 = vadd.f32 %v6086, %v6354
        %v6483 = vadd.f32 %v6087, %v6355
        %v6484 = vadd.f32 %v6088, %v6356
        %v6485 = vadd.f32 %v6089, %v6357
        %v6486 = vadd.f32 %v6090, %v6358
        %v6487 = vadd.f32 %v6091, %v6359
        %v6488 = vadd.f32 %v6092, %v6360
        %v6489 = vadd.f32 %v6093, %v6361
        %v6490 = vadd.f32 %v6094, %v6362
        %v6491 = vadd.f32 %v6095, %v6363
        %v6492 = vadd.f32 %v6096, %v6364
        %v6493 = vadd.f32 %v6097, %v6365
        %v6494 = vadd.f32 %v6098, %v6366
        %s6495 = scalar_lea.vmem %s5, 96
        %v6496 = vld [vmem:[%s6495] sm:$0xf]
        %v6497 = vld [vmem:[%s6495 + $0x4] sm:$0xf]
        %v6498 = vld [vmem:[%s6495 + $0x8] sm:$0xf]
        %v6499 = vld [vmem:[%s6495 + $0xc] sm:$0xf]
        %v6500 = vld [vmem:[%s6495 + $0x10] sm:$0xf]
        %v6501 = vld [vmem:[%s6495 + $0x14] sm:$0xf]
        %v6502 = vld [vmem:[%s6495 + $0x18] sm:$0xf]
        %v6503 = vld [vmem:[%s6495 + $0x1c] sm:$0xf]
        %v6504 = vld [vmem:[%s6495 + $0x20] sm:$0xf]
        %v6505 = vld [vmem:[%s6495 + $0x24] sm:$0xf]
        %v6506 = vld [vmem:[%s6495 + $0x28] sm:$0xf]
        %v6507 = vld [vmem:[%s6495 + $0x2c] sm:$0xf]
        %v6508 = vld [vmem:[#allocation3 + $0x4] sm:$0xff]
        %v6509 = vld [vmem:[#allocation3 + $0xc] sm:$0xff]
        %v6510 = vld [vmem:[#allocation3 + $0x14] sm:$0xff]
        %v6511 = vld [vmem:[#allocation3 + $0x1c] sm:$0xff]
        %v6512 = vld [vmem:[#allocation3 + $0x24] sm:$0x3]
        %v6525 = vunpack.c.l.b16 %v6496
        %v6526 = vunpack.c.l.b16 %v6497
        %v6527 = vunpack.c.l.b16 %v6498
        %v6528 = vunpack.c.l.b16 %v6499
        %v6529 = vunpack.c.l.b16 %v6500
        %v6530 = vunpack.c.l.b16 %v6501
        %v6531 = vunpack.c.l.b16 %v6502
        %v6532 = vunpack.c.l.b16 %v6503
        %v6533 = vunpack.c.l.b16 %v6504
        %v6534 = vunpack.c.l.b16 %v6505
        %v6535 = vunpack.c.l.b16 %v6506
        %v6536 = vunpack.c.l.b16 %v6507
        %v6537 = vpack.c.b16 %v6526, %v6525
        %v6538 = vpack.c.b16 %v6528, %v6527
        %v6539 = vpack.c.b16 %v6530, %v6529
        %v6540 = vpack.c.b16 %v6532, %v6531
        %v6541 = vpack.c.b16 %v6534, %v6533
        %v6542 = vpack.c.b16 %v6536, %v6535
        %v6548 = vcombine.high %v6508, %v6508
        %v6550 = vunpack.c.l.s4 1983009808
        %v6551 = vunpack.c.0.s8 %v6550
        %v6552 = vlaneseq
        %v6553 = vshrl.u32 %v6552, 7
        %v6554 = vsub.s32 %v6551, %v6553
        %v6555 = vrot.slane %v6508, %v6554
        %v6557 = vunpack.c.l.s4 1983009808
        %v6558 = vunpack.c.0.s8 %v6557
        %v6559 = vlaneseq
        %v6560 = vshrl.u32 %v6559, 7
        %v6561 = vsub.s32 %v6558, %v6560
        %v6562 = vrot.slane %v6548, %v6561
        %v6563 = vcombine.high %v6555, %v6555
        %v6564 = vcombine.high %v6562, %v6562
        %v6565 = vcombine.high %v6509, %v6509
        %v6567 = vunpack.c.l.s4 1983009808
        %v6568 = vunpack.c.0.s8 %v6567
        %v6569 = vlaneseq
        %v6570 = vshrl.u32 %v6569, 7
        %v6571 = vsub.s32 %v6568, %v6570
        %v6572 = vrot.slane %v6509, %v6571
        %v6574 = vunpack.c.l.s4 1983009808
        %v6575 = vunpack.c.0.s8 %v6574
        %v6576 = vlaneseq
        %v6577 = vshrl.u32 %v6576, 7
        %v6578 = vsub.s32 %v6575, %v6577
        %v6579 = vrot.slane %v6565, %v6578
        %v6580 = vcombine.high %v6572, %v6572
        %v6581 = vcombine.high %v6579, %v6579
        %v6582 = vcombine.high %v6510, %v6510
        %v6584 = vunpack.c.l.s4 1983009808
        %v6585 = vunpack.c.0.s8 %v6584
        %v6586 = vlaneseq
        %v6587 = vshrl.u32 %v6586, 7
        %v6588 = vsub.s32 %v6585, %v6587
        %v6589 = vrot.slane %v6510, %v6588
        %v6591 = vunpack.c.l.s4 1983009808
        %v6592 = vunpack.c.0.s8 %v6591
        %v6593 = vlaneseq
        %v6594 = vshrl.u32 %v6593, 7
        %v6595 = vsub.s32 %v6592, %v6594
        %v6596 = vrot.slane %v6582, %v6595
        %v6597 = vcombine.high %v6589, %v6589
        %v6598 = vcombine.high %v6596, %v6596
        %v6599 = vcombine.high %v6511, %v6511
        %v6601 = vunpack.c.l.s4 1983009808
        %v6602 = vunpack.c.0.s8 %v6601
        %v6603 = vlaneseq
        %v6604 = vshrl.u32 %v6603, 7
        %v6605 = vsub.s32 %v6602, %v6604
        %v6606 = vrot.slane %v6511, %v6605
        %v6608 = vunpack.c.l.s4 1983009808
        %v6609 = vunpack.c.0.s8 %v6608
        %v6610 = vlaneseq
        %v6611 = vshrl.u32 %v6610, 7
        %v6612 = vsub.s32 %v6609, %v6611
        %v6613 = vrot.slane %v6599, %v6612
        %v6614 = vcombine.high %v6606, %v6606
        %v6615 = vcombine.high %v6613, %v6613
        %v6617 = vunpack.c.l.s4 1983009808
        %v6618 = vunpack.c.0.s8 %v6617
        %v6619 = vlaneseq
        %v6620 = vshrl.u32 %v6619, 7
        %v6621 = vsub.s32 %v6618, %v6620
        %v6622 = vrot.slane %v6512, %v6621
        %v6624 = vsel %vm2938, %v6537, 0
        %v6627 = vsel %vm2938, %v6538, 0
        %v6630 = vsel %vm2938, %v6539, 0
        %v6633 = vsel %vm2938, %v6540, 0
        %v6636 = vsel %vm2938, %v6541, 0
        %v6639 = vsel %vm2938, %v6542, 0
        %v6642 = vsel %vm2511, %v6555, 0
        %v6645 = vsel %vm2511, %v6563, 0
        %v6648 = vsel %vm2511, %v6562, 0
        %v6651 = vsel %vm2511, %v6564, 0
        %v6654 = vsel %vm2511, %v6572, 0
        %v6657 = vsel %vm2511, %v6580, 0
        %v6660 = vsel %vm2511, %v6579, 0
        %v6663 = vsel %vm2511, %v6581, 0
        %v6666 = vsel %vm2511, %v6589, 0
        %v6669 = vsel %vm2511, %v6597, 0
        %v6672 = vsel %vm2511, %v6596, 0
        %v6675 = vsel %vm2511, %v6598, 0
        %v6678 = vsel %vm2511, %v6606, 0
        %v6681 = vsel %vm2511, %v6614, 0
        %v6684 = vsel %vm2511, %v6613, 0
        %v6687 = vsel %vm2511, %v6615, 0
        %v6690 = vsel %vm2511, %v6622, 0
        %6692 = vmatprep.subr.bf16.mxu0 0
        %6693 = vmatpush1.bf16.msra.mxu0 0
        %6694 = vmatprep.subr.bf16.mxu0 0
        %6695 = vmatpush1.bf16.msra.mxu0 0
        %6696 = vmatprep.subr.bf16.mxu0 0
        %6697 = vmatpush1.bf16.msra.mxu0 0
        %6698 = vmatprep.subr.bf16.mxu0 0
        %6699 = vmatpush1.bf16.msra.mxu0 0
        %6700 = vmatprep.subr.bf16.mxu0 0
        %6701 = vmatpush1.bf16.msra.mxu0 0
        %6702 = vmatprep.subr.bf16.mxu0 0
        %6703 = vmatpush1.bf16.msra.mxu0 0
        %6704 = vmatprep.subr.bf16.mxu0 0
        %6705 = vmatpush1.bf16.msra.mxu0 0
        %6706 = vmatprep.subr.bf16.mxu0 %v6645
        %6707 = vmatpush1.bf16.msra.mxu0 %v6642
        %6708 = vmatprep.subr.bf16.mxu0 0
        %6709 = vmatpush2.bf16.msra.mxu0 0
        %6710 = vmatprep.subr.bf16.mxu0 0
        %6711 = vmatpush2.bf16.msra.mxu0 0
        %6712 = vmatprep.subr.bf16.mxu0 0
        %6713 = vmatpush2.bf16.msra.mxu0 0
        %6714 = vmatprep.subr.bf16.mxu0 0
        %6715 = vmatpush2.bf16.msra.mxu0 0
        %6716 = vmatprep.subr.bf16.mxu0 0
        %6717 = vmatpush2.bf16.msra.mxu0 0
        %6718 = vmatprep.subr.bf16.mxu0 0
        %6719 = vmatpush2.bf16.msra.mxu0 0
        %6720 = vmatprep.subr.bf16.mxu0 0
        %6721 = vmatpush2.bf16.msra.mxu0 0
        %6722 = vmatprep.subr.bf16.mxu0 0
        %6723 = vmatpush2.bf16.msra.mxu0 0
        %6724 = vmatprep.mubr.bf16.mxu0 0
        %6725 = vmatmul.mubr.bf16.gmra.mxu0 %v6624
        %v6726 = vpop.f32.mrf.mxu0
        %v6727 = vadd.f32 0.0, %v6726
        %v6728 = vpop.f32.mrf.mxu0
        %v6729 = vadd.f32 0.0, %v6728
        %v6730 = vpop.f32.mrf.mxu0
        %v6731 = vadd.f32 0.0, %v6730
        %v6732 = vpop.f32.mrf.mxu0
        %v6733 = vadd.f32 0.0, %v6732
        %6734 = vmatprep.mubr.bf16.mxu0 0
        %6735 = vmatmul.mubr.bf16.gmra.mxu0 %v6627
        %v6736 = vpop.f32.mrf.mxu0
        %v6737 = vadd.f32 0.0, %v6736
        %v6738 = vpop.f32.mrf.mxu0
        %v6739 = vadd.f32 0.0, %v6738
        %v6740 = vpop.f32.mrf.mxu0
        %v6741 = vadd.f32 0.0, %v6740
        %v6742 = vpop.f32.mrf.mxu0
        %v6743 = vadd.f32 0.0, %v6742
        %6744 = vmatprep.mubr.bf16.mxu0 0
        %6745 = vmatmul.mubr.bf16.gmra.mxu0 %v6630
        %v6746 = vpop.f32.mrf.mxu0
        %v6747 = vadd.f32 0.0, %v6746
        %v6748 = vpop.f32.mrf.mxu0
        %v6749 = vadd.f32 0.0, %v6748
        %v6750 = vpop.f32.mrf.mxu0
        %v6751 = vadd.f32 0.0, %v6750
        %v6752 = vpop.f32.mrf.mxu0
        %v6753 = vadd.f32 0.0, %v6752
        %6754 = vmatprep.mubr.bf16.mxu0 0
        %6755 = vmatmul.mubr.bf16.gmra.mxu0 %v6633
        %v6756 = vpop.f32.mrf.mxu0
        %v6757 = vadd.f32 0.0, %v6756
        %v6758 = vpop.f32.mrf.mxu0
        %v6759 = vadd.f32 0.0, %v6758
        %v6760 = vpop.f32.mrf.mxu0
        %v6761 = vadd.f32 0.0, %v6760
        %v6762 = vpop.f32.mrf.mxu0
        %v6763 = vadd.f32 0.0, %v6762
        %6764 = vmatprep.mubr.bf16.mxu0 0
        %6765 = vmatmul.mubr.bf16.gmra.mxu0 %v6636
        %v6766 = vpop.f32.mrf.mxu0
        %v6767 = vadd.f32 0.0, %v6766
        %v6768 = vpop.f32.mrf.mxu0
        %v6769 = vadd.f32 0.0, %v6768
        %v6770 = vpop.f32.mrf.mxu0
        %v6771 = vadd.f32 0.0, %v6770
        %v6772 = vpop.f32.mrf.mxu0
        %v6773 = vadd.f32 0.0, %v6772
        %6774 = vmatprep.mubr.bf16.mxu0 0
        %6775 = vmatmul.mubr.bf16.gmra.mxu0 %v6639
        %v6776 = vpop.f32.mrf.mxu0
        %v6777 = vadd.f32 0.0, %v6776
        %v6778 = vpop.f32.mrf.mxu0
        %v6779 = vadd.f32 0.0, %v6778
        %v6780 = vpop.f32.mrf.mxu0
        %v6781 = vadd.f32 0.0, %v6780
        %v6782 = vpop.f32.mrf.mxu0
        %v6783 = vadd.f32 0.0, %v6782
        %6784 = vdwg.mxu0
        %6785 = vmatprep.subr.bf16.mxu0 0
        %6786 = vmatpush1.bf16.msra.mxu0 0
        %6787 = vmatprep.subr.bf16.mxu0 0
        %6788 = vmatpush1.bf16.msra.mxu0 0
        %6789 = vmatprep.subr.bf16.mxu0 0
        %6790 = vmatpush1.bf16.msra.mxu0 0
        %6791 = vmatprep.subr.bf16.mxu0 0
        %6792 = vmatpush1.bf16.msra.mxu0 0
        %6793 = vmatprep.subr.bf16.mxu0 0
        %6794 = vmatpush1.bf16.msra.mxu0 0
        %6795 = vmatprep.subr.bf16.mxu0 0
        %6796 = vmatpush1.bf16.msra.mxu0 0
        %6797 = vmatprep.subr.bf16.mxu0 0
        %6798 = vmatpush1.bf16.msra.mxu0 0
        %6799 = vmatprep.subr.bf16.mxu0 %v6651
        %6800 = vmatpush1.bf16.msra.mxu0 %v6648
        %6801 = vmatprep.subr.bf16.mxu0 0
        %6802 = vmatpush2.bf16.msra.mxu0 0
        %6803 = vmatprep.subr.bf16.mxu0 0
        %6804 = vmatpush2.bf16.msra.mxu0 0
        %6805 = vmatprep.subr.bf16.mxu0 0
        %6806 = vmatpush2.bf16.msra.mxu0 0
        %6807 = vmatprep.subr.bf16.mxu0 0
        %6808 = vmatpush2.bf16.msra.mxu0 0
        %6809 = vmatprep.subr.bf16.mxu0 0
        %6810 = vmatpush2.bf16.msra.mxu0 0
        %6811 = vmatprep.subr.bf16.mxu0 0
        %6812 = vmatpush2.bf16.msra.mxu0 0
        %6813 = vmatprep.subr.bf16.mxu0 0
        %6814 = vmatpush2.bf16.msra.mxu0 0
        %6815 = vmatprep.subr.bf16.mxu0 0
        %6816 = vmatpush2.bf16.msra.mxu0 0
        %6817 = vmatprep.mubr.bf16.mxu0 0
        %6818 = vmatmul.mubr.bf16.gmra.mxu0 %v6624
        %v6819 = vpop.f32.mrf.mxu0
        %v6820 = vadd.f32 0.0, %v6819
        %v6821 = vpop.f32.mrf.mxu0
        %v6822 = vadd.f32 0.0, %v6821
        %v6823 = vpop.f32.mrf.mxu0
        %v6824 = vadd.f32 0.0, %v6823
        %v6825 = vpop.f32.mrf.mxu0
        %v6826 = vadd.f32 0.0, %v6825
        %6827 = vmatprep.mubr.bf16.mxu0 0
        %6828 = vmatmul.mubr.bf16.gmra.mxu0 %v6627
        %v6829 = vpop.f32.mrf.mxu0
        %v6830 = vadd.f32 0.0, %v6829
        %v6831 = vpop.f32.mrf.mxu0
        %v6832 = vadd.f32 0.0, %v6831
        %v6833 = vpop.f32.mrf.mxu0
        %v6834 = vadd.f32 0.0, %v6833
        %v6835 = vpop.f32.mrf.mxu0
        %v6836 = vadd.f32 0.0, %v6835
        %6837 = vmatprep.mubr.bf16.mxu0 0
        %6838 = vmatmul.mubr.bf16.gmra.mxu0 %v6630
        %v6839 = vpop.f32.mrf.mxu0
        %v6840 = vadd.f32 0.0, %v6839
        %v6841 = vpop.f32.mrf.mxu0
        %v6842 = vadd.f32 0.0, %v6841
        %v6843 = vpop.f32.mrf.mxu0
        %v6844 = vadd.f32 0.0, %v6843
        %v6845 = vpop.f32.mrf.mxu0
        %v6846 = vadd.f32 0.0, %v6845
        %6847 = vmatprep.mubr.bf16.mxu0 0
        %6848 = vmatmul.mubr.bf16.gmra.mxu0 %v6633
        %v6849 = vpop.f32.mrf.mxu0
        %v6850 = vadd.f32 0.0, %v6849
        %v6851 = vpop.f32.mrf.mxu0
        %v6852 = vadd.f32 0.0, %v6851
        %v6853 = vpop.f32.mrf.mxu0
        %v6854 = vadd.f32 0.0, %v6853
        %v6855 = vpop.f32.mrf.mxu0
        %v6856 = vadd.f32 0.0, %v6855
        %6857 = vmatprep.mubr.bf16.mxu0 0
        %6858 = vmatmul.mubr.bf16.gmra.mxu0 %v6636
        %v6859 = vpop.f32.mrf.mxu0
        %v6860 = vadd.f32 0.0, %v6859
        %v6861 = vpop.f32.mrf.mxu0
        %v6862 = vadd.f32 0.0, %v6861
        %v6863 = vpop.f32.mrf.mxu0
        %v6864 = vadd.f32 0.0, %v6863
        %v6865 = vpop.f32.mrf.mxu0
        %v6866 = vadd.f32 0.0, %v6865
        %6867 = vmatprep.mubr.bf16.mxu0 0
        %6868 = vmatmul.mubr.bf16.gmra.mxu0 %v6639
        %v6869 = vpop.f32.mrf.mxu0
        %v6870 = vadd.f32 0.0, %v6869
        %v6871 = vpop.f32.mrf.mxu0
        %v6872 = vadd.f32 0.0, %v6871
        %v6873 = vpop.f32.mrf.mxu0
        %v6874 = vadd.f32 0.0, %v6873
        %v6875 = vpop.f32.mrf.mxu0
        %v6876 = vadd.f32 0.0, %v6875
        %6877 = vdwg.mxu0
        %6878 = vmatprep.subr.bf16.mxu0 0
        %6879 = vmatpush1.bf16.msra.mxu0 0
        %6880 = vmatprep.subr.bf16.mxu0 0
        %6881 = vmatpush1.bf16.msra.mxu0 0
        %6882 = vmatprep.subr.bf16.mxu0 0
        %6883 = vmatpush1.bf16.msra.mxu0 0
        %6884 = vmatprep.subr.bf16.mxu0 0
        %6885 = vmatpush1.bf16.msra.mxu0 0
        %6886 = vmatprep.subr.bf16.mxu0 0
        %6887 = vmatpush1.bf16.msra.mxu0 0
        %6888 = vmatprep.subr.bf16.mxu0 0
        %6889 = vmatpush1.bf16.msra.mxu0 0
        %6890 = vmatprep.subr.bf16.mxu0 0
        %6891 = vmatpush1.bf16.msra.mxu0 0
        %6892 = vmatprep.subr.bf16.mxu0 %v6657
        %6893 = vmatpush1.bf16.msra.mxu0 %v6654
        %6894 = vmatprep.subr.bf16.mxu0 0
        %6895 = vmatpush2.bf16.msra.mxu0 0
        %6896 = vmatprep.subr.bf16.mxu0 0
        %6897 = vmatpush2.bf16.msra.mxu0 0
        %6898 = vmatprep.subr.bf16.mxu0 0
        %6899 = vmatpush2.bf16.msra.mxu0 0
        %6900 = vmatprep.subr.bf16.mxu0 0
        %6901 = vmatpush2.bf16.msra.mxu0 0
        %6902 = vmatprep.subr.bf16.mxu0 0
        %6903 = vmatpush2.bf16.msra.mxu0 0
        %6904 = vmatprep.subr.bf16.mxu0 0
        %6905 = vmatpush2.bf16.msra.mxu0 0
        %6906 = vmatprep.subr.bf16.mxu0 0
        %6907 = vmatpush2.bf16.msra.mxu0 0
        %6908 = vmatprep.subr.bf16.mxu0 0
        %6909 = vmatpush2.bf16.msra.mxu0 0
        %6910 = vmatprep.mubr.bf16.mxu0 0
        %6911 = vmatmul.mubr.bf16.gmra.mxu0 %v6624
        %v6912 = vpop.f32.mrf.mxu0
        %v6913 = vadd.f32 0.0, %v6912
        %v6914 = vpop.f32.mrf.mxu0
        %v6915 = vadd.f32 0.0, %v6914
        %v6916 = vpop.f32.mrf.mxu0
        %v6917 = vadd.f32 0.0, %v6916
        %v6918 = vpop.f32.mrf.mxu0
        %v6919 = vadd.f32 0.0, %v6918
        %6920 = vmatprep.mubr.bf16.mxu0 0
        %6921 = vmatmul.mubr.bf16.gmra.mxu0 %v6627
        %v6922 = vpop.f32.mrf.mxu0
        %v6923 = vadd.f32 0.0, %v6922
        %v6924 = vpop.f32.mrf.mxu0
        %v6925 = vadd.f32 0.0, %v6924
        %v6926 = vpop.f32.mrf.mxu0
        %v6927 = vadd.f32 0.0, %v6926
        %v6928 = vpop.f32.mrf.mxu0
        %v6929 = vadd.f32 0.0, %v6928
        %6930 = vmatprep.mubr.bf16.mxu0 0
        %6931 = vmatmul.mubr.bf16.gmra.mxu0 %v6630
        %v6932 = vpop.f32.mrf.mxu0
        %v6933 = vadd.f32 0.0, %v6932
        %v6934 = vpop.f32.mrf.mxu0
        %v6935 = vadd.f32 0.0, %v6934
        %v6936 = vpop.f32.mrf.mxu0
        %v6937 = vadd.f32 0.0, %v6936
        %v6938 = vpop.f32.mrf.mxu0
        %v6939 = vadd.f32 0.0, %v6938
        %6940 = vmatprep.mubr.bf16.mxu0 0
        %6941 = vmatmul.mubr.bf16.gmra.mxu0 %v6633
        %v6942 = vpop.f32.mrf.mxu0
        %v6943 = vadd.f32 0.0, %v6942
        %v6944 = vpop.f32.mrf.mxu0
        %v6945 = vadd.f32 0.0, %v6944
        %v6946 = vpop.f32.mrf.mxu0
        %v6947 = vadd.f32 0.0, %v6946
        %v6948 = vpop.f32.mrf.mxu0
        %v6949 = vadd.f32 0.0, %v6948
        %6950 = vmatprep.mubr.bf16.mxu0 0
        %6951 = vmatmul.mubr.bf16.gmra.mxu0 %v6636
        %v6952 = vpop.f32.mrf.mxu0
        %v6953 = vadd.f32 0.0, %v6952
        %v6954 = vpop.f32.mrf.mxu0
        %v6955 = vadd.f32 0.0, %v6954
        %v6956 = vpop.f32.mrf.mxu0
        %v6957 = vadd.f32 0.0, %v6956
        %v6958 = vpop.f32.mrf.mxu0
        %v6959 = vadd.f32 0.0, %v6958
        %6960 = vmatprep.mubr.bf16.mxu0 0
        %6961 = vmatmul.mubr.bf16.gmra.mxu0 %v6639
        %v6962 = vpop.f32.mrf.mxu0
        %v6963 = vadd.f32 0.0, %v6962
        %v6964 = vpop.f32.mrf.mxu0
        %v6965 = vadd.f32 0.0, %v6964
        %v6966 = vpop.f32.mrf.mxu0
        %v6967 = vadd.f32 0.0, %v6966
        %v6968 = vpop.f32.mrf.mxu0
        %v6969 = vadd.f32 0.0, %v6968
        %6970 = vdwg.mxu0
        %6971 = vmatprep.subr.bf16.mxu0 0
        %6972 = vmatpush1.bf16.msra.mxu0 0
        %6973 = vmatprep.subr.bf16.mxu0 0
        %6974 = vmatpush1.bf16.msra.mxu0 0
        %6975 = vmatprep.subr.bf16.mxu0 0
        %6976 = vmatpush1.bf16.msra.mxu0 0
        %6977 = vmatprep.subr.bf16.mxu0 0
        %6978 = vmatpush1.bf16.msra.mxu0 0
        %6979 = vmatprep.subr.bf16.mxu0 0
        %6980 = vmatpush1.bf16.msra.mxu0 0
        %6981 = vmatprep.subr.bf16.mxu0 0
        %6982 = vmatpush1.bf16.msra.mxu0 0
        %6983 = vmatprep.subr.bf16.mxu0 0
        %6984 = vmatpush1.bf16.msra.mxu0 0
        %6985 = vmatprep.subr.bf16.mxu0 %v6663
        %6986 = vmatpush1.bf16.msra.mxu0 %v6660
        %6987 = vmatprep.subr.bf16.mxu0 0
        %6988 = vmatpush2.bf16.msra.mxu0 0
        %6989 = vmatprep.subr.bf16.mxu0 0
        %6990 = vmatpush2.bf16.msra.mxu0 0
        %6991 = vmatprep.subr.bf16.mxu0 0
        %6992 = vmatpush2.bf16.msra.mxu0 0
        %6993 = vmatprep.subr.bf16.mxu0 0
        %6994 = vmatpush2.bf16.msra.mxu0 0
        %6995 = vmatprep.subr.bf16.mxu0 0
        %6996 = vmatpush2.bf16.msra.mxu0 0
        %6997 = vmatprep.subr.bf16.mxu0 0
        %6998 = vmatpush2.bf16.msra.mxu0 0
        %6999 = vmatprep.subr.bf16.mxu0 0
        %7000 = vmatpush2.bf16.msra.mxu0 0
        %7001 = vmatprep.subr.bf16.mxu0 0
        %7002 = vmatpush2.bf16.msra.mxu0 0
        %7003 = vmatprep.mubr.bf16.mxu0 0
        %7004 = vmatmul.mubr.bf16.gmra.mxu0 %v6624
        %v7005 = vpop.f32.mrf.mxu0
        %v7006 = vadd.f32 0.0, %v7005
        %v7007 = vpop.f32.mrf.mxu0
        %v7008 = vadd.f32 0.0, %v7007
        %v7009 = vpop.f32.mrf.mxu0
        %v7010 = vadd.f32 0.0, %v7009
        %v7011 = vpop.f32.mrf.mxu0
        %v7012 = vadd.f32 0.0, %v7011
        %7013 = vmatprep.mubr.bf16.mxu0 0
        %7014 = vmatmul.mubr.bf16.gmra.mxu0 %v6627
        %v7015 = vpop.f32.mrf.mxu0
        %v7016 = vadd.f32 0.0, %v7015
        %v7017 = vpop.f32.mrf.mxu0
        %v7018 = vadd.f32 0.0, %v7017
        %v7019 = vpop.f32.mrf.mxu0
        %v7020 = vadd.f32 0.0, %v7019
        %v7021 = vpop.f32.mrf.mxu0
        %v7022 = vadd.f32 0.0, %v7021
        %7023 = vmatprep.mubr.bf16.mxu0 0
        %7024 = vmatmul.mubr.bf16.gmra.mxu0 %v6630
        %v7025 = vpop.f32.mrf.mxu0
        %v7026 = vadd.f32 0.0, %v7025
        %v7027 = vpop.f32.mrf.mxu0
        %v7028 = vadd.f32 0.0, %v7027
        %v7029 = vpop.f32.mrf.mxu0
        %v7030 = vadd.f32 0.0, %v7029
        %v7031 = vpop.f32.mrf.mxu0
        %v7032 = vadd.f32 0.0, %v7031
        %7033 = vmatprep.mubr.bf16.mxu0 0
        %7034 = vmatmul.mubr.bf16.gmra.mxu0 %v6633
        %v7035 = vpop.f32.mrf.mxu0
        %v7036 = vadd.f32 0.0, %v7035
        %v7037 = vpop.f32.mrf.mxu0
        %v7038 = vadd.f32 0.0, %v7037
        %v7039 = vpop.f32.mrf.mxu0
        %v7040 = vadd.f32 0.0, %v7039
        %v7041 = vpop.f32.mrf.mxu0
        %v7042 = vadd.f32 0.0, %v7041
        %7043 = vmatprep.mubr.bf16.mxu0 0
        %7044 = vmatmul.mubr.bf16.gmra.mxu0 %v6636
        %v7045 = vpop.f32.mrf.mxu0
        %v7046 = vadd.f32 0.0, %v7045
        %v7047 = vpop.f32.mrf.mxu0
        %v7048 = vadd.f32 0.0, %v7047
        %v7049 = vpop.f32.mrf.mxu0
        %v7050 = vadd.f32 0.0, %v7049
        %v7051 = vpop.f32.mrf.mxu0
        %v7052 = vadd.f32 0.0, %v7051
        %7053 = vmatprep.mubr.bf16.mxu0 0
        %7054 = vmatmul.mubr.bf16.gmra.mxu0 %v6639
        %v7055 = vpop.f32.mrf.mxu0
        %v7056 = vadd.f32 0.0, %v7055
        %v7057 = vpop.f32.mrf.mxu0
        %v7058 = vadd.f32 0.0, %v7057
        %v7059 = vpop.f32.mrf.mxu0
        %v7060 = vadd.f32 0.0, %v7059
        %v7061 = vpop.f32.mrf.mxu0
        %v7062 = vadd.f32 0.0, %v7061
        %7063 = vdwg.mxu0
        %7064 = vmatprep.subr.bf16.mxu0 0
        %7065 = vmatpush1.bf16.msra.mxu0 0
        %7066 = vmatprep.subr.bf16.mxu0 0
        %7067 = vmatpush1.bf16.msra.mxu0 0
        %7068 = vmatprep.subr.bf16.mxu0 0
        %7069 = vmatpush1.bf16.msra.mxu0 0
        %7070 = vmatprep.subr.bf16.mxu0 0
        %7071 = vmatpush1.bf16.msra.mxu0 0
        %7072 = vmatprep.subr.bf16.mxu0 0
        %7073 = vmatpush1.bf16.msra.mxu0 0
        %7074 = vmatprep.subr.bf16.mxu0 0
        %7075 = vmatpush1.bf16.msra.mxu0 0
        %7076 = vmatprep.subr.bf16.mxu0 0
        %7077 = vmatpush1.bf16.msra.mxu0 0
        %7078 = vmatprep.subr.bf16.mxu0 %v6669
        %7079 = vmatpush1.bf16.msra.mxu0 %v6666
        %7080 = vmatprep.subr.bf16.mxu0 0
        %7081 = vmatpush2.bf16.msra.mxu0 0
        %7082 = vmatprep.subr.bf16.mxu0 0
        %7083 = vmatpush2.bf16.msra.mxu0 0
        %7084 = vmatprep.subr.bf16.mxu0 0
        %7085 = vmatpush2.bf16.msra.mxu0 0
        %7086 = vmatprep.subr.bf16.mxu0 0
        %7087 = vmatpush2.bf16.msra.mxu0 0
        %7088 = vmatprep.subr.bf16.mxu0 0
        %7089 = vmatpush2.bf16.msra.mxu0 0
        %7090 = vmatprep.subr.bf16.mxu0 0
        %7091 = vmatpush2.bf16.msra.mxu0 0
        %7092 = vmatprep.subr.bf16.mxu0 0
        %7093 = vmatpush2.bf16.msra.mxu0 0
        %7094 = vmatprep.subr.bf16.mxu0 0
        %7095 = vmatpush2.bf16.msra.mxu0 0
        %7096 = vmatprep.mubr.bf16.mxu0 0
        %7097 = vmatmul.mubr.bf16.gmra.mxu0 %v6624
        %v7098 = vpop.f32.mrf.mxu0
        %v7099 = vadd.f32 0.0, %v7098
        %v7100 = vpop.f32.mrf.mxu0
        %v7101 = vadd.f32 0.0, %v7100
        %v7102 = vpop.f32.mrf.mxu0
        %v7103 = vadd.f32 0.0, %v7102
        %v7104 = vpop.f32.mrf.mxu0
        %v7105 = vadd.f32 0.0, %v7104
        %7106 = vmatprep.mubr.bf16.mxu0 0
        %7107 = vmatmul.mubr.bf16.gmra.mxu0 %v6627
        %v7108 = vpop.f32.mrf.mxu0
        %v7109 = vadd.f32 0.0, %v7108
        %v7110 = vpop.f32.mrf.mxu0
        %v7111 = vadd.f32 0.0, %v7110
        %v7112 = vpop.f32.mrf.mxu0
        %v7113 = vadd.f32 0.0, %v7112
        %v7114 = vpop.f32.mrf.mxu0
        %v7115 = vadd.f32 0.0, %v7114
        %7116 = vmatprep.mubr.bf16.mxu0 0
        %7117 = vmatmul.mubr.bf16.gmra.mxu0 %v6630
        %v7118 = vpop.f32.mrf.mxu0
        %v7119 = vadd.f32 0.0, %v7118
        %v7120 = vpop.f32.mrf.mxu0
        %v7121 = vadd.f32 0.0, %v7120
        %v7122 = vpop.f32.mrf.mxu0
        %v7123 = vadd.f32 0.0, %v7122
        %v7124 = vpop.f32.mrf.mxu0
        %v7125 = vadd.f32 0.0, %v7124
        %7126 = vmatprep.mubr.bf16.mxu0 0
        %7127 = vmatmul.mubr.bf16.gmra.mxu0 %v6633
        %v7128 = vpop.f32.mrf.mxu0
        %v7129 = vadd.f32 0.0, %v7128
        %v7130 = vpop.f32.mrf.mxu0
        %v7131 = vadd.f32 0.0, %v7130
        %v7132 = vpop.f32.mrf.mxu0
        %v7133 = vadd.f32 0.0, %v7132
        %v7134 = vpop.f32.mrf.mxu0
        %v7135 = vadd.f32 0.0, %v7134
        %7136 = vmatprep.mubr.bf16.mxu0 0
        %7137 = vmatmul.mubr.bf16.gmra.mxu0 %v6636
        %v7138 = vpop.f32.mrf.mxu0
        %v7139 = vadd.f32 0.0, %v7138
        %v7140 = vpop.f32.mrf.mxu0
        %v7141 = vadd.f32 0.0, %v7140
        %v7142 = vpop.f32.mrf.mxu0
        %v7143 = vadd.f32 0.0, %v7142
        %v7144 = vpop.f32.mrf.mxu0
        %v7145 = vadd.f32 0.0, %v7144
        %7146 = vmatprep.mubr.bf16.mxu0 0
        %7147 = vmatmul.mubr.bf16.gmra.mxu0 %v6639
        %v7148 = vpop.f32.mrf.mxu0
        %v7149 = vadd.f32 0.0, %v7148
        %v7150 = vpop.f32.mrf.mxu0
        %v7151 = vadd.f32 0.0, %v7150
        %v7152 = vpop.f32.mrf.mxu0
        %v7153 = vadd.f32 0.0, %v7152
        %v7154 = vpop.f32.mrf.mxu0
        %v7155 = vadd.f32 0.0, %v7154
        %7156 = vdwg.mxu0
        %7157 = vmatprep.subr.bf16.mxu0 0
        %7158 = vmatpush1.bf16.msra.mxu0 0
        %7159 = vmatprep.subr.bf16.mxu0 0
        %7160 = vmatpush1.bf16.msra.mxu0 0
        %7161 = vmatprep.subr.bf16.mxu0 0
        %7162 = vmatpush1.bf16.msra.mxu0 0
        %7163 = vmatprep.subr.bf16.mxu0 0
        %7164 = vmatpush1.bf16.msra.mxu0 0
        %7165 = vmatprep.subr.bf16.mxu0 0
        %7166 = vmatpush1.bf16.msra.mxu0 0
        %7167 = vmatprep.subr.bf16.mxu0 0
        %7168 = vmatpush1.bf16.msra.mxu0 0
        %7169 = vmatprep.subr.bf16.mxu0 0
        %7170 = vmatpush1.bf16.msra.mxu0 0
        %7171 = vmatprep.subr.bf16.mxu0 %v6675
        %7172 = vmatpush1.bf16.msra.mxu0 %v6672
        %7173 = vmatprep.subr.bf16.mxu0 0
        %7174 = vmatpush2.bf16.msra.mxu0 0
        %7175 = vmatprep.subr.bf16.mxu0 0
        %7176 = vmatpush2.bf16.msra.mxu0 0
        %7177 = vmatprep.subr.bf16.mxu0 0
        %7178 = vmatpush2.bf16.msra.mxu0 0
        %7179 = vmatprep.subr.bf16.mxu0 0
        %7180 = vmatpush2.bf16.msra.mxu0 0
        %7181 = vmatprep.subr.bf16.mxu0 0
        %7182 = vmatpush2.bf16.msra.mxu0 0
        %7183 = vmatprep.subr.bf16.mxu0 0
        %7184 = vmatpush2.bf16.msra.mxu0 0
        %7185 = vmatprep.subr.bf16.mxu0 0
        %7186 = vmatpush2.bf16.msra.mxu0 0
        %7187 = vmatprep.subr.bf16.mxu0 0
        %7188 = vmatpush2.bf16.msra.mxu0 0
        %7189 = vmatprep.mubr.bf16.mxu0 0
        %7190 = vmatmul.mubr.bf16.gmra.mxu0 %v6624
        %v7191 = vpop.f32.mrf.mxu0
        %v7192 = vadd.f32 0.0, %v7191
        %v7193 = vpop.f32.mrf.mxu0
        %v7194 = vadd.f32 0.0, %v7193
        %v7195 = vpop.f32.mrf.mxu0
        %v7196 = vadd.f32 0.0, %v7195
        %v7197 = vpop.f32.mrf.mxu0
        %v7198 = vadd.f32 0.0, %v7197
        %7199 = vmatprep.mubr.bf16.mxu0 0
        %7200 = vmatmul.mubr.bf16.gmra.mxu0 %v6627
        %v7201 = vpop.f32.mrf.mxu0
        %v7202 = vadd.f32 0.0, %v7201
        %v7203 = vpop.f32.mrf.mxu0
        %v7204 = vadd.f32 0.0, %v7203
        %v7205 = vpop.f32.mrf.mxu0
        %v7206 = vadd.f32 0.0, %v7205
        %v7207 = vpop.f32.mrf.mxu0
        %v7208 = vadd.f32 0.0, %v7207
        %7209 = vmatprep.mubr.bf16.mxu0 0
        %7210 = vmatmul.mubr.bf16.gmra.mxu0 %v6630
        %v7211 = vpop.f32.mrf.mxu0
        %v7212 = vadd.f32 0.0, %v7211
        %v7213 = vpop.f32.mrf.mxu0
        %v7214 = vadd.f32 0.0, %v7213
        %v7215 = vpop.f32.mrf.mxu0
        %v7216 = vadd.f32 0.0, %v7215
        %v7217 = vpop.f32.mrf.mxu0
        %v7218 = vadd.f32 0.0, %v7217
        %7219 = vmatprep.mubr.bf16.mxu0 0
        %7220 = vmatmul.mubr.bf16.gmra.mxu0 %v6633
        %v7221 = vpop.f32.mrf.mxu0
        %v7222 = vadd.f32 0.0, %v7221
        %v7223 = vpop.f32.mrf.mxu0
        %v7224 = vadd.f32 0.0, %v7223
        %v7225 = vpop.f32.mrf.mxu0
        %v7226 = vadd.f32 0.0, %v7225
        %v7227 = vpop.f32.mrf.mxu0
        %v7228 = vadd.f32 0.0, %v7227
        %7229 = vmatprep.mubr.bf16.mxu0 0
        %7230 = vmatmul.mubr.bf16.gmra.mxu0 %v6636
        %v7231 = vpop.f32.mrf.mxu0
        %v7232 = vadd.f32 0.0, %v7231
        %v7233 = vpop.f32.mrf.mxu0
        %v7234 = vadd.f32 0.0, %v7233
        %v7235 = vpop.f32.mrf.mxu0
        %v7236 = vadd.f32 0.0, %v7235
        %v7237 = vpop.f32.mrf.mxu0
        %v7238 = vadd.f32 0.0, %v7237
        %7239 = vmatprep.mubr.bf16.mxu0 0
        %7240 = vmatmul.mubr.bf16.gmra.mxu0 %v6639
        %v7241 = vpop.f32.mrf.mxu0
        %v7242 = vadd.f32 0.0, %v7241
        %v7243 = vpop.f32.mrf.mxu0
        %v7244 = vadd.f32 0.0, %v7243
        %v7245 = vpop.f32.mrf.mxu0
        %v7246 = vadd.f32 0.0, %v7245
        %v7247 = vpop.f32.mrf.mxu0
        %v7248 = vadd.f32 0.0, %v7247
        %7249 = vdwg.mxu0
        %7250 = vmatprep.subr.bf16.mxu0 0
        %7251 = vmatpush1.bf16.msra.mxu0 0
        %7252 = vmatprep.subr.bf16.mxu0 0
        %7253 = vmatpush1.bf16.msra.mxu0 0
        %7254 = vmatprep.subr.bf16.mxu0 0
        %7255 = vmatpush1.bf16.msra.mxu0 0
        %7256 = vmatprep.subr.bf16.mxu0 0
        %7257 = vmatpush1.bf16.msra.mxu0 0
        %7258 = vmatprep.subr.bf16.mxu0 0
        %7259 = vmatpush1.bf16.msra.mxu0 0
        %7260 = vmatprep.subr.bf16.mxu0 0
        %7261 = vmatpush1.bf16.msra.mxu0 0
        %7262 = vmatprep.subr.bf16.mxu0 0
        %7263 = vmatpush1.bf16.msra.mxu0 0
        %7264 = vmatprep.subr.bf16.mxu0 %v6681
        %7265 = vmatpush1.bf16.msra.mxu0 %v6678
        %7266 = vmatprep.subr.bf16.mxu0 0
        %7267 = vmatpush2.bf16.msra.mxu0 0
        %7268 = vmatprep.subr.bf16.mxu0 0
        %7269 = vmatpush2.bf16.msra.mxu0 0
        %7270 = vmatprep.subr.bf16.mxu0 0
        %7271 = vmatpush2.bf16.msra.mxu0 0
        %7272 = vmatprep.subr.bf16.mxu0 0
        %7273 = vmatpush2.bf16.msra.mxu0 0
        %7274 = vmatprep.subr.bf16.mxu0 0
        %7275 = vmatpush2.bf16.msra.mxu0 0
        %7276 = vmatprep.subr.bf16.mxu0 0
        %7277 = vmatpush2.bf16.msra.mxu0 0
        %7278 = vmatprep.subr.bf16.mxu0 0
        %7279 = vmatpush2.bf16.msra.mxu0 0
        %7280 = vmatprep.subr.bf16.mxu0 0
        %7281 = vmatpush2.bf16.msra.mxu0 0
        %7282 = vmatprep.mubr.bf16.mxu0 0
        %7283 = vmatmul.mubr.bf16.gmra.mxu0 %v6624
        %v7284 = vpop.f32.mrf.mxu0
        %v7285 = vadd.f32 0.0, %v7284
        %v7286 = vpop.f32.mrf.mxu0
        %v7287 = vadd.f32 0.0, %v7286
        %v7288 = vpop.f32.mrf.mxu0
        %v7289 = vadd.f32 0.0, %v7288
        %v7290 = vpop.f32.mrf.mxu0
        %v7291 = vadd.f32 0.0, %v7290
        %7292 = vmatprep.mubr.bf16.mxu0 0
        %7293 = vmatmul.mubr.bf16.gmra.mxu0 %v6627
        %v7294 = vpop.f32.mrf.mxu0
        %v7295 = vadd.f32 0.0, %v7294
        %v7296 = vpop.f32.mrf.mxu0
        %v7297 = vadd.f32 0.0, %v7296
        %v7298 = vpop.f32.mrf.mxu0
        %v7299 = vadd.f32 0.0, %v7298
        %v7300 = vpop.f32.mrf.mxu0
        %v7301 = vadd.f32 0.0, %v7300
        %7302 = vmatprep.mubr.bf16.mxu0 0
        %7303 = vmatmul.mubr.bf16.gmra.mxu0 %v6630
        %v7304 = vpop.f32.mrf.mxu0
        %v7305 = vadd.f32 0.0, %v7304
        %v7306 = vpop.f32.mrf.mxu0
        %v7307 = vadd.f32 0.0, %v7306
        %v7308 = vpop.f32.mrf.mxu0
        %v7309 = vadd.f32 0.0, %v7308
        %v7310 = vpop.f32.mrf.mxu0
        %v7311 = vadd.f32 0.0, %v7310
        %7312 = vmatprep.mubr.bf16.mxu0 0
        %7313 = vmatmul.mubr.bf16.gmra.mxu0 %v6633
        %v7314 = vpop.f32.mrf.mxu0
        %v7315 = vadd.f32 0.0, %v7314
        %v7316 = vpop.f32.mrf.mxu0
        %v7317 = vadd.f32 0.0, %v7316
        %v7318 = vpop.f32.mrf.mxu0
        %v7319 = vadd.f32 0.0, %v7318
        %v7320 = vpop.f32.mrf.mxu0
        %v7321 = vadd.f32 0.0, %v7320
        %7322 = vmatprep.mubr.bf16.mxu0 0
        %7323 = vmatmul.mubr.bf16.gmra.mxu0 %v6636
        %v7324 = vpop.f32.mrf.mxu0
        %v7325 = vadd.f32 0.0, %v7324
        %v7326 = vpop.f32.mrf.mxu0
        %v7327 = vadd.f32 0.0, %v7326
        %v7328 = vpop.f32.mrf.mxu0
        %v7329 = vadd.f32 0.0, %v7328
        %v7330 = vpop.f32.mrf.mxu0
        %v7331 = vadd.f32 0.0, %v7330
        %7332 = vmatprep.mubr.bf16.mxu0 0
        %7333 = vmatmul.mubr.bf16.gmra.mxu0 %v6639
        %v7334 = vpop.f32.mrf.mxu0
        %v7335 = vadd.f32 0.0, %v7334
        %v7336 = vpop.f32.mrf.mxu0
        %v7337 = vadd.f32 0.0, %v7336
        %v7338 = vpop.f32.mrf.mxu0
        %v7339 = vadd.f32 0.0, %v7338
        %v7340 = vpop.f32.mrf.mxu0
        %v7341 = vadd.f32 0.0, %v7340
        %7342 = vdwg.mxu0
        %7343 = vmatprep.subr.bf16.mxu0 0
        %7344 = vmatpush1.bf16.msra.mxu0 0
        %7345 = vmatprep.subr.bf16.mxu0 0
        %7346 = vmatpush1.bf16.msra.mxu0 0
        %7347 = vmatprep.subr.bf16.mxu0 0
        %7348 = vmatpush1.bf16.msra.mxu0 0
        %7349 = vmatprep.subr.bf16.mxu0 0
        %7350 = vmatpush1.bf16.msra.mxu0 0
        %7351 = vmatprep.subr.bf16.mxu0 0
        %7352 = vmatpush1.bf16.msra.mxu0 0
        %7353 = vmatprep.subr.bf16.mxu0 0
        %7354 = vmatpush1.bf16.msra.mxu0 0
        %7355 = vmatprep.subr.bf16.mxu0 0
        %7356 = vmatpush1.bf16.msra.mxu0 0
        %7357 = vmatprep.subr.bf16.mxu0 %v6687
        %7358 = vmatpush1.bf16.msra.mxu0 %v6684
        %7359 = vmatprep.subr.bf16.mxu0 0
        %7360 = vmatpush2.bf16.msra.mxu0 0
        %7361 = vmatprep.subr.bf16.mxu0 0
        %7362 = vmatpush2.bf16.msra.mxu0 0
        %7363 = vmatprep.subr.bf16.mxu0 0
        %7364 = vmatpush2.bf16.msra.mxu0 0
        %7365 = vmatprep.subr.bf16.mxu0 0
        %7366 = vmatpush2.bf16.msra.mxu0 0
        %7367 = vmatprep.subr.bf16.mxu0 0
        %7368 = vmatpush2.bf16.msra.mxu0 0
        %7369 = vmatprep.subr.bf16.mxu0 0
        %7370 = vmatpush2.bf16.msra.mxu0 0
        %7371 = vmatprep.subr.bf16.mxu0 0
        %7372 = vmatpush2.bf16.msra.mxu0 0
        %7373 = vmatprep.subr.bf16.mxu0 0
        %7374 = vmatpush2.bf16.msra.mxu0 0
        %7375 = vmatprep.mubr.bf16.mxu0 0
        %7376 = vmatmul.mubr.bf16.gmra.mxu0 %v6624
        %v7377 = vpop.f32.mrf.mxu0
        %v7378 = vadd.f32 0.0, %v7377
        %v7379 = vpop.f32.mrf.mxu0
        %v7380 = vadd.f32 0.0, %v7379
        %v7381 = vpop.f32.mrf.mxu0
        %v7382 = vadd.f32 0.0, %v7381
        %v7383 = vpop.f32.mrf.mxu0
        %v7384 = vadd.f32 0.0, %v7383
        %7385 = vmatprep.mubr.bf16.mxu0 0
        %7386 = vmatmul.mubr.bf16.gmra.mxu0 %v6627
        %v7387 = vpop.f32.mrf.mxu0
        %v7388 = vadd.f32 0.0, %v7387
        %v7389 = vpop.f32.mrf.mxu0
        %v7390 = vadd.f32 0.0, %v7389
        %v7391 = vpop.f32.mrf.mxu0
        %v7392 = vadd.f32 0.0, %v7391
        %v7393 = vpop.f32.mrf.mxu0
        %v7394 = vadd.f32 0.0, %v7393
        %7395 = vmatprep.mubr.bf16.mxu0 0
        %7396 = vmatmul.mubr.bf16.gmra.mxu0 %v6630
        %v7397 = vpop.f32.mrf.mxu0
        %v7398 = vadd.f32 0.0, %v7397
        %v7399 = vpop.f32.mrf.mxu0
        %v7400 = vadd.f32 0.0, %v7399
        %v7401 = vpop.f32.mrf.mxu0
        %v7402 = vadd.f32 0.0, %v7401
        %v7403 = vpop.f32.mrf.mxu0
        %v7404 = vadd.f32 0.0, %v7403
        %7405 = vmatprep.mubr.bf16.mxu0 0
        %7406 = vmatmul.mubr.bf16.gmra.mxu0 %v6633
        %v7407 = vpop.f32.mrf.mxu0
        %v7408 = vadd.f32 0.0, %v7407
        %v7409 = vpop.f32.mrf.mxu0
        %v7410 = vadd.f32 0.0, %v7409
        %v7411 = vpop.f32.mrf.mxu0
        %v7412 = vadd.f32 0.0, %v7411
        %v7413 = vpop.f32.mrf.mxu0
        %v7414 = vadd.f32 0.0, %v7413
        %7415 = vmatprep.mubr.bf16.mxu0 0
        %7416 = vmatmul.mubr.bf16.gmra.mxu0 %v6636
        %v7417 = vpop.f32.mrf.mxu0
        %v7418 = vadd.f32 0.0, %v7417
        %v7419 = vpop.f32.mrf.mxu0
        %v7420 = vadd.f32 0.0, %v7419
        %v7421 = vpop.f32.mrf.mxu0
        %v7422 = vadd.f32 0.0, %v7421
        %v7423 = vpop.f32.mrf.mxu0
        %v7424 = vadd.f32 0.0, %v7423
        %7425 = vmatprep.mubr.bf16.mxu0 0
        %7426 = vmatmul.mubr.bf16.gmra.mxu0 %v6639
        %v7427 = vpop.f32.mrf.mxu0
        %v7428 = vadd.f32 0.0, %v7427
        %v7429 = vpop.f32.mrf.mxu0
        %v7430 = vadd.f32 0.0, %v7429
        %v7431 = vpop.f32.mrf.mxu0
        %v7432 = vadd.f32 0.0, %v7431
        %v7433 = vpop.f32.mrf.mxu0
        %v7434 = vadd.f32 0.0, %v7433
        %7435 = vdwg.mxu0
        %7436 = vmatprep.subr.bf16.mxu0 0
        %7437 = vmatpush1.bf16.msra.mxu0 0
        %7438 = vmatprep.subr.bf16.mxu0 0
        %7439 = vmatpush1.bf16.msra.mxu0 0
        %7440 = vmatprep.subr.bf16.mxu0 0
        %7441 = vmatpush1.bf16.msra.mxu0 0
        %7442 = vmatprep.subr.bf16.mxu0 0
        %7443 = vmatpush1.bf16.msra.mxu0 0
        %7444 = vmatprep.subr.bf16.mxu0 0
        %7445 = vmatpush1.bf16.msra.mxu0 0
        %7446 = vmatprep.subr.bf16.mxu0 0
        %7447 = vmatpush1.bf16.msra.mxu0 0
        %7448 = vmatprep.subr.bf16.mxu0 0
        %7449 = vmatpush1.bf16.msra.mxu0 0
        %7450 = vmatprep.subr.bf16.mxu0 0
        %7451 = vmatpush1.bf16.msra.mxu0 %v6690
        %7452 = vmatprep.subr.bf16.mxu0 0
        %7453 = vmatpush2.bf16.msra.mxu0 0
        %7454 = vmatprep.subr.bf16.mxu0 0
        %7455 = vmatpush2.bf16.msra.mxu0 0
        %7456 = vmatprep.subr.bf16.mxu0 0
        %7457 = vmatpush2.bf16.msra.mxu0 0
        %7458 = vmatprep.subr.bf16.mxu0 0
        %7459 = vmatpush2.bf16.msra.mxu0 0
        %7460 = vmatprep.subr.bf16.mxu0 0
        %7461 = vmatpush2.bf16.msra.mxu0 0
        %7462 = vmatprep.subr.bf16.mxu0 0
        %7463 = vmatpush2.bf16.msra.mxu0 0
        %7464 = vmatprep.subr.bf16.mxu0 0
        %7465 = vmatpush2.bf16.msra.mxu0 0
        %7466 = vmatprep.subr.bf16.mxu0 0
        %7467 = vmatpush2.bf16.msra.mxu0 0
        %7468 = vmatprep.mubr.bf16.mxu0 0
        %7469 = vmatmul.mubr.bf16.gmra.mxu0 %v6624
        %v7470 = vpop.f32.mrf.mxu0
        %v7471 = vpop.f32.mrf.mxu0
        %v7472 = vpop.f32.mrf.mxu0
        %v7473 = vpop.f32.mrf.mxu0
        %7474 = vmatprep.mubr.bf16.mxu0 0
        %7475 = vmatmul.mubr.bf16.gmra.mxu0 %v6627
        %v7476 = vpop.f32.mrf.mxu0
        %v7477 = vpop.f32.mrf.mxu0
        %v7478 = vpop.f32.mrf.mxu0
        %v7479 = vpop.f32.mrf.mxu0
        %7480 = vmatprep.mubr.bf16.mxu0 0
        %7481 = vmatmul.mubr.bf16.gmra.mxu0 %v6630
        %v7482 = vpop.f32.mrf.mxu0
        %v7483 = vadd.f32 0.0, %v7482
        %v7484 = vpop.f32.mrf.mxu0
        %v7485 = vpop.f32.mrf.mxu0
        %v7486 = vadd.f32 0.0, %v7485
        %v7487 = vpop.f32.mrf.mxu0
        %7488 = vmatprep.mubr.bf16.mxu0 0
        %7489 = vmatmul.mubr.bf16.gmra.mxu0 %v6633
        %v7490 = vpop.f32.mrf.mxu0
        %v7491 = vadd.f32 0.0, %v7490
        %v7492 = vpop.f32.mrf.mxu0
        %v7493 = vpop.f32.mrf.mxu0
        %v7494 = vadd.f32 0.0, %v7493
        %v7495 = vpop.f32.mrf.mxu0
        %7496 = vmatprep.mubr.bf16.mxu0 0
        %7497 = vmatmul.mubr.bf16.gmra.mxu0 %v6636
        %v7498 = vpop.f32.mrf.mxu0
        %v7499 = vadd.f32 0.0, %v7498
        %v7500 = vpop.f32.mrf.mxu0
        %v7501 = vpop.f32.mrf.mxu0
        %v7502 = vadd.f32 0.0, %v7501
        %v7503 = vpop.f32.mrf.mxu0
        %7504 = vmatprep.mubr.bf16.mxu0 0
        %7505 = vmatmul.mubr.bf16.gmra.mxu0 %v6639
        %v7506 = vpop.f32.mrf.mxu0
        %v7507 = vadd.f32 0.0, %v7506
        %v7508 = vpop.f32.mrf.mxu0
        %v7509 = vpop.f32.mrf.mxu0
        %v7510 = vadd.f32 0.0, %v7509
        %v7511 = vpop.f32.mrf.mxu0
        %7512 = vdwg.mxu0
        %v7513 = vadd.f32 %v6431, %v6727
        %v7514 = vadd.f32 %v6432, %v6729
        %v7515 = vadd.f32 %v6433, %v6820
        %v7516 = vadd.f32 %v6434, %v6822
        %v7517 = vadd.f32 %v6435, %v6913
        %v7518 = vadd.f32 %v6436, %v6915
        %v7519 = vadd.f32 %v6437, %v7006
        %v7520 = vadd.f32 %v6438, %v7008
        %v7521 = vadd.f32 %v6439, %v7099
        %v7522 = vadd.f32 %v6440, %v7101
        %v7523 = vadd.f32 %v6441, %v7192
        %v7524 = vadd.f32 %v6442, %v7194
        %v7525 = vadd.f32 %v6443, %v7285
        %v7526 = vadd.f32 %v6444, %v7287
        %v7527 = vadd.f32 %v6445, %v7378
        %v7528 = vadd.f32 %v6446, %v7380
        %v7529 = vadd.f32 %v6447, %v6731
        %v7530 = vadd.f32 %v6448, %v6733
        %v7531 = vadd.f32 %v6449, %v6824
        %v7532 = vadd.f32 %v6450, %v6826
        %v7533 = vadd.f32 %v6451, %v6917
        %v7534 = vadd.f32 %v6452, %v6919
        %v7535 = vadd.f32 %v6453, %v7010
        %v7536 = vadd.f32 %v6454, %v7012
        %v7537 = vadd.f32 %v6455, %v7103
        %v7538 = vadd.f32 %v6456, %v7105
        %v7539 = vadd.f32 %v6457, %v7196
        %v7540 = vadd.f32 %v6458, %v7198
        %v7541 = vadd.f32 %v6459, %v7289
        %v7542 = vadd.f32 %v6460, %v7291
        %v7543 = vadd.f32 %v6461, %v7382
        %v7544 = vadd.f32 %v6462, %v7384
        %v7545 = vadd.f32 %v6463, %v6737
        %v7546 = vadd.f32 %v6464, %v6739
        %v7547 = vadd.f32 %v6465, %v6830
        %v7548 = vadd.f32 %v6466, %v6832
        %v7549 = vadd.f32 %v6467, %v6923
        %v7550 = vadd.f32 %v6468, %v6925
        %v7551 = vadd.f32 %v6469, %v7016
        %v7552 = vadd.f32 %v6470, %v7018
        %v7553 = vadd.f32 %v6471, %v7109
        %v7554 = vadd.f32 %v6472, %v7111
        %v7555 = vadd.f32 %v6473, %v7202
        %v7556 = vadd.f32 %v6474, %v7204
        %v7557 = vadd.f32 %v6475, %v7295
        %v7558 = vadd.f32 %v6476, %v7297
        %v7559 = vadd.f32 %v6477, %v7388
        %v7560 = vadd.f32 %v6478, %v7390
        %v7561 = vadd.f32 %v6479, %v6741
        %v7562 = vadd.f32 %v6480, %v6743
        %v7563 = vadd.f32 %v6481, %v6834
        %v7564 = vadd.f32 %v6482, %v6836
        %v7565 = vadd.f32 %v6483, %v6927
        %v7566 = vadd.f32 %v6484, %v6929
        %v7567 = vadd.f32 %v6485, %v7020
        %v7568 = vadd.f32 %v6486, %v7022
        %v7569 = vadd.f32 %v6487, %v7113
        %v7570 = vadd.f32 %v6488, %v7115
        %v7571 = vadd.f32 %v6489, %v7206
        %v7572 = vadd.f32 %v6490, %v7208
        %v7573 = vadd.f32 %v6491, %v7299
        %v7574 = vadd.f32 %v6492, %v7301
        %v7575 = vadd.f32 %v6493, %v7392
        %v7576 = vadd.f32 %v6494, %v7394
        %7645 = vrot.lane.b32.xlu0 %v6747, 127
        %v7646 = vpop.permute.xlu0 %7645
        %7647 = vrot.lane.b32.xlu0 %v6749, 127
        %v7648 = vpop.permute.xlu0 %7647
        %7649 = vrot.lane.b32.xlu0 %v6840, 127
        %v7650 = vpop.permute.xlu0 %7649
        %7651 = vrot.lane.b32.xlu0 %v6842, 127
        %v7652 = vpop.permute.xlu0 %7651
        %7653 = vrot.lane.b32.xlu0 %v6933, 127
        %v7654 = vpop.permute.xlu0 %7653
        %7655 = vrot.lane.b32.xlu0 %v6935, 127
        %v7656 = vpop.permute.xlu0 %7655
        %7657 = vrot.lane.b32.xlu0 %v7026, 127
        %v7658 = vpop.permute.xlu0 %7657
        %7659 = vrot.lane.b32.xlu0 %v7028, 127
        %v7660 = vpop.permute.xlu0 %7659
        %7661 = vrot.lane.b32.xlu0 %v7119, 127
        %v7662 = vpop.permute.xlu0 %7661
        %7663 = vrot.lane.b32.xlu0 %v7121, 127
        %v7664 = vpop.permute.xlu0 %7663
        %7665 = vrot.lane.b32.xlu0 %v7212, 127
        %v7666 = vpop.permute.xlu0 %7665
        %7667 = vrot.lane.b32.xlu0 %v7214, 127
        %v7668 = vpop.permute.xlu0 %7667
        %7669 = vrot.lane.b32.xlu0 %v7305, 127
        %v7670 = vpop.permute.xlu0 %7669
        %7671 = vrot.lane.b32.xlu0 %v7307, 127
        %v7672 = vpop.permute.xlu0 %7671
        %7673 = vrot.lane.b32.xlu0 %v7398, 127
        %v7674 = vpop.permute.xlu0 %7673
        %7675 = vrot.lane.b32.xlu0 %v7400, 127
        %v7676 = vpop.permute.xlu0 %7675
        %7677 = vrot.lane.b32.xlu0 %v7483, 127
        %v7678 = vpop.permute.xlu0 %7677
        %7679 = vrot.lane.b32.xlu0 %v6751, 127
        %v7680 = vpop.permute.xlu0 %7679
        %7681 = vrot.lane.b32.xlu0 %v6753, 127
        %v7682 = vpop.permute.xlu0 %7681
        %7683 = vrot.lane.b32.xlu0 %v6844, 127
        %v7684 = vpop.permute.xlu0 %7683
        %7685 = vrot.lane.b32.xlu0 %v6846, 127
        %v7686 = vpop.permute.xlu0 %7685
        %7687 = vrot.lane.b32.xlu0 %v6937, 127
        %v7688 = vpop.permute.xlu0 %7687
        %7689 = vrot.lane.b32.xlu0 %v6939, 127
        %v7690 = vpop.permute.xlu0 %7689
        %7691 = vrot.lane.b32.xlu0 %v7030, 127
        %v7692 = vpop.permute.xlu0 %7691
        %7693 = vrot.lane.b32.xlu0 %v7032, 127
        %v7694 = vpop.permute.xlu0 %7693
        %7695 = vrot.lane.b32.xlu0 %v7123, 127
        %v7696 = vpop.permute.xlu0 %7695
        %7697 = vrot.lane.b32.xlu0 %v7125, 127
        %v7698 = vpop.permute.xlu0 %7697
        %7699 = vrot.lane.b32.xlu0 %v7216, 127
        %v7700 = vpop.permute.xlu0 %7699
        %7701 = vrot.lane.b32.xlu0 %v7218, 127
        %v7702 = vpop.permute.xlu0 %7701
        %7703 = vrot.lane.b32.xlu0 %v7309, 127
        %v7704 = vpop.permute.xlu0 %7703
        %7705 = vrot.lane.b32.xlu0 %v7311, 127
        %v7706 = vpop.permute.xlu0 %7705
        %7707 = vrot.lane.b32.xlu0 %v7402, 127
        %v7708 = vpop.permute.xlu0 %7707
        %7709 = vrot.lane.b32.xlu0 %v7404, 127
        %v7710 = vpop.permute.xlu0 %7709
        %7711 = vrot.lane.b32.xlu0 %v7486, 127
        %v7712 = vpop.permute.xlu0 %7711
        %7713 = vrot.lane.b32.xlu0 %v6757, 127
        %v7714 = vpop.permute.xlu0 %7713
        %7715 = vrot.lane.b32.xlu0 %v6759, 127
        %v7716 = vpop.permute.xlu0 %7715
        %7717 = vrot.lane.b32.xlu0 %v6850, 127
        %v7718 = vpop.permute.xlu0 %7717
        %7719 = vrot.lane.b32.xlu0 %v6852, 127
        %v7720 = vpop.permute.xlu0 %7719
        %7721 = vrot.lane.b32.xlu0 %v6943, 127
        %v7722 = vpop.permute.xlu0 %7721
        %7723 = vrot.lane.b32.xlu0 %v6945, 127
        %v7724 = vpop.permute.xlu0 %7723
        %7725 = vrot.lane.b32.xlu0 %v7036, 127
        %v7726 = vpop.permute.xlu0 %7725
        %7727 = vrot.lane.b32.xlu0 %v7038, 127
        %v7728 = vpop.permute.xlu0 %7727
        %7729 = vrot.lane.b32.xlu0 %v7129, 127
        %v7730 = vpop.permute.xlu0 %7729
        %7731 = vrot.lane.b32.xlu0 %v7131, 127
        %v7732 = vpop.permute.xlu0 %7731
        %7733 = vrot.lane.b32.xlu0 %v7222, 127
        %v7734 = vpop.permute.xlu0 %7733
        %7735 = vrot.lane.b32.xlu0 %v7224, 127
        %v7736 = vpop.permute.xlu0 %7735
        %7737 = vrot.lane.b32.xlu0 %v7315, 127
        %v7738 = vpop.permute.xlu0 %7737
        %7739 = vrot.lane.b32.xlu0 %v7317, 127
        %v7740 = vpop.permute.xlu0 %7739
        %7741 = vrot.lane.b32.xlu0 %v7408, 127
        %v7742 = vpop.permute.xlu0 %7741
        %7743 = vrot.lane.b32.xlu0 %v7410, 127
        %v7744 = vpop.permute.xlu0 %7743
        %7745 = vrot.lane.b32.xlu0 %v7491, 127
        %v7746 = vpop.permute.xlu0 %7745
        %7747 = vrot.lane.b32.xlu0 %v6761, 127
        %v7748 = vpop.permute.xlu0 %7747
        %7749 = vrot.lane.b32.xlu0 %v6763, 127
        %v7750 = vpop.permute.xlu0 %7749
        %7751 = vrot.lane.b32.xlu0 %v6854, 127
        %v7752 = vpop.permute.xlu0 %7751
        %7753 = vrot.lane.b32.xlu0 %v6856, 127
        %v7754 = vpop.permute.xlu0 %7753
        %7755 = vrot.lane.b32.xlu0 %v6947, 127
        %v7756 = vpop.permute.xlu0 %7755
        %7757 = vrot.lane.b32.xlu0 %v6949, 127
        %v7758 = vpop.permute.xlu0 %7757
        %7759 = vrot.lane.b32.xlu0 %v7040, 127
        %v7760 = vpop.permute.xlu0 %7759
        %7761 = vrot.lane.b32.xlu0 %v7042, 127
        %v7762 = vpop.permute.xlu0 %7761
        %7763 = vrot.lane.b32.xlu0 %v7133, 127
        %v7764 = vpop.permute.xlu0 %7763
        %7765 = vrot.lane.b32.xlu0 %v7135, 127
        %v7766 = vpop.permute.xlu0 %7765
        %7767 = vrot.lane.b32.xlu0 %v7226, 127
        %v7768 = vpop.permute.xlu0 %7767
        %7769 = vrot.lane.b32.xlu0 %v7228, 127
        %v7770 = vpop.permute.xlu0 %7769
        %7771 = vrot.lane.b32.xlu0 %v7319, 127
        %v7772 = vpop.permute.xlu0 %7771
        %7773 = vrot.lane.b32.xlu0 %v7321, 127
        %v7774 = vpop.permute.xlu0 %7773
        %7775 = vrot.lane.b32.xlu0 %v7412, 127
        %v7776 = vpop.permute.xlu0 %7775
        %7777 = vrot.lane.b32.xlu0 %v7414, 127
        %v7778 = vpop.permute.xlu0 %7777
        %7779 = vrot.lane.b32.xlu0 %v7494, 127
        %v7780 = vpop.permute.xlu0 %7779
        %v7781 = vsel %vm739, %v7646, %v7648
        %v7782 = vsel %vm739, %v7648, %v7650
        %v7783 = vsel %vm739, %v7650, %v7652
        %v7784 = vsel %vm739, %v7652, %v7654
        %v7785 = vsel %vm739, %v7654, %v7656
        %v7786 = vsel %vm739, %v7656, %v7658
        %v7787 = vsel %vm739, %v7658, %v7660
        %v7788 = vsel %vm739, %v7660, %v7662
        %v7789 = vsel %vm739, %v7662, %v7664
        %v7790 = vsel %vm739, %v7664, %v7666
        %v7791 = vsel %vm739, %v7666, %v7668
        %v7792 = vsel %vm739, %v7668, %v7670
        %v7793 = vsel %vm739, %v7670, %v7672
        %v7794 = vsel %vm739, %v7672, %v7674
        %v7795 = vsel %vm739, %v7674, %v7676
        %v7796 = vsel %vm739, %v7676, %v7678
        %v7797 = vsel %vm739, %v7680, %v7682
        %v7798 = vsel %vm739, %v7682, %v7684
        %v7799 = vsel %vm739, %v7684, %v7686
        %v7800 = vsel %vm739, %v7686, %v7688
        %v7801 = vsel %vm739, %v7688, %v7690
        %v7802 = vsel %vm739, %v7690, %v7692
        %v7803 = vsel %vm739, %v7692, %v7694
        %v7804 = vsel %vm739, %v7694, %v7696
        %v7805 = vsel %vm739, %v7696, %v7698
        %v7806 = vsel %vm739, %v7698, %v7700
        %v7807 = vsel %vm739, %v7700, %v7702
        %v7808 = vsel %vm739, %v7702, %v7704
        %v7809 = vsel %vm739, %v7704, %v7706
        %v7810 = vsel %vm739, %v7706, %v7708
        %v7811 = vsel %vm739, %v7708, %v7710
        %v7812 = vsel %vm739, %v7710, %v7712
        %v7813 = vsel %vm739, %v7714, %v7716
        %v7814 = vsel %vm739, %v7716, %v7718
        %v7815 = vsel %vm739, %v7718, %v7720
        %v7816 = vsel %vm739, %v7720, %v7722
        %v7817 = vsel %vm739, %v7722, %v7724
        %v7818 = vsel %vm739, %v7724, %v7726
        %v7819 = vsel %vm739, %v7726, %v7728
        %v7820 = vsel %vm739, %v7728, %v7730
        %v7821 = vsel %vm739, %v7730, %v7732
        %v7822 = vsel %vm739, %v7732, %v7734
        %v7823 = vsel %vm739, %v7734, %v7736
        %v7824 = vsel %vm739, %v7736, %v7738
        %v7825 = vsel %vm739, %v7738, %v7740
        %v7826 = vsel %vm739, %v7740, %v7742
        %v7827 = vsel %vm739, %v7742, %v7744
        %v7828 = vsel %vm739, %v7744, %v7746
        %v7829 = vsel %vm739, %v7748, %v7750
        %v7830 = vsel %vm739, %v7750, %v7752
        %v7831 = vsel %vm739, %v7752, %v7754
        %v7832 = vsel %vm739, %v7754, %v7756
        %v7833 = vsel %vm739, %v7756, %v7758
        %v7834 = vsel %vm739, %v7758, %v7760
        %v7835 = vsel %vm739, %v7760, %v7762
        %v7836 = vsel %vm739, %v7762, %v7764
        %v7837 = vsel %vm739, %v7764, %v7766
        %v7838 = vsel %vm739, %v7766, %v7768
        %v7839 = vsel %vm739, %v7768, %v7770
        %v7840 = vsel %vm739, %v7770, %v7772
        %v7841 = vsel %vm739, %v7772, %v7774
        %v7842 = vsel %vm739, %v7774, %v7776
        %v7843 = vsel %vm739, %v7776, %v7778
        %v7844 = vsel %vm739, %v7778, %v7780
        %v7909 = vadd.f32 %v7513, %v7781
        %v7910 = vadd.f32 %v7514, %v7782
        %v7911 = vadd.f32 %v7515, %v7783
        %v7912 = vadd.f32 %v7516, %v7784
        %v7913 = vadd.f32 %v7517, %v7785
        %v7914 = vadd.f32 %v7518, %v7786
        %v7915 = vadd.f32 %v7519, %v7787
        %v7916 = vadd.f32 %v7520, %v7788
        %v7917 = vadd.f32 %v7521, %v7789
        %v7918 = vadd.f32 %v7522, %v7790
        %v7919 = vadd.f32 %v7523, %v7791
        %v7920 = vadd.f32 %v7524, %v7792
        %v7921 = vadd.f32 %v7525, %v7793
        %v7922 = vadd.f32 %v7526, %v7794
        %v7923 = vadd.f32 %v7527, %v7795
        %v7924 = vadd.f32 %v7528, %v7796
        %v7925 = vadd.f32 %v7529, %v7797
        %v7926 = vadd.f32 %v7530, %v7798
        %v7927 = vadd.f32 %v7531, %v7799
        %v7928 = vadd.f32 %v7532, %v7800
        %v7929 = vadd.f32 %v7533, %v7801
        %v7930 = vadd.f32 %v7534, %v7802
        %v7931 = vadd.f32 %v7535, %v7803
        %v7932 = vadd.f32 %v7536, %v7804
        %v7933 = vadd.f32 %v7537, %v7805
        %v7934 = vadd.f32 %v7538, %v7806
        %v7935 = vadd.f32 %v7539, %v7807
        %v7936 = vadd.f32 %v7540, %v7808
        %v7937 = vadd.f32 %v7541, %v7809
        %v7938 = vadd.f32 %v7542, %v7810
        %v7939 = vadd.f32 %v7543, %v7811
        %v7940 = vadd.f32 %v7544, %v7812
        %v7941 = vadd.f32 %v7545, %v7813
        %v7942 = vadd.f32 %v7546, %v7814
        %v7943 = vadd.f32 %v7547, %v7815
        %v7944 = vadd.f32 %v7548, %v7816
        %v7945 = vadd.f32 %v7549, %v7817
        %v7946 = vadd.f32 %v7550, %v7818
        %v7947 = vadd.f32 %v7551, %v7819
        %v7948 = vadd.f32 %v7552, %v7820
        %v7949 = vadd.f32 %v7553, %v7821
        %v7950 = vadd.f32 %v7554, %v7822
        %v7951 = vadd.f32 %v7555, %v7823
        %v7952 = vadd.f32 %v7556, %v7824
        %v7953 = vadd.f32 %v7557, %v7825
        %v7954 = vadd.f32 %v7558, %v7826
        %v7955 = vadd.f32 %v7559, %v7827
        %v7956 = vadd.f32 %v7560, %v7828
        %v7957 = vadd.f32 %v7561, %v7829
        %v7958 = vadd.f32 %v7562, %v7830
        %v7959 = vadd.f32 %v7563, %v7831
        %v7960 = vadd.f32 %v7564, %v7832
        %v7961 = vadd.f32 %v7565, %v7833
        %v7962 = vadd.f32 %v7566, %v7834
        %v7963 = vadd.f32 %v7567, %v7835
        %v7964 = vadd.f32 %v7568, %v7836
        %v7965 = vadd.f32 %v7569, %v7837
        %v7966 = vadd.f32 %v7570, %v7838
        %v7967 = vadd.f32 %v7571, %v7839
        %v7968 = vadd.f32 %v7572, %v7840
        %v7969 = vadd.f32 %v7573, %v7841
        %v7970 = vadd.f32 %v7574, %v7842
        %v7971 = vadd.f32 %v7575, %v7843
        %v7972 = vadd.f32 %v7576, %v7844
        %8041 = vrot.lane.b32.xlu0 %v6767, 126
        %v8042 = vpop.permute.xlu0 %8041
        %8043 = vrot.lane.b32.xlu0 %v6769, 126
        %v8044 = vpop.permute.xlu0 %8043
        %8045 = vrot.lane.b32.xlu0 %v6860, 126
        %v8046 = vpop.permute.xlu0 %8045
        %8047 = vrot.lane.b32.xlu0 %v6862, 126
        %v8048 = vpop.permute.xlu0 %8047
        %8049 = vrot.lane.b32.xlu0 %v6953, 126
        %v8050 = vpop.permute.xlu0 %8049
        %8051 = vrot.lane.b32.xlu0 %v6955, 126
        %v8052 = vpop.permute.xlu0 %8051
        %8053 = vrot.lane.b32.xlu0 %v7046, 126
        %v8054 = vpop.permute.xlu0 %8053
        %8055 = vrot.lane.b32.xlu0 %v7048, 126
        %v8056 = vpop.permute.xlu0 %8055
        %8057 = vrot.lane.b32.xlu0 %v7139, 126
        %v8058 = vpop.permute.xlu0 %8057
        %8059 = vrot.lane.b32.xlu0 %v7141, 126
        %v8060 = vpop.permute.xlu0 %8059
        %8061 = vrot.lane.b32.xlu0 %v7232, 126
        %v8062 = vpop.permute.xlu0 %8061
        %8063 = vrot.lane.b32.xlu0 %v7234, 126
        %v8064 = vpop.permute.xlu0 %8063
        %8065 = vrot.lane.b32.xlu0 %v7325, 126
        %v8066 = vpop.permute.xlu0 %8065
        %8067 = vrot.lane.b32.xlu0 %v7327, 126
        %v8068 = vpop.permute.xlu0 %8067
        %8069 = vrot.lane.b32.xlu0 %v7418, 126
        %v8070 = vpop.permute.xlu0 %8069
        %8071 = vrot.lane.b32.xlu0 %v7420, 126
        %v8072 = vpop.permute.xlu0 %8071
        %8073 = vrot.lane.b32.xlu0 %v7499, 126
        %v8074 = vpop.permute.xlu0 %8073
        %8075 = vrot.lane.b32.xlu0 %v6771, 126
        %v8076 = vpop.permute.xlu0 %8075
        %8077 = vrot.lane.b32.xlu0 %v6773, 126
        %v8078 = vpop.permute.xlu0 %8077
        %8079 = vrot.lane.b32.xlu0 %v6864, 126
        %v8080 = vpop.permute.xlu0 %8079
        %8081 = vrot.lane.b32.xlu0 %v6866, 126
        %v8082 = vpop.permute.xlu0 %8081
        %8083 = vrot.lane.b32.xlu0 %v6957, 126
        %v8084 = vpop.permute.xlu0 %8083
        %8085 = vrot.lane.b32.xlu0 %v6959, 126
        %v8086 = vpop.permute.xlu0 %8085
        %8087 = vrot.lane.b32.xlu0 %v7050, 126
        %v8088 = vpop.permute.xlu0 %8087
        %8089 = vrot.lane.b32.xlu0 %v7052, 126
        %v8090 = vpop.permute.xlu0 %8089
        %8091 = vrot.lane.b32.xlu0 %v7143, 126
        %v8092 = vpop.permute.xlu0 %8091
        %8093 = vrot.lane.b32.xlu0 %v7145, 126
        %v8094 = vpop.permute.xlu0 %8093
        %8095 = vrot.lane.b32.xlu0 %v7236, 126
        %v8096 = vpop.permute.xlu0 %8095
        %8097 = vrot.lane.b32.xlu0 %v7238, 126
        %v8098 = vpop.permute.xlu0 %8097
        %8099 = vrot.lane.b32.xlu0 %v7329, 126
        %v8100 = vpop.permute.xlu0 %8099
        %8101 = vrot.lane.b32.xlu0 %v7331, 126
        %v8102 = vpop.permute.xlu0 %8101
        %8103 = vrot.lane.b32.xlu0 %v7422, 126
        %v8104 = vpop.permute.xlu0 %8103
        %8105 = vrot.lane.b32.xlu0 %v7424, 126
        %v8106 = vpop.permute.xlu0 %8105
        %8107 = vrot.lane.b32.xlu0 %v7502, 126
        %v8108 = vpop.permute.xlu0 %8107
        %8109 = vrot.lane.b32.xlu0 %v6777, 126
        %v8110 = vpop.permute.xlu0 %8109
        %8111 = vrot.lane.b32.xlu0 %v6779, 126
        %v8112 = vpop.permute.xlu0 %8111
        %8113 = vrot.lane.b32.xlu0 %v6870, 126
        %v8114 = vpop.permute.xlu0 %8113
        %8115 = vrot.lane.b32.xlu0 %v6872, 126
        %v8116 = vpop.permute.xlu0 %8115
        %8117 = vrot.lane.b32.xlu0 %v6963, 126
        %v8118 = vpop.permute.xlu0 %8117
        %8119 = vrot.lane.b32.xlu0 %v6965, 126
        %v8120 = vpop.permute.xlu0 %8119
        %8121 = vrot.lane.b32.xlu0 %v7056, 126
        %v8122 = vpop.permute.xlu0 %8121
        %8123 = vrot.lane.b32.xlu0 %v7058, 126
        %v8124 = vpop.permute.xlu0 %8123
        %8125 = vrot.lane.b32.xlu0 %v7149, 126
        %v8126 = vpop.permute.xlu0 %8125
        %8127 = vrot.lane.b32.xlu0 %v7151, 126
        %v8128 = vpop.permute.xlu0 %8127
        %8129 = vrot.lane.b32.xlu0 %v7242, 126
        %v8130 = vpop.permute.xlu0 %8129
        %8131 = vrot.lane.b32.xlu0 %v7244, 126
        %v8132 = vpop.permute.xlu0 %8131
        %8133 = vrot.lane.b32.xlu0 %v7335, 126
        %v8134 = vpop.permute.xlu0 %8133
        %8135 = vrot.lane.b32.xlu0 %v7337, 126
        %v8136 = vpop.permute.xlu0 %8135
        %8137 = vrot.lane.b32.xlu0 %v7428, 126
        %v8138 = vpop.permute.xlu0 %8137
        %8139 = vrot.lane.b32.xlu0 %v7430, 126
        %v8140 = vpop.permute.xlu0 %8139
        %8141 = vrot.lane.b32.xlu0 %v7507, 126
        %v8142 = vpop.permute.xlu0 %8141
        %8143 = vrot.lane.b32.xlu0 %v6781, 126
        %v8144 = vpop.permute.xlu0 %8143
        %8145 = vrot.lane.b32.xlu0 %v6783, 126
        %v8146 = vpop.permute.xlu0 %8145
        %8147 = vrot.lane.b32.xlu0 %v6874, 126
        %v8148 = vpop.permute.xlu0 %8147
        %8149 = vrot.lane.b32.xlu0 %v6876, 126
        %v8150 = vpop.permute.xlu0 %8149
        %8151 = vrot.lane.b32.xlu0 %v6967, 126
        %v8152 = vpop.permute.xlu0 %8151
        %8153 = vrot.lane.b32.xlu0 %v6969, 126
        %v8154 = vpop.permute.xlu0 %8153
        %8155 = vrot.lane.b32.xlu0 %v7060, 126
        %v8156 = vpop.permute.xlu0 %8155
        %8157 = vrot.lane.b32.xlu0 %v7062, 126
        %v8158 = vpop.permute.xlu0 %8157
        %8159 = vrot.lane.b32.xlu0 %v7153, 126
        %v8160 = vpop.permute.xlu0 %8159
        %8161 = vrot.lane.b32.xlu0 %v7155, 126
        %v8162 = vpop.permute.xlu0 %8161
        %8163 = vrot.lane.b32.xlu0 %v7246, 126
        %v8164 = vpop.permute.xlu0 %8163
        %8165 = vrot.lane.b32.xlu0 %v7248, 126
        %v8166 = vpop.permute.xlu0 %8165
        %8167 = vrot.lane.b32.xlu0 %v7339, 126
        %v8168 = vpop.permute.xlu0 %8167
        %8169 = vrot.lane.b32.xlu0 %v7341, 126
        %v8170 = vpop.permute.xlu0 %8169
        %8171 = vrot.lane.b32.xlu0 %v7432, 126
        %v8172 = vpop.permute.xlu0 %8171
        %8173 = vrot.lane.b32.xlu0 %v7434, 126
        %v8174 = vpop.permute.xlu0 %8173
        %8175 = vrot.lane.b32.xlu0 %v7510, 126
        %v8176 = vpop.permute.xlu0 %8175
        %v8177 = vsel %vm803, %v8042, %v8044
        %v8178 = vsel %vm803, %v8044, %v8046
        %v8179 = vsel %vm803, %v8046, %v8048
        %v8180 = vsel %vm803, %v8048, %v8050
        %v8181 = vsel %vm803, %v8050, %v8052
        %v8182 = vsel %vm803, %v8052, %v8054
        %v8183 = vsel %vm803, %v8054, %v8056
        %v8184 = vsel %vm803, %v8056, %v8058
        %v8185 = vsel %vm803, %v8058, %v8060
        %v8186 = vsel %vm803, %v8060, %v8062
        %v8187 = vsel %vm803, %v8062, %v8064
        %v8188 = vsel %vm803, %v8064, %v8066
        %v8189 = vsel %vm803, %v8066, %v8068
        %v8190 = vsel %vm803, %v8068, %v8070
        %v8191 = vsel %vm803, %v8070, %v8072
        %v8192 = vsel %vm803, %v8072, %v8074
        %v8193 = vsel %vm803, %v8076, %v8078
        %v8194 = vsel %vm803, %v8078, %v8080
        %v8195 = vsel %vm803, %v8080, %v8082
        %v8196 = vsel %vm803, %v8082, %v8084
        %v8197 = vsel %vm803, %v8084, %v8086
        %v8198 = vsel %vm803, %v8086, %v8088
        %v8199 = vsel %vm803, %v8088, %v8090
        %v8200 = vsel %vm803, %v8090, %v8092
        %v8201 = vsel %vm803, %v8092, %v8094
        %v8202 = vsel %vm803, %v8094, %v8096
        %v8203 = vsel %vm803, %v8096, %v8098
        %v8204 = vsel %vm803, %v8098, %v8100
        %v8205 = vsel %vm803, %v8100, %v8102
        %v8206 = vsel %vm803, %v8102, %v8104
        %v8207 = vsel %vm803, %v8104, %v8106
        %v8208 = vsel %vm803, %v8106, %v8108
        %v8209 = vsel %vm803, %v8110, %v8112
        %v8210 = vsel %vm803, %v8112, %v8114
        %v8211 = vsel %vm803, %v8114, %v8116
        %v8212 = vsel %vm803, %v8116, %v8118
        %v8213 = vsel %vm803, %v8118, %v8120
        %v8214 = vsel %vm803, %v8120, %v8122
        %v8215 = vsel %vm803, %v8122, %v8124
        %v8216 = vsel %vm803, %v8124, %v8126
        %v8217 = vsel %vm803, %v8126, %v8128
        %v8218 = vsel %vm803, %v8128, %v8130
        %v8219 = vsel %vm803, %v8130, %v8132
        %v8220 = vsel %vm803, %v8132, %v8134
        %v8221 = vsel %vm803, %v8134, %v8136
        %v8222 = vsel %vm803, %v8136, %v8138
        %v8223 = vsel %vm803, %v8138, %v8140
        %v8224 = vsel %vm803, %v8140, %v8142
        %v8225 = vsel %vm803, %v8144, %v8146
        %v8226 = vsel %vm803, %v8146, %v8148
        %v8227 = vsel %vm803, %v8148, %v8150
        %v8228 = vsel %vm803, %v8150, %v8152
        %v8229 = vsel %vm803, %v8152, %v8154
        %v8230 = vsel %vm803, %v8154, %v8156
        %v8231 = vsel %vm803, %v8156, %v8158
        %v8232 = vsel %vm803, %v8158, %v8160
        %v8233 = vsel %vm803, %v8160, %v8162
        %v8234 = vsel %vm803, %v8162, %v8164
        %v8235 = vsel %vm803, %v8164, %v8166
        %v8236 = vsel %vm803, %v8166, %v8168
        %v8237 = vsel %vm803, %v8168, %v8170
        %v8238 = vsel %vm803, %v8170, %v8172
        %v8239 = vsel %vm803, %v8172, %v8174
        %v8240 = vsel %vm803, %v8174, %v8176
        %v8305 = vadd.f32 %v7909, %v8177
        %v8306 = vadd.f32 %v7910, %v8178
        %v8307 = vadd.f32 %v7911, %v8179
        %v8308 = vadd.f32 %v7912, %v8180
        %v8309 = vadd.f32 %v7913, %v8181
        %v8310 = vadd.f32 %v7914, %v8182
        %v8311 = vadd.f32 %v7915, %v8183
        %v8312 = vadd.f32 %v7916, %v8184
        %v8313 = vadd.f32 %v7917, %v8185
        %v8314 = vadd.f32 %v7918, %v8186
        %v8315 = vadd.f32 %v7919, %v8187
        %v8316 = vadd.f32 %v7920, %v8188
        %v8317 = vadd.f32 %v7921, %v8189
        %v8318 = vadd.f32 %v7922, %v8190
        %v8319 = vadd.f32 %v7923, %v8191
        %v8320 = vadd.f32 %v7924, %v8192
        %v8321 = vadd.f32 %v7925, %v8193
        %v8322 = vadd.f32 %v7926, %v8194
        %v8323 = vadd.f32 %v7927, %v8195
        %v8324 = vadd.f32 %v7928, %v8196
        %v8325 = vadd.f32 %v7929, %v8197
        %v8326 = vadd.f32 %v7930, %v8198
        %v8327 = vadd.f32 %v7931, %v8199
        %v8328 = vadd.f32 %v7932, %v8200
        %v8329 = vadd.f32 %v7933, %v8201
        %v8330 = vadd.f32 %v7934, %v8202
        %v8331 = vadd.f32 %v7935, %v8203
        %v8332 = vadd.f32 %v7936, %v8204
        %v8333 = vadd.f32 %v7937, %v8205
        %v8334 = vadd.f32 %v7938, %v8206
        %v8335 = vadd.f32 %v7939, %v8207
        %v8336 = vadd.f32 %v7940, %v8208
        %v8337 = vadd.f32 %v7941, %v8209
        %v8338 = vadd.f32 %v7942, %v8210
        %v8339 = vadd.f32 %v7943, %v8211
        %v8340 = vadd.f32 %v7944, %v8212
        %v8341 = vadd.f32 %v7945, %v8213
        %v8342 = vadd.f32 %v7946, %v8214
        %v8343 = vadd.f32 %v7947, %v8215
        %v8344 = vadd.f32 %v7948, %v8216
        %v8345 = vadd.f32 %v7949, %v8217
        %v8346 = vadd.f32 %v7950, %v8218
        %v8347 = vadd.f32 %v7951, %v8219
        %v8348 = vadd.f32 %v7952, %v8220
        %v8349 = vadd.f32 %v7953, %v8221
        %v8350 = vadd.f32 %v7954, %v8222
        %v8351 = vadd.f32 %v7955, %v8223
        %v8352 = vadd.f32 %v7956, %v8224
        %v8353 = vadd.f32 %v7957, %v8225
        %v8354 = vadd.f32 %v7958, %v8226
        %v8355 = vadd.f32 %v7959, %v8227
        %v8356 = vadd.f32 %v7960, %v8228
        %v8357 = vadd.f32 %v7961, %v8229
        %v8358 = vadd.f32 %v7962, %v8230
        %v8359 = vadd.f32 %v7963, %v8231
        %v8360 = vadd.f32 %v7964, %v8232
        %v8361 = vadd.f32 %v7965, %v8233
        %v8362 = vadd.f32 %v7966, %v8234
        %v8363 = vadd.f32 %v7967, %v8235
        %v8364 = vadd.f32 %v7968, %v8236
        %v8365 = vadd.f32 %v7969, %v8237
        %v8366 = vadd.f32 %v7970, %v8238
        %v8367 = vadd.f32 %v7971, %v8239
        %v8368 = vadd.f32 %v7972, %v8240
        %v8369 = vld [vmem:[%s6] sm:$0xff]
        %v8370 = vld [vmem:[%s6 + $0x8] sm:$0xff]
        %v8371 = vld [vmem:[%s6 + $0x10] sm:$0xff]
        %v8372 = vld [vmem:[%s6 + $0x18] sm:$0xff]
        %8374 = vset.pattern.permute.xlu0 0
        %8375 = vperm.xlu0 %8374, %v8369
        %v8376 = vpop.permute.xlu0 %8375
        %8379 = vset.pattern.permute.xlu0 0
        %8380 = vperm.xlu0 %8379, %v8370
        %v8381 = vpop.permute.xlu0 %8380
        %8384 = vset.pattern.permute.xlu0 0
        %8385 = vperm.xlu0 %8384, %v8371
        %v8386 = vpop.permute.xlu0 %8385
        %8389 = vset.pattern.permute.xlu0 0
        %8390 = vperm.xlu0 %8389, %v8372
        %v8391 = vpop.permute.xlu0 %8390
        %v8393 = vadd.f32 %v8305, %v8376
        %v8394 = vadd.f32 %v8306, %v8376
        %v8395 = vadd.f32 %v8307, %v8376
        %v8396 = vadd.f32 %v8308, %v8376
        %v8397 = vadd.f32 %v8309, %v8376
        %v8398 = vadd.f32 %v8310, %v8376
        %v8399 = vadd.f32 %v8311, %v8376
        %v8400 = vadd.f32 %v8312, %v8376
        %v8401 = vadd.f32 %v8313, %v8376
        %v8402 = vadd.f32 %v8314, %v8376
        %v8403 = vadd.f32 %v8315, %v8376
        %v8404 = vadd.f32 %v8316, %v8376
        %v8405 = vadd.f32 %v8317, %v8376
        %v8406 = vadd.f32 %v8318, %v8376
        %v8407 = vadd.f32 %v8319, %v8376
        %v8408 = vadd.f32 %v8320, %v8376
        %v8409 = vadd.f32 %v8321, %v8381
        %v8410 = vadd.f32 %v8322, %v8381
        %v8411 = vadd.f32 %v8323, %v8381
        %v8412 = vadd.f32 %v8324, %v8381
        %v8413 = vadd.f32 %v8325, %v8381
        %v8414 = vadd.f32 %v8326, %v8381
        %v8415 = vadd.f32 %v8327, %v8381
        %v8416 = vadd.f32 %v8328, %v8381
        %v8417 = vadd.f32 %v8329, %v8381
        %v8418 = vadd.f32 %v8330, %v8381
        %v8419 = vadd.f32 %v8331, %v8381
        %v8420 = vadd.f32 %v8332, %v8381
        %v8421 = vadd.f32 %v8333, %v8381
        %v8422 = vadd.f32 %v8334, %v8381
        %v8423 = vadd.f32 %v8335, %v8381
        %v8424 = vadd.f32 %v8336, %v8381
        %v8425 = vadd.f32 %v8337, %v8386
        %v8426 = vadd.f32 %v8338, %v8386
        %v8427 = vadd.f32 %v8339, %v8386
        %v8428 = vadd.f32 %v8340, %v8386
        %v8429 = vadd.f32 %v8341, %v8386
        %v8430 = vadd.f32 %v8342, %v8386
        %v8431 = vadd.f32 %v8343, %v8386
        %v8432 = vadd.f32 %v8344, %v8386
        %v8433 = vadd.f32 %v8345, %v8386
        %v8434 = vadd.f32 %v8346, %v8386
        %v8435 = vadd.f32 %v8347, %v8386
        %v8436 = vadd.f32 %v8348, %v8386
        %v8437 = vadd.f32 %v8349, %v8386
        %v8438 = vadd.f32 %v8350, %v8386
        %v8439 = vadd.f32 %v8351, %v8386
        %v8440 = vadd.f32 %v8352, %v8386
        %v8441 = vadd.f32 %v8353, %v8391
        %v8442 = vadd.f32 %v8354, %v8391
        %v8443 = vadd.f32 %v8355, %v8391
        %v8444 = vadd.f32 %v8356, %v8391
        %v8445 = vadd.f32 %v8357, %v8391
        %v8446 = vadd.f32 %v8358, %v8391
        %v8447 = vadd.f32 %v8359, %v8391
        %v8448 = vadd.f32 %v8360, %v8391
        %v8449 = vadd.f32 %v8361, %v8391
        %v8450 = vadd.f32 %v8362, %v8391
        %v8451 = vadd.f32 %v8363, %v8391
        %v8452 = vadd.f32 %v8364, %v8391
        %v8453 = vadd.f32 %v8365, %v8391
        %v8454 = vadd.f32 %v8366, %v8391
        %v8455 = vadd.f32 %v8367, %v8391
        %v8456 = vadd.f32 %v8368, %v8391
        %v8457 = vmax.f32 %v8393, 0.0
        %v8458 = vmax.f32 %v8394, 0.0
        %v8459 = vmax.f32 %v8395, 0.0
        %v8460 = vmax.f32 %v8396, 0.0
        %v8461 = vmax.f32 %v8397, 0.0
        %v8462 = vmax.f32 %v8398, 0.0
        %v8463 = vmax.f32 %v8399, 0.0
        %v8464 = vmax.f32 %v8400, 0.0
        %v8465 = vmax.f32 %v8401, 0.0
        %v8466 = vmax.f32 %v8402, 0.0
        %v8467 = vmax.f32 %v8403, 0.0
        %v8468 = vmax.f32 %v8404, 0.0
        %v8469 = vmax.f32 %v8405, 0.0
        %v8470 = vmax.f32 %v8406, 0.0
        %v8471 = vmax.f32 %v8407, 0.0
        %v8472 = vmax.f32 %v8408, 0.0
        %v8473 = vmax.f32 %v8409, 0.0
        %v8474 = vmax.f32 %v8410, 0.0
        %v8475 = vmax.f32 %v8411, 0.0
        %v8476 = vmax.f32 %v8412, 0.0
        %v8477 = vmax.f32 %v8413, 0.0
        %v8478 = vmax.f32 %v8414, 0.0
        %v8479 = vmax.f32 %v8415, 0.0
        %v8480 = vmax.f32 %v8416, 0.0
        %v8481 = vmax.f32 %v8417, 0.0
        %v8482 = vmax.f32 %v8418, 0.0
        %v8483 = vmax.f32 %v8419, 0.0
        %v8484 = vmax.f32 %v8420, 0.0
        %v8485 = vmax.f32 %v8421, 0.0
        %v8486 = vmax.f32 %v8422, 0.0
        %v8487 = vmax.f32 %v8423, 0.0
        %v8488 = vmax.f32 %v8424, 0.0
        %v8489 = vmax.f32 %v8425, 0.0
        %v8490 = vmax.f32 %v8426, 0.0
        %v8491 = vmax.f32 %v8427, 0.0
        %v8492 = vmax.f32 %v8428, 0.0
        %v8493 = vmax.f32 %v8429, 0.0
        %v8494 = vmax.f32 %v8430, 0.0
        %v8495 = vmax.f32 %v8431, 0.0
        %v8496 = vmax.f32 %v8432, 0.0
        %v8497 = vmax.f32 %v8433, 0.0
        %v8498 = vmax.f32 %v8434, 0.0
        %v8499 = vmax.f32 %v8435, 0.0
        %v8500 = vmax.f32 %v8436, 0.0
        %v8501 = vmax.f32 %v8437, 0.0
        %v8502 = vmax.f32 %v8438, 0.0
        %v8503 = vmax.f32 %v8439, 0.0
        %v8504 = vmax.f32 %v8440, 0.0
        %v8505 = vmax.f32 %v8441, 0.0
        %v8506 = vmax.f32 %v8442, 0.0
        %v8507 = vmax.f32 %v8443, 0.0
        %v8508 = vmax.f32 %v8444, 0.0
        %v8509 = vmax.f32 %v8445, 0.0
        %v8510 = vmax.f32 %v8446, 0.0
        %v8511 = vmax.f32 %v8447, 0.0
        %v8512 = vmax.f32 %v8448, 0.0
        %v8513 = vmax.f32 %v8449, 0.0
        %v8514 = vmax.f32 %v8450, 0.0
        %v8515 = vmax.f32 %v8451, 0.0
        %v8516 = vmax.f32 %v8452, 0.0
        %v8517 = vmax.f32 %v8453, 0.0
        %v8518 = vmax.f32 %v8454, 0.0
        %v8519 = vmax.f32 %v8455, 0.0
        %v8520 = vmax.f32 %v8456, 0.0
        %v8521 = vld [vmem:[%s7] sm:$0xff]
        %v8522 = vld [vmem:[%s7 + $0x8] sm:$0xff]
        %v8523 = vld [vmem:[%s7 + $0x10] sm:$0xff]
        %v8524 = vld [vmem:[%s7 + $0x18] sm:$0xff]
        %8526 = vset.pattern.permute.xlu0 0
        %8527 = vperm.xlu0 %8526, %v8521
        %v8528 = vpop.permute.xlu0 %8527
        %8531 = vset.pattern.permute.xlu0 0
        %8532 = vperm.xlu0 %8531, %v8522
        %v8533 = vpop.permute.xlu0 %8532
        %8536 = vset.pattern.permute.xlu0 0
        %8537 = vperm.xlu0 %8536, %v8523
        %v8538 = vpop.permute.xlu0 %8537
        %8541 = vset.pattern.permute.xlu0 0
        %8542 = vperm.xlu0 %8541, %v8524
        %v8543 = vpop.permute.xlu0 %8542
        %v8545 = vmul.f32 %v8457, %v8528
        %v8546 = vmul.f32 %v8458, %v8528
        %v8547 = vmul.f32 %v8459, %v8528
        %v8548 = vmul.f32 %v8460, %v8528
        %v8549 = vmul.f32 %v8461, %v8528
        %v8550 = vmul.f32 %v8462, %v8528
        %v8551 = vmul.f32 %v8463, %v8528
        %v8552 = vmul.f32 %v8464, %v8528
        %v8553 = vmul.f32 %v8465, %v8528
        %v8554 = vmul.f32 %v8466, %v8528
        %v8555 = vmul.f32 %v8467, %v8528
        %v8556 = vmul.f32 %v8468, %v8528
        %v8557 = vmul.f32 %v8469, %v8528
        %v8558 = vmul.f32 %v8470, %v8528
        %v8559 = vmul.f32 %v8471, %v8528
        %v8560 = vmul.f32 %v8472, %v8528
        %v8561 = vmul.f32 %v8473, %v8533
        %v8562 = vmul.f32 %v8474, %v8533
        %v8563 = vmul.f32 %v8475, %v8533
        %v8564 = vmul.f32 %v8476, %v8533
        %v8565 = vmul.f32 %v8477, %v8533
        %v8566 = vmul.f32 %v8478, %v8533
        %v8567 = vmul.f32 %v8479, %v8533
        %v8568 = vmul.f32 %v8480, %v8533
        %v8569 = vmul.f32 %v8481, %v8533
        %v8570 = vmul.f32 %v8482, %v8533
        %v8571 = vmul.f32 %v8483, %v8533
        %v8572 = vmul.f32 %v8484, %v8533
        %v8573 = vmul.f32 %v8485, %v8533
        %v8574 = vmul.f32 %v8486, %v8533
        %v8575 = vmul.f32 %v8487, %v8533
        %v8576 = vmul.f32 %v8488, %v8533
        %v8577 = vmul.f32 %v8489, %v8538
        %v8578 = vmul.f32 %v8490, %v8538
        %v8579 = vmul.f32 %v8491, %v8538
        %v8580 = vmul.f32 %v8492, %v8538
        %v8581 = vmul.f32 %v8493, %v8538
        %v8582 = vmul.f32 %v8494, %v8538
        %v8583 = vmul.f32 %v8495, %v8538
        %v8584 = vmul.f32 %v8496, %v8538
        %v8585 = vmul.f32 %v8497, %v8538
        %v8586 = vmul.f32 %v8498, %v8538
        %v8587 = vmul.f32 %v8499, %v8538
        %v8588 = vmul.f32 %v8500, %v8538
        %v8589 = vmul.f32 %v8501, %v8538
        %v8590 = vmul.f32 %v8502, %v8538
        %v8591 = vmul.f32 %v8503, %v8538
        %v8592 = vmul.f32 %v8504, %v8538
        %v8593 = vmul.f32 %v8505, %v8543
        %v8594 = vmul.f32 %v8506, %v8543
        %v8595 = vmul.f32 %v8507, %v8543
        %v8596 = vmul.f32 %v8508, %v8543
        %v8597 = vmul.f32 %v8509, %v8543
        %v8598 = vmul.f32 %v8510, %v8543
        %v8599 = vmul.f32 %v8511, %v8543
        %v8600 = vmul.f32 %v8512, %v8543
        %v8601 = vmul.f32 %v8513, %v8543
        %v8602 = vmul.f32 %v8514, %v8543
        %v8603 = vmul.f32 %v8515, %v8543
        %v8604 = vmul.f32 %v8516, %v8543
        %v8605 = vmul.f32 %v8517, %v8543
        %v8606 = vmul.f32 %v8518, %v8543
        %v8607 = vmul.f32 %v8519, %v8543
        %v8608 = vmul.f32 %v8520, %v8543
        %v8609 = vadd.f32 %v8545, %v8561
        %v8610 = vadd.f32 %v8609, %v8577
        %v8611 = vadd.f32 %v8610, %v8593
        %v8612 = vrot.slane %v8611, 4
        %v8613 = vadd.f32 %v8611, %v8612
        %v8614 = vrot.slane %v8613, 2
        %v8615 = vadd.f32 %v8613, %v8614
        %v8616 = vrot.slane %v8615, 1
        %v8617 = vadd.f32 %v8615, %v8616
        %v8618 = vadd.f32 %v8546, %v8562
        %v8619 = vadd.f32 %v8618, %v8578
        %v8620 = vadd.f32 %v8619, %v8594
        %v8621 = vrot.slane %v8620, 4
        %v8622 = vadd.f32 %v8620, %v8621
        %v8623 = vrot.slane %v8622, 2
        %v8624 = vadd.f32 %v8622, %v8623
        %v8625 = vrot.slane %v8624, 1
        %v8626 = vadd.f32 %v8624, %v8625
        %v8627 = vadd.f32 %v8547, %v8563
        %v8628 = vadd.f32 %v8627, %v8579
        %v8629 = vadd.f32 %v8628, %v8595
        %v8630 = vrot.slane %v8629, 4
        %v8631 = vadd.f32 %v8629, %v8630
        %v8632 = vrot.slane %v8631, 2
        %v8633 = vadd.f32 %v8631, %v8632
        %v8634 = vrot.slane %v8633, 1
        %v8635 = vadd.f32 %v8633, %v8634
        %v8636 = vadd.f32 %v8548, %v8564
        %v8637 = vadd.f32 %v8636, %v8580
        %v8638 = vadd.f32 %v8637, %v8596
        %v8639 = vrot.slane %v8638, 4
        %v8640 = vadd.f32 %v8638, %v8639
        %v8641 = vrot.slane %v8640, 2
        %v8642 = vadd.f32 %v8640, %v8641
        %v8643 = vrot.slane %v8642, 1
        %v8644 = vadd.f32 %v8642, %v8643
        %v8645 = vadd.f32 %v8549, %v8565
        %v8646 = vadd.f32 %v8645, %v8581
        %v8647 = vadd.f32 %v8646, %v8597
        %v8648 = vrot.slane %v8647, 4
        %v8649 = vadd.f32 %v8647, %v8648
        %v8650 = vrot.slane %v8649, 2
        %v8651 = vadd.f32 %v8649, %v8650
        %v8652 = vrot.slane %v8651, 1
        %v8653 = vadd.f32 %v8651, %v8652
        %v8654 = vadd.f32 %v8550, %v8566
        %v8655 = vadd.f32 %v8654, %v8582
        %v8656 = vadd.f32 %v8655, %v8598
        %v8657 = vrot.slane %v8656, 4
        %v8658 = vadd.f32 %v8656, %v8657
        %v8659 = vrot.slane %v8658, 2
        %v8660 = vadd.f32 %v8658, %v8659
        %v8661 = vrot.slane %v8660, 1
        %v8662 = vadd.f32 %v8660, %v8661
        %v8663 = vadd.f32 %v8551, %v8567
        %v8664 = vadd.f32 %v8663, %v8583
        %v8665 = vadd.f32 %v8664, %v8599
        %v8666 = vrot.slane %v8665, 4
        %v8667 = vadd.f32 %v8665, %v8666
        %v8668 = vrot.slane %v8667, 2
        %v8669 = vadd.f32 %v8667, %v8668
        %v8670 = vrot.slane %v8669, 1
        %v8671 = vadd.f32 %v8669, %v8670
        %v8672 = vadd.f32 %v8552, %v8568
        %v8673 = vadd.f32 %v8672, %v8584
        %v8674 = vadd.f32 %v8673, %v8600
        %v8675 = vrot.slane %v8674, 4
        %v8676 = vadd.f32 %v8674, %v8675
        %v8677 = vrot.slane %v8676, 2
        %v8678 = vadd.f32 %v8676, %v8677
        %v8679 = vrot.slane %v8678, 1
        %v8680 = vadd.f32 %v8678, %v8679
        %v8681 = vadd.f32 %v8553, %v8569
        %v8682 = vadd.f32 %v8681, %v8585
        %v8683 = vadd.f32 %v8682, %v8601
        %v8684 = vrot.slane %v8683, 4
        %v8685 = vadd.f32 %v8683, %v8684
        %v8686 = vrot.slane %v8685, 2
        %v8687 = vadd.f32 %v8685, %v8686
        %v8688 = vrot.slane %v8687, 1
        %v8689 = vadd.f32 %v8687, %v8688
        %v8690 = vadd.f32 %v8554, %v8570
        %v8691 = vadd.f32 %v8690, %v8586
        %v8692 = vadd.f32 %v8691, %v8602
        %v8693 = vrot.slane %v8692, 4
        %v8694 = vadd.f32 %v8692, %v8693
        %v8695 = vrot.slane %v8694, 2
        %v8696 = vadd.f32 %v8694, %v8695
        %v8697 = vrot.slane %v8696, 1
        %v8698 = vadd.f32 %v8696, %v8697
        %v8699 = vadd.f32 %v8555, %v8571
        %v8700 = vadd.f32 %v8699, %v8587
        %v8701 = vadd.f32 %v8700, %v8603
        %v8702 = vrot.slane %v8701, 4
        %v8703 = vadd.f32 %v8701, %v8702
        %v8704 = vrot.slane %v8703, 2
        %v8705 = vadd.f32 %v8703, %v8704
        %v8706 = vrot.slane %v8705, 1
        %v8707 = vadd.f32 %v8705, %v8706
        %v8708 = vadd.f32 %v8556, %v8572
        %v8709 = vadd.f32 %v8708, %v8588
        %v8710 = vadd.f32 %v8709, %v8604
        %v8711 = vrot.slane %v8710, 4
        %v8712 = vadd.f32 %v8710, %v8711
        %v8713 = vrot.slane %v8712, 2
        %v8714 = vadd.f32 %v8712, %v8713
        %v8715 = vrot.slane %v8714, 1
        %v8716 = vadd.f32 %v8714, %v8715
        %v8717 = vadd.f32 %v8557, %v8573
        %v8718 = vadd.f32 %v8717, %v8589
        %v8719 = vadd.f32 %v8718, %v8605
        %v8720 = vrot.slane %v8719, 4
        %v8721 = vadd.f32 %v8719, %v8720
        %v8722 = vrot.slane %v8721, 2
        %v8723 = vadd.f32 %v8721, %v8722
        %v8724 = vrot.slane %v8723, 1
        %v8725 = vadd.f32 %v8723, %v8724
        %v8726 = vadd.f32 %v8558, %v8574
        %v8727 = vadd.f32 %v8726, %v8590
        %v8728 = vadd.f32 %v8727, %v8606
        %v8729 = vrot.slane %v8728, 4
        %v8730 = vadd.f32 %v8728, %v8729
        %v8731 = vrot.slane %v8730, 2
        %v8732 = vadd.f32 %v8730, %v8731
        %v8733 = vrot.slane %v8732, 1
        %v8734 = vadd.f32 %v8732, %v8733
        %v8735 = vadd.f32 %v8559, %v8575
        %v8736 = vadd.f32 %v8735, %v8591
        %v8737 = vadd.f32 %v8736, %v8607
        %v8738 = vrot.slane %v8737, 4
        %v8739 = vadd.f32 %v8737, %v8738
        %v8740 = vrot.slane %v8739, 2
        %v8741 = vadd.f32 %v8739, %v8740
        %v8742 = vrot.slane %v8741, 1
        %v8743 = vadd.f32 %v8741, %v8742
        %v8744 = vadd.f32 %v8560, %v8576
        %v8745 = vadd.f32 %v8744, %v8592
        %v8746 = vadd.f32 %v8745, %v8608
        %v8747 = vrot.slane %v8746, 4
        %v8748 = vadd.f32 %v8746, %v8747
        %v8749 = vrot.slane %v8748, 2
        %v8750 = vadd.f32 %v8748, %v8749
        %v8751 = vrot.slane %v8750, 1
        %v8752 = vadd.f32 %v8750, %v8751
        %v8753 = vld [vmem:[#allocation7] sm:$0x1]
        %8755 = vset.pattern.permute.xlu0 0
        %8756 = vperm.xlu0 %8755, %v8753
        %v8757 = vpop.permute.xlu0 %8756
        %v8759 = vlaneseq
        %v8760 = vshrl.u32 %v8759, 7
        %v8761 = vsub.s32 0, %v8760
        %v8762 = vrot.slane %v8757, %v8761
        %v8763 = vadd.f32 %v8617, %v8762
        %v8764 = vadd.f32 %v8626, %v8762
        %v8765 = vadd.f32 %v8635, %v8762
        %v8766 = vadd.f32 %v8644, %v8762
        %v8767 = vadd.f32 %v8653, %v8762
        %v8768 = vadd.f32 %v8662, %v8762
        %v8769 = vadd.f32 %v8671, %v8762
        %v8770 = vadd.f32 %v8680, %v8762
        %v8771 = vadd.f32 %v8689, %v8762
        %v8772 = vadd.f32 %v8698, %v8762
        %v8773 = vadd.f32 %v8707, %v8762
        %v8774 = vadd.f32 %v8716, %v8762
        %v8775 = vadd.f32 %v8725, %v8762
        %v8776 = vadd.f32 %v8734, %v8762
        %v8777 = vadd.f32 %v8743, %v8762
        %v8778 = vadd.f32 %v8752, %v8762
        %v8795 = vcombine.low %v8763, %v8764
        %v8796 = vcombine.low %v8765, %v8766
        %v8797 = vcombine.low %v8767, %v8768
        %v8798 = vcombine.low %v8769, %v8770
        %v8800 = vunpack.c.l.s4 1966171168
        %v8801 = vunpack.c.0.s8 %v8800
        %v8802 = vlaneseq
        %v8803 = vshrl.u32 %v8802, 7
        %v8804 = vsub.s32 %v8801, %v8803
        %v8805 = vrot.slane %v8795, %v8804
        %v8807 = vunpack.c.l.s4 1966171168
        %v8808 = vunpack.c.0.s8 %v8807
        %v8809 = vlaneseq
        %v8810 = vshrl.u32 %v8809, 7
        %v8811 = vsub.s32 %v8808, %v8810
        %v8812 = vrot.slane %v8796, %v8811
        %v8814 = vunpack.c.l.s4 1966171168
        %v8815 = vunpack.c.0.s8 %v8814
        %v8816 = vlaneseq
        %v8817 = vshrl.u32 %v8816, 7
        %v8818 = vsub.s32 %v8815, %v8817
        %v8819 = vrot.slane %v8797, %v8818
        %v8821 = vunpack.c.l.s4 1966171168
        %v8822 = vunpack.c.0.s8 %v8821
        %v8823 = vlaneseq
        %v8824 = vshrl.u32 %v8823, 7
        %v8825 = vsub.s32 %v8822, %v8824
        %v8826 = vrot.slane %v8798, %v8825
        %v8827 = vcombine.low %v8805, %v8812
        %v8828 = vcombine.low %v8819, %v8826
        %v8830 = vunpack.c.l.s4 1966171168
        %v8831 = vunpack.c.0.s8 %v8830
        %v8832 = vlaneseq
        %v8833 = vshrl.u32 %v8832, 7
        %v8834 = vsub.s32 %v8831, %v8833
        %v8835 = vrot.slane %v8827, %v8834
        %v8837 = vunpack.c.l.s4 1966171168
        %v8838 = vunpack.c.0.s8 %v8837
        %v8839 = vlaneseq
        %v8840 = vshrl.u32 %v8839, 7
        %v8841 = vsub.s32 %v8838, %v8840
        %v8842 = vrot.slane %v8828, %v8841
        %v8843 = vcombine.low %v8835, %v8842
        %v8844 = vcombine.low %v8771, %v8772
        %v8845 = vcombine.low %v8773, %v8774
        %v8846 = vcombine.low %v8775, %v8776
        %v8847 = vcombine.low %v8777, %v8778
        %v8849 = vunpack.c.l.s4 1966171168
        %v8850 = vunpack.c.0.s8 %v8849
        %v8851 = vlaneseq
        %v8852 = vshrl.u32 %v8851, 7
        %v8853 = vsub.s32 %v8850, %v8852
        %v8854 = vrot.slane %v8844, %v8853
        %v8856 = vunpack.c.l.s4 1966171168
        %v8857 = vunpack.c.0.s8 %v8856
        %v8858 = vlaneseq
        %v8859 = vshrl.u32 %v8858, 7
        %v8860 = vsub.s32 %v8857, %v8859
        %v8861 = vrot.slane %v8845, %v8860
        %v8863 = vunpack.c.l.s4 1966171168
        %v8864 = vunpack.c.0.s8 %v8863
        %v8865 = vlaneseq
        %v8866 = vshrl.u32 %v8865, 7
        %v8867 = vsub.s32 %v8864, %v8866
        %v8868 = vrot.slane %v8846, %v8867
        %v8870 = vunpack.c.l.s4 1966171168
        %v8871 = vunpack.c.0.s8 %v8870
        %v8872 = vlaneseq
        %v8873 = vshrl.u32 %v8872, 7
        %v8874 = vsub.s32 %v8871, %v8873
        %v8875 = vrot.slane %v8847, %v8874
        %v8876 = vcombine.low %v8854, %v8861
        %v8877 = vcombine.low %v8868, %v8875
        %v8879 = vunpack.c.l.s4 1966171168
        %v8880 = vunpack.c.0.s8 %v8879
        %v8881 = vlaneseq
        %v8882 = vshrl.u32 %v8881, 7
        %v8883 = vsub.s32 %v8880, %v8882
        %v8884 = vrot.slane %v8876, %v8883
        %v8886 = vunpack.c.l.s4 1966171168
        %v8887 = vunpack.c.0.s8 %v8886
        %v8888 = vlaneseq
        %v8889 = vshrl.u32 %v8888, 7
        %v8890 = vsub.s32 %v8887, %v8889
        %v8891 = vrot.slane %v8877, %v8890
        %v8892 = vcombine.low %v8884, %v8891
        %8895 = vst [vmem:[%s280] sm:$0xff] %v8843
        %8896 = vst [vmem:[%s280 + $0x8] sm:$0xff] %v8892
        %s8897 = sand.u32 %s200, 1
        %s8898 = scalar_lea.sflag [#allocation9], %s8897
        %s8899 = sand.u32 %s200, 1
        %s8900 = smul.addr %s8899, 16
        %s8901 = scalar_lea.vmem [#allocation8], %s8900
        // Predicated region
        $region86: #{tpu_custom_call.1} parent=47 // pred_check
          %p8902 = pneg %p210
        $region87: #{tpu_custom_call.1} parent=47 // pred_check_branch
          %8904 = sbr.rel (%p8902) target = $region89
        $region88: #{tpu_custom_call.1} parent=47 // pred_region
          %s8905 = smul.u32 16, %s36
          %s8907 = ssub.s32 256, 256
          %8908 = vsyncadd %s8898, %s8907
          %s8909 = smul.addr %s35, 32
          %s8910 = sadd.s32 %s8905, %s8909
          %s8911 = smul.addr %s8910, 16
          %s8912 = scalar_lea.hbm %s9, %s8911
          %s8914 = sshll.u32 %s8901, 4
          %s8915 = int_to_ptr.vmem [resolvable:$true] %s8914
          %8917 = dma.vmem_to_hbm [thread:$0]  %s8915, 256, %s8912, %s8898
        $region89: #{tpu_custom_call.1} parent=47 // pred_fallthru
          _
      $region48: #{tpu_custom_call.1} parent=5 // pred_fallthru
        _
      %p8918 = scmp.le.s32.totalorder 2, %s26
      // Predicated region
      $region90: #{tpu_custom_call.1} parent=5 // pred_check
        %p8919 = pneg %p8918
      $region91: #{tpu_custom_call.1} parent=5 // pred_check_branch
        %8921 = sbr.rel (%p8919) target = $region93
      $region92: #{tpu_custom_call.1} parent=5 // pred_region
        %s8922 = ssub.s32 %s26, 2
        // Predicated region
        $region94: #{tpu_custom_call.1} parent=92 // pred_check
          %p8923 = pneg %p216
        $region95: #{tpu_custom_call.1} parent=92 // pred_check_branch
          %8925 = sbr.rel (%p8923) target = $region97
        $region96: #{tpu_custom_call.1} parent=92 // pred_region
          %s8926 = sand.u32 %s201, 1
          %s8927 = scalar_lea.sflag [#allocation9], %s8926
          %s8928 = sand.u32 %s201, 1
          %s8929 = smul.addr %s8928, 16
          %s8930 = scalar_lea.vmem [#allocation8], %s8929
          %8931 = dma.done %s8927, 256
        $region97: #{tpu_custom_call.1} parent=92 // pred_fallthru
          _
      $region93: #{tpu_custom_call.1} parent=5 // pred_fallthru
        _
    $region6: #{tpu_custom_call.1} parent=1 // loop_footer
      %s30 = sadd.s32 1, %s26
    $region7: #{tpu_custom_call.1} parent=1 // loop_footer_branch
      %25 = sbr.rel target = $region3
    $region8: #{tpu_custom_call.1} parent=1 // loop_exit
      _
    %8932 = vsyncpa [#allocation9], 1
    %s8933 = scalar_lea.sflag [#allocation9], 1
    %8934 = vsyncpa %s8933, 1
  %8935 = vsyncmov [#allocation4]
  %s8936 = vpop.sfrf %8935
  %p8937 = scmp.eq.s32.totalorder %s8936, 0
  %p8938 = pneg %p8937
  %8940 = shalt.err (%p8938)

</llo_original>
